<compile_context>
chip_gen: v6e
topology: v6e:2x2x1
jax: 0.10.0
libtpu: 0.0.40
codegen_flags: <defaults>
</compile_context>

<pallas_src>
import functools
import numpy as np

import jax
import jax.numpy as jnp
from jax.experimental import pallas as pl
from jax.experimental.pallas import tpu as pltpu


# ----------------------------------------------------------------------------
# Pallas kernels
# ----------------------------------------------------------------------------

def _stage_kernel(*refs, n_pre, C, k):
    """One FPN stage: up_conv(s) + SelectiveInceptionBlock, fully fused.

    refs layout (inputs):
      x [1,N,Cin], mask [1,N,1],
      n_pre * (W [ci,co], s [1,co], b [1,co])                # up-convs (+BN+ReLU)
      W1 [Cin,5C], s1,b1,r1 [1,5C]                           # branch pass 1 (wide)
      W2 [5C,5C],  s2,b2,r2 [1,5C]                           # branch pass 2 (block-diag)
      W3c [5,5C,C], s3c,b3c [5,1,C]                          # branch pass 3 (chunked)
      eca_w [5,k]  (SMEM)                                    # ECA channel-conv taps
      T1c [5,C,C], sT1,bT1 [5,1,C]                           # trans_layers layer 0
      T2c [5,C,C], sT2,bT2 [5,1,C]                           # trans_layers layer 1
      TFc [5,C,C], sTF,bTF [5,1,C]                           # trans_layer2 (col-chunked)
      out [1,N,C]
    """
    it = iter(refs)
    x_ref = next(it)
    m_ref = next(it)
    pre = [(next(it), next(it), next(it)) for _ in range(n_pre)]
    W1, s1, b1, r1 = next(it), next(it), next(it), next(it)
    W2, s2, b2, r2 = next(it), next(it), next(it), next(it)
    W3c, s3c, b3c = next(it), next(it), next(it)
    eca_w = next(it)
    T1c, sT1, bT1 = next(it), next(it), next(it)
    T2c, sT2, bT2 = next(it), next(it), next(it)
    TFc, sTF, bTF = next(it), next(it), next(it)
    o_ref = next(it)

    mask = m_ref[0]                       # [N, 1]
    h = x_ref[0]                          # [N, Cin]

    # fused up-convs: conv(k=1) + folded BN + ReLU
    for (wr, sr, br) in pre:
        h = jnp.dot(h, wr[...], preferred_element_type=jnp.float32)
        h = jnp.maximum(h * sr[...] + br[...], 0.0)

    def wide_pass(hv, wr, sr, br, rr):
        y = jnp.dot(hv, wr[...], preferred_element_type=jnp.float32)
        y = y * sr[...] + br[...]
        return jnp.where(rr[...] > 0.0, jnp.maximum(y, 0.0), y)

    # inception branches: two lane-dense [N, 5C] passes
    a = wide_pass(h, W1, s1, b1, r1)      # [N, 5C]
    a = wide_pass(a, W2, s2, b2, r2)      # [N, 5C]

    cnt = jnp.maximum(jnp.sum(mask), 1.0)
    lane = jax.lax.broadcasted_iota(jnp.int32, (1, C), 1)
    pad = (k - 1) // 2

    xg = []   # ECA-gated branch outputs   [N, C] each
    wl = []   # per-branch trans_layers outputs
    for bi in range(5):
        # last branch layer (identity for branches 0-2), no ReLU
        xb = jnp.dot(a, W3c[bi], preferred_element_type=jnp.float32)
        xb = xb * s3c[bi] + b3c[bi]                             # [N, C]

        # ECA: masked global avg pool -> k-tap channel conv -> sigmoid gate
        pooled = jnp.sum(xb * mask, axis=0, keepdims=True) / cnt  # [1, C]
        acc = jnp.zeros_like(pooled)
        for t in range(k):
            off = t - pad
            rolled = pooled if off == 0 else pltpu.roll(
                pooled, shift=(-off) % C, axis=1)
            valid = jnp.logical_and(lane + off >= 0, lane + off < C)
            acc = acc + eca_w[bi, t] * jnp.where(valid, rolled, 0.0)
        gate = jax.nn.sigmoid(acc)                              # [1, C]
        xgb = xb * gate
        xg.append(xgb)

        # trans_layers[bi]: conv1x1+BN+ReLU, conv1x1+BN
        t1 = jnp.dot(xgb, T1c[bi], preferred_element_type=jnp.float32)
        t1 = jnp.maximum(t1 * sT1[bi] + bT1[bi], 0.0)
        t2 = jnp.dot(t1, T2c[bi], preferred_element_type=jnp.float32)
        wl.append(t2 * sT2[bi] + bT2[bi])

    wsum = wl[0] + wl[1] + wl[2] + wl[3] + wl[4]                # [N, C]

    # trans_layer2 (C -> 5C), evaluated per output-branch chunk, then softmax
    # across the 5 branches per channel and branch-weighted fusion.
    logits = []
    for bi in range(5):
        lg = jnp.dot(wsum, TFc[bi], preferred_element_type=jnp.float32)
        logits.append(lg * sTF[bi] + bTF[bi])
    mx = logits[0]
    for lg in logits[1:]:
        mx = jnp.maximum(mx, lg)
    es = [jnp.exp(lg - mx) for lg in logits]
    den = es[0] + es[1] + es[2] + es[3] + es[4]
    num = (es[0] * xg[0] + es[1] * xg[1] + es[2] * xg[2]
           + es[3] * xg[3] + es[4] * xg[4])
    o_ref[0] = (num / den) * mask


def _transformer_kernel(x_ref, m_ref, mr_ref, wq_ref, wk_ref, wv_ref,
                        fw_ref, fs_ref, fb_ref, o_ref, *, L, C):
    """Masked single-head self-attention stack + conv_fuse, fused per batch."""
    mask = m_ref[0]                      # [N, 1]
    mrow = mr_ref[0]                     # [1, N]
    x = x_ref[0] * mask                  # [N, C]  (pad_sequence zero padding)
    scale = 1.0 / np.sqrt(C)

    cur = x
    outs = [x]
    for l in range(L):
        q = jnp.dot(cur, wq_ref[l], preferred_element_type=jnp.float32)
        k = jnp.dot(cur, wk_ref[l], preferred_element_type=jnp.float32)
        v = jnp.dot(cur, wv_ref[l], preferred_element_type=jnp.float32)
        s = jnp.dot(q, k.T, preferred_element_type=jnp.float32) * scale  # [N, N]
        s = jnp.where(mrow > 0.0, s, -1e30)
        s = s - jnp.max(s, axis=-1, keepdims=True)
        p = jnp.exp(s)
        p = p / jnp.sum(p, axis=-1, keepdims=True)
        o = jnp.dot(p, v, preferred_element_type=jnp.float32)
        cur = cur + o * mask
        outs.append(cur)

    # conv_fuse (1x1 Conv1d + BN + ReLU) applied to the channel-concat of
    # [x, layer1, layer2]: implemented as an accumulated matmul over weight
    # chunks so no in-kernel concatenation is needed.
    acc = jnp.dot(outs[0], fw_ref[0], preferred_element_type=jnp.float32)
    for j in range(1, L + 1):
        acc = acc + jnp.dot(outs[j], fw_ref[j], preferred_element_type=jnp.float32)
    o_ref[0] = jnp.maximum(acc * fs_ref[...] + fb_ref[...], 0.0)


# ----------------------------------------------------------------------------
# pallas_call wrappers
# ----------------------------------------------------------------------------

def fused_stage(x, mask, pre, sp):
    """x: [B, N, Cin] -> [B, N, C]; one pallas_call per FPN stage."""
    B, N, Cin = x.shape
    C = sp['C']
    arrays = []
    for (w, s, b) in pre:
        arrays += [w, s, b]
    arrays += [sp['W1'], sp['s1'], sp['b1'], sp['r1'],
               sp['W2'], sp['s2'], sp['b2'], sp['r2'],
               sp['W3c'], sp['s3c'], sp['b3c'],
               sp['eca_w'],
               sp['T1c'], sp['sT1'], sp['bT1'],
               sp['T2c'], sp['sT2'], sp['bT2'],
               sp['TFc'], sp['sTF'], sp['bTF']]

    in_specs = [pl.BlockSpec((1, N, Cin), lambda i: (i, 0, 0)),
                pl.BlockSpec((1, N, 1), lambda i: (i, 0, 0))]
    for a in arrays:
        if a is sp['eca_w']:
            in_specs.append(pl.BlockSpec(memory_space=pltpu.MemorySpace.SMEM))
        else:
            nd = a.ndim
            in_specs.append(pl.BlockSpec(a.shape, lambda i, nd=nd: (0,) * nd))

    kern = functools.partial(_stage_kernel, n_pre=len(pre), C=C, k=sp['k'])
    return pl.pallas_call(
        kern,
        out_shape=jax.ShapeDtypeStruct((B, N, C), jnp.float32),
        grid=(B,),
        in_specs=in_specs,
        out_specs=pl.BlockSpec((1, N, C), lambda i: (i, 0, 0)),
        compiler_params=pltpu.CompilerParams(dimension_semantics=("parallel",)),
    )(x, mask, *arrays)


def fused_transformer(x, mask, mask_row, wq, wk, wv, fw, fs, fb):
    """x: [B, N, C] -> [B, N, Cf]; transformer stack + conv_fuse in one call."""
    B, N, C = x.shape
    L = wq.shape[0]
    Cf = fw.shape[-1]
    kern = functools.partial(_transformer_kernel, L=L, C=C)
    return pl.pallas_call(
        kern,
        out_shape=jax.ShapeDtypeStruct((B, N, Cf), jnp.float32),
        grid=(B,),
        in_specs=[
            pl.BlockSpec((1, N, C), lambda i: (i, 0, 0)),
            pl.BlockSpec((1, N, 1), lambda i: (i, 0, 0)),
            pl.BlockSpec((1, 1, N), lambda i: (i, 0, 0)),
            pl.BlockSpec(wq.shape, lambda i: (0, 0, 0)),
            pl.BlockSpec(wk.shape, lambda i: (0, 0, 0)),
            pl.BlockSpec(wv.shape, lambda i: (0, 0, 0)),
            pl.BlockSpec(fw.shape, lambda i: (0, 0, 0)),
            pl.BlockSpec(fs.shape, lambda i: (0, 0)),
            pl.BlockSpec(fb.shape, lambda i: (0, 0)),
        ],
        out_specs=pl.BlockSpec((1, N, Cf), lambda i: (i, 0, 0)),
        compiler_params=pltpu.CompilerParams(dimension_semantics=("parallel",)),
    )(x, mask, mask_row, wq, wk, wv, fw, fs, fb)


def transloc3d_fpn_forward(features, mask, params):
    """features: [B, N, Cin] padded point features; mask: [B, N, 1]."""
    x = features
    for st in params['stages']:
        x = fused_stage(x, mask, st['pre'], st['sib'])
    mask_row = jnp.transpose(mask, (0, 2, 1))                   # [B, 1, N]
    y = fused_transformer(x, mask, mask_row,
                          params['wq'], params['wk'], params['wv'],
                          params['fw'], params['fs'], params['fb'])
    # final [B, N, Cout] -> [B, Cout, N] (tiny XLA transpose on the output slab)
    return jnp.transpose(y, (0, 2, 1))


# ----------------------------------------------------------------------------
# Deterministic parameter construction (BN folded to scale/shift, eval mode)
# ----------------------------------------------------------------------------

class KeyGen:
    def __init__(self, key):
        self.key = key

    def __call__(self):
        self.key, k = jax.random.split(self.key)
        return k


def linear_bn_params(kg, cin, cout, eps=1e-5):
    w = jax.random.normal(kg(), (cin, cout), jnp.float32) / np.sqrt(cin)
    gamma = jax.random.uniform(kg(), (cout,), jnp.float32, 0.5, 1.5)
    beta = jax.random.normal(kg(), (cout,), jnp.float32) * 0.1
    mean = jax.random.normal(kg(), (cout,), jnp.float32) * 0.1
    var = jax.random.uniform(kg(), (cout,), jnp.float32, 0.5, 1.5)
    scale = gamma / jnp.sqrt(var + eps)
    shift = beta - mean * scale
    return w, scale, shift


def make_pre(kg, cin, cout):
    w, s, b = linear_bn_params(kg, cin, cout)
    return (w, s.reshape(1, cout), b.reshape(1, cout))


def make_sib_params(kg, cin, C):
    def layer(ci, co):
        return linear_bn_params(kg, ci, co)

    eyeC = jnp.eye(C, dtype=jnp.float32)
    onesC = jnp.ones((C,), jnp.float32)
    zerosC = jnp.zeros((C,), jnp.float32)
    ident = (eyeC, onesC, zerosC)

    # first layer of each branch (conv1x1 identity if cin == C)
    f0 = ident if cin == C else layer(cin, C)
    firsts = [f0, layer(cin, C), layer(cin, C), layer(cin, C), layer(cin, C)]
    relus1 = [0.0, 1.0, 1.0, 1.0, 1.0]
    W1 = jnp.concatenate([f[0] for f in firsts], axis=1)              # [cin, 5C]
    s1 = jnp.concatenate([f[1] for f in firsts]).reshape(1, 5 * C)
    b1 = jnp.concatenate([f[2] for f in firsts]).reshape(1, 5 * C)
    r1 = jnp.concatenate(
        [jnp.full((C,), rv, jnp.float32) for rv in relus1]).reshape(1, 5 * C)

    # second layer (identity pass-through for branch 0)
    seconds = [ident, layer(C, C), layer(C, C), layer(C, C), layer(C, C)]
    relus2 = [0.0, 0.0, 0.0, 1.0, 1.0]
    W2 = jnp.zeros((5 * C, 5 * C), jnp.float32)
    for bi, (w, _, _) in enumerate(seconds):
        W2 = W2.at[bi * C:(bi + 1) * C, bi * C:(bi + 1) * C].set(w)
    s2 = jnp.concatenate([sv for (_, sv, _) in seconds]).reshape(1, 5 * C)
    b2 = jnp.concatenate([bv for (_, _, bv) in seconds]).reshape(1, 5 * C)
    r2 = jnp.concatenate(
        [jnp.full((C,), rv, jnp.float32) for rv in relus2]).reshape(1, 5 * C)

    # third layer (identity for branches 0-2), column-chunked, no ReLU
    thirds = [ident, ident, ident, layer(C, C), layer(C, C)]
    W3c = jnp.zeros((5, 5 * C, C), jnp.float32)
    for bi, (w, _, _) in enumerate(thirds):
        W3c = W3c.at[bi, bi * C:(bi + 1) * C, :].set(w)
    s3c = jnp.stack([sv.reshape(1, C) for (_, sv, _) in thirds], axis=0)
    b3c = jnp.stack([bv.reshape(1, C) for (_, _, bv) in thirds], axis=0)

    # ECA channel-conv taps (one k-tap filter per branch)
    t = int(abs((np.log2(C) + 1) / 2))
    k = t if t % 2 else t + 1
    eca_w = jax.random.normal(kg(), (5, k), jnp.float32) * 0.5

    # trans_layers: per branch, conv1x1+BN+ReLU then conv1x1+BN
    tl = [(layer(C, C), layer(C, C)) for _ in range(5)]
    T1c = jnp.stack([tl[bi][0][0] for bi in range(5)], axis=0)
    sT1 = jnp.stack([tl[bi][0][1].reshape(1, C) for bi in range(5)], axis=0)
    bT1 = jnp.stack([tl[bi][0][2].reshape(1, C) for bi in range(5)], axis=0)
    T2c = jnp.stack([tl[bi][1][0] for bi in range(5)], axis=0)
    sT2 = jnp.stack([tl[bi][1][1].reshape(1, C) for bi in range(5)], axis=0)
    bT2 = jnp.stack([tl[bi][1][2].reshape(1, C) for bi in range(5)], axis=0)

    # trans_layer2: C -> 5C, chunked by output branch (sliced at build time)
    wt2, st2, bt2 = layer(C, 5 * C)
    TFc = jnp.stack([wt2[:, bi * C:(bi + 1) * C] for bi in range(5)], axis=0)
    sTF = jnp.stack([st2[bi * C:(bi + 1) * C].reshape(1, C) for bi in range(5)], axis=0)
    bTF = jnp.stack([bt2[bi * C:(bi + 1) * C].reshape(1, C) for bi in range(5)], axis=0)

    return dict(C=C, k=k, W1=W1, s1=s1, b1=b1, r1=r1, W2=W2, s2=s2, b2=b2, r2=r2,
                W3c=W3c, s3c=s3c, b3c=b3c, eca_w=eca_w,
                T1c=T1c, sT1=sT1, bT1=bT1, T2c=T2c, sT2=sT2, bT2=bT2,
                TFc=TFc, sTF=sTF, bTF=bTF)


def build_params(kg):
    in_ch = [4, 16, 32]
    out_ch = [16, 32, 32]
    global_channels = 32
    num_attn_layers = 2
    backbone_out = 64

    stages = []
    # stage 0: up_conv0 (4->16) + up_conv1 (16->32) + SIB(32 -> in_ch[2])
    pre0 = [make_pre(kg, in_ch[0], out_ch[0]), make_pre(kg, in_ch[1], out_ch[1])]
    stages.append({'pre': pre0, 'sib': make_sib_params(kg, out_ch[1], in_ch[2])})
    # stage 1: up_conv2 (32->32) + SIB(32 -> global_channels)
    pre1 = [make_pre(kg, in_ch[2], out_ch[2])]
    stages.append({'pre': pre1, 'sib': make_sib_params(kg, out_ch[2], global_channels)})

    # transformer QKV projections (minimal masked single-head MHSA stack)
    C = global_channels
    wqs, wks, wvs = [], [], []
    for _ in range(num_attn_layers):
        wqs.append(jax.random.normal(kg(), (C, C), jnp.float32) / np.sqrt(C))
        wks.append(jax.random.normal(kg(), (C, C), jnp.float32) / np.sqrt(C))
        wvs.append(jax.random.normal(kg(), (C, C), jnp.float32) / np.sqrt(C))
    wq = jnp.stack(wqs, axis=0)
    wk = jnp.stack(wks, axis=0)
    wv = jnp.stack(wvs, axis=0)

    # conv_fuse: 1x1 Conv1d + BN + ReLU over C*(L+1) -> backbone_out
    wf, sf, bf = linear_bn_params(kg, C * (num_attn_layers + 1), backbone_out)
    fw = wf.reshape(num_attn_layers + 1, C, backbone_out)
    fs = sf.reshape(1, backbone_out)
    fb = bf.reshape(1, backbone_out)

    return {'stages': stages, 'wq': wq, 'wk': wk, 'wv': wv,
            'fw': fw, 'fs': fs, 'fb': fb, 'out_channels': backbone_out}


# ----------------------------------------------------------------------------
# Main
# ----------------------------------------------------------------------------

if __name__ == "__main__":
    B, N, IN_FEAT = 2, 64, 4
    kg = KeyGen(jax.random.PRNGKey(0))

    # synthetic sparse batch: per-batch variable point counts, padded to N
    lengths = jnp.array([N, N - 16], dtype=jnp.int32)
    mask = (jnp.arange(N)[None, :] < lengths[:, None]).astype(jnp.float32)[..., None]
    feats = jax.random.normal(kg(), (B, N, IN_FEAT), jnp.float32) * mask

    params = build_params(kg)
    out = transloc3d_fpn_forward(feats, mask, params)
    jax.block_until_ready(out)
    assert out.shape == (B, 64, N), out.shape
    print("KERNEL_OK")
</pallas_src>

<mosaic_0001>
module attributes {stable_mosaic.version = 11 : i64} {
  func.func @_stage_kernel(%arg0: i32, %arg1: memref<1x64x4xf32, #tpu.memory_space<vmem>>, %arg2: memref<1x64x1xf32, #tpu.memory_space<vmem>>, %arg3: memref<4x16xf32, #tpu.memory_space<vmem>>, %arg4: memref<1x16xf32, #tpu.memory_space<vmem>>, %arg5: memref<1x16xf32, #tpu.memory_space<vmem>>, %arg6: memref<16x32xf32, #tpu.memory_space<vmem>>, %arg7: memref<1x32xf32, #tpu.memory_space<vmem>>, %arg8: memref<1x32xf32, #tpu.memory_space<vmem>>, %arg9: memref<32x160xf32, #tpu.memory_space<vmem>>, %arg10: memref<1x160xf32, #tpu.memory_space<vmem>>, %arg11: memref<1x160xf32, #tpu.memory_space<vmem>>, %arg12: memref<1x160xf32, #tpu.memory_space<vmem>>, %arg13: memref<160x160xf32, #tpu.memory_space<vmem>>, %arg14: memref<1x160xf32, #tpu.memory_space<vmem>>, %arg15: memref<1x160xf32, #tpu.memory_space<vmem>>, %arg16: memref<1x160xf32, #tpu.memory_space<vmem>>, %arg17: memref<5x160x32xf32, #tpu.memory_space<vmem>>, %arg18: memref<5x1x32xf32, #tpu.memory_space<vmem>>, %arg19: memref<5x1x32xf32, #tpu.memory_space<vmem>>, %arg20: memref<5x3xf32, #tpu.memory_space<smem>>, %arg21: memref<5x32x32xf32, #tpu.memory_space<vmem>>, %arg22: memref<5x1x32xf32, #tpu.memory_space<vmem>>, %arg23: memref<5x1x32xf32, #tpu.memory_space<vmem>>, %arg24: memref<5x32x32xf32, #tpu.memory_space<vmem>>, %arg25: memref<5x1x32xf32, #tpu.memory_space<vmem>>, %arg26: memref<5x1x32xf32, #tpu.memory_space<vmem>>, %arg27: memref<5x32x32xf32, #tpu.memory_space<vmem>>, %arg28: memref<5x1x32xf32, #tpu.memory_space<vmem>>, %arg29: memref<5x1x32xf32, #tpu.memory_space<vmem>>, %arg30: memref<1x64x32xf32, #tpu.memory_space<vmem>>) attributes {dimension_semantics = [#tpu.dimension_semantics<parallel>], iteration_bounds = array<i64: 2>, scalar_prefetch = 0 : i64, scratch_operands = 0 : i64, tpu.core_type = #tpu.core_type<tc>, window_params = [{transform_indices = @transform_0, window_bounds = array<i64: 1, 64, 4>}, {transform_indices = @transform_1, window_bounds = array<i64: 1, 64, 1>}, {pipeline_mode = #tpu.pipeline_mode<synchronous>, transform_indices = @transform_2, window_bounds = array<i64: 4, 16>}, {pipeline_mode = #tpu.pipeline_mode<synchronous>, transform_indices = @transform_3, window_bounds = array<i64: 1, 16>}, {pipeline_mode = #tpu.pipeline_mode<synchronous>, transform_indices = @transform_4, window_bounds = array<i64: 1, 16>}, {pipeline_mode = #tpu.pipeline_mode<synchronous>, transform_indices = @transform_5, window_bounds = array<i64: 16, 32>}, {pipeline_mode = #tpu.pipeline_mode<synchronous>, transform_indices = @transform_6, window_bounds = array<i64: 1, 32>}, {pipeline_mode = #tpu.pipeline_mode<synchronous>, transform_indices = @transform_7, window_bounds = array<i64: 1, 32>}, {pipeline_mode = #tpu.pipeline_mode<synchronous>, transform_indices = @transform_8, window_bounds = array<i64: 32, 160>}, {pipeline_mode = #tpu.pipeline_mode<synchronous>, transform_indices = @transform_9, window_bounds = array<i64: 1, 160>}, {pipeline_mode = #tpu.pipeline_mode<synchronous>, transform_indices = @transform_10, window_bounds = array<i64: 1, 160>}, {pipeline_mode = #tpu.pipeline_mode<synchronous>, transform_indices = @transform_11, window_bounds = array<i64: 1, 160>}, {pipeline_mode = #tpu.pipeline_mode<synchronous>, transform_indices = @transform_12, window_bounds = array<i64: 160, 160>}, {pipeline_mode = #tpu.pipeline_mode<synchronous>, transform_indices = @transform_13, window_bounds = array<i64: 1, 160>}, {pipeline_mode = #tpu.pipeline_mode<synchronous>, transform_indices = @transform_14, window_bounds = array<i64: 1, 160>}, {pipeline_mode = #tpu.pipeline_mode<synchronous>, transform_indices = @transform_15, window_bounds = array<i64: 1, 160>}, {pipeline_mode = #tpu.pipeline_mode<synchronous>, transform_indices = @transform_16, window_bounds = array<i64: 5, 160, 32>}, {pipeline_mode = #tpu.pipeline_mode<synchronous>, transform_indices = @transform_17, window_bounds = array<i64: 5, 1, 32>}, {pipeline_mode = #tpu.pipeline_mode<synchronous>, transform_indices = @transform_18, window_bounds = array<i64: 5, 1, 32>}, {transform_indices = @transform_19, window_bounds = array<i64: 5, 3>}, {pipeline_mode = #tpu.pipeline_mode<synchronous>, transform_indices = @transform_20, window_bounds = array<i64: 5, 32, 32>}, {pipeline_mode = #tpu.pipeline_mode<synchronous>, transform_indices = @transform_21, window_bounds = array<i64: 5, 1, 32>}, {pipeline_mode = #tpu.pipeline_mode<synchronous>, transform_indices = @transform_22, window_bounds = array<i64: 5, 1, 32>}, {pipeline_mode = #tpu.pipeline_mode<synchronous>, transform_indices = @transform_23, window_bounds = array<i64: 5, 32, 32>}, {pipeline_mode = #tpu.pipeline_mode<synchronous>, transform_indices = @transform_24, window_bounds = array<i64: 5, 1, 32>}, {pipeline_mode = #tpu.pipeline_mode<synchronous>, transform_indices = @transform_25, window_bounds = array<i64: 5, 1, 32>}, {pipeline_mode = #tpu.pipeline_mode<synchronous>, transform_indices = @transform_26, window_bounds = array<i64: 5, 32, 32>}, {pipeline_mode = #tpu.pipeline_mode<synchronous>, transform_indices = @transform_27, window_bounds = array<i64: 5, 1, 32>}, {pipeline_mode = #tpu.pipeline_mode<synchronous>, transform_indices = @transform_28, window_bounds = array<i64: 5, 1, 32>}, {transform_indices = @transform_29, window_bounds = array<i64: 1, 64, 32>}]} {
    %c0 = arith.constant 0 : index
    %c0_0 = arith.constant 0 : index
    %c0_1 = arith.constant 0 : index
    %0 = vector.load %arg2[%c0, %c0_0, %c0_1] : memref<1x64x1xf32, #tpu.memory_space<vmem>>, vector<1x64x1xf32>
    %1 = vector.shape_cast %0 : vector<1x64x1xf32> to vector<64x1xf32>
    %c0_2 = arith.constant 0 : index
    %c0_3 = arith.constant 0 : index
    %c0_4 = arith.constant 0 : index
    %2 = vector.load %arg1[%c0_2, %c0_3, %c0_4] : memref<1x64x4xf32, #tpu.memory_space<vmem>>, vector<1x64x4xf32>
    %3 = vector.shape_cast %2 : vector<1x64x4xf32> to vector<64x4xf32>
    %c0_5 = arith.constant 0 : index
    %c0_6 = arith.constant 0 : index
    %4 = vector.load %arg3[%c0_5, %c0_6] : memref<4x16xf32, #tpu.memory_space<vmem>>, vector<4x16xf32>
    %cst = arith.constant dense<0.000000e+00> : vector<64x16xf32>
    %5 = tpu.matmul %3, %4, %cst {dimension_numbers = #tpu.dot_dimension_numbers<[1], [0], [0], [1], [0, 0, 1, 1], [], []>} : vector<64x4xf32>, vector<4x16xf32>, vector<64x16xf32> -> vector<64x16xf32>
    %c0_7 = arith.constant 0 : index
    %c0_8 = arith.constant 0 : index
    %6 = vector.load %arg4[%c0_7, %c0_8] : memref<1x16xf32, #tpu.memory_space<vmem>>, vector<1x16xf32>
    %7 = vector.broadcast %6 : vector<1x16xf32> to vector<64x16xf32>
    %8 = arith.mulf %5, %7 : vector<64x16xf32>
    %c0_9 = arith.constant 0 : index
    %c0_10 = arith.constant 0 : index
    %9 = vector.load %arg5[%c0_9, %c0_10] : memref<1x16xf32, #tpu.memory_space<vmem>>, vector<1x16xf32>
    %10 = vector.broadcast %9 : vector<1x16xf32> to vector<64x16xf32>
    %11 = arith.addf %8, %10 : vector<64x16xf32>
    %cst_11 = arith.constant 0.000000e+00 : f32
    %12 = vector.broadcast %cst_11 : f32 to vector<64x16xf32>
    %13 = arith.maximumf %11, %12 : vector<64x16xf32>
    %c0_12 = arith.constant 0 : index
    %c0_13 = arith.constant 0 : index
    %14 = vector.load %arg6[%c0_12, %c0_13] : memref<16x32xf32, #tpu.memory_space<vmem>>, vector<16x32xf32>
    %cst_14 = arith.constant dense<0.000000e+00> : vector<64x32xf32>
    %15 = tpu.matmul %13, %14, %cst_14 {dimension_numbers = #tpu.dot_dimension_numbers<[1], [0], [0], [1], [0, 0, 1, 1], [], []>} : vector<64x16xf32>, vector<16x32xf32>, vector<64x32xf32> -> vector<64x32xf32>
    %c0_15 = arith.constant 0 : index
    %c0_16 = arith.constant 0 : index
    %16 = vector.load %arg7[%c0_15, %c0_16] : memref<1x32xf32, #tpu.memory_space<vmem>>, vector<1x32xf32>
    %17 = vector.broadcast %16 : vector<1x32xf32> to vector<64x32xf32>
    %18 = arith.mulf %15, %17 : vector<64x32xf32>
    %c0_17 = arith.constant 0 : index
    %c0_18 = arith.constant 0 : index
    %19 = vector.load %arg8[%c0_17, %c0_18] : memref<1x32xf32, #tpu.memory_space<vmem>>, vector<1x32xf32>
    %20 = vector.broadcast %19 : vector<1x32xf32> to vector<64x32xf32>
    %21 = arith.addf %18, %20 : vector<64x32xf32>
    %cst_19 = arith.constant 0.000000e+00 : f32
    %22 = vector.broadcast %cst_19 : f32 to vector<64x32xf32>
    %23 = arith.maximumf %21, %22 : vector<64x32xf32>
    %c0_20 = arith.constant 0 : index
    %c0_21 = arith.constant 0 : index
    %24 = vector.load %arg9[%c0_20, %c0_21] : memref<32x160xf32, #tpu.memory_space<vmem>>, vector<32x160xf32>
    %cst_22 = arith.constant dense<0.000000e+00> : vector<64x160xf32>
    %25 = tpu.matmul %23, %24, %cst_22 {dimension_numbers = #tpu.dot_dimension_numbers<[1], [0], [0], [1], [0, 0, 1, 1], [], []>} : vector<64x32xf32>, vector<32x160xf32>, vector<64x160xf32> -> vector<64x160xf32>
    %c0_23 = arith.constant 0 : index
    %c0_24 = arith.constant 0 : index
    %26 = vector.load %arg10[%c0_23, %c0_24] : memref<1x160xf32, #tpu.memory_space<vmem>>, vector<1x160xf32>
    %27 = vector.broadcast %26 : vector<1x160xf32> to vector<64x160xf32>
    %28 = arith.mulf %25, %27 : vector<64x160xf32>
    %c0_25 = arith.constant 0 : index
    %c0_26 = arith.constant 0 : index
    %29 = vector.load %arg11[%c0_25, %c0_26] : memref<1x160xf32, #tpu.memory_space<vmem>>, vector<1x160xf32>
    %30 = vector.broadcast %29 : vector<1x160xf32> to vector<64x160xf32>
    %31 = arith.addf %28, %30 : vector<64x160xf32>
    %c0_27 = arith.constant 0 : index
    %c0_28 = arith.constant 0 : index
    %32 = vector.load %arg12[%c0_27, %c0_28] : memref<1x160xf32, #tpu.memory_space<vmem>>, vector<1x160xf32>
    %cst_29 = arith.constant 0.000000e+00 : f32
    %33 = vector.broadcast %cst_29 : f32 to vector<1x160xf32>
    %34 = arith.cmpf ogt, %32, %33 : vector<1x160xf32>
    %cst_30 = arith.constant 0.000000e+00 : f32
    %35 = vector.broadcast %cst_30 : f32 to vector<64x160xf32>
    %36 = arith.maximumf %31, %35 : vector<64x160xf32>
    %37 = vector.shape_cast %34 : vector<1x160xi1> to vector<1x160xi1>
    %38 = vector.broadcast %37 : vector<1x160xi1> to vector<64x160xi1>
    %39 = arith.select %38, %36, %31 : vector<64x160xi1>, vector<64x160xf32>
    %c0_31 = arith.constant 0 : index
    %c0_32 = arith.constant 0 : index
    %40 = vector.load %arg13[%c0_31, %c0_32] : memref<160x160xf32, #tpu.memory_space<vmem>>, vector<160x160xf32>
    %cst_33 = arith.constant dense<0.000000e+00> : vector<64x160xf32>
    %41 = tpu.matmul %39, %40, %cst_33 {dimension_numbers = #tpu.dot_dimension_numbers<[1], [0], [0], [1], [0, 0, 1, 1], [], []>} : vector<64x160xf32>, vector<160x160xf32>, vector<64x160xf32> -> vector<64x160xf32>
    %c0_34 = arith.constant 0 : index
    %c0_35 = arith.constant 0 : index
    %42 = vector.load %arg14[%c0_34, %c0_35] : memref<1x160xf32, #tpu.memory_space<vmem>>, vector<1x160xf32>
    %43 = vector.broadcast %42 : vector<1x160xf32> to vector<64x160xf32>
    %44 = arith.mulf %41, %43 : vector<64x160xf32>
    %c0_36 = arith.constant 0 : index
    %c0_37 = arith.constant 0 : index
    %45 = vector.load %arg15[%c0_36, %c0_37] : memref<1x160xf32, #tpu.memory_space<vmem>>, vector<1x160xf32>
    %46 = vector.broadcast %45 : vector<1x160xf32> to vector<64x160xf32>
    %47 = arith.addf %44, %46 : vector<64x160xf32>
    %c0_38 = arith.constant 0 : index
    %c0_39 = arith.constant 0 : index
    %48 = vector.load %arg16[%c0_38, %c0_39] : memref<1x160xf32, #tpu.memory_space<vmem>>, vector<1x160xf32>
    %cst_40 = arith.constant 0.000000e+00 : f32
    %49 = vector.broadcast %cst_40 : f32 to vector<1x160xf32>
    %50 = arith.cmpf ogt, %48, %49 : vector<1x160xf32>
    %cst_41 = arith.constant 0.000000e+00 : f32
    %51 = vector.broadcast %cst_41 : f32 to vector<64x160xf32>
    %52 = arith.maximumf %47, %51 : vector<64x160xf32>
    %53 = vector.shape_cast %50 : vector<1x160xi1> to vector<1x160xi1>
    %54 = vector.broadcast %53 : vector<1x160xi1> to vector<64x160xi1>
    %55 = arith.select %54, %52, %47 : vector<64x160xi1>, vector<64x160xf32>
    %56 = vector.shape_cast %1 : vector<64x1xf32> to vector<1x64x1xf32>
    %cst_42 = arith.constant dense<0.000000e+00> : vector<1xf32>
    %57 = vector.multi_reduction <add>, %56, %cst_42 [1, 2] : vector<1x64x1xf32> to vector<1xf32>
    %58 = vector.shape_cast %57 : vector<1xf32> to vector<1x1x1xf32>
    %59 = vector.extract %58[0, 0, 0] : f32 from vector<1x1x1xf32>
    %cst_43 = arith.constant 1.000000e+00 : f32
    %60 = arith.maximumf %59, %cst_43 : f32
    %61 = tpu.iota {dimensions = array<i32: 1>} : vector<1x32xi32>
    %c0_44 = arith.constant 0 : index
    %c0_45 = arith.constant 0 : index
    %c0_46 = arith.constant 0 : index
    %62 = vector.load %arg17[%c0_44, %c0_45, %c0_46] : memref<5x160x32xf32, #tpu.memory_space<vmem>>, vector<1x160x32xf32>
    %63 = vector.shape_cast %62 : vector<1x160x32xf32> to vector<160x32xf32>
    %cst_47 = arith.constant dense<0.000000e+00> : vector<64x32xf32>
    %64 = tpu.matmul %55, %63, %cst_47 {dimension_numbers = #tpu.dot_dimension_numbers<[1], [0], [0], [1], [0, 0, 1, 1], [], []>} : vector<64x160xf32>, vector<160x32xf32>, vector<64x32xf32> -> vector<64x32xf32>
    %c0_48 = arith.constant 0 : index
    %c0_49 = arith.constant 0 : index
    %c0_50 = arith.constant 0 : index
    %65 = vector.load %arg18[%c0_48, %c0_49, %c0_50] : memref<5x1x32xf32, #tpu.memory_space<vmem>>, vector<1x1x32xf32>
    %66 = vector.shape_cast %65 : vector<1x1x32xf32> to vector<1x32xf32>
    %67 = vector.broadcast %66 : vector<1x32xf32> to vector<64x32xf32>
    %68 = arith.mulf %64, %67 : vector<64x32xf32>
    %c0_51 = arith.constant 0 : index
    %c0_52 = arith.constant 0 : index
    %c0_53 = arith.constant 0 : index
    %69 = vector.load %arg19[%c0_51, %c0_52, %c0_53] : memref<5x1x32xf32, #tpu.memory_space<vmem>>, vector<1x1x32xf32>
    %70 = vector.shape_cast %69 : vector<1x1x32xf32> to vector<1x32xf32>
    %71 = vector.broadcast %70 : vector<1x32xf32> to vector<64x32xf32>
    %72 = arith.addf %68, %71 : vector<64x32xf32>
    %73 = vector.broadcast %1 : vector<64x1xf32> to vector<64x32xf32>
    %74 = arith.mulf %72, %73 : vector<64x32xf32>
    %cst_54 = arith.constant dense<0.000000e+00> : vector<32xf32>
    %75 = vector.multi_reduction <add>, %74, %cst_54 [0] : vector<64x32xf32> to vector<32xf32>
    %76 = vector.shape_cast %75 : vector<32xf32> to vector<1x32xf32>
    %77 = vector.broadcast %60 : f32 to vector<1x32xf32>
    %78 = arith.divf %76, %77 : vector<1x32xf32>
    %cst_55 = arith.constant 0.000000e+00 : f32
    %79 = vector.broadcast %cst_55 : f32 to vector<1x32xf32>
    %c1_i32 = arith.constant 1 : i32
    %80 = tpu.dynamic_rotate %78 by %c1_i32 dim 1 : vector<1x32xf32>, i32 -> vector<1x32xf32>
    %c-1_i32 = arith.constant -1 : i32
    %81 = vector.broadcast %c-1_i32 : i32 to vector<1x32xi32>
    %82 = arith.addi %61, %81 : vector<1x32xi32>
    %c0_i32 = arith.constant 0 : i32
    %83 = vector.broadcast %c0_i32 : i32 to vector<1x32xi32>
    %84 = arith.cmpi sge, %82, %83 : vector<1x32xi32>
    %c-1_i32_56 = arith.constant -1 : i32
    %85 = vector.broadcast %c-1_i32_56 : i32 to vector<1x32xi32>
    %86 = arith.addi %61, %85 : vector<1x32xi32>
    %c32_i32 = arith.constant 32 : i32
    %87 = vector.broadcast %c32_i32 : i32 to vector<1x32xi32>
    %88 = arith.cmpi slt, %86, %87 : vector<1x32xi32>
    %89 = arith.andi %84, %88 : vector<1x32xi1>
    %c0_57 = arith.constant 0 : index
    %c0_58 = arith.constant 0 : index
    %90 = memref.load %arg20[%c0_57, %c0_58] : memref<5x3xf32, #tpu.memory_space<smem>>
    %cst_59 = arith.constant 0.000000e+00 : f32
    %91 = vector.broadcast %cst_59 : f32 to vector<1x32xf32>
    %92 = arith.select %89, %80, %91 : vector<1x32xi1>, vector<1x32xf32>
    %93 = vector.broadcast %90 : f32 to vector<1x32xf32>
    %94 = arith.mulf %93, %92 : vector<1x32xf32>
    %95 = arith.addf %79, %94 : vector<1x32xf32>
    %c0_i32_60 = arith.constant 0 : i32
    %96 = vector.broadcast %c0_i32_60 : i32 to vector<1x32xi32>
    %97 = arith.addi %61, %96 : vector<1x32xi32>
    %c0_i32_61 = arith.constant 0 : i32
    %98 = vector.broadcast %c0_i32_61 : i32 to vector<1x32xi32>
    %99 = arith.cmpi sge, %97, %98 : vector<1x32xi32>
    %c0_i32_62 = arith.constant 0 : i32
    %100 = vector.broadcast %c0_i32_62 : i32 to vector<1x32xi32>
    %101 = arith.addi %61, %100 : vector<1x32xi32>
    %c32_i32_63 = arith.constant 32 : i32
    %102 = vector.broadcast %c32_i32_63 : i32 to vector<1x32xi32>
    %103 = arith.cmpi slt, %101, %102 : vector<1x32xi32>
    %104 = arith.andi %99, %103 : vector<1x32xi1>
    %c0_64 = arith.constant 0 : index
    %c1 = arith.constant 1 : index
    %105 = memref.load %arg20[%c0_64, %c1] : memref<5x3xf32, #tpu.memory_space<smem>>
    %cst_65 = arith.constant 0.000000e+00 : f32
    %106 = vector.broadcast %cst_65 : f32 to vector<1x32xf32>
    %107 = arith.select %104, %78, %106 : vector<1x32xi1>, vector<1x32xf32>
    %108 = vector.broadcast %105 : f32 to vector<1x32xf32>
    %109 = arith.mulf %108, %107 : vector<1x32xf32>
    %110 = arith.addf %95, %109 : vector<1x32xf32>
    %c31_i32 = arith.constant 31 : i32
    %111 = tpu.dynamic_rotate %78 by %c31_i32 dim 1 : vector<1x32xf32>, i32 -> vector<1x32xf32>
    %c1_i32_66 = arith.constant 1 : i32
    %112 = vector.broadcast %c1_i32_66 : i32 to vector<1x32xi32>
    %113 = arith.addi %61, %112 : vector<1x32xi32>
    %c0_i32_67 = arith.constant 0 : i32
    %114 = vector.broadcast %c0_i32_67 : i32 to vector<1x32xi32>
    %115 = arith.cmpi sge, %113, %114 : vector<1x32xi32>
    %c1_i32_68 = arith.constant 1 : i32
    %116 = vector.broadcast %c1_i32_68 : i32 to vector<1x32xi32>
    %117 = arith.addi %61, %116 : vector<1x32xi32>
    %c32_i32_69 = arith.constant 32 : i32
    %118 = vector.broadcast %c32_i32_69 : i32 to vector<1x32xi32>
    %119 = arith.cmpi slt, %117, %118 : vector<1x32xi32>
    %120 = arith.andi %115, %119 : vector<1x32xi1>
    %c0_70 = arith.constant 0 : index
    %c2 = arith.constant 2 : index
    %121 = memref.load %arg20[%c0_70, %c2] : memref<5x3xf32, #tpu.memory_space<smem>>
    %cst_71 = arith.constant 0.000000e+00 : f32
    %122 = vector.broadcast %cst_71 : f32 to vector<1x32xf32>
    %123 = arith.select %120, %111, %122 : vector<1x32xi1>, vector<1x32xf32>
    %124 = vector.broadcast %121 : f32 to vector<1x32xf32>
    %125 = arith.mulf %124, %123 : vector<1x32xf32>
    %126 = arith.addf %110, %125 : vector<1x32xf32>
    %127 = arith.negf %126 : vector<1x32xf32>
    %128 = math.exp %127 : vector<1x32xf32>
    %cst_72 = arith.constant 1.000000e+00 : f32
    %129 = vector.broadcast %cst_72 : f32 to vector<1x32xf32>
    %130 = arith.addf %129, %128 : vector<1x32xf32>
    %131 = arith.divf %129, %130 : vector<1x32xf32>
    %132 = vector.broadcast %131 : vector<1x32xf32> to vector<64x32xf32>
    %133 = arith.mulf %72, %132 : vector<64x32xf32>
    %c0_73 = arith.constant 0 : index
    %c0_74 = arith.constant 0 : index
    %c0_75 = arith.constant 0 : index
    %134 = vector.load %arg21[%c0_73, %c0_74, %c0_75] : memref<5x32x32xf32, #tpu.memory_space<vmem>>, vector<1x32x32xf32>
    %135 = vector.shape_cast %134 : vector<1x32x32xf32> to vector<32x32xf32>
    %cst_76 = arith.constant dense<0.000000e+00> : vector<64x32xf32>
    %136 = tpu.matmul %133, %135, %cst_76 {dimension_numbers = #tpu.dot_dimension_numbers<[1], [0], [0], [1], [0, 0, 1, 1], [], []>} : vector<64x32xf32>, vector<32x32xf32>, vector<64x32xf32> -> vector<64x32xf32>
    %c0_77 = arith.constant 0 : index
    %c0_78 = arith.constant 0 : index
    %c0_79 = arith.constant 0 : index
    %137 = vector.load %arg22[%c0_77, %c0_78, %c0_79] : memref<5x1x32xf32, #tpu.memory_space<vmem>>, vector<1x1x32xf32>
    %138 = vector.shape_cast %137 : vector<1x1x32xf32> to vector<1x32xf32>
    %139 = vector.broadcast %138 : vector<1x32xf32> to vector<64x32xf32>
    %140 = arith.mulf %136, %139 : vector<64x32xf32>
    %c0_80 = arith.constant 0 : index
    %c0_81 = arith.constant 0 : index
    %c0_82 = arith.constant 0 : index
    %141 = vector.load %arg23[%c0_80, %c0_81, %c0_82] : memref<5x1x32xf32, #tpu.memory_space<vmem>>, vector<1x1x32xf32>
    %142 = vector.shape_cast %141 : vector<1x1x32xf32> to vector<1x32xf32>
    %143 = vector.broadcast %142 : vector<1x32xf32> to vector<64x32xf32>
    %144 = arith.addf %140, %143 : vector<64x32xf32>
    %cst_83 = arith.constant 0.000000e+00 : f32
    %145 = vector.broadcast %cst_83 : f32 to vector<64x32xf32>
    %146 = arith.maximumf %144, %145 : vector<64x32xf32>
    %c0_84 = arith.constant 0 : index
    %c0_85 = arith.constant 0 : index
    %c0_86 = arith.constant 0 : index
    %147 = vector.load %arg24[%c0_84, %c0_85, %c0_86] : memref<5x32x32xf32, #tpu.memory_space<vmem>>, vector<1x32x32xf32>
    %148 = vector.shape_cast %147 : vector<1x32x32xf32> to vector<32x32xf32>
    %cst_87 = arith.constant dense<0.000000e+00> : vector<64x32xf32>
    %149 = tpu.matmul %146, %148, %cst_87 {dimension_numbers = #tpu.dot_dimension_numbers<[1], [0], [0], [1], [0, 0, 1, 1], [], []>} : vector<64x32xf32>, vector<32x32xf32>, vector<64x32xf32> -> vector<64x32xf32>
    %c0_88 = arith.constant 0 : index
    %c0_89 = arith.constant 0 : index
    %c0_90 = arith.constant 0 : index
    %150 = vector.load %arg25[%c0_88, %c0_89, %c0_90] : memref<5x1x32xf32, #tpu.memory_space<vmem>>, vector<1x1x32xf32>
    %151 = vector.shape_cast %150 : vector<1x1x32xf32> to vector<1x32xf32>
    %152 = vector.broadcast %151 : vector<1x32xf32> to vector<64x32xf32>
    %153 = arith.mulf %149, %152 : vector<64x32xf32>
    %c0_91 = arith.constant 0 : index
    %c0_92 = arith.constant 0 : index
    %c0_93 = arith.constant 0 : index
    %154 = vector.load %arg26[%c0_91, %c0_92, %c0_93] : memref<5x1x32xf32, #tpu.memory_space<vmem>>, vector<1x1x32xf32>
    %155 = vector.shape_cast %154 : vector<1x1x32xf32> to vector<1x32xf32>
    %156 = vector.broadcast %155 : vector<1x32xf32> to vector<64x32xf32>
    %157 = arith.addf %153, %156 : vector<64x32xf32>
    %c1_94 = arith.constant 1 : index
    %c0_95 = arith.constant 0 : index
    %c0_96 = arith.constant 0 : index
    %158 = vector.load %arg17[%c1_94, %c0_95, %c0_96] : memref<5x160x32xf32, #tpu.memory_space<vmem>>, vector<1x160x32xf32>
    %159 = vector.shape_cast %158 : vector<1x160x32xf32> to vector<160x32xf32>
    %cst_97 = arith.constant dense<0.000000e+00> : vector<64x32xf32>
    %160 = tpu.matmul %55, %159, %cst_97 {dimension_numbers = #tpu.dot_dimension_numbers<[1], [0], [0], [1], [0, 0, 1, 1], [], []>} : vector<64x160xf32>, vector<160x32xf32>, vector<64x32xf32> -> vector<64x32xf32>
    %c1_98 = arith.constant 1 : index
    %c0_99 = arith.constant 0 : index
    %c0_100 = arith.constant 0 : index
    %161 = vector.load %arg18[%c1_98, %c0_99, %c0_100] : memref<5x1x32xf32, #tpu.memory_space<vmem>>, vector<1x1x32xf32>
    %162 = vector.shape_cast %161 : vector<1x1x32xf32> to vector<1x32xf32>
    %163 = vector.broadcast %162 : vector<1x32xf32> to vector<64x32xf32>
    %164 = arith.mulf %160, %163 : vector<64x32xf32>
    %c1_101 = arith.constant 1 : index
    %c0_102 = arith.constant 0 : index
    %c0_103 = arith.constant 0 : index
    %165 = vector.load %arg19[%c1_101, %c0_102, %c0_103] : memref<5x1x32xf32, #tpu.memory_space<vmem>>, vector<1x1x32xf32>
    %166 = vector.shape_cast %165 : vector<1x1x32xf32> to vector<1x32xf32>
    %167 = vector.broadcast %166 : vector<1x32xf32> to vector<64x32xf32>
    %168 = arith.addf %164, %167 : vector<64x32xf32>
    %169 = vector.broadcast %1 : vector<64x1xf32> to vector<64x32xf32>
    %170 = arith.mulf %168, %169 : vector<64x32xf32>
    %cst_104 = arith.constant dense<0.000000e+00> : vector<32xf32>
    %171 = vector.multi_reduction <add>, %170, %cst_104 [0] : vector<64x32xf32> to vector<32xf32>
    %172 = vector.shape_cast %171 : vector<32xf32> to vector<1x32xf32>
    %173 = vector.broadcast %60 : f32 to vector<1x32xf32>
    %174 = arith.divf %172, %173 : vector<1x32xf32>
    %cst_105 = arith.constant 0.000000e+00 : f32
    %175 = vector.broadcast %cst_105 : f32 to vector<1x32xf32>
    %c1_i32_106 = arith.constant 1 : i32
    %176 = tpu.dynamic_rotate %174 by %c1_i32_106 dim 1 : vector<1x32xf32>, i32 -> vector<1x32xf32>
    %c-1_i32_107 = arith.constant -1 : i32
    %177 = vector.broadcast %c-1_i32_107 : i32 to vector<1x32xi32>
    %178 = arith.addi %61, %177 : vector<1x32xi32>
    %c0_i32_108 = arith.constant 0 : i32
    %179 = vector.broadcast %c0_i32_108 : i32 to vector<1x32xi32>
    %180 = arith.cmpi sge, %178, %179 : vector<1x32xi32>
    %c-1_i32_109 = arith.constant -1 : i32
    %181 = vector.broadcast %c-1_i32_109 : i32 to vector<1x32xi32>
    %182 = arith.addi %61, %181 : vector<1x32xi32>
    %c32_i32_110 = arith.constant 32 : i32
    %183 = vector.broadcast %c32_i32_110 : i32 to vector<1x32xi32>
    %184 = arith.cmpi slt, %182, %183 : vector<1x32xi32>
    %185 = arith.andi %180, %184 : vector<1x32xi1>
    %c1_111 = arith.constant 1 : index
    %c0_112 = arith.constant 0 : index
    %186 = memref.load %arg20[%c1_111, %c0_112] : memref<5x3xf32, #tpu.memory_space<smem>>
    %cst_113 = arith.constant 0.000000e+00 : f32
    %187 = vector.broadcast %cst_113 : f32 to vector<1x32xf32>
    %188 = arith.select %185, %176, %187 : vector<1x32xi1>, vector<1x32xf32>
    %189 = vector.broadcast %186 : f32 to vector<1x32xf32>
    %190 = arith.mulf %189, %188 : vector<1x32xf32>
    %191 = arith.addf %175, %190 : vector<1x32xf32>
    %c0_i32_114 = arith.constant 0 : i32
    %192 = vector.broadcast %c0_i32_114 : i32 to vector<1x32xi32>
    %193 = arith.addi %61, %192 : vector<1x32xi32>
    %c0_i32_115 = arith.constant 0 : i32
    %194 = vector.broadcast %c0_i32_115 : i32 to vector<1x32xi32>
    %195 = arith.cmpi sge, %193, %194 : vector<1x32xi32>
    %c0_i32_116 = arith.constant 0 : i32
    %196 = vector.broadcast %c0_i32_116 : i32 to vector<1x32xi32>
    %197 = arith.addi %61, %196 : vector<1x32xi32>
    %c32_i32_117 = arith.constant 32 : i32
    %198 = vector.broadcast %c32_i32_117 : i32 to vector<1x32xi32>
    %199 = arith.cmpi slt, %197, %198 : vector<1x32xi32>
    %200 = arith.andi %195, %199 : vector<1x32xi1>
    %c1_118 = arith.constant 1 : index
    %c1_119 = arith.constant 1 : index
    %201 = memref.load %arg20[%c1_118, %c1_119] : memref<5x3xf32, #tpu.memory_space<smem>>
    %cst_120 = arith.constant 0.000000e+00 : f32
    %202 = vector.broadcast %cst_120 : f32 to vector<1x32xf32>
    %203 = arith.select %200, %174, %202 : vector<1x32xi1>, vector<1x32xf32>
    %204 = vector.broadcast %201 : f32 to vector<1x32xf32>
    %205 = arith.mulf %204, %203 : vector<1x32xf32>
    %206 = arith.addf %191, %205 : vector<1x32xf32>
    %c31_i32_121 = arith.constant 31 : i32
    %207 = tpu.dynamic_rotate %174 by %c31_i32_121 dim 1 : vector<1x32xf32>, i32 -> vector<1x32xf32>
    %c1_i32_122 = arith.constant 1 : i32
    %208 = vector.broadcast %c1_i32_122 : i32 to vector<1x32xi32>
    %209 = arith.addi %61, %208 : vector<1x32xi32>
    %c0_i32_123 = arith.constant 0 : i32
    %210 = vector.broadcast %c0_i32_123 : i32 to vector<1x32xi32>
    %211 = arith.cmpi sge, %209, %210 : vector<1x32xi32>
    %c1_i32_124 = arith.constant 1 : i32
    %212 = vector.broadcast %c1_i32_124 : i32 to vector<1x32xi32>
    %213 = arith.addi %61, %212 : vector<1x32xi32>
    %c32_i32_125 = arith.constant 32 : i32
    %214 = vector.broadcast %c32_i32_125 : i32 to vector<1x32xi32>
    %215 = arith.cmpi slt, %213, %214 : vector<1x32xi32>
    %216 = arith.andi %211, %215 : vector<1x32xi1>
    %c1_126 = arith.constant 1 : index
    %c2_127 = arith.constant 2 : index
    %217 = memref.load %arg20[%c1_126, %c2_127] : memref<5x3xf32, #tpu.memory_space<smem>>
    %cst_128 = arith.constant 0.000000e+00 : f32
    %218 = vector.broadcast %cst_128 : f32 to vector<1x32xf32>
    %219 = arith.select %216, %207, %218 : vector<1x32xi1>, vector<1x32xf32>
    %220 = vector.broadcast %217 : f32 to vector<1x32xf32>
    %221 = arith.mulf %220, %219 : vector<1x32xf32>
    %222 = arith.addf %206, %221 : vector<1x32xf32>
    %223 = arith.negf %222 : vector<1x32xf32>
    %224 = math.exp %223 : vector<1x32xf32>
    %cst_129 = arith.constant 1.000000e+00 : f32
    %225 = vector.broadcast %cst_129 : f32 to vector<1x32xf32>
    %226 = arith.addf %225, %224 : vector<1x32xf32>
    %227 = arith.divf %225, %226 : vector<1x32xf32>
    %228 = vector.broadcast %227 : vector<1x32xf32> to vector<64x32xf32>
    %229 = arith.mulf %168, %228 : vector<64x32xf32>
    %c1_130 = arith.constant 1 : index
    %c0_131 = arith.constant 0 : index
    %c0_132 = arith.constant 0 : index
    %230 = vector.load %arg21[%c1_130, %c0_131, %c0_132] : memref<5x32x32xf32, #tpu.memory_space<vmem>>, vector<1x32x32xf32>
    %231 = vector.shape_cast %230 : vector<1x32x32xf32> to vector<32x32xf32>
    %cst_133 = arith.constant dense<0.000000e+00> : vector<64x32xf32>
    %232 = tpu.matmul %229, %231, %cst_133 {dimension_numbers = #tpu.dot_dimension_numbers<[1], [0], [0], [1], [0, 0, 1, 1], [], []>} : vector<64x32xf32>, vector<32x32xf32>, vector<64x32xf32> -> vector<64x32xf32>
    %c1_134 = arith.constant 1 : index
    %c0_135 = arith.constant 0 : index
    %c0_136 = arith.constant 0 : index
    %233 = vector.load %arg22[%c1_134, %c0_135, %c0_136] : memref<5x1x32xf32, #tpu.memory_space<vmem>>, vector<1x1x32xf32>
    %234 = vector.shape_cast %233 : vector<1x1x32xf32> to vector<1x32xf32>
    %235 = vector.broadcast %234 : vector<1x32xf32> to vector<64x32xf32>
    %236 = arith.mulf %232, %235 : vector<64x32xf32>
    %c1_137 = arith.constant 1 : index
    %c0_138 = arith.constant 0 : index
    %c0_139 = arith.constant 0 : index
    %237 = vector.load %arg23[%c1_137, %c0_138, %c0_139] : memref<5x1x32xf32, #tpu.memory_space<vmem>>, vector<1x1x32xf32>
    %238 = vector.shape_cast %237 : vector<1x1x32xf32> to vector<1x32xf32>
    %239 = vector.broadcast %238 : vector<1x32xf32> to vector<64x32xf32>
    %240 = arith.addf %236, %239 : vector<64x32xf32>
    %cst_140 = arith.constant 0.000000e+00 : f32
    %241 = vector.broadcast %cst_140 : f32 to vector<64x32xf32>
    %242 = arith.maximumf %240, %241 : vector<64x32xf32>
    %c1_141 = arith.constant 1 : index
    %c0_142 = arith.constant 0 : index
    %c0_143 = arith.constant 0 : index
    %243 = vector.load %arg24[%c1_141, %c0_142, %c0_143] : memref<5x32x32xf32, #tpu.memory_space<vmem>>, vector<1x32x32xf32>
    %244 = vector.shape_cast %243 : vector<1x32x32xf32> to vector<32x32xf32>
    %cst_144 = arith.constant dense<0.000000e+00> : vector<64x32xf32>
    %245 = tpu.matmul %242, %244, %cst_144 {dimension_numbers = #tpu.dot_dimension_numbers<[1], [0], [0], [1], [0, 0, 1, 1], [], []>} : vector<64x32xf32>, vector<32x32xf32>, vector<64x32xf32> -> vector<64x32xf32>
    %c1_145 = arith.constant 1 : index
    %c0_146 = arith.constant 0 : index
    %c0_147 = arith.constant 0 : index
    %246 = vector.load %arg25[%c1_145, %c0_146, %c0_147] : memref<5x1x32xf32, #tpu.memory_space<vmem>>, vector<1x1x32xf32>
    %247 = vector.shape_cast %246 : vector<1x1x32xf32> to vector<1x32xf32>
    %248 = vector.broadcast %247 : vector<1x32xf32> to vector<64x32xf32>
    %249 = arith.mulf %245, %248 : vector<64x32xf32>
    %c1_148 = arith.constant 1 : index
    %c0_149 = arith.constant 0 : index
    %c0_150 = arith.constant 0 : index
    %250 = vector.load %arg26[%c1_148, %c0_149, %c0_150] : memref<5x1x32xf32, #tpu.memory_space<vmem>>, vector<1x1x32xf32>
    %251 = vector.shape_cast %250 : vector<1x1x32xf32> to vector<1x32xf32>
    %252 = vector.broadcast %251 : vector<1x32xf32> to vector<64x32xf32>
    %253 = arith.addf %249, %252 : vector<64x32xf32>
    %c2_151 = arith.constant 2 : index
    %c0_152 = arith.constant 0 : index
    %c0_153 = arith.constant 0 : index
    %254 = vector.load %arg17[%c2_151, %c0_152, %c0_153] : memref<5x160x32xf32, #tpu.memory_space<vmem>>, vector<1x160x32xf32>
    %255 = vector.shape_cast %254 : vector<1x160x32xf32> to vector<160x32xf32>
    %cst_154 = arith.constant dense<0.000000e+00> : vector<64x32xf32>
    %256 = tpu.matmul %55, %255, %cst_154 {dimension_numbers = #tpu.dot_dimension_numbers<[1], [0], [0], [1], [0, 0, 1, 1], [], []>} : vector<64x160xf32>, vector<160x32xf32>, vector<64x32xf32> -> vector<64x32xf32>
    %c2_155 = arith.constant 2 : index
    %c0_156 = arith.constant 0 : index
    %c0_157 = arith.constant 0 : index
    %257 = vector.load %arg18[%c2_155, %c0_156, %c0_157] : memref<5x1x32xf32, #tpu.memory_space<vmem>>, vector<1x1x32xf32>
    %258 = vector.shape_cast %257 : vector<1x1x32xf32> to vector<1x32xf32>
    %259 = vector.broadcast %258 : vector<1x32xf32> to vector<64x32xf32>
    %260 = arith.mulf %256, %259 : vector<64x32xf32>
    %c2_158 = arith.constant 2 : index
    %c0_159 = arith.constant 0 : index
    %c0_160 = arith.constant 0 : index
    %261 = vector.load %arg19[%c2_158, %c0_159, %c0_160] : memref<5x1x32xf32, #tpu.memory_space<vmem>>, vector<1x1x32xf32>
    %262 = vector.shape_cast %261 : vector<1x1x32xf32> to vector<1x32xf32>
    %263 = vector.broadcast %262 : vector<1x32xf32> to vector<64x32xf32>
    %264 = arith.addf %260, %263 : vector<64x32xf32>
    %265 = vector.broadcast %1 : vector<64x1xf32> to vector<64x32xf32>
    %266 = arith.mulf %264, %265 : vector<64x32xf32>
    %cst_161 = arith.constant dense<0.000000e+00> : vector<32xf32>
    %267 = vector.multi_reduction <add>, %266, %cst_161 [0] : vector<64x32xf32> to vector<32xf32>
    %268 = vector.shape_cast %267 : vector<32xf32> to vector<1x32xf32>
    %269 = vector.broadcast %60 : f32 to vector<1x32xf32>
    %270 = arith.divf %268, %269 : vector<1x32xf32>
    %cst_162 = arith.constant 0.000000e+00 : f32
    %271 = vector.broadcast %cst_162 : f32 to vector<1x32xf32>
    %c1_i32_163 = arith.constant 1 : i32
    %272 = tpu.dynamic_rotate %270 by %c1_i32_163 dim 1 : vector<1x32xf32>, i32 -> vector<1x32xf32>
    %c-1_i32_164 = arith.constant -1 : i32
    %273 = vector.broadcast %c-1_i32_164 : i32 to vector<1x32xi32>
    %274 = arith.addi %61, %273 : vector<1x32xi32>
    %c0_i32_165 = arith.constant 0 : i32
    %275 = vector.broadcast %c0_i32_165 : i32 to vector<1x32xi32>
    %276 = arith.cmpi sge, %274, %275 : vector<1x32xi32>
    %c-1_i32_166 = arith.constant -1 : i32
    %277 = vector.broadcast %c-1_i32_166 : i32 to vector<1x32xi32>
    %278 = arith.addi %61, %277 : vector<1x32xi32>
    %c32_i32_167 = arith.constant 32 : i32
    %279 = vector.broadcast %c32_i32_167 : i32 to vector<1x32xi32>
    %280 = arith.cmpi slt, %278, %279 : vector<1x32xi32>
    %281 = arith.andi %276, %280 : vector<1x32xi1>
    %c2_168 = arith.constant 2 : index
    %c0_169 = arith.constant 0 : index
    %282 = memref.load %arg20[%c2_168, %c0_169] : memref<5x3xf32, #tpu.memory_space<smem>>
    %cst_170 = arith.constant 0.000000e+00 : f32
    %283 = vector.broadcast %cst_170 : f32 to vector<1x32xf32>
    %284 = arith.select %281, %272, %283 : vector<1x32xi1>, vector<1x32xf32>
    %285 = vector.broadcast %282 : f32 to vector<1x32xf32>
    %286 = arith.mulf %285, %284 : vector<1x32xf32>
    %287 = arith.addf %271, %286 : vector<1x32xf32>
    %c0_i32_171 = arith.constant 0 : i32
    %288 = vector.broadcast %c0_i32_171 : i32 to vector<1x32xi32>
    %289 = arith.addi %61, %288 : vector<1x32xi32>
    %c0_i32_172 = arith.constant 0 : i32
    %290 = vector.broadcast %c0_i32_172 : i32 to vector<1x32xi32>
    %291 = arith.cmpi sge, %289, %290 : vector<1x32xi32>
    %c0_i32_173 = arith.constant 0 : i32
    %292 = vector.broadcast %c0_i32_173 : i32 to vector<1x32xi32>
    %293 = arith.addi %61, %292 : vector<1x32xi32>
    %c32_i32_174 = arith.constant 32 : i32
    %294 = vector.broadcast %c32_i32_174 : i32 to vector<1x32xi32>
    %295 = arith.cmpi slt, %293, %294 : vector<1x32xi32>
    %296 = arith.andi %291, %295 : vector<1x32xi1>
    %c2_175 = arith.constant 2 : index
    %c1_176 = arith.constant 1 : index
    %297 = memref.load %arg20[%c2_175, %c1_176] : memref<5x3xf32, #tpu.memory_space<smem>>
    %cst_177 = arith.constant 0.000000e+00 : f32
    %298 = vector.broadcast %cst_177 : f32 to vector<1x32xf32>
    %299 = arith.select %296, %270, %298 : vector<1x32xi1>, vector<1x32xf32>
    %300 = vector.broadcast %297 : f32 to vector<1x32xf32>
    %301 = arith.mulf %300, %299 : vector<1x32xf32>
    %302 = arith.addf %287, %301 : vector<1x32xf32>
    %c31_i32_178 = arith.constant 31 : i32
    %303 = tpu.dynamic_rotate %270 by %c31_i32_178 dim 1 : vector<1x32xf32>, i32 -> vector<1x32xf32>
    %c1_i32_179 = arith.constant 1 : i32
    %304 = vector.broadcast %c1_i32_179 : i32 to vector<1x32xi32>
    %305 = arith.addi %61, %304 : vector<1x32xi32>
    %c0_i32_180 = arith.constant 0 : i32
    %306 = vector.broadcast %c0_i32_180 : i32 to vector<1x32xi32>
    %307 = arith.cmpi sge, %305, %306 : vector<1x32xi32>
    %c1_i32_181 = arith.constant 1 : i32
    %308 = vector.broadcast %c1_i32_181 : i32 to vector<1x32xi32>
    %309 = arith.addi %61, %308 : vector<1x32xi32>
    %c32_i32_182 = arith.constant 32 : i32
    %310 = vector.broadcast %c32_i32_182 : i32 to vector<1x32xi32>
    %311 = arith.cmpi slt, %309, %310 : vector<1x32xi32>
    %312 = arith.andi %307, %311 : vector<1x32xi1>
    %c2_183 = arith.constant 2 : index
    %c2_184 = arith.constant 2 : index
    %313 = memref.load %arg20[%c2_183, %c2_184] : memref<5x3xf32, #tpu.memory_space<smem>>
    %cst_185 = arith.constant 0.000000e+00 : f32
    %314 = vector.broadcast %cst_185 : f32 to vector<1x32xf32>
    %315 = arith.select %312, %303, %314 : vector<1x32xi1>, vector<1x32xf32>
    %316 = vector.broadcast %313 : f32 to vector<1x32xf32>
    %317 = arith.mulf %316, %315 : vector<1x32xf32>
    %318 = arith.addf %302, %317 : vector<1x32xf32>
    %319 = arith.negf %318 : vector<1x32xf32>
    %320 = math.exp %319 : vector<1x32xf32>
    %cst_186 = arith.constant 1.000000e+00 : f32
    %321 = vector.broadcast %cst_186 : f32 to vector<1x32xf32>
    %322 = arith.addf %321, %320 : vector<1x32xf32>
    %323 = arith.divf %321, %322 : vector<1x32xf32>
    %324 = vector.broadcast %323 : vector<1x32xf32> to vector<64x32xf32>
    %325 = arith.mulf %264, %324 : vector<64x32xf32>
    %c2_187 = arith.constant 2 : index
    %c0_188 = arith.constant 0 : index
    %c0_189 = arith.constant 0 : index
    %326 = vector.load %arg21[%c2_187, %c0_188, %c0_189] : memref<5x32x32xf32, #tpu.memory_space<vmem>>, vector<1x32x32xf32>
    %327 = vector.shape_cast %326 : vector<1x32x32xf32> to vector<32x32xf32>
    %cst_190 = arith.constant dense<0.000000e+00> : vector<64x32xf32>
    %328 = tpu.matmul %325, %327, %cst_190 {dimension_numbers = #tpu.dot_dimension_numbers<[1], [0], [0], [1], [0, 0, 1, 1], [], []>} : vector<64x32xf32>, vector<32x32xf32>, vector<64x32xf32> -> vector<64x32xf32>
    %c2_191 = arith.constant 2 : index
    %c0_192 = arith.constant 0 : index
    %c0_193 = arith.constant 0 : index
    %329 = vector.load %arg22[%c2_191, %c0_192, %c0_193] : memref<5x1x32xf32, #tpu.memory_space<vmem>>, vector<1x1x32xf32>
    %330 = vector.shape_cast %329 : vector<1x1x32xf32> to vector<1x32xf32>
    %331 = vector.broadcast %330 : vector<1x32xf32> to vector<64x32xf32>
    %332 = arith.mulf %328, %331 : vector<64x32xf32>
    %c2_194 = arith.constant 2 : index
    %c0_195 = arith.constant 0 : index
    %c0_196 = arith.constant 0 : index
    %333 = vector.load %arg23[%c2_194, %c0_195, %c0_196] : memref<5x1x32xf32, #tpu.memory_space<vmem>>, vector<1x1x32xf32>
    %334 = vector.shape_cast %333 : vector<1x1x32xf32> to vector<1x32xf32>
    %335 = vector.broadcast %334 : vector<1x32xf32> to vector<64x32xf32>
    %336 = arith.addf %332, %335 : vector<64x32xf32>
    %cst_197 = arith.constant 0.000000e+00 : f32
    %337 = vector.broadcast %cst_197 : f32 to vector<64x32xf32>
    %338 = arith.maximumf %336, %337 : vector<64x32xf32>
    %c2_198 = arith.constant 2 : index
    %c0_199 = arith.constant 0 : index
    %c0_200 = arith.constant 0 : index
    %339 = vector.load %arg24[%c2_198, %c0_199, %c0_200] : memref<5x32x32xf32, #tpu.memory_space<vmem>>, vector<1x32x32xf32>
    %340 = vector.shape_cast %339 : vector<1x32x32xf32> to vector<32x32xf32>
    %cst_201 = arith.constant dense<0.000000e+00> : vector<64x32xf32>
    %341 = tpu.matmul %338, %340, %cst_201 {dimension_numbers = #tpu.dot_dimension_numbers<[1], [0], [0], [1], [0, 0, 1, 1], [], []>} : vector<64x32xf32>, vector<32x32xf32>, vector<64x32xf32> -> vector<64x32xf32>
    %c2_202 = arith.constant 2 : index
    %c0_203 = arith.constant 0 : index
    %c0_204 = arith.constant 0 : index
    %342 = vector.load %arg25[%c2_202, %c0_203, %c0_204] : memref<5x1x32xf32, #tpu.memory_space<vmem>>, vector<1x1x32xf32>
    %343 = vector.shape_cast %342 : vector<1x1x32xf32> to vector<1x32xf32>
    %344 = vector.broadcast %343 : vector<1x32xf32> to vector<64x32xf32>
    %345 = arith.mulf %341, %344 : vector<64x32xf32>
    %c2_205 = arith.constant 2 : index
    %c0_206 = arith.constant 0 : index
    %c0_207 = arith.constant 0 : index
    %346 = vector.load %arg26[%c2_205, %c0_206, %c0_207] : memref<5x1x32xf32, #tpu.memory_space<vmem>>, vector<1x1x32xf32>
    %347 = vector.shape_cast %346 : vector<1x1x32xf32> to vector<1x32xf32>
    %348 = vector.broadcast %347 : vector<1x32xf32> to vector<64x32xf32>
    %349 = arith.addf %345, %348 : vector<64x32xf32>
    %c3 = arith.constant 3 : index
    %c0_208 = arith.constant 0 : index
    %c0_209 = arith.constant 0 : index
    %350 = vector.load %arg17[%c3, %c0_208, %c0_209] : memref<5x160x32xf32, #tpu.memory_space<vmem>>, vector<1x160x32xf32>
    %351 = vector.shape_cast %350 : vector<1x160x32xf32> to vector<160x32xf32>
    %cst_210 = arith.constant dense<0.000000e+00> : vector<64x32xf32>
    %352 = tpu.matmul %55, %351, %cst_210 {dimension_numbers = #tpu.dot_dimension_numbers<[1], [0], [0], [1], [0, 0, 1, 1], [], []>} : vector<64x160xf32>, vector<160x32xf32>, vector<64x32xf32> -> vector<64x32xf32>
    %c3_211 = arith.constant 3 : index
    %c0_212 = arith.constant 0 : index
    %c0_213 = arith.constant 0 : index
    %353 = vector.load %arg18[%c3_211, %c0_212, %c0_213] : memref<5x1x32xf32, #tpu.memory_space<vmem>>, vector<1x1x32xf32>
    %354 = vector.shape_cast %353 : vector<1x1x32xf32> to vector<1x32xf32>
    %355 = vector.broadcast %354 : vector<1x32xf32> to vector<64x32xf32>
    %356 = arith.mulf %352, %355 : vector<64x32xf32>
    %c3_214 = arith.constant 3 : index
    %c0_215 = arith.constant 0 : index
    %c0_216 = arith.constant 0 : index
    %357 = vector.load %arg19[%c3_214, %c0_215, %c0_216] : memref<5x1x32xf32, #tpu.memory_space<vmem>>, vector<1x1x32xf32>
    %358 = vector.shape_cast %357 : vector<1x1x32xf32> to vector<1x32xf32>
    %359 = vector.broadcast %358 : vector<1x32xf32> to vector<64x32xf32>
    %360 = arith.addf %356, %359 : vector<64x32xf32>
    %361 = vector.broadcast %1 : vector<64x1xf32> to vector<64x32xf32>
    %362 = arith.mulf %360, %361 : vector<64x32xf32>
    %cst_217 = arith.constant dense<0.000000e+00> : vector<32xf32>
    %363 = vector.multi_reduction <add>, %362, %cst_217 [0] : vector<64x32xf32> to vector<32xf32>
    %364 = vector.shape_cast %363 : vector<32xf32> to vector<1x32xf32>
    %365 = vector.broadcast %60 : f32 to vector<1x32xf32>
    %366 = arith.divf %364, %365 : vector<1x32xf32>
    %cst_218 = arith.constant 0.000000e+00 : f32
    %367 = vector.broadcast %cst_218 : f32 to vector<1x32xf32>
    %c1_i32_219 = arith.constant 1 : i32
    %368 = tpu.dynamic_rotate %366 by %c1_i32_219 dim 1 : vector<1x32xf32>, i32 -> vector<1x32xf32>
    %c-1_i32_220 = arith.constant -1 : i32
    %369 = vector.broadcast %c-1_i32_220 : i32 to vector<1x32xi32>
    %370 = arith.addi %61, %369 : vector<1x32xi32>
    %c0_i32_221 = arith.constant 0 : i32
    %371 = vector.broadcast %c0_i32_221 : i32 to vector<1x32xi32>
    %372 = arith.cmpi sge, %370, %371 : vector<1x32xi32>
    %c-1_i32_222 = arith.constant -1 : i32
    %373 = vector.broadcast %c-1_i32_222 : i32 to vector<1x32xi32>
    %374 = arith.addi %61, %373 : vector<1x32xi32>
    %c32_i32_223 = arith.constant 32 : i32
    %375 = vector.broadcast %c32_i32_223 : i32 to vector<1x32xi32>
    %376 = arith.cmpi slt, %374, %375 : vector<1x32xi32>
    %377 = arith.andi %372, %376 : vector<1x32xi1>
    %c3_224 = arith.constant 3 : index
    %c0_225 = arith.constant 0 : index
    %378 = memref.load %arg20[%c3_224, %c0_225] : memref<5x3xf32, #tpu.memory_space<smem>>
    %cst_226 = arith.constant 0.000000e+00 : f32
    %379 = vector.broadcast %cst_226 : f32 to vector<1x32xf32>
    %380 = arith.select %377, %368, %379 : vector<1x32xi1>, vector<1x32xf32>
    %381 = vector.broadcast %378 : f32 to vector<1x32xf32>
    %382 = arith.mulf %381, %380 : vector<1x32xf32>
    %383 = arith.addf %367, %382 : vector<1x32xf32>
    %c0_i32_227 = arith.constant 0 : i32
    %384 = vector.broadcast %c0_i32_227 : i32 to vector<1x32xi32>
    %385 = arith.addi %61, %384 : vector<1x32xi32>
    %c0_i32_228 = arith.constant 0 : i32
    %386 = vector.broadcast %c0_i32_228 : i32 to vector<1x32xi32>
    %387 = arith.cmpi sge, %385, %386 : vector<1x32xi32>
    %c0_i32_229 = arith.constant 0 : i32
    %388 = vector.broadcast %c0_i32_229 : i32 to vector<1x32xi32>
    %389 = arith.addi %61, %388 : vector<1x32xi32>
    %c32_i32_230 = arith.constant 32 : i32
    %390 = vector.broadcast %c32_i32_230 : i32 to vector<1x32xi32>
    %391 = arith.cmpi slt, %389, %390 : vector<1x32xi32>
    %392 = arith.andi %387, %391 : vector<1x32xi1>
    %c3_231 = arith.constant 3 : index
    %c1_232 = arith.constant 1 : index
    %393 = memref.load %arg20[%c3_231, %c1_232] : memref<5x3xf32, #tpu.memory_space<smem>>
    %cst_233 = arith.constant 0.000000e+00 : f32
    %394 = vector.broadcast %cst_233 : f32 to vector<1x32xf32>
    %395 = arith.select %392, %366, %394 : vector<1x32xi1>, vector<1x32xf32>
    %396 = vector.broadcast %393 : f32 to vector<1x32xf32>
    %397 = arith.mulf %396, %395 : vector<1x32xf32>
    %398 = arith.addf %383, %397 : vector<1x32xf32>
    %c31_i32_234 = arith.constant 31 : i32
    %399 = tpu.dynamic_rotate %366 by %c31_i32_234 dim 1 : vector<1x32xf32>, i32 -> vector<1x32xf32>
    %c1_i32_235 = arith.constant 1 : i32
    %400 = vector.broadcast %c1_i32_235 : i32 to vector<1x32xi32>
    %401 = arith.addi %61, %400 : vector<1x32xi32>
    %c0_i32_236 = arith.constant 0 : i32
    %402 = vector.broadcast %c0_i32_236 : i32 to vector<1x32xi32>
    %403 = arith.cmpi sge, %401, %402 : vector<1x32xi32>
    %c1_i32_237 = arith.constant 1 : i32
    %404 = vector.broadcast %c1_i32_237 : i32 to vector<1x32xi32>
    %405 = arith.addi %61, %404 : vector<1x32xi32>
    %c32_i32_238 = arith.constant 32 : i32
    %406 = vector.broadcast %c32_i32_238 : i32 to vector<1x32xi32>
    %407 = arith.cmpi slt, %405, %406 : vector<1x32xi32>
    %408 = arith.andi %403, %407 : vector<1x32xi1>
    %c3_239 = arith.constant 3 : index
    %c2_240 = arith.constant 2 : index
    %409 = memref.load %arg20[%c3_239, %c2_240] : memref<5x3xf32, #tpu.memory_space<smem>>
    %cst_241 = arith.constant 0.000000e+00 : f32
    %410 = vector.broadcast %cst_241 : f32 to vector<1x32xf32>
    %411 = arith.select %408, %399, %410 : vector<1x32xi1>, vector<1x32xf32>
    %412 = vector.broadcast %409 : f32 to vector<1x32xf32>
    %413 = arith.mulf %412, %411 : vector<1x32xf32>
    %414 = arith.addf %398, %413 : vector<1x32xf32>
    %415 = arith.negf %414 : vector<1x32xf32>
    %416 = math.exp %415 : vector<1x32xf32>
    %cst_242 = arith.constant 1.000000e+00 : f32
    %417 = vector.broadcast %cst_242 : f32 to vector<1x32xf32>
    %418 = arith.addf %417, %416 : vector<1x32xf32>
    %419 = arith.divf %417, %418 : vector<1x32xf32>
    %420 = vector.broadcast %419 : vector<1x32xf32> to vector<64x32xf32>
    %421 = arith.mulf %360, %420 : vector<64x32xf32>
    %c3_243 = arith.constant 3 : index
    %c0_244 = arith.constant 0 : index
    %c0_245 = arith.constant 0 : index
    %422 = vector.load %arg21[%c3_243, %c0_244, %c0_245] : memref<5x32x32xf32, #tpu.memory_space<vmem>>, vector<1x32x32xf32>
    %423 = vector.shape_cast %422 : vector<1x32x32xf32> to vector<32x32xf32>
    %cst_246 = arith.constant dense<0.000000e+00> : vector<64x32xf32>
    %424 = tpu.matmul %421, %423, %cst_246 {dimension_numbers = #tpu.dot_dimension_numbers<[1], [0], [0], [1], [0, 0, 1, 1], [], []>} : vector<64x32xf32>, vector<32x32xf32>, vector<64x32xf32> -> vector<64x32xf32>
    %c3_247 = arith.constant 3 : index
    %c0_248 = arith.constant 0 : index
    %c0_249 = arith.constant 0 : index
    %425 = vector.load %arg22[%c3_247, %c0_248, %c0_249] : memref<5x1x32xf32, #tpu.memory_space<vmem>>, vector<1x1x32xf32>
    %426 = vector.shape_cast %425 : vector<1x1x32xf32> to vector<1x32xf32>
    %427 = vector.broadcast %426 : vector<1x32xf32> to vector<64x32xf32>
    %428 = arith.mulf %424, %427 : vector<64x32xf32>
    %c3_250 = arith.constant 3 : index
    %c0_251 = arith.constant 0 : index
    %c0_252 = arith.constant 0 : index
    %429 = vector.load %arg23[%c3_250, %c0_251, %c0_252] : memref<5x1x32xf32, #tpu.memory_space<vmem>>, vector<1x1x32xf32>
    %430 = vector.shape_cast %429 : vector<1x1x32xf32> to vector<1x32xf32>
    %431 = vector.broadcast %430 : vector<1x32xf32> to vector<64x32xf32>
    %432 = arith.addf %428, %431 : vector<64x32xf32>
    %cst_253 = arith.constant 0.000000e+00 : f32
    %433 = vector.broadcast %cst_253 : f32 to vector<64x32xf32>
    %434 = arith.maximumf %432, %433 : vector<64x32xf32>
    %c3_254 = arith.constant 3 : index
    %c0_255 = arith.constant 0 : index
    %c0_256 = arith.constant 0 : index
    %435 = vector.load %arg24[%c3_254, %c0_255, %c0_256] : memref<5x32x32xf32, #tpu.memory_space<vmem>>, vector<1x32x32xf32>
    %436 = vector.shape_cast %435 : vector<1x32x32xf32> to vector<32x32xf32>
    %cst_257 = arith.constant dense<0.000000e+00> : vector<64x32xf32>
    %437 = tpu.matmul %434, %436, %cst_257 {dimension_numbers = #tpu.dot_dimension_numbers<[1], [0], [0], [1], [0, 0, 1, 1], [], []>} : vector<64x32xf32>, vector<32x32xf32>, vector<64x32xf32> -> vector<64x32xf32>
    %c3_258 = arith.constant 3 : index
    %c0_259 = arith.constant 0 : index
    %c0_260 = arith.constant 0 : index
    %438 = vector.load %arg25[%c3_258, %c0_259, %c0_260] : memref<5x1x32xf32, #tpu.memory_space<vmem>>, vector<1x1x32xf32>
    %439 = vector.shape_cast %438 : vector<1x1x32xf32> to vector<1x32xf32>
    %440 = vector.broadcast %439 : vector<1x32xf32> to vector<64x32xf32>
    %441 = arith.mulf %437, %440 : vector<64x32xf32>
    %c3_261 = arith.constant 3 : index
    %c0_262 = arith.constant 0 : index
    %c0_263 = arith.constant 0 : index
    %442 = vector.load %arg26[%c3_261, %c0_262, %c0_263] : memref<5x1x32xf32, #tpu.memory_space<vmem>>, vector<1x1x32xf32>
    %443 = vector.shape_cast %442 : vector<1x1x32xf32> to vector<1x32xf32>
    %444 = vector.broadcast %443 : vector<1x32xf32> to vector<64x32xf32>
    %445 = arith.addf %441, %444 : vector<64x32xf32>
    %c4 = arith.constant 4 : index
    %c0_264 = arith.constant 0 : index
    %c0_265 = arith.constant 0 : index
    %446 = vector.load %arg17[%c4, %c0_264, %c0_265] : memref<5x160x32xf32, #tpu.memory_space<vmem>>, vector<1x160x32xf32>
    %447 = vector.shape_cast %446 : vector<1x160x32xf32> to vector<160x32xf32>
    %cst_266 = arith.constant dense<0.000000e+00> : vector<64x32xf32>
    %448 = tpu.matmul %55, %447, %cst_266 {dimension_numbers = #tpu.dot_dimension_numbers<[1], [0], [0], [1], [0, 0, 1, 1], [], []>} : vector<64x160xf32>, vector<160x32xf32>, vector<64x32xf32> -> vector<64x32xf32>
    %c4_267 = arith.constant 4 : index
    %c0_268 = arith.constant 0 : index
    %c0_269 = arith.constant 0 : index
    %449 = vector.load %arg18[%c4_267, %c0_268, %c0_269] : memref<5x1x32xf32, #tpu.memory_space<vmem>>, vector<1x1x32xf32>
    %450 = vector.shape_cast %449 : vector<1x1x32xf32> to vector<1x32xf32>
    %451 = vector.broadcast %450 : vector<1x32xf32> to vector<64x32xf32>
    %452 = arith.mulf %448, %451 : vector<64x32xf32>
    %c4_270 = arith.constant 4 : index
    %c0_271 = arith.constant 0 : index
    %c0_272 = arith.constant 0 : index
    %453 = vector.load %arg19[%c4_270, %c0_271, %c0_272] : memref<5x1x32xf32, #tpu.memory_space<vmem>>, vector<1x1x32xf32>
    %454 = vector.shape_cast %453 : vector<1x1x32xf32> to vector<1x32xf32>
    %455 = vector.broadcast %454 : vector<1x32xf32> to vector<64x32xf32>
    %456 = arith.addf %452, %455 : vector<64x32xf32>
    %457 = vector.broadcast %1 : vector<64x1xf32> to vector<64x32xf32>
    %458 = arith.mulf %456, %457 : vector<64x32xf32>
    %cst_273 = arith.constant dense<0.000000e+00> : vector<32xf32>
    %459 = vector.multi_reduction <add>, %458, %cst_273 [0] : vector<64x32xf32> to vector<32xf32>
    %460 = vector.shape_cast %459 : vector<32xf32> to vector<1x32xf32>
    %461 = vector.broadcast %60 : f32 to vector<1x32xf32>
    %462 = arith.divf %460, %461 : vector<1x32xf32>
    %cst_274 = arith.constant 0.000000e+00 : f32
    %463 = vector.broadcast %cst_274 : f32 to vector<1x32xf32>
    %c1_i32_275 = arith.constant 1 : i32
    %464 = tpu.dynamic_rotate %462 by %c1_i32_275 dim 1 : vector<1x32xf32>, i32 -> vector<1x32xf32>
    %c-1_i32_276 = arith.constant -1 : i32
    %465 = vector.broadcast %c-1_i32_276 : i32 to vector<1x32xi32>
    %466 = arith.addi %61, %465 : vector<1x32xi32>
    %c0_i32_277 = arith.constant 0 : i32
    %467 = vector.broadcast %c0_i32_277 : i32 to vector<1x32xi32>
    %468 = arith.cmpi sge, %466, %467 : vector<1x32xi32>
    %c-1_i32_278 = arith.constant -1 : i32
    %469 = vector.broadcast %c-1_i32_278 : i32 to vector<1x32xi32>
    %470 = arith.addi %61, %469 : vector<1x32xi32>
    %c32_i32_279 = arith.constant 32 : i32
    %471 = vector.broadcast %c32_i32_279 : i32 to vector<1x32xi32>
    %472 = arith.cmpi slt, %470, %471 : vector<1x32xi32>
    %473 = arith.andi %468, %472 : vector<1x32xi1>
    %c4_280 = arith.constant 4 : index
    %c0_281 = arith.constant 0 : index
    %474 = memref.load %arg20[%c4_280, %c0_281] : memref<5x3xf32, #tpu.memory_space<smem>>
    %cst_282 = arith.constant 0.000000e+00 : f32
    %475 = vector.broadcast %cst_282 : f32 to vector<1x32xf32>
    %476 = arith.select %473, %464, %475 : vector<1x32xi1>, vector<1x32xf32>
    %477 = vector.broadcast %474 : f32 to vector<1x32xf32>
    %478 = arith.mulf %477, %476 : vector<1x32xf32>
    %479 = arith.addf %463, %478 : vector<1x32xf32>
    %c0_i32_283 = arith.constant 0 : i32
    %480 = vector.broadcast %c0_i32_283 : i32 to vector<1x32xi32>
    %481 = arith.addi %61, %480 : vector<1x32xi32>
    %c0_i32_284 = arith.constant 0 : i32
    %482 = vector.broadcast %c0_i32_284 : i32 to vector<1x32xi32>
    %483 = arith.cmpi sge, %481, %482 : vector<1x32xi32>
    %c0_i32_285 = arith.constant 0 : i32
    %484 = vector.broadcast %c0_i32_285 : i32 to vector<1x32xi32>
    %485 = arith.addi %61, %484 : vector<1x32xi32>
    %c32_i32_286 = arith.constant 32 : i32
    %486 = vector.broadcast %c32_i32_286 : i32 to vector<1x32xi32>
    %487 = arith.cmpi slt, %485, %486 : vector<1x32xi32>
    %488 = arith.andi %483, %487 : vector<1x32xi1>
    %c4_287 = arith.constant 4 : index
    %c1_288 = arith.constant 1 : index
    %489 = memref.load %arg20[%c4_287, %c1_288] : memref<5x3xf32, #tpu.memory_space<smem>>
    %cst_289 = arith.constant 0.000000e+00 : f32
    %490 = vector.broadcast %cst_289 : f32 to vector<1x32xf32>
    %491 = arith.select %488, %462, %490 : vector<1x32xi1>, vector<1x32xf32>
    %492 = vector.broadcast %489 : f32 to vector<1x32xf32>
    %493 = arith.mulf %492, %491 : vector<1x32xf32>
    %494 = arith.addf %479, %493 : vector<1x32xf32>
    %c31_i32_290 = arith.constant 31 : i32
    %495 = tpu.dynamic_rotate %462 by %c31_i32_290 dim 1 : vector<1x32xf32>, i32 -> vector<1x32xf32>
    %c1_i32_291 = arith.constant 1 : i32
    %496 = vector.broadcast %c1_i32_291 : i32 to vector<1x32xi32>
    %497 = arith.addi %61, %496 : vector<1x32xi32>
    %c0_i32_292 = arith.constant 0 : i32
    %498 = vector.broadcast %c0_i32_292 : i32 to vector<1x32xi32>
    %499 = arith.cmpi sge, %497, %498 : vector<1x32xi32>
    %c1_i32_293 = arith.constant 1 : i32
    %500 = vector.broadcast %c1_i32_293 : i32 to vector<1x32xi32>
    %501 = arith.addi %61, %500 : vector<1x32xi32>
    %c32_i32_294 = arith.constant 32 : i32
    %502 = vector.broadcast %c32_i32_294 : i32 to vector<1x32xi32>
    %503 = arith.cmpi slt, %501, %502 : vector<1x32xi32>
    %504 = arith.andi %499, %503 : vector<1x32xi1>
    %c4_295 = arith.constant 4 : index
    %c2_296 = arith.constant 2 : index
    %505 = memref.load %arg20[%c4_295, %c2_296] : memref<5x3xf32, #tpu.memory_space<smem>>
    %cst_297 = arith.constant 0.000000e+00 : f32
    %506 = vector.broadcast %cst_297 : f32 to vector<1x32xf32>
    %507 = arith.select %504, %495, %506 : vector<1x32xi1>, vector<1x32xf32>
    %508 = vector.broadcast %505 : f32 to vector<1x32xf32>
    %509 = arith.mulf %508, %507 : vector<1x32xf32>
    %510 = arith.addf %494, %509 : vector<1x32xf32>
    %511 = arith.negf %510 : vector<1x32xf32>
    %512 = math.exp %511 : vector<1x32xf32>
    %cst_298 = arith.constant 1.000000e+00 : f32
    %513 = vector.broadcast %cst_298 : f32 to vector<1x32xf32>
    %514 = arith.addf %513, %512 : vector<1x32xf32>
    %515 = arith.divf %513, %514 : vector<1x32xf32>
    %516 = vector.broadcast %515 : vector<1x32xf32> to vector<64x32xf32>
    %517 = arith.mulf %456, %516 : vector<64x32xf32>
    %c4_299 = arith.constant 4 : index
    %c0_300 = arith.constant 0 : index
    %c0_301 = arith.constant 0 : index
    %518 = vector.load %arg21[%c4_299, %c0_300, %c0_301] : memref<5x32x32xf32, #tpu.memory_space<vmem>>, vector<1x32x32xf32>
    %519 = vector.shape_cast %518 : vector<1x32x32xf32> to vector<32x32xf32>
    %cst_302 = arith.constant dense<0.000000e+00> : vector<64x32xf32>
    %520 = tpu.matmul %517, %519, %cst_302 {dimension_numbers = #tpu.dot_dimension_numbers<[1], [0], [0], [1], [0, 0, 1, 1], [], []>} : vector<64x32xf32>, vector<32x32xf32>, vector<64x32xf32> -> vector<64x32xf32>
    %c4_303 = arith.constant 4 : index
    %c0_304 = arith.constant 0 : index
    %c0_305 = arith.constant 0 : index
    %521 = vector.load %arg22[%c4_303, %c0_304, %c0_305] : memref<5x1x32xf32, #tpu.memory_space<vmem>>, vector<1x1x32xf32>
    %522 = vector.shape_cast %521 : vector<1x1x32xf32> to vector<1x32xf32>
    %523 = vector.broadcast %522 : vector<1x32xf32> to vector<64x32xf32>
    %524 = arith.mulf %520, %523 : vector<64x32xf32>
    %c4_306 = arith.constant 4 : index
    %c0_307 = arith.constant 0 : index
    %c0_308 = arith.constant 0 : index
    %525 = vector.load %arg23[%c4_306, %c0_307, %c0_308] : memref<5x1x32xf32, #tpu.memory_space<vmem>>, vector<1x1x32xf32>
    %526 = vector.shape_cast %525 : vector<1x1x32xf32> to vector<1x32xf32>
    %527 = vector.broadcast %526 : vector<1x32xf32> to vector<64x32xf32>
    %528 = arith.addf %524, %527 : vector<64x32xf32>
    %cst_309 = arith.constant 0.000000e+00 : f32
    %529 = vector.broadcast %cst_309 : f32 to vector<64x32xf32>
    %530 = arith.maximumf %528, %529 : vector<64x32xf32>
    %c4_310 = arith.constant 4 : index
    %c0_311 = arith.constant 0 : index
    %c0_312 = arith.constant 0 : index
    %531 = vector.load %arg24[%c4_310, %c0_311, %c0_312] : memref<5x32x32xf32, #tpu.memory_space<vmem>>, vector<1x32x32xf32>
    %532 = vector.shape_cast %531 : vector<1x32x32xf32> to vector<32x32xf32>
    %cst_313 = arith.constant dense<0.000000e+00> : vector<64x32xf32>
    %533 = tpu.matmul %530, %532, %cst_313 {dimension_numbers = #tpu.dot_dimension_numbers<[1], [0], [0], [1], [0, 0, 1, 1], [], []>} : vector<64x32xf32>, vector<32x32xf32>, vector<64x32xf32> -> vector<64x32xf32>
    %c4_314 = arith.constant 4 : index
    %c0_315 = arith.constant 0 : index
    %c0_316 = arith.constant 0 : index
    %534 = vector.load %arg25[%c4_314, %c0_315, %c0_316] : memref<5x1x32xf32, #tpu.memory_space<vmem>>, vector<1x1x32xf32>
    %535 = vector.shape_cast %534 : vector<1x1x32xf32> to vector<1x32xf32>
    %536 = vector.broadcast %535 : vector<1x32xf32> to vector<64x32xf32>
    %537 = arith.mulf %533, %536 : vector<64x32xf32>
    %c4_317 = arith.constant 4 : index
    %c0_318 = arith.constant 0 : index
    %c0_319 = arith.constant 0 : index
    %538 = vector.load %arg26[%c4_317, %c0_318, %c0_319] : memref<5x1x32xf32, #tpu.memory_space<vmem>>, vector<1x1x32xf32>
    %539 = vector.shape_cast %538 : vector<1x1x32xf32> to vector<1x32xf32>
    %540 = vector.broadcast %539 : vector<1x32xf32> to vector<64x32xf32>
    %541 = arith.addf %537, %540 : vector<64x32xf32>
    %542 = arith.addf %157, %253 : vector<64x32xf32>
    %543 = arith.addf %542, %349 : vector<64x32xf32>
    %544 = arith.addf %543, %445 : vector<64x32xf32>
    %545 = arith.addf %544, %541 : vector<64x32xf32>
    %c0_320 = arith.constant 0 : index
    %c0_321 = arith.constant 0 : index
    %c0_322 = arith.constant 0 : index
    %546 = vector.load %arg27[%c0_320, %c0_321, %c0_322] : memref<5x32x32xf32, #tpu.memory_space<vmem>>, vector<1x32x32xf32>
    %547 = vector.shape_cast %546 : vector<1x32x32xf32> to vector<32x32xf32>
    %cst_323 = arith.constant dense<0.000000e+00> : vector<64x32xf32>
    %548 = tpu.matmul %545, %547, %cst_323 {dimension_numbers = #tpu.dot_dimension_numbers<[1], [0], [0], [1], [0, 0, 1, 1], [], []>} : vector<64x32xf32>, vector<32x32xf32>, vector<64x32xf32> -> vector<64x32xf32>
    %c0_324 = arith.constant 0 : index
    %c0_325 = arith.constant 0 : index
    %c0_326 = arith.constant 0 : index
    %549 = vector.load %arg28[%c0_324, %c0_325, %c0_326] : memref<5x1x32xf32, #tpu.memory_space<vmem>>, vector<1x1x32xf32>
    %550 = vector.shape_cast %549 : vector<1x1x32xf32> to vector<1x32xf32>
    %551 = vector.broadcast %550 : vector<1x32xf32> to vector<64x32xf32>
    %552 = arith.mulf %548, %551 : vector<64x32xf32>
    %c0_327 = arith.constant 0 : index
    %c0_328 = arith.constant 0 : index
    %c0_329 = arith.constant 0 : index
    %553 = vector.load %arg29[%c0_327, %c0_328, %c0_329] : memref<5x1x32xf32, #tpu.memory_space<vmem>>, vector<1x1x32xf32>
    %554 = vector.shape_cast %553 : vector<1x1x32xf32> to vector<1x32xf32>
    %555 = vector.broadcast %554 : vector<1x32xf32> to vector<64x32xf32>
    %556 = arith.addf %552, %555 : vector<64x32xf32>
    %c1_330 = arith.constant 1 : index
    %c0_331 = arith.constant 0 : index
    %c0_332 = arith.constant 0 : index
    %557 = vector.load %arg27[%c1_330, %c0_331, %c0_332] : memref<5x32x32xf32, #tpu.memory_space<vmem>>, vector<1x32x32xf32>
    %558 = vector.shape_cast %557 : vector<1x32x32xf32> to vector<32x32xf32>
    %cst_333 = arith.constant dense<0.000000e+00> : vector<64x32xf32>
    %559 = tpu.matmul %545, %558, %cst_333 {dimension_numbers = #tpu.dot_dimension_numbers<[1], [0], [0], [1], [0, 0, 1, 1], [], []>} : vector<64x32xf32>, vector<32x32xf32>, vector<64x32xf32> -> vector<64x32xf32>
    %c1_334 = arith.constant 1 : index
    %c0_335 = arith.constant 0 : index
    %c0_336 = arith.constant 0 : index
    %560 = vector.load %arg28[%c1_334, %c0_335, %c0_336] : memref<5x1x32xf32, #tpu.memory_space<vmem>>, vector<1x1x32xf32>
    %561 = vector.shape_cast %560 : vector<1x1x32xf32> to vector<1x32xf32>
    %562 = vector.broadcast %561 : vector<1x32xf32> to vector<64x32xf32>
    %563 = arith.mulf %559, %562 : vector<64x32xf32>
    %c1_337 = arith.constant 1 : index
    %c0_338 = arith.constant 0 : index
    %c0_339 = arith.constant 0 : index
    %564 = vector.load %arg29[%c1_337, %c0_338, %c0_339] : memref<5x1x32xf32, #tpu.memory_space<vmem>>, vector<1x1x32xf32>
    %565 = vector.shape_cast %564 : vector<1x1x32xf32> to vector<1x32xf32>
    %566 = vector.broadcast %565 : vector<1x32xf32> to vector<64x32xf32>
    %567 = arith.addf %563, %566 : vector<64x32xf32>
    %c2_340 = arith.constant 2 : index
    %c0_341 = arith.constant 0 : index
    %c0_342 = arith.constant 0 : index
    %568 = vector.load %arg27[%c2_340, %c0_341, %c0_342] : memref<5x32x32xf32, #tpu.memory_space<vmem>>, vector<1x32x32xf32>
    %569 = vector.shape_cast %568 : vector<1x32x32xf32> to vector<32x32xf32>
    %cst_343 = arith.constant dense<0.000000e+00> : vector<64x32xf32>
    %570 = tpu.matmul %545, %569, %cst_343 {dimension_numbers = #tpu.dot_dimension_numbers<[1], [0], [0], [1], [0, 0, 1, 1], [], []>} : vector<64x32xf32>, vector<32x32xf32>, vector<64x32xf32> -> vector<64x32xf32>
    %c2_344 = arith.constant 2 : index
    %c0_345 = arith.constant 0 : index
    %c0_346 = arith.constant 0 : index
    %571 = vector.load %arg28[%c2_344, %c0_345, %c0_346] : memref<5x1x32xf32, #tpu.memory_space<vmem>>, vector<1x1x32xf32>
    %572 = vector.shape_cast %571 : vector<1x1x32xf32> to vector<1x32xf32>
    %573 = vector.broadcast %572 : vector<1x32xf32> to vector<64x32xf32>
    %574 = arith.mulf %570, %573 : vector<64x32xf32>
    %c2_347 = arith.constant 2 : index
    %c0_348 = arith.constant 0 : index
    %c0_349 = arith.constant 0 : index
    %575 = vector.load %arg29[%c2_347, %c0_348, %c0_349] : memref<5x1x32xf32, #tpu.memory_space<vmem>>, vector<1x1x32xf32>
    %576 = vector.shape_cast %575 : vector<1x1x32xf32> to vector<1x32xf32>
    %577 = vector.broadcast %576 : vector<1x32xf32> to vector<64x32xf32>
    %578 = arith.addf %574, %577 : vector<64x32xf32>
    %c3_350 = arith.constant 3 : index
    %c0_351 = arith.constant 0 : index
    %c0_352 = arith.constant 0 : index
    %579 = vector.load %arg27[%c3_350, %c0_351, %c0_352] : memref<5x32x32xf32, #tpu.memory_space<vmem>>, vector<1x32x32xf32>
    %580 = vector.shape_cast %579 : vector<1x32x32xf32> to vector<32x32xf32>
    %cst_353 = arith.constant dense<0.000000e+00> : vector<64x32xf32>
    %581 = tpu.matmul %545, %580, %cst_353 {dimension_numbers = #tpu.dot_dimension_numbers<[1], [0], [0], [1], [0, 0, 1, 1], [], []>} : vector<64x32xf32>, vector<32x32xf32>, vector<64x32xf32> -> vector<64x32xf32>
    %c3_354 = arith.constant 3 : index
    %c0_355 = arith.constant 0 : index
    %c0_356 = arith.constant 0 : index
    %582 = vector.load %arg28[%c3_354, %c0_355, %c0_356] : memref<5x1x32xf32, #tpu.memory_space<vmem>>, vector<1x1x32xf32>
    %583 = vector.shape_cast %582 : vector<1x1x32xf32> to vector<1x32xf32>
    %584 = vector.broadcast %583 : vector<1x32xf32> to vector<64x32xf32>
    %585 = arith.mulf %581, %584 : vector<64x32xf32>
    %c3_357 = arith.constant 3 : index
    %c0_358 = arith.constant 0 : index
    %c0_359 = arith.constant 0 : index
    %586 = vector.load %arg29[%c3_357, %c0_358, %c0_359] : memref<5x1x32xf32, #tpu.memory_space<vmem>>, vector<1x1x32xf32>
    %587 = vector.shape_cast %586 : vector<1x1x32xf32> to vector<1x32xf32>
    %588 = vector.broadcast %587 : vector<1x32xf32> to vector<64x32xf32>
    %589 = arith.addf %585, %588 : vector<64x32xf32>
    %c4_360 = arith.constant 4 : index
    %c0_361 = arith.constant 0 : index
    %c0_362 = arith.constant 0 : index
    %590 = vector.load %arg27[%c4_360, %c0_361, %c0_362] : memref<5x32x32xf32, #tpu.memory_space<vmem>>, vector<1x32x32xf32>
    %591 = vector.shape_cast %590 : vector<1x32x32xf32> to vector<32x32xf32>
    %cst_363 = arith.constant dense<0.000000e+00> : vector<64x32xf32>
    %592 = tpu.matmul %545, %591, %cst_363 {dimension_numbers = #tpu.dot_dimension_numbers<[1], [0], [0], [1], [0, 0, 1, 1], [], []>} : vector<64x32xf32>, vector<32x32xf32>, vector<64x32xf32> -> vector<64x32xf32>
    %c4_364 = arith.constant 4 : index
    %c0_365 = arith.constant 0 : index
    %c0_366 = arith.constant 0 : index
    %593 = vector.load %arg28[%c4_364, %c0_365, %c0_366] : memref<5x1x32xf32, #tpu.memory_space<vmem>>, vector<1x1x32xf32>
    %594 = vector.shape_cast %593 : vector<1x1x32xf32> to vector<1x32xf32>
    %595 = vector.broadcast %594 : vector<1x32xf32> to vector<64x32xf32>
    %596 = arith.mulf %592, %595 : vector<64x32xf32>
    %c4_367 = arith.constant 4 : index
    %c0_368 = arith.constant 0 : index
    %c0_369 = arith.constant 0 : index
    %597 = vector.load %arg29[%c4_367, %c0_368, %c0_369] : memref<5x1x32xf32, #tpu.memory_space<vmem>>, vector<1x1x32xf32>
    %598 = vector.shape_cast %597 : vector<1x1x32xf32> to vector<1x32xf32>
    %599 = vector.broadcast %598 : vector<1x32xf32> to vector<64x32xf32>
    %600 = arith.addf %596, %599 : vector<64x32xf32>
    %601 = arith.maximumf %556, %567 : vector<64x32xf32>
    %602 = arith.maximumf %601, %578 : vector<64x32xf32>
    %603 = arith.maximumf %602, %589 : vector<64x32xf32>
    %604 = arith.maximumf %603, %600 : vector<64x32xf32>
    %605 = arith.subf %556, %604 : vector<64x32xf32>
    %606 = math.exp %605 : vector<64x32xf32>
    %607 = arith.subf %567, %604 : vector<64x32xf32>
    %608 = math.exp %607 : vector<64x32xf32>
    %609 = arith.subf %578, %604 : vector<64x32xf32>
    %610 = math.exp %609 : vector<64x32xf32>
    %611 = arith.subf %589, %604 : vector<64x32xf32>
    %612 = math.exp %611 : vector<64x32xf32>
    %613 = arith.subf %600, %604 : vector<64x32xf32>
    %614 = math.exp %613 : vector<64x32xf32>
    %615 = arith.addf %606, %608 : vector<64x32xf32>
    %616 = arith.addf %615, %610 : vector<64x32xf32>
    %617 = arith.addf %616, %612 : vector<64x32xf32>
    %618 = arith.addf %617, %614 : vector<64x32xf32>
    %619 = arith.mulf %606, %133 : vector<64x32xf32>
    %620 = arith.mulf %608, %229 : vector<64x32xf32>
    %621 = arith.addf %619, %620 : vector<64x32xf32>
    %622 = arith.mulf %610, %325 : vector<64x32xf32>
    %623 = arith.addf %621, %622 : vector<64x32xf32>
    %624 = arith.mulf %612, %421 : vector<64x32xf32>
    %625 = arith.addf %623, %624 : vector<64x32xf32>
    %626 = arith.mulf %614, %517 : vector<64x32xf32>
    %627 = arith.addf %625, %626 : vector<64x32xf32>
    %628 = arith.divf %627, %618 : vector<64x32xf32>
    %629 = vector.broadcast %1 : vector<64x1xf32> to vector<64x32xf32>
    %630 = arith.mulf %628, %629 : vector<64x32xf32>
    %c0_370 = arith.constant 0 : index
    %c0_371 = arith.constant 0 : index
    %c0_372 = arith.constant 0 : index
    %631 = vector.load %arg30[%c0_370, %c0_371, %c0_372] : memref<1x64x32xf32, #tpu.memory_space<vmem>>, vector<1x64x32xf32>
    %632 = vector.shape_cast %631 : vector<1x64x32xf32> to vector<64x32xf32>
    %633 = vector.shape_cast %630 : vector<64x32xf32> to vector<1x64x32xf32>
    tpu.vector_store %arg30[%c0_370, %c0_371, %c0_372], %633 {strides = array<i32>} : memref<1x64x32xf32, #tpu.memory_space<vmem>>, vector<1x64x32xf32>,
    return
  }
  func.func @transform_0(%arg0: i32) -> (i32, i32, i32) {
    %c0_i32 = arith.constant 0 : i32
    %c0_i32_0 = arith.constant 0 : i32
    %c0_i32_1 = arith.constant 0 : i32
    return %arg0, %c0_i32, %c0_i32_0 : i32, i32, i32
  }
  func.func @transform_1(%arg0: i32) -> (i32, i32, i32) {
    %c0_i32 = arith.constant 0 : i32
    %c0_i32_0 = arith.constant 0 : i32
    %c0_i32_1 = arith.constant 0 : i32
    return %arg0, %c0_i32, %c0_i32_0 : i32, i32, i32
  }
  func.func @transform_2(%arg0: i32) -> (i32, i32) {
    %c0_i32 = arith.constant 0 : i32
    %c0_i32_0 = arith.constant 0 : i32
    %c0_i32_1 = arith.constant 0 : i32
    return %c0_i32, %c0_i32_0 : i32, i32
  }
  func.func @transform_3(%arg0: i32) -> (i32, i32) {
    %c0_i32 = arith.constant 0 : i32
    %c0_i32_0 = arith.constant 0 : i32
    %c0_i32_1 = arith.constant 0 : i32
    return %c0_i32, %c0_i32_0 : i32, i32
  }
  func.func @transform_4(%arg0: i32) -> (i32, i32) {
    %c0_i32 = arith.constant 0 : i32
    %c0_i32_0 = arith.constant 0 : i32
    %c0_i32_1 = arith.constant 0 : i32
    return %c0_i32, %c0_i32_0 : i32, i32
  }
  func.func @transform_5(%arg0: i32) -> (i32, i32) {
    %c0_i32 = arith.constant 0 : i32
    %c0_i32_0 = arith.constant 0 : i32
    %c0_i32_1 = arith.constant 0 : i32
    return %c0_i32, %c0_i32_0 : i32, i32
  }
  func.func @transform_6(%arg0: i32) -> (i32, i32) {
    %c0_i32 = arith.constant 0 : i32
    %c0_i32_0 = arith.constant 0 : i32
    %c0_i32_1 = arith.constant 0 : i32
    return %c0_i32, %c0_i32_0 : i32, i32
  }
  func.func @transform_7(%arg0: i32) -> (i32, i32) {
    %c0_i32 = arith.constant 0 : i32
    %c0_i32_0 = arith.constant 0 : i32
    %c0_i32_1 = arith.constant 0 : i32
    return %c0_i32, %c0_i32_0 : i32, i32
  }
  func.func @transform_8(%arg0: i32) -> (i32, i32) {
    %c0_i32 = arith.constant 0 : i32
    %c0_i32_0 = arith.constant 0 : i32
    %c0_i32_1 = arith.constant 0 : i32
    return %c0_i32, %c0_i32_0 : i32, i32
  }
  func.func @transform_9(%arg0: i32) -> (i32, i32) {
    %c0_i32 = arith.constant 0 : i32
    %c0_i32_0 = arith.constant 0 : i32
    %c0_i32_1 = arith.constant 0 : i32
    return %c0_i32, %c0_i32_0 : i32, i32
  }
  func.func @transform_10(%arg0: i32) -> (i32, i32) {
    %c0_i32 = arith.constant 0 : i32
    %c0_i32_0 = arith.constant 0 : i32
    %c0_i32_1 = arith.constant 0 : i32
    return %c0_i32, %c0_i32_0 : i32, i32
  }
  func.func @transform_11(%arg0: i32) -> (i32, i32) {
    %c0_i32 = arith.constant 0 : i32
    %c0_i32_0 = arith.constant 0 : i32
    %c0_i32_1 = arith.constant 0 : i32
    return %c0_i32, %c0_i32_0 : i32, i32
  }
  func.func @transform_12(%arg0: i32) -> (i32, i32) {
    %c0_i32 = arith.constant 0 : i32
    %c0_i32_0 = arith.constant 0 : i32
    %c0_i32_1 = arith.constant 0 : i32
    return %c0_i32, %c0_i32_0 : i32, i32
  }
  func.func @transform_13(%arg0: i32) -> (i32, i32) {
    %c0_i32 = arith.constant 0 : i32
    %c0_i32_0 = arith.constant 0 : i32
    %c0_i32_1 = arith.constant 0 : i32
    return %c0_i32, %c0_i32_0 : i32, i32
  }
  func.func @transform_14(%arg0: i32) -> (i32, i32) {
    %c0_i32 = arith.constant 0 : i32
    %c0_i32_0 = arith.constant 0 : i32
    %c0_i32_1 = arith.constant 0 : i32
    return %c0_i32, %c0_i32_0 : i32, i32
  }
  func.func @transform_15(%arg0: i32) -> (i32, i32) {
    %c0_i32 = arith.constant 0 : i32
    %c0_i32_0 = arith.constant 0 : i32
    %c0_i32_1 = arith.constant 0 : i32
    return %c0_i32, %c0_i32_0 : i32, i32
  }
  func.func @transform_16(%arg0: i32) -> (i32, i32, i32) {
    %c0_i32 = arith.constant 0 : i32
    %c0_i32_0 = arith.constant 0 : i32
    %c0_i32_1 = arith.constant 0 : i32
    %c0_i32_2 = arith.constant 0 : i32
    return %c0_i32, %c0_i32_0, %c0_i32_1 : i32, i32, i32
  }
  func.func @transform_17(%arg0: i32) -> (i32, i32, i32) {
    %c0_i32 = arith.constant 0 : i32
    %c0_i32_0 = arith.constant 0 : i32
    %c0_i32_1 = arith.constant 0 : i32
    %c0_i32_2 = arith.constant 0 : i32
    return %c0_i32, %c0_i32_0, %c0_i32_1 : i32, i32, i32
  }
  func.func @transform_18(%arg0: i32) -> (i32, i32, i32) {
    %c0_i32 = arith.constant 0 : i32
    %c0_i32_0 = arith.constant 0 : i32
    %c0_i32_1 = arith.constant 0 : i32
    %c0_i32_2 = arith.constant 0 : i32
    return %c0_i32, %c0_i32_0, %c0_i32_1 : i32, i32, i32
  }
  func.func @transform_19(%arg0: i32) -> (i32, i32) {
    %c0_i32 = arith.constant 0 : i32
    %c0_i32_0 = arith.constant 0 : i32
    %c0_i32_1 = arith.constant 0 : i32
    return %c0_i32, %c0_i32_0 : i32, i32
  }
  func.func @transform_20(%arg0: i32) -> (i32, i32, i32) {
    %c0_i32 = arith.constant 0 : i32
    %c0_i32_0 = arith.constant 0 : i32
    %c0_i32_1 = arith.constant 0 : i32
    %c0_i32_2 = arith.constant 0 : i32
    return %c0_i32, %c0_i32_0, %c0_i32_1 : i32, i32, i32
  }
  func.func @transform_21(%arg0: i32) -> (i32, i32, i32) {
    %c0_i32 = arith.constant 0 : i32
    %c0_i32_0 = arith.constant 0 : i32
    %c0_i32_1 = arith.constant 0 : i32
    %c0_i32_2 = arith.constant 0 : i32
    return %c0_i32, %c0_i32_0, %c0_i32_1 : i32, i32, i32
  }
  func.func @transform_22(%arg0: i32) -> (i32, i32, i32) {
    %c0_i32 = arith.constant 0 : i32
    %c0_i32_0 = arith.constant 0 : i32
    %c0_i32_1 = arith.constant 0 : i32
    %c0_i32_2 = arith.constant 0 : i32
    return %c0_i32, %c0_i32_0, %c0_i32_1 : i32, i32, i32
  }
  func.func @transform_23(%arg0: i32) -> (i32, i32, i32) {
    %c0_i32 = arith.constant 0 : i32
    %c0_i32_0 = arith.constant 0 : i32
    %c0_i32_1 = arith.constant 0 : i32
    %c0_i32_2 = arith.constant 0 : i32
    return %c0_i32, %c0_i32_0, %c0_i32_1 : i32, i32, i32
  }
  func.func @transform_24(%arg0: i32) -> (i32, i32, i32) {
    %c0_i32 = arith.constant 0 : i32
    %c0_i32_0 = arith.constant 0 : i32
    %c0_i32_1 = arith.constant 0 : i32
    %c0_i32_2 = arith.constant 0 : i32
    return %c0_i32, %c0_i32_0, %c0_i32_1 : i32, i32, i32
  }
  func.func @transform_25(%arg0: i32) -> (i32, i32, i32) {
    %c0_i32 = arith.constant 0 : i32
    %c0_i32_0 = arith.constant 0 : i32
    %c0_i32_1 = arith.constant 0 : i32
    %c0_i32_2 = arith.constant 0 : i32
    return %c0_i32, %c0_i32_0, %c0_i32_1 : i32, i32, i32
  }
  func.func @transform_26(%arg0: i32) -> (i32, i32, i32) {
    %c0_i32 = arith.constant 0 : i32
    %c0_i32_0 = arith.constant 0 : i32
    %c0_i32_1 = arith.constant 0 : i32
    %c0_i32_2 = arith.constant 0 : i32
    return %c0_i32, %c0_i32_0, %c0_i32_1 : i32, i32, i32
  }
  func.func @transform_27(%arg0: i32) -> (i32, i32, i32) {
    %c0_i32 = arith.constant 0 : i32
    %c0_i32_0 = arith.constant 0 : i32
    %c0_i32_1 = arith.constant 0 : i32
    %c0_i32_2 = arith.constant 0 : i32
    return %c0_i32, %c0_i32_0, %c0_i32_1 : i32, i32, i32
  }
  func.func @transform_28(%arg0: i32) -> (i32, i32, i32) {
    %c0_i32 = arith.constant 0 : i32
    %c0_i32_0 = arith.constant 0 : i32
    %c0_i32_1 = arith.constant 0 : i32
    %c0_i32_2 = arith.constant 0 : i32
    return %c0_i32, %c0_i32_0, %c0_i32_1 : i32, i32, i32
  }
  func.func @transform_29(%arg0: i32) -> (i32, i32, i32) {
    %c0_i32 = arith.constant 0 : i32
    %c0_i32_0 = arith.constant 0 : i32
    %c0_i32_1 = arith.constant 0 : i32
    return %arg0, %c0_i32, %c0_i32_0 : i32, i32, i32
  }
}

</mosaic_0001>

<llo_original>
// kernel: tpu_custom_call.1
$region0: #{tpu_custom_call.1}
  #allocation0 [shape = 'u32[]', space=smem, size = 0x4, offset = 0x4, fixed_abs, tag = 'smem constant byte address 0x4 - core index']
  #allocation1 [shape = 'u32[144,128]{1,0:T(1,128)}', space=vmem, size = 0x12000, scoped, tag = 'internal scratch']
  %s0 = inlined_call_operand.smem [shape: u32[30], index: -1, kind: input, shape index: {}]
  %s1 = sld [smem:[%s0]]
  %s2 = scalar_lea.smem %s0, 1
  %s3 = sld [smem:[%s2]]
  %s4 = scalar_lea.smem %s0, 2
  %s5 = sld [smem:[%s4]]
  %s6 = scalar_lea.smem %s0, 3
  %s7 = sld [smem:[%s6]]
  %s8 = scalar_lea.smem %s0, 4
  %s9 = sld [smem:[%s8]]
  %s10 = scalar_lea.smem %s0, 5
  %s11 = sld [smem:[%s10]]
  %s12 = scalar_lea.smem %s0, 6
  %s13 = sld [smem:[%s12]]
  %s14 = scalar_lea.smem %s0, 7
  %s15 = sld [smem:[%s14]]
  %s16 = scalar_lea.smem %s0, 8
  %s17 = sld [smem:[%s16]]
  %s18 = scalar_lea.smem %s0, 9
  %s19 = sld [smem:[%s18]]
  %s20 = scalar_lea.smem %s0, 10
  %s21 = sld [smem:[%s20]]
  %s22 = scalar_lea.smem %s0, 11
  %s23 = sld [smem:[%s22]]
  %s24 = scalar_lea.smem %s0, 12
  %s25 = sld [smem:[%s24]]
  %s26 = scalar_lea.smem %s0, 13
  %s27 = sld [smem:[%s26]]
  %s28 = scalar_lea.smem %s0, 14
  %s29 = sld [smem:[%s28]]
  %s30 = scalar_lea.smem %s0, 15
  %s31 = sld [smem:[%s30]]
  %s32 = scalar_lea.smem %s0, 16
  %s33 = sld [smem:[%s32]]
  %s34 = scalar_lea.smem %s0, 17
  %s35 = sld [smem:[%s34]]
  %s36 = scalar_lea.smem %s0, 18
  %s37 = sld [smem:[%s36]]
  %s38 = scalar_lea.smem %s0, 19
  %s39 = sld [smem:[%s38]]
  %s40 = scalar_lea.smem %s0, 20
  %s41 = sld [smem:[%s40]]
  %s42 = scalar_lea.smem %s0, 21
  %s43 = sld [smem:[%s42]]
  %s44 = scalar_lea.smem %s0, 22
  %s45 = sld [smem:[%s44]]
  %s46 = scalar_lea.smem %s0, 23
  %s47 = sld [smem:[%s46]]
  %s48 = scalar_lea.smem %s0, 24
  %s49 = sld [smem:[%s48]]
  %s50 = scalar_lea.smem %s0, 25
  %s51 = sld [smem:[%s50]]
  %s52 = scalar_lea.smem %s0, 26
  %s53 = sld [smem:[%s52]]
  %s54 = scalar_lea.smem %s0, 27
  %s55 = sld [smem:[%s54]]
  %s56 = scalar_lea.smem %s0, 28
  %s57 = sld [smem:[%s56]]
  %s58 = scalar_lea.smem %s0, 29
  %s59 = sld [smem:[%s58]]
  %s60 = sld [smem:[#allocation0]]
  $region153: #{tpu_custom_call.1} parent=0
    _
  %s62 = ssub.s32 1, %s60
  %s63 = scalar_select 0, %s62, %s60
  $region1: #{tpu_custom_call.1} parent=0
    #allocation2 [shape = 'u8[4096]{0}', space=smem, size = 0x1000, scoped, tag = 'input window, operand 19, single buffered']
    #allocation3 [shape = 's32[2]{0}', space=sflag, size = 0x8, scoped, tag = 'scoped memory for tpu_custom_call.1']
    %64 = vsyncpa [#allocation3], 0
    loop: start=0, step=1, limit=4
    $region2: #{tpu_custom_call.1} parent=1 // loop_pre_header
      _
    $region3: #{tpu_custom_call.1} parent=1 // loop_header
      %s66 = sphi 0, %s70
      %p67 = scmp.ge.s32.totalorder %s66, 4
      %s76 = sphi 0, %s78
      %s79 = sphi 0, %s76
      %s80 = sphi 0, %s79
      %s96 = sphi 0, %s80
      %s102 = sphi 0, %s104
      %s105 = sphi 0, %s102
      %s106 = sphi 0, %s105
      %s122 = sphi 0, %s106
      %s126 = sphi 0, %s126
      %s128 = sphi 0, %s126
      %s129 = sphi 0, %s128
      %s143 = sphi 0, %s129
      %s147 = sphi 0, %s147
      %s149 = sphi 0, %s147
      %s150 = sphi 0, %s149
      %s164 = sphi 0, %s150
      %s168 = sphi 0, %s168
      %s170 = sphi 0, %s168
      %s171 = sphi 0, %s170
      %s185 = sphi 0, %s171
      %s189 = sphi 0, %s189
      %s191 = sphi 0, %s189
      %s192 = sphi 0, %s191
      %s206 = sphi 0, %s192
      %s210 = sphi 0, %s210
      %s212 = sphi 0, %s210
      %s213 = sphi 0, %s212
      %s227 = sphi 0, %s213
      %s231 = sphi 0, %s231
      %s233 = sphi 0, %s231
      %s234 = sphi 0, %s233
      %s248 = sphi 0, %s234
      %s252 = sphi 0, %s252
      %s254 = sphi 0, %s252
      %s255 = sphi 0, %s254
      %s269 = sphi 0, %s255
      %s273 = sphi 0, %s273
      %s275 = sphi 0, %s273
      %s276 = sphi 0, %s275
      %s290 = sphi 0, %s276
      %s294 = sphi 0, %s294
      %s296 = sphi 0, %s294
      %s297 = sphi 0, %s296
      %s311 = sphi 0, %s297
      %s315 = sphi 0, %s315
      %s317 = sphi 0, %s315
      %s318 = sphi 0, %s317
      %s332 = sphi 0, %s318
      %s336 = sphi 0, %s336
      %s338 = sphi 0, %s336
      %s339 = sphi 0, %s338
      %s353 = sphi 0, %s339
      %s357 = sphi 0, %s357
      %s359 = sphi 0, %s357
      %s360 = sphi 0, %s359
      %s374 = sphi 0, %s360
      %s378 = sphi 0, %s378
      %s380 = sphi 0, %s378
      %s381 = sphi 0, %s380
      %s395 = sphi 0, %s381
      %s399 = sphi 0, %s399
      %s401 = sphi 0, %s399
      %s402 = sphi 0, %s401
      %s416 = sphi 0, %s402
      %s420 = sphi 0, %s420
      %s422 = sphi 0, %s420
      %s423 = sphi 0, %s422
      %s437 = sphi 0, %s423
      %s441 = sphi 0, %s441
      %s443 = sphi 0, %s441
      %s444 = sphi 0, %s443
      %s458 = sphi 0, %s444
      %s462 = sphi 0, %s462
      %s464 = sphi 0, %s462
      %s465 = sphi 0, %s464
      %s479 = sphi 0, %s465
      %s483 = sphi 0, %s483
      %s485 = sphi 0, %s483
      %s486 = sphi 0, %s485
      %s500 = sphi 0, %s486
      %s504 = sphi 0, %s504
      %s506 = sphi 0, %s504
      %s507 = sphi 0, %s506
      %s521 = sphi 0, %s507
      %s525 = sphi 0, %s525
      %s527 = sphi 0, %s525
      %s528 = sphi 0, %s527
      %s542 = sphi 0, %s528
      %s546 = sphi 0, %s546
      %s548 = sphi 0, %s546
      %s549 = sphi 0, %s548
      %s563 = sphi 0, %s549
      %s567 = sphi 0, %s567
      %s569 = sphi 0, %s567
      %s570 = sphi 0, %s569
      %s584 = sphi 0, %s570
      %s588 = sphi 0, %s588
      %s590 = sphi 0, %s588
      %s591 = sphi 0, %s590
      %s605 = sphi 0, %s591
      %s609 = sphi 0, %s609
      %s611 = sphi 0, %s609
      %s612 = sphi 0, %s611
      %s626 = sphi 0, %s612
      %s630 = sphi 0, %s630
      %s632 = sphi 0, %s630
      %s633 = sphi 0, %s632
      %s647 = sphi 0, %s633
      %s651 = sphi 0, %s651
      %s653 = sphi 0, %s651
      %s654 = sphi 0, %s653
      %s668 = sphi 0, %s654
      %s672 = sphi 0, %s672
      %s674 = sphi 0, %s672
      %s675 = sphi 0, %s674
      %s689 = sphi 0, %s675
      %s695 = sphi 0, %s697
      %s698 = sphi 0, %s695
      %s699 = sphi 0, %s698
      %s715 = sphi 0, %s699
    $region4: #{tpu_custom_call.1} parent=1 // loop_header_branch
      %69 = sbr.rel (%p67) target = $region8
    $region5: #{tpu_custom_call.1} parent=1 // loop_body
      %s71 = ssub.s32 %s66, 1
      %s72 = ssub.s32 %s66, 2
      %s73 = sadd.s32 %s66, 1
      %s74 = ssub.s32 %s66, %s73
      %p75 = scmp.eq.s32.totalorder %s74, 0
      %s77 = sadd.s32 %s76, 1
      %s78 = scalar_select %p75, %s76, %s77
      %p81 = pneg %p75
      %p82 = scmp.eq.s32.totalorder %s66, 1
      %p83 = por %p81, %p82
      %p84 = scmp.ne.s32.totalorder %s76, %s79
      %p85 = scmp.eq.s32.totalorder %s66, 0
      %p86 = por %p84, %p85
      %p87 = scmp.ne.s32.totalorder %s76, %s79
      %p88 = scmp.eq.s32.totalorder %s71, 1
      %p89 = por %p87, %p88
      %p90 = scmp.ne.s32.totalorder %s79, %s80
      %p91 = scmp.eq.s32.totalorder %s71, 0
      %p92 = por %p90, %p91
      %p93 = scmp.ne.s32.totalorder %s79, %s80
      %p94 = scmp.eq.s32.totalorder %s72, 1
      %p95 = por %p93, %p94
      %p97 = scmp.ne.s32.totalorder %s80, %s96
      %p98 = scmp.eq.s32.totalorder %s72, 0
      %p99 = por %p97, %p98
      %s100 = ssub.s32 %s66, %s73
      %p101 = scmp.eq.s32.totalorder %s100, 0
      %s103 = sadd.s32 %s102, 1
      %s104 = scalar_select %p101, %s102, %s103
      %p107 = pneg %p101
      %p108 = scmp.eq.s32.totalorder %s66, 1
      %p109 = por %p107, %p108
      %p110 = scmp.ne.s32.totalorder %s102, %s105
      %p111 = scmp.eq.s32.totalorder %s66, 0
      %p112 = por %p110, %p111
      %p113 = scmp.ne.s32.totalorder %s102, %s105
      %p114 = scmp.eq.s32.totalorder %s71, 1
      %p115 = por %p113, %p114
      %p116 = scmp.ne.s32.totalorder %s105, %s106
      %p117 = scmp.eq.s32.totalorder %s71, 0
      %p118 = por %p116, %p117
      %p119 = scmp.ne.s32.totalorder %s105, %s106
      %p120 = scmp.eq.s32.totalorder %s72, 1
      %p121 = por %p119, %p120
      %p123 = scmp.ne.s32.totalorder %s106, %s122
      %p124 = scmp.eq.s32.totalorder %s72, 0
      %p125 = por %p123, %p124
      %s127 = sadd.s32 %s126, 1
      %p130 = scmp.eq.s32.totalorder %s66, 1
      %p131 = scmp.ne.s32.totalorder %s126, %s128
      %p132 = scmp.eq.s32.totalorder %s66, 0
      %p133 = por %p131, %p132
      %p134 = scmp.ne.s32.totalorder %s126, %s128
      %p135 = scmp.eq.s32.totalorder %s71, 1
      %p136 = por %p134, %p135
      %p137 = scmp.ne.s32.totalorder %s128, %s129
      %p138 = scmp.eq.s32.totalorder %s71, 0
      %p139 = por %p137, %p138
      %p140 = scmp.ne.s32.totalorder %s128, %s129
      %p141 = scmp.eq.s32.totalorder %s72, 1
      %p142 = por %p140, %p141
      %p144 = scmp.ne.s32.totalorder %s129, %s143
      %p145 = scmp.eq.s32.totalorder %s72, 0
      %p146 = por %p144, %p145
      %s148 = sadd.s32 %s147, 1
      %p151 = scmp.eq.s32.totalorder %s66, 1
      %p152 = scmp.ne.s32.totalorder %s147, %s149
      %p153 = scmp.eq.s32.totalorder %s66, 0
      %p154 = por %p152, %p153
      %p155 = scmp.ne.s32.totalorder %s147, %s149
      %p156 = scmp.eq.s32.totalorder %s71, 1
      %p157 = por %p155, %p156
      %p158 = scmp.ne.s32.totalorder %s149, %s150
      %p159 = scmp.eq.s32.totalorder %s71, 0
      %p160 = por %p158, %p159
      %p161 = scmp.ne.s32.totalorder %s149, %s150
      %p162 = scmp.eq.s32.totalorder %s72, 1
      %p163 = por %p161, %p162
      %p165 = scmp.ne.s32.totalorder %s150, %s164
      %p166 = scmp.eq.s32.totalorder %s72, 0
      %p167 = por %p165, %p166
      %s169 = sadd.s32 %s168, 1
      %p172 = scmp.eq.s32.totalorder %s66, 1
      %p173 = scmp.ne.s32.totalorder %s168, %s170
      %p174 = scmp.eq.s32.totalorder %s66, 0
      %p175 = por %p173, %p174
      %p176 = scmp.ne.s32.totalorder %s168, %s170
      %p177 = scmp.eq.s32.totalorder %s71, 1
      %p178 = por %p176, %p177
      %p179 = scmp.ne.s32.totalorder %s170, %s171
      %p180 = scmp.eq.s32.totalorder %s71, 0
      %p181 = por %p179, %p180
      %p182 = scmp.ne.s32.totalorder %s170, %s171
      %p183 = scmp.eq.s32.totalorder %s72, 1
      %p184 = por %p182, %p183
      %p186 = scmp.ne.s32.totalorder %s171, %s185
      %p187 = scmp.eq.s32.totalorder %s72, 0
      %p188 = por %p186, %p187
      %s190 = sadd.s32 %s189, 1
      %p193 = scmp.eq.s32.totalorder %s66, 1
      %p194 = scmp.ne.s32.totalorder %s189, %s191
      %p195 = scmp.eq.s32.totalorder %s66, 0
      %p196 = por %p194, %p195
      %p197 = scmp.ne.s32.totalorder %s189, %s191
      %p198 = scmp.eq.s32.totalorder %s71, 1
      %p199 = por %p197, %p198
      %p200 = scmp.ne.s32.totalorder %s191, %s192
      %p201 = scmp.eq.s32.totalorder %s71, 0
      %p202 = por %p200, %p201
      %p203 = scmp.ne.s32.totalorder %s191, %s192
      %p204 = scmp.eq.s32.totalorder %s72, 1
      %p205 = por %p203, %p204
      %p207 = scmp.ne.s32.totalorder %s192, %s206
      %p208 = scmp.eq.s32.totalorder %s72, 0
      %p209 = por %p207, %p208
      %s211 = sadd.s32 %s210, 1
      %p214 = scmp.eq.s32.totalorder %s66, 1
      %p215 = scmp.ne.s32.totalorder %s210, %s212
      %p216 = scmp.eq.s32.totalorder %s66, 0
      %p217 = por %p215, %p216
      %p218 = scmp.ne.s32.totalorder %s210, %s212
      %p219 = scmp.eq.s32.totalorder %s71, 1
      %p220 = por %p218, %p219
      %p221 = scmp.ne.s32.totalorder %s212, %s213
      %p222 = scmp.eq.s32.totalorder %s71, 0
      %p223 = por %p221, %p222
      %p224 = scmp.ne.s32.totalorder %s212, %s213
      %p225 = scmp.eq.s32.totalorder %s72, 1
      %p226 = por %p224, %p225
      %p228 = scmp.ne.s32.totalorder %s213, %s227
      %p229 = scmp.eq.s32.totalorder %s72, 0
      %p230 = por %p228, %p229
      %s232 = sadd.s32 %s231, 1
      %p235 = scmp.eq.s32.totalorder %s66, 1
      %p236 = scmp.ne.s32.totalorder %s231, %s233
      %p237 = scmp.eq.s32.totalorder %s66, 0
      %p238 = por %p236, %p237
      %p239 = scmp.ne.s32.totalorder %s231, %s233
      %p240 = scmp.eq.s32.totalorder %s71, 1
      %p241 = por %p239, %p240
      %p242 = scmp.ne.s32.totalorder %s233, %s234
      %p243 = scmp.eq.s32.totalorder %s71, 0
      %p244 = por %p242, %p243
      %p245 = scmp.ne.s32.totalorder %s233, %s234
      %p246 = scmp.eq.s32.totalorder %s72, 1
      %p247 = por %p245, %p246
      %p249 = scmp.ne.s32.totalorder %s234, %s248
      %p250 = scmp.eq.s32.totalorder %s72, 0
      %p251 = por %p249, %p250
      %s253 = sadd.s32 %s252, 1
      %p256 = scmp.eq.s32.totalorder %s66, 1
      %p257 = scmp.ne.s32.totalorder %s252, %s254
      %p258 = scmp.eq.s32.totalorder %s66, 0
      %p259 = por %p257, %p258
      %p260 = scmp.ne.s32.totalorder %s252, %s254
      %p261 = scmp.eq.s32.totalorder %s71, 1
      %p262 = por %p260, %p261
      %p263 = scmp.ne.s32.totalorder %s254, %s255
      %p264 = scmp.eq.s32.totalorder %s71, 0
      %p265 = por %p263, %p264
      %p266 = scmp.ne.s32.totalorder %s254, %s255
      %p267 = scmp.eq.s32.totalorder %s72, 1
      %p268 = por %p266, %p267
      %p270 = scmp.ne.s32.totalorder %s255, %s269
      %p271 = scmp.eq.s32.totalorder %s72, 0
      %p272 = por %p270, %p271
      %s274 = sadd.s32 %s273, 1
      %p277 = scmp.eq.s32.totalorder %s66, 1
      %p278 = scmp.ne.s32.totalorder %s273, %s275
      %p279 = scmp.eq.s32.totalorder %s66, 0
      %p280 = por %p278, %p279
      %p281 = scmp.ne.s32.totalorder %s273, %s275
      %p282 = scmp.eq.s32.totalorder %s71, 1
      %p283 = por %p281, %p282
      %p284 = scmp.ne.s32.totalorder %s275, %s276
      %p285 = scmp.eq.s32.totalorder %s71, 0
      %p286 = por %p284, %p285
      %p287 = scmp.ne.s32.totalorder %s275, %s276
      %p288 = scmp.eq.s32.totalorder %s72, 1
      %p289 = por %p287, %p288
      %p291 = scmp.ne.s32.totalorder %s276, %s290
      %p292 = scmp.eq.s32.totalorder %s72, 0
      %p293 = por %p291, %p292
      %s295 = sadd.s32 %s294, 1
      %p298 = scmp.eq.s32.totalorder %s66, 1
      %p299 = scmp.ne.s32.totalorder %s294, %s296
      %p300 = scmp.eq.s32.totalorder %s66, 0
      %p301 = por %p299, %p300
      %p302 = scmp.ne.s32.totalorder %s294, %s296
      %p303 = scmp.eq.s32.totalorder %s71, 1
      %p304 = por %p302, %p303
      %p305 = scmp.ne.s32.totalorder %s296, %s297
      %p306 = scmp.eq.s32.totalorder %s71, 0
      %p307 = por %p305, %p306
      %p308 = scmp.ne.s32.totalorder %s296, %s297
      %p309 = scmp.eq.s32.totalorder %s72, 1
      %p310 = por %p308, %p309
      %p312 = scmp.ne.s32.totalorder %s297, %s311
      %p313 = scmp.eq.s32.totalorder %s72, 0
      %p314 = por %p312, %p313
      %s316 = sadd.s32 %s315, 1
      %p319 = scmp.eq.s32.totalorder %s66, 1
      %p320 = scmp.ne.s32.totalorder %s315, %s317
      %p321 = scmp.eq.s32.totalorder %s66, 0
      %p322 = por %p320, %p321
      %p323 = scmp.ne.s32.totalorder %s315, %s317
      %p324 = scmp.eq.s32.totalorder %s71, 1
      %p325 = por %p323, %p324
      %p326 = scmp.ne.s32.totalorder %s317, %s318
      %p327 = scmp.eq.s32.totalorder %s71, 0
      %p328 = por %p326, %p327
      %p329 = scmp.ne.s32.totalorder %s317, %s318
      %p330 = scmp.eq.s32.totalorder %s72, 1
      %p331 = por %p329, %p330
      %p333 = scmp.ne.s32.totalorder %s318, %s332
      %p334 = scmp.eq.s32.totalorder %s72, 0
      %p335 = por %p333, %p334
      %s337 = sadd.s32 %s336, 1
      %p340 = scmp.eq.s32.totalorder %s66, 1
      %p341 = scmp.ne.s32.totalorder %s336, %s338
      %p342 = scmp.eq.s32.totalorder %s66, 0
      %p343 = por %p341, %p342
      %p344 = scmp.ne.s32.totalorder %s336, %s338
      %p345 = scmp.eq.s32.totalorder %s71, 1
      %p346 = por %p344, %p345
      %p347 = scmp.ne.s32.totalorder %s338, %s339
      %p348 = scmp.eq.s32.totalorder %s71, 0
      %p349 = por %p347, %p348
      %p350 = scmp.ne.s32.totalorder %s338, %s339
      %p351 = scmp.eq.s32.totalorder %s72, 1
      %p352 = por %p350, %p351
      %p354 = scmp.ne.s32.totalorder %s339, %s353
      %p355 = scmp.eq.s32.totalorder %s72, 0
      %p356 = por %p354, %p355
      %s358 = sadd.s32 %s357, 1
      %p361 = scmp.eq.s32.totalorder %s66, 1
      %p362 = scmp.ne.s32.totalorder %s357, %s359
      %p363 = scmp.eq.s32.totalorder %s66, 0
      %p364 = por %p362, %p363
      %p365 = scmp.ne.s32.totalorder %s357, %s359
      %p366 = scmp.eq.s32.totalorder %s71, 1
      %p367 = por %p365, %p366
      %p368 = scmp.ne.s32.totalorder %s359, %s360
      %p369 = scmp.eq.s32.totalorder %s71, 0
      %p370 = por %p368, %p369
      %p371 = scmp.ne.s32.totalorder %s359, %s360
      %p372 = scmp.eq.s32.totalorder %s72, 1
      %p373 = por %p371, %p372
      %p375 = scmp.ne.s32.totalorder %s360, %s374
      %p376 = scmp.eq.s32.totalorder %s72, 0
      %p377 = por %p375, %p376
      %s379 = sadd.s32 %s378, 1
      %p382 = scmp.eq.s32.totalorder %s66, 1
      %p383 = scmp.ne.s32.totalorder %s378, %s380
      %p384 = scmp.eq.s32.totalorder %s66, 0
      %p385 = por %p383, %p384
      %p386 = scmp.ne.s32.totalorder %s378, %s380
      %p387 = scmp.eq.s32.totalorder %s71, 1
      %p388 = por %p386, %p387
      %p389 = scmp.ne.s32.totalorder %s380, %s381
      %p390 = scmp.eq.s32.totalorder %s71, 0
      %p391 = por %p389, %p390
      %p392 = scmp.ne.s32.totalorder %s380, %s381
      %p393 = scmp.eq.s32.totalorder %s72, 1
      %p394 = por %p392, %p393
      %p396 = scmp.ne.s32.totalorder %s381, %s395
      %p397 = scmp.eq.s32.totalorder %s72, 0
      %p398 = por %p396, %p397
      %s400 = sadd.s32 %s399, 1
      %p403 = scmp.eq.s32.totalorder %s66, 1
      %p404 = scmp.ne.s32.totalorder %s399, %s401
      %p405 = scmp.eq.s32.totalorder %s66, 0
      %p406 = por %p404, %p405
      %p407 = scmp.ne.s32.totalorder %s399, %s401
      %p408 = scmp.eq.s32.totalorder %s71, 1
      %p409 = por %p407, %p408
      %p410 = scmp.ne.s32.totalorder %s401, %s402
      %p411 = scmp.eq.s32.totalorder %s71, 0
      %p412 = por %p410, %p411
      %p413 = scmp.ne.s32.totalorder %s401, %s402
      %p414 = scmp.eq.s32.totalorder %s72, 1
      %p415 = por %p413, %p414
      %p417 = scmp.ne.s32.totalorder %s402, %s416
      %p418 = scmp.eq.s32.totalorder %s72, 0
      %p419 = por %p417, %p418
      %s421 = sadd.s32 %s420, 1
      %p424 = scmp.eq.s32.totalorder %s66, 1
      %p425 = scmp.ne.s32.totalorder %s420, %s422
      %p426 = scmp.eq.s32.totalorder %s66, 0
      %p427 = por %p425, %p426
      %p428 = scmp.ne.s32.totalorder %s420, %s422
      %p429 = scmp.eq.s32.totalorder %s71, 1
      %p430 = por %p428, %p429
      %p431 = scmp.ne.s32.totalorder %s422, %s423
      %p432 = scmp.eq.s32.totalorder %s71, 0
      %p433 = por %p431, %p432
      %p434 = scmp.ne.s32.totalorder %s422, %s423
      %p435 = scmp.eq.s32.totalorder %s72, 1
      %p436 = por %p434, %p435
      %p438 = scmp.ne.s32.totalorder %s423, %s437
      %p439 = scmp.eq.s32.totalorder %s72, 0
      %p440 = por %p438, %p439
      %s442 = sadd.s32 %s441, 1
      %p445 = scmp.eq.s32.totalorder %s66, 1
      %p446 = scmp.ne.s32.totalorder %s441, %s443
      %p447 = scmp.eq.s32.totalorder %s66, 0
      %p448 = por %p446, %p447
      %p449 = scmp.ne.s32.totalorder %s441, %s443
      %p450 = scmp.eq.s32.totalorder %s71, 1
      %p451 = por %p449, %p450
      %p452 = scmp.ne.s32.totalorder %s443, %s444
      %p453 = scmp.eq.s32.totalorder %s71, 0
      %p454 = por %p452, %p453
      %p455 = scmp.ne.s32.totalorder %s443, %s444
      %p456 = scmp.eq.s32.totalorder %s72, 1
      %p457 = por %p455, %p456
      %p459 = scmp.ne.s32.totalorder %s444, %s458
      %p460 = scmp.eq.s32.totalorder %s72, 0
      %p461 = por %p459, %p460
      %s463 = sadd.s32 %s462, 1
      %p466 = scmp.eq.s32.totalorder %s66, 1
      %p467 = scmp.ne.s32.totalorder %s462, %s464
      %p468 = scmp.eq.s32.totalorder %s66, 0
      %p469 = por %p467, %p468
      %p470 = scmp.ne.s32.totalorder %s462, %s464
      %p471 = scmp.eq.s32.totalorder %s71, 1
      %p472 = por %p470, %p471
      %p473 = scmp.ne.s32.totalorder %s464, %s465
      %p474 = scmp.eq.s32.totalorder %s71, 0
      %p475 = por %p473, %p474
      %p476 = scmp.ne.s32.totalorder %s464, %s465
      %p477 = scmp.eq.s32.totalorder %s72, 1
      %p478 = por %p476, %p477
      %p480 = scmp.ne.s32.totalorder %s465, %s479
      %p481 = scmp.eq.s32.totalorder %s72, 0
      %p482 = por %p480, %p481
      %s484 = sadd.s32 %s483, 1
      %p487 = scmp.eq.s32.totalorder %s66, 1
      %p488 = scmp.ne.s32.totalorder %s483, %s485
      %p489 = scmp.eq.s32.totalorder %s66, 0
      %p490 = por %p488, %p489
      %p491 = scmp.ne.s32.totalorder %s483, %s485
      %p492 = scmp.eq.s32.totalorder %s71, 1
      %p493 = por %p491, %p492
      %p494 = scmp.ne.s32.totalorder %s485, %s486
      %p495 = scmp.eq.s32.totalorder %s71, 0
      %p496 = por %p494, %p495
      %p497 = scmp.ne.s32.totalorder %s485, %s486
      %p498 = scmp.eq.s32.totalorder %s72, 1
      %p499 = por %p497, %p498
      %p501 = scmp.ne.s32.totalorder %s486, %s500
      %p502 = scmp.eq.s32.totalorder %s72, 0
      %p503 = por %p501, %p502
      %s505 = sadd.s32 %s504, 1
      %p508 = scmp.eq.s32.totalorder %s66, 1
      %p509 = scmp.ne.s32.totalorder %s504, %s506
      %p510 = scmp.eq.s32.totalorder %s66, 0
      %p511 = por %p509, %p510
      %p512 = scmp.ne.s32.totalorder %s504, %s506
      %p513 = scmp.eq.s32.totalorder %s71, 1
      %p514 = por %p512, %p513
      %p515 = scmp.ne.s32.totalorder %s506, %s507
      %p516 = scmp.eq.s32.totalorder %s71, 0
      %p517 = por %p515, %p516
      %p518 = scmp.ne.s32.totalorder %s506, %s507
      %p519 = scmp.eq.s32.totalorder %s72, 1
      %p520 = por %p518, %p519
      %p522 = scmp.ne.s32.totalorder %s507, %s521
      %p523 = scmp.eq.s32.totalorder %s72, 0
      %p524 = por %p522, %p523
      %s526 = sadd.s32 %s525, 1
      %p529 = scmp.eq.s32.totalorder %s66, 1
      %p530 = scmp.ne.s32.totalorder %s525, %s527
      %p531 = scmp.eq.s32.totalorder %s66, 0
      %p532 = por %p530, %p531
      %p533 = scmp.ne.s32.totalorder %s525, %s527
      %p534 = scmp.eq.s32.totalorder %s71, 1
      %p535 = por %p533, %p534
      %p536 = scmp.ne.s32.totalorder %s527, %s528
      %p537 = scmp.eq.s32.totalorder %s71, 0
      %p538 = por %p536, %p537
      %p539 = scmp.ne.s32.totalorder %s527, %s528
      %p540 = scmp.eq.s32.totalorder %s72, 1
      %p541 = por %p539, %p540
      %p543 = scmp.ne.s32.totalorder %s528, %s542
      %p544 = scmp.eq.s32.totalorder %s72, 0
      %p545 = por %p543, %p544
      %s547 = sadd.s32 %s546, 1
      %p550 = scmp.eq.s32.totalorder %s66, 1
      %p551 = scmp.ne.s32.totalorder %s546, %s548
      %p552 = scmp.eq.s32.totalorder %s66, 0
      %p553 = por %p551, %p552
      %p554 = scmp.ne.s32.totalorder %s546, %s548
      %p555 = scmp.eq.s32.totalorder %s71, 1
      %p556 = por %p554, %p555
      %p557 = scmp.ne.s32.totalorder %s548, %s549
      %p558 = scmp.eq.s32.totalorder %s71, 0
      %p559 = por %p557, %p558
      %p560 = scmp.ne.s32.totalorder %s548, %s549
      %p561 = scmp.eq.s32.totalorder %s72, 1
      %p562 = por %p560, %p561
      %p564 = scmp.ne.s32.totalorder %s549, %s563
      %p565 = scmp.eq.s32.totalorder %s72, 0
      %p566 = por %p564, %p565
      %s568 = sadd.s32 %s567, 1
      %p571 = scmp.eq.s32.totalorder %s66, 1
      %p572 = scmp.ne.s32.totalorder %s567, %s569
      %p573 = scmp.eq.s32.totalorder %s66, 0
      %p574 = por %p572, %p573
      %p575 = scmp.ne.s32.totalorder %s567, %s569
      %p576 = scmp.eq.s32.totalorder %s71, 1
      %p577 = por %p575, %p576
      %p578 = scmp.ne.s32.totalorder %s569, %s570
      %p579 = scmp.eq.s32.totalorder %s71, 0
      %p580 = por %p578, %p579
      %p581 = scmp.ne.s32.totalorder %s569, %s570
      %p582 = scmp.eq.s32.totalorder %s72, 1
      %p583 = por %p581, %p582
      %p585 = scmp.ne.s32.totalorder %s570, %s584
      %p586 = scmp.eq.s32.totalorder %s72, 0
      %p587 = por %p585, %p586
      %s589 = sadd.s32 %s588, 1
      %p592 = scmp.eq.s32.totalorder %s66, 1
      %p593 = scmp.ne.s32.totalorder %s588, %s590
      %p594 = scmp.eq.s32.totalorder %s66, 0
      %p595 = por %p593, %p594
      %p596 = scmp.ne.s32.totalorder %s588, %s590
      %p597 = scmp.eq.s32.totalorder %s71, 1
      %p598 = por %p596, %p597
      %p599 = scmp.ne.s32.totalorder %s590, %s591
      %p600 = scmp.eq.s32.totalorder %s71, 0
      %p601 = por %p599, %p600
      %p602 = scmp.ne.s32.totalorder %s590, %s591
      %p603 = scmp.eq.s32.totalorder %s72, 1
      %p604 = por %p602, %p603
      %p606 = scmp.ne.s32.totalorder %s591, %s605
      %p607 = scmp.eq.s32.totalorder %s72, 0
      %p608 = por %p606, %p607
      %s610 = sadd.s32 %s609, 1
      %p613 = scmp.eq.s32.totalorder %s66, 1
      %p614 = scmp.ne.s32.totalorder %s609, %s611
      %p615 = scmp.eq.s32.totalorder %s66, 0
      %p616 = por %p614, %p615
      %p617 = scmp.ne.s32.totalorder %s609, %s611
      %p618 = scmp.eq.s32.totalorder %s71, 1
      %p619 = por %p617, %p618
      %p620 = scmp.ne.s32.totalorder %s611, %s612
      %p621 = scmp.eq.s32.totalorder %s71, 0
      %p622 = por %p620, %p621
      %p623 = scmp.ne.s32.totalorder %s611, %s612
      %p624 = scmp.eq.s32.totalorder %s72, 1
      %p625 = por %p623, %p624
      %p627 = scmp.ne.s32.totalorder %s612, %s626
      %p628 = scmp.eq.s32.totalorder %s72, 0
      %p629 = por %p627, %p628
      %s631 = sadd.s32 %s630, 1
      %p634 = scmp.eq.s32.totalorder %s66, 1
      %p635 = scmp.ne.s32.totalorder %s630, %s632
      %p636 = scmp.eq.s32.totalorder %s66, 0
      %p637 = por %p635, %p636
      %p638 = scmp.ne.s32.totalorder %s630, %s632
      %p639 = scmp.eq.s32.totalorder %s71, 1
      %p640 = por %p638, %p639
      %p641 = scmp.ne.s32.totalorder %s632, %s633
      %p642 = scmp.eq.s32.totalorder %s71, 0
      %p643 = por %p641, %p642
      %p644 = scmp.ne.s32.totalorder %s632, %s633
      %p645 = scmp.eq.s32.totalorder %s72, 1
      %p646 = por %p644, %p645
      %p648 = scmp.ne.s32.totalorder %s633, %s647
      %p649 = scmp.eq.s32.totalorder %s72, 0
      %p650 = por %p648, %p649
      %s652 = sadd.s32 %s651, 1
      %p655 = scmp.eq.s32.totalorder %s66, 1
      %p656 = scmp.ne.s32.totalorder %s651, %s653
      %p657 = scmp.eq.s32.totalorder %s66, 0
      %p658 = por %p656, %p657
      %p659 = scmp.ne.s32.totalorder %s651, %s653
      %p660 = scmp.eq.s32.totalorder %s71, 1
      %p661 = por %p659, %p660
      %p662 = scmp.ne.s32.totalorder %s653, %s654
      %p663 = scmp.eq.s32.totalorder %s71, 0
      %p664 = por %p662, %p663
      %p665 = scmp.ne.s32.totalorder %s653, %s654
      %p666 = scmp.eq.s32.totalorder %s72, 1
      %p667 = por %p665, %p666
      %p669 = scmp.ne.s32.totalorder %s654, %s668
      %p670 = scmp.eq.s32.totalorder %s72, 0
      %p671 = por %p669, %p670
      %s673 = sadd.s32 %s672, 1
      %p676 = scmp.eq.s32.totalorder %s66, 1
      %p677 = scmp.ne.s32.totalorder %s672, %s674
      %p678 = scmp.eq.s32.totalorder %s66, 0
      %p679 = por %p677, %p678
      %p680 = scmp.ne.s32.totalorder %s672, %s674
      %p681 = scmp.eq.s32.totalorder %s71, 1
      %p682 = por %p680, %p681
      %p683 = scmp.ne.s32.totalorder %s674, %s675
      %p684 = scmp.eq.s32.totalorder %s71, 0
      %p685 = por %p683, %p684
      %p686 = scmp.ne.s32.totalorder %s674, %s675
      %p687 = scmp.eq.s32.totalorder %s72, 1
      %p688 = por %p686, %p687
      %p690 = scmp.ne.s32.totalorder %s675, %s689
      %p691 = scmp.eq.s32.totalorder %s72, 0
      %p692 = por %p690, %p691
      %s693 = ssub.s32 %s66, %s73
      %p694 = scmp.eq.s32.totalorder %s693, 0
      %s696 = sadd.s32 %s695, 1
      %s697 = scalar_select %p694, %s695, %s696
      %p700 = pneg %p694
      %p701 = scmp.eq.s32.totalorder %s66, 1
      %p702 = por %p700, %p701
      %p703 = scmp.ne.s32.totalorder %s695, %s698
      %p704 = scmp.eq.s32.totalorder %s66, 0
      %p705 = por %p703, %p704
      %p706 = scmp.ne.s32.totalorder %s695, %s698
      %p707 = scmp.eq.s32.totalorder %s71, 1
      %p708 = por %p706, %p707
      %p709 = scmp.ne.s32.totalorder %s698, %s699
      %p710 = scmp.eq.s32.totalorder %s71, 0
      %p711 = por %p709, %p710
      %p712 = scmp.ne.s32.totalorder %s698, %s699
      %p713 = scmp.eq.s32.totalorder %s72, 1
      %p714 = por %p712, %p713
      %p716 = scmp.ne.s32.totalorder %s699, %s715
      %p717 = scmp.eq.s32.totalorder %s72, 0
      %p718 = por %p716, %p717
      %p719 = scmp.le.s32.totalorder 1, %s66
      %p720 = scmp.lt.s32.totalorder %s66, 3
      %p721 = pnand %p719, %p720
      %p722 = pneg %p721
      // Predicated region
      $region9: #{tpu_custom_call.1} parent=5 // pred_check
        _
      $region10: #{tpu_custom_call.1} parent=5 // pred_check_branch
        %724 = sbr.rel (%p721) target = $region12
      $region11: #{tpu_custom_call.1} parent=5 // pred_region
        %s725 = ssub.s32 %s66, 1
        // Predicated region
        $region13: #{tpu_custom_call.1} parent=11 // pred_check
          %p726 = pneg %p139
        $region14: #{tpu_custom_call.1} parent=11 // pred_check_branch
          %728 = sbr.rel (%p726) target = $region16
        $region15: #{tpu_custom_call.1} parent=11 // pred_region
          _
        $region16: #{tpu_custom_call.1} parent=11 // pred_fallthru
          _
        // Predicated region
        $region17: #{tpu_custom_call.1} parent=11 // pred_check
          %p729 = pneg %p160
        $region18: #{tpu_custom_call.1} parent=11 // pred_check_branch
          %731 = sbr.rel (%p729) target = $region20
        $region19: #{tpu_custom_call.1} parent=11 // pred_region
          _
        $region20: #{tpu_custom_call.1} parent=11 // pred_fallthru
          _
        // Predicated region
        $region21: #{tpu_custom_call.1} parent=11 // pred_check
          %p732 = pneg %p181
        $region22: #{tpu_custom_call.1} parent=11 // pred_check_branch
          %734 = sbr.rel (%p732) target = $region24
        $region23: #{tpu_custom_call.1} parent=11 // pred_region
          _
        $region24: #{tpu_custom_call.1} parent=11 // pred_fallthru
          _
        // Predicated region
        $region25: #{tpu_custom_call.1} parent=11 // pred_check
          %p735 = pneg %p202
        $region26: #{tpu_custom_call.1} parent=11 // pred_check_branch
          %737 = sbr.rel (%p735) target = $region28
        $region27: #{tpu_custom_call.1} parent=11 // pred_region
          _
        $region28: #{tpu_custom_call.1} parent=11 // pred_fallthru
          _
        // Predicated region
        $region29: #{tpu_custom_call.1} parent=11 // pred_check
          %p738 = pneg %p223
        $region30: #{tpu_custom_call.1} parent=11 // pred_check_branch
          %740 = sbr.rel (%p738) target = $region32
        $region31: #{tpu_custom_call.1} parent=11 // pred_region
          _
        $region32: #{tpu_custom_call.1} parent=11 // pred_fallthru
          _
        // Predicated region
        $region33: #{tpu_custom_call.1} parent=11 // pred_check
          %p741 = pneg %p244
        $region34: #{tpu_custom_call.1} parent=11 // pred_check_branch
          %743 = sbr.rel (%p741) target = $region36
        $region35: #{tpu_custom_call.1} parent=11 // pred_region
          _
        $region36: #{tpu_custom_call.1} parent=11 // pred_fallthru
          _
        // Predicated region
        $region37: #{tpu_custom_call.1} parent=11 // pred_check
          %p744 = pneg %p265
        $region38: #{tpu_custom_call.1} parent=11 // pred_check_branch
          %746 = sbr.rel (%p744) target = $region40
        $region39: #{tpu_custom_call.1} parent=11 // pred_region
          _
        $region40: #{tpu_custom_call.1} parent=11 // pred_fallthru
          _
        // Predicated region
        $region41: #{tpu_custom_call.1} parent=11 // pred_check
          %p747 = pneg %p286
        $region42: #{tpu_custom_call.1} parent=11 // pred_check_branch
          %749 = sbr.rel (%p747) target = $region44
        $region43: #{tpu_custom_call.1} parent=11 // pred_region
          _
        $region44: #{tpu_custom_call.1} parent=11 // pred_fallthru
          _
        // Predicated region
        $region45: #{tpu_custom_call.1} parent=11 // pred_check
          %p750 = pneg %p307
        $region46: #{tpu_custom_call.1} parent=11 // pred_check_branch
          %752 = sbr.rel (%p750) target = $region48
        $region47: #{tpu_custom_call.1} parent=11 // pred_region
          _
        $region48: #{tpu_custom_call.1} parent=11 // pred_fallthru
          _
        // Predicated region
        $region49: #{tpu_custom_call.1} parent=11 // pred_check
          %p753 = pneg %p328
        $region50: #{tpu_custom_call.1} parent=11 // pred_check_branch
          %755 = sbr.rel (%p753) target = $region52
        $region51: #{tpu_custom_call.1} parent=11 // pred_region
          _
        $region52: #{tpu_custom_call.1} parent=11 // pred_fallthru
          _
        // Predicated region
        $region53: #{tpu_custom_call.1} parent=11 // pred_check
          %p756 = pneg %p349
        $region54: #{tpu_custom_call.1} parent=11 // pred_check_branch
          %758 = sbr.rel (%p756) target = $region56
        $region55: #{tpu_custom_call.1} parent=11 // pred_region
          _
        $region56: #{tpu_custom_call.1} parent=11 // pred_fallthru
          _
        // Predicated region
        $region57: #{tpu_custom_call.1} parent=11 // pred_check
          %p759 = pneg %p370
        $region58: #{tpu_custom_call.1} parent=11 // pred_check_branch
          %761 = sbr.rel (%p759) target = $region60
        $region59: #{tpu_custom_call.1} parent=11 // pred_region
          _
        $region60: #{tpu_custom_call.1} parent=11 // pred_fallthru
          _
        // Predicated region
        $region61: #{tpu_custom_call.1} parent=11 // pred_check
          %p762 = pneg %p391
        $region62: #{tpu_custom_call.1} parent=11 // pred_check_branch
          %764 = sbr.rel (%p762) target = $region64
        $region63: #{tpu_custom_call.1} parent=11 // pred_region
          _
        $region64: #{tpu_custom_call.1} parent=11 // pred_fallthru
          _
        // Predicated region
        $region65: #{tpu_custom_call.1} parent=11 // pred_check
          %p765 = pneg %p412
        $region66: #{tpu_custom_call.1} parent=11 // pred_check_branch
          %767 = sbr.rel (%p765) target = $region68
        $region67: #{tpu_custom_call.1} parent=11 // pred_region
          _
        $region68: #{tpu_custom_call.1} parent=11 // pred_fallthru
          _
        // Predicated region
        $region69: #{tpu_custom_call.1} parent=11 // pred_check
          %p768 = pneg %p433
        $region70: #{tpu_custom_call.1} parent=11 // pred_check_branch
          %770 = sbr.rel (%p768) target = $region72
        $region71: #{tpu_custom_call.1} parent=11 // pred_region
          _
        $region72: #{tpu_custom_call.1} parent=11 // pred_fallthru
          _
        // Predicated region
        $region73: #{tpu_custom_call.1} parent=11 // pred_check
          %p771 = pneg %p454
        $region74: #{tpu_custom_call.1} parent=11 // pred_check_branch
          %773 = sbr.rel (%p771) target = $region76
        $region75: #{tpu_custom_call.1} parent=11 // pred_region
          _
        $region76: #{tpu_custom_call.1} parent=11 // pred_fallthru
          _
        // Predicated region
        $region77: #{tpu_custom_call.1} parent=11 // pred_check
          %p774 = pneg %p475
        $region78: #{tpu_custom_call.1} parent=11 // pred_check_branch
          %776 = sbr.rel (%p774) target = $region80
        $region79: #{tpu_custom_call.1} parent=11 // pred_region
          _
        $region80: #{tpu_custom_call.1} parent=11 // pred_fallthru
          _
        // Predicated region
        $region81: #{tpu_custom_call.1} parent=11 // pred_check
          %p777 = pneg %p496
        $region82: #{tpu_custom_call.1} parent=11 // pred_check_branch
          %779 = sbr.rel (%p777) target = $region84
        $region83: #{tpu_custom_call.1} parent=11 // pred_region
          %s781 = ssub.s32 128, 128
          %782 = vsyncadd [#allocation3], %s781
          %s784 = sshll.u32 %s39, 4
          %s785 = int_to_ptr.vmem [resolvable:$true] %s784
          %787 = dma.vmem_to_smem %s785, 128, [#allocation2], [#allocation3]
        $region84: #{tpu_custom_call.1} parent=11 // pred_fallthru
          _
        // Predicated region
        $region85: #{tpu_custom_call.1} parent=11 // pred_check
          %p788 = pneg %p517
        $region86: #{tpu_custom_call.1} parent=11 // pred_check_branch
          %790 = sbr.rel (%p788) target = $region88
        $region87: #{tpu_custom_call.1} parent=11 // pred_region
          _
        $region88: #{tpu_custom_call.1} parent=11 // pred_fallthru
          _
        // Predicated region
        $region89: #{tpu_custom_call.1} parent=11 // pred_check
          %p791 = pneg %p538
        $region90: #{tpu_custom_call.1} parent=11 // pred_check_branch
          %793 = sbr.rel (%p791) target = $region92
        $region91: #{tpu_custom_call.1} parent=11 // pred_region
          _
        $region92: #{tpu_custom_call.1} parent=11 // pred_fallthru
          _
        // Predicated region
        $region93: #{tpu_custom_call.1} parent=11 // pred_check
          %p794 = pneg %p559
        $region94: #{tpu_custom_call.1} parent=11 // pred_check_branch
          %796 = sbr.rel (%p794) target = $region96
        $region95: #{tpu_custom_call.1} parent=11 // pred_region
          _
        $region96: #{tpu_custom_call.1} parent=11 // pred_fallthru
          _
        // Predicated region
        $region97: #{tpu_custom_call.1} parent=11 // pred_check
          %p797 = pneg %p580
        $region98: #{tpu_custom_call.1} parent=11 // pred_check_branch
          %799 = sbr.rel (%p797) target = $region100
        $region99: #{tpu_custom_call.1} parent=11 // pred_region
          _
        $region100: #{tpu_custom_call.1} parent=11 // pred_fallthru
          _
        // Predicated region
        $region101: #{tpu_custom_call.1} parent=11 // pred_check
          %p800 = pneg %p601
        $region102: #{tpu_custom_call.1} parent=11 // pred_check_branch
          %802 = sbr.rel (%p800) target = $region104
        $region103: #{tpu_custom_call.1} parent=11 // pred_region
          _
        $region104: #{tpu_custom_call.1} parent=11 // pred_fallthru
          _
        // Predicated region
        $region105: #{tpu_custom_call.1} parent=11 // pred_check
          %p803 = pneg %p622
        $region106: #{tpu_custom_call.1} parent=11 // pred_check_branch
          %805 = sbr.rel (%p803) target = $region108
        $region107: #{tpu_custom_call.1} parent=11 // pred_region
          _
        $region108: #{tpu_custom_call.1} parent=11 // pred_fallthru
          _
        // Predicated region
        $region109: #{tpu_custom_call.1} parent=11 // pred_check
          %p806 = pneg %p643
        $region110: #{tpu_custom_call.1} parent=11 // pred_check_branch
          %808 = sbr.rel (%p806) target = $region112
        $region111: #{tpu_custom_call.1} parent=11 // pred_region
          _
        $region112: #{tpu_custom_call.1} parent=11 // pred_fallthru
          _
        // Predicated region
        $region113: #{tpu_custom_call.1} parent=11 // pred_check
          %p809 = pneg %p664
        $region114: #{tpu_custom_call.1} parent=11 // pred_check_branch
          %811 = sbr.rel (%p809) target = $region116
        $region115: #{tpu_custom_call.1} parent=11 // pred_region
          _
        $region116: #{tpu_custom_call.1} parent=11 // pred_fallthru
          _
        // Predicated region
        $region117: #{tpu_custom_call.1} parent=11 // pred_check
          %p812 = pneg %p685
        $region118: #{tpu_custom_call.1} parent=11 // pred_check_branch
          %814 = sbr.rel (%p812) target = $region120
        $region119: #{tpu_custom_call.1} parent=11 // pred_region
          _
        $region120: #{tpu_custom_call.1} parent=11 // pred_fallthru
          _
      $region12: #{tpu_custom_call.1} parent=5 // pred_fallthru
        _
      %p815 = scmp.lt.s32.totalorder %s66, 2
      // Predicated region
      $region121: #{tpu_custom_call.1} parent=5 // pred_check
        %p816 = pneg %p815
      $region122: #{tpu_custom_call.1} parent=5 // pred_check_branch
        %818 = sbr.rel (%p816) target = $region124
      $region123: #{tpu_custom_call.1} parent=5 // pred_region
        // Predicated region
        $region125: #{tpu_custom_call.1} parent=123 // pred_check
          %p819 = pneg %p86
        $region126: #{tpu_custom_call.1} parent=123 // pred_check_branch
          %821 = sbr.rel (%p819) target = $region128
        $region127: #{tpu_custom_call.1} parent=123 // pred_region
          %p822 = scmp.lt.s32.totalorder %s66, 1
          %s823 = scalar_select %p822, %s66, 1
          %s824 = smul.addr %s823, 8
          %s825 = smul.addr %s824, 8
          %s826 = scalar_lea.vmem %s1, %s825
        $region128: #{tpu_custom_call.1} parent=123 // pred_fallthru
          _
        // Predicated region
        $region129: #{tpu_custom_call.1} parent=123 // pred_check
          %p827 = pneg %p112
        $region130: #{tpu_custom_call.1} parent=123 // pred_check_branch
          %829 = sbr.rel (%p827) target = $region132
        $region131: #{tpu_custom_call.1} parent=123 // pred_region
          %p830 = scmp.lt.s32.totalorder %s66, 1
          %s831 = scalar_select %p830, %s66, 1
          %s832 = smul.addr %s831, 8
          %s833 = smul.addr %s832, 8
          %s834 = scalar_lea.vmem %s3, %s833
        $region132: #{tpu_custom_call.1} parent=123 // pred_fallthru
          _
      $region124: #{tpu_custom_call.1} parent=5 // pred_fallthru
        _
      %p835 = scmp.le.s32.totalorder 1, %s66
      %p836 = scmp.lt.s32.totalorder %s66, 3
      %p837 = pnand %p835, %p836
      %p838 = pneg %p837
      // Predicated region
      $region133: #{tpu_custom_call.1} parent=5 // pred_check
        _
      $region134: #{tpu_custom_call.1} parent=5 // pred_check_branch
        %840 = sbr.rel (%p837) target = $region136
      $region135: #{tpu_custom_call.1} parent=5 // pred_region
        %s841 = ssub.s32 %s66, 1
        // Predicated region
        $region137: #{tpu_custom_call.1} parent=135 // pred_check
          %p842 = pneg %p496
        $region138: #{tpu_custom_call.1} parent=135 // pred_check_branch
          %844 = sbr.rel (%p842) target = $region140
        $region139: #{tpu_custom_call.1} parent=135 // pred_region
          %845 = dma.done [#allocation3], 128
        $region140: #{tpu_custom_call.1} parent=135 // pred_fallthru
          _
        %846 = sfence
        %p847 = scmp.lt.s32.totalorder %s71, 1
        %s848 = scalar_select %p847, %s71, 1
        %s849 = smul.addr %s848, 8
        %s850 = smul.addr %s849, 8
        %s851 = scalar_lea.vmem %s1, %s850
        %p852 = pneg %p92
        %p853 = pneg %p89
        %p854 = scmp.lt.s32.totalorder %s71, 1
        %s855 = scalar_select %p854, %s71, 1
        %s856 = smul.addr %s855, 8
        %s857 = smul.addr %s856, 8
        %s858 = scalar_lea.vmem %s3, %s857
        %p859 = pneg %p118
        %p860 = pneg %p115
        %p861 = pneg %p139
        %p862 = pneg %p136
        %p863 = pneg %p160
        %p864 = pneg %p157
        %p865 = pneg %p181
        %p866 = pneg %p178
        %p867 = pneg %p202
        %p868 = pneg %p199
        %p869 = pneg %p223
        %p870 = pneg %p220
        %p871 = pneg %p244
        %p872 = pneg %p241
        %p873 = pneg %p265
        %p874 = pneg %p262
        %p875 = pneg %p286
        %p876 = pneg %p283
        %p877 = pneg %p307
        %p878 = pneg %p304
        %p879 = pneg %p328
        %p880 = pneg %p325
        %p881 = pneg %p349
        %p882 = pneg %p346
        %p883 = pneg %p370
        %p884 = pneg %p367
        %p885 = pneg %p391
        %p886 = pneg %p388
        %p887 = pneg %p412
        %p888 = pneg %p409
        %p889 = pneg %p433
        %p890 = pneg %p430
        %p891 = pneg %p454
        %p892 = pneg %p451
        %p893 = pneg %p475
        %p894 = pneg %p472
        %p895 = pneg %p496
        %p896 = pneg %p493
        %p897 = pneg %p517
        %p898 = pneg %p514
        %p899 = pneg %p538
        %p900 = pneg %p535
        %p901 = pneg %p559
        %p902 = pneg %p556
        %p903 = pneg %p580
        %p904 = pneg %p577
        %p905 = pneg %p601
        %p906 = pneg %p598
        %p907 = pneg %p622
        %p908 = pneg %p619
        %p909 = pneg %p643
        %p910 = pneg %p640
        %p911 = pneg %p664
        %p912 = pneg %p661
        %p913 = pneg %p685
        %p914 = pneg %p682
        %p915 = pneg %p711
        %p916 = pneg %p708
        %p917 = scmp.lt.s32.totalorder %s71, 1
        %s918 = scalar_select %p917, %s71, 1
        %s919 = smul.addr %s918, 8
        %s920 = smul.addr %s919, 8
        %s921 = scalar_lea.vmem %s59, %s920
        %p922 = scmp.lt.s32.totalorder %s71, 1
        %s923 = scalar_select %p922, %s71, 1
        %s924 = smul.addr %s923, 8
        %s925 = smul.addr %s924, 8
        %s926 = scalar_lea.vmem %s1, %s925
        %p927 = scmp.lt.s32.totalorder %s71, 1
        %s928 = scalar_select %p927, %s71, 1
        %s929 = smul.addr %s928, 8
        %s930 = smul.addr %s929, 8
        %s931 = scalar_lea.vmem %s3, %s930
        %p932 = scmp.lt.s32.totalorder %s71, 1
        %s933 = scalar_select %p932, %s71, 1
        %s934 = smul.addr %s933, 8
        %s935 = smul.addr %s934, 8
        %s936 = scalar_lea.vmem %s59, %s935
        %v937 = vld [vmem:[%s931] sm:$0xff]
        %v938 = vld [vmem:[%s931 + $0x8] sm:$0xff]
        %v939 = vld [vmem:[%s931 + $0x10] sm:$0xff]
        %v940 = vld [vmem:[%s931 + $0x18] sm:$0xff]
        %v941 = vld [vmem:[%s931 + $0x20] sm:$0xff]
        %v942 = vld [vmem:[%s931 + $0x28] sm:$0xff]
        %v943 = vld [vmem:[%s931 + $0x30] sm:$0xff]
        %v944 = vld [vmem:[%s931 + $0x38] sm:$0xff]
        %v945 = vld [vmem:[%s926] sm:$0xff]
        %v946 = vld [vmem:[%s926 + $0x8] sm:$0xff]
        %v947 = vld [vmem:[%s926 + $0x10] sm:$0xff]
        %v948 = vld [vmem:[%s926 + $0x18] sm:$0xff]
        %v949 = vld [vmem:[%s926 + $0x20] sm:$0xff]
        %v950 = vld [vmem:[%s926 + $0x28] sm:$0xff]
        %v951 = vld [vmem:[%s926 + $0x30] sm:$0xff]
        %v952 = vld [vmem:[%s926 + $0x38] sm:$0xff]
        %v953 = vld [vmem:[%s5] sm:$0xf]
        %vm954 = vcmask 31744
        %v956 = vsel %vm954, %v945, 0
        %v959 = vsel %vm954, %v946, 0
        %v962 = vsel %vm954, %v947, 0
        %v965 = vsel %vm954, %v948, 0
        %v968 = vsel %vm954, %v949, 0
        %v971 = vsel %vm954, %v950, 0
        %v974 = vsel %vm954, %v951, 0
        %v977 = vsel %vm954, %v952, 0
        %vm979 = vcmask 1043456
        %v981 = vsel %vm979, %v953, 0
        %983 = vmatprep.subr.mxu0 0.0
        %984 = vmatpush1.msra.mxu0 0.0
        %985 = vmatprep.subr.mxu0 0.0
        %986 = vmatpush1.msra.mxu0 0.0
        %987 = vmatprep.subr.mxu0 0.0
        %988 = vmatpush1.msra.mxu0 0.0
        %989 = vmatprep.subr.mxu0 0.0
        %990 = vmatpush1.msra.mxu0 0.0
        %991 = vmatprep.subr.mxu0 0.0
        %992 = vmatpush1.msra.mxu0 0.0
        %993 = vmatprep.subr.mxu0 0.0
        %994 = vmatpush1.msra.mxu0 0.0
        %995 = vmatprep.subr.mxu0 0.0
        %996 = vmatpush1.msra.mxu0 0.0
        %997 = vmatprep.subr.mxu0 0.0
        %998 = vmatpush1.msra.mxu0 0.0
        %999 = vmatprep.subr.mxu0 0.0
        %1000 = vmatpush1.msra.mxu0 0.0
        %1001 = vmatprep.subr.mxu0 0.0
        %1002 = vmatpush1.msra.mxu0 0.0
        %1003 = vmatprep.subr.mxu0 0.0
        %1004 = vmatpush1.msra.mxu0 0.0
        %1005 = vmatprep.subr.mxu0 0.0
        %1006 = vmatpush1.msra.mxu0 0.0
        %1007 = vmatprep.subr.mxu0 0.0
        %1008 = vmatpush1.msra.mxu0 0.0
        %1009 = vmatprep.subr.mxu0 0.0
        %1010 = vmatpush1.msra.mxu0 0.0
        %1011 = vmatprep.subr.mxu0 0.0
        %1012 = vmatpush1.msra.mxu0 0.0
        %1013 = vmatprep.subr.mxu0 0.0
        %1014 = vmatpush1.msra.mxu0 %v981
        %1015 = vmatprep.subr.mxu0 0.0
        %1016 = vmatpush2.msra.mxu0 0.0
        %1017 = vmatprep.subr.mxu0 0.0
        %1018 = vmatpush2.msra.mxu0 0.0
        %1019 = vmatprep.subr.mxu0 0.0
        %1020 = vmatpush2.msra.mxu0 0.0
        %1021 = vmatprep.subr.mxu0 0.0
        %1022 = vmatpush2.msra.mxu0 0.0
        %1023 = vmatprep.subr.mxu0 0.0
        %1024 = vmatpush2.msra.mxu0 0.0
        %1025 = vmatprep.subr.mxu0 0.0
        %1026 = vmatpush2.msra.mxu0 0.0
        %1027 = vmatprep.subr.mxu0 0.0
        %1028 = vmatpush2.msra.mxu0 0.0
        %1029 = vmatprep.subr.mxu0 0.0
        %1030 = vmatpush2.msra.mxu0 0.0
        %1031 = vmatprep.subr.mxu0 0.0
        %1032 = vmatpush2.msra.mxu0 0.0
        %1033 = vmatprep.subr.mxu0 0.0
        %1034 = vmatpush2.msra.mxu0 0.0
        %1035 = vmatprep.subr.mxu0 0.0
        %1036 = vmatpush2.msra.mxu0 0.0
        %1037 = vmatprep.subr.mxu0 0.0
        %1038 = vmatpush2.msra.mxu0 0.0
        %1039 = vmatprep.subr.mxu0 0.0
        %1040 = vmatpush2.msra.mxu0 0.0
        %1041 = vmatprep.subr.mxu0 0.0
        %1042 = vmatpush2.msra.mxu0 0.0
        %1043 = vmatprep.subr.mxu0 0.0
        %1044 = vmatpush2.msra.mxu0 0.0
        %1045 = vmatprep.subr.mxu0 0.0
        %1046 = vmatpush2.msra.mxu0 0.0
        %1047 = vmatprep.mubr.f32.mxu0 0.0
        %1048 = vmatmul.mubr.f32.gmra.mxu0 %v956
        %v1049 = vpop.f32.mrf.mxu0
        %v1050 = vadd.f32 0.0, %v1049
        %v1051 = vpop.f32.mrf.mxu0
        %1052 = vmatprep.mubr.f32.mxu0 0.0
        %1053 = vmatmul.mubr.f32.gmra.mxu0 %v959
        %v1054 = vpop.f32.mrf.mxu0
        %v1055 = vadd.f32 0.0, %v1054
        %v1056 = vpop.f32.mrf.mxu0
        %1057 = vmatprep.mubr.f32.mxu0 0.0
        %1058 = vmatmul.mubr.f32.gmra.mxu0 %v962
        %v1059 = vpop.f32.mrf.mxu0
        %v1060 = vadd.f32 0.0, %v1059
        %v1061 = vpop.f32.mrf.mxu0
        %1062 = vmatprep.mubr.f32.mxu0 0.0
        %1063 = vmatmul.mubr.f32.gmra.mxu0 %v965
        %v1064 = vpop.f32.mrf.mxu0
        %v1065 = vadd.f32 0.0, %v1064
        %v1066 = vpop.f32.mrf.mxu0
        %1067 = vmatprep.mubr.f32.mxu0 0.0
        %1068 = vmatmul.mubr.f32.gmra.mxu0 %v968
        %v1069 = vpop.f32.mrf.mxu0
        %v1070 = vadd.f32 0.0, %v1069
        %v1071 = vpop.f32.mrf.mxu0
        %1072 = vmatprep.mubr.f32.mxu0 0.0
        %1073 = vmatmul.mubr.f32.gmra.mxu0 %v971
        %v1074 = vpop.f32.mrf.mxu0
        %v1075 = vadd.f32 0.0, %v1074
        %v1076 = vpop.f32.mrf.mxu0
        %1077 = vmatprep.mubr.f32.mxu0 0.0
        %1078 = vmatmul.mubr.f32.gmra.mxu0 %v974
        %v1079 = vpop.f32.mrf.mxu0
        %v1080 = vadd.f32 0.0, %v1079
        %v1081 = vpop.f32.mrf.mxu0
        %1082 = vmatprep.mubr.f32.mxu0 0.0
        %1083 = vmatmul.mubr.f32.gmra.mxu0 %v977
        %v1084 = vpop.f32.mrf.mxu0
        %v1085 = vadd.f32 0.0, %v1084
        %v1086 = vpop.f32.mrf.mxu0
        %1087 = vdwg.mxu0
        %v1088 = vld [vmem:[%s7] sm:$0x1]
        %v1090 = vlaneseq
        %v1091 = vshrl.u32 %v1090, 7
        %v1092 = vsub.s32 0, %v1091
        %v1093 = vrot.slane %v1088, %v1092
        %v1095 = vmul.f32 %v1050, %v1093
        %v1096 = vmul.f32 %v1055, %v1093
        %v1097 = vmul.f32 %v1060, %v1093
        %v1098 = vmul.f32 %v1065, %v1093
        %v1099 = vmul.f32 %v1070, %v1093
        %v1100 = vmul.f32 %v1075, %v1093
        %v1101 = vmul.f32 %v1080, %v1093
        %v1102 = vmul.f32 %v1085, %v1093
        %v1103 = vld [vmem:[%s9] sm:$0x1]
        %v1105 = vlaneseq
        %v1106 = vshrl.u32 %v1105, 7
        %v1107 = vsub.s32 0, %v1106
        %v1108 = vrot.slane %v1103, %v1107
        %v1110 = vadd.f32 %v1095, %v1108
        %v1111 = vadd.f32 %v1096, %v1108
        %v1112 = vadd.f32 %v1097, %v1108
        %v1113 = vadd.f32 %v1098, %v1108
        %v1114 = vadd.f32 %v1099, %v1108
        %v1115 = vadd.f32 %v1100, %v1108
        %v1116 = vadd.f32 %v1101, %v1108
        %v1117 = vadd.f32 %v1102, %v1108
        %v1118 = vmax.f32 %v1110, 0.0
        %v1119 = vmax.f32 %v1111, 0.0
        %v1120 = vmax.f32 %v1112, 0.0
        %v1121 = vmax.f32 %v1113, 0.0
        %v1122 = vmax.f32 %v1114, 0.0
        %v1123 = vmax.f32 %v1115, 0.0
        %v1124 = vmax.f32 %v1116, 0.0
        %v1125 = vmax.f32 %v1117, 0.0
        %v1126 = vld [vmem:[%s11] sm:$0xff]
        %v1127 = vld [vmem:[%s11 + $0x8] sm:$0xff]
        %vm1128 = vcmask 130048
        %v1130 = vsel %vm1128, %v1118, 0
        %v1133 = vsel %vm1128, %v1119, 0
        %v1136 = vsel %vm1128, %v1120, 0
        %v1139 = vsel %vm1128, %v1121, 0
        %v1142 = vsel %vm1128, %v1122, 0
        %v1145 = vsel %vm1128, %v1123, 0
        %v1148 = vsel %vm1128, %v1124, 0
        %v1151 = vsel %vm1128, %v1125, 0
        %1153 = vmatprep.subr.mxu0 0.0
        %1154 = vmatpush1.msra.mxu0 0.0
        %1155 = vmatprep.subr.mxu0 0.0
        %1156 = vmatpush1.msra.mxu0 0.0
        %1157 = vmatprep.subr.mxu0 0.0
        %1158 = vmatpush1.msra.mxu0 0.0
        %1159 = vmatprep.subr.mxu0 0.0
        %1160 = vmatpush1.msra.mxu0 0.0
        %1161 = vmatprep.subr.mxu0 0.0
        %1162 = vmatpush1.msra.mxu0 0.0
        %1163 = vmatprep.subr.mxu0 0.0
        %1164 = vmatpush1.msra.mxu0 0.0
        %1165 = vmatprep.subr.mxu0 0.0
        %1166 = vmatpush1.msra.mxu0 0.0
        %1167 = vmatprep.subr.mxu0 0.0
        %1168 = vmatpush1.msra.mxu0 0.0
        %1169 = vmatprep.subr.mxu0 0.0
        %1170 = vmatpush1.msra.mxu0 0.0
        %1171 = vmatprep.subr.mxu0 0.0
        %1172 = vmatpush1.msra.mxu0 0.0
        %1173 = vmatprep.subr.mxu0 0.0
        %1174 = vmatpush1.msra.mxu0 0.0
        %1175 = vmatprep.subr.mxu0 0.0
        %1176 = vmatpush1.msra.mxu0 0.0
        %1177 = vmatprep.subr.mxu0 0.0
        %1178 = vmatpush1.msra.mxu0 0.0
        %1179 = vmatprep.subr.mxu0 0.0
        %1180 = vmatpush1.msra.mxu0 0.0
        %1181 = vmatprep.subr.mxu0 0.0
        %1182 = vmatpush1.msra.mxu0 %v1127
        %1183 = vmatprep.subr.mxu0 0.0
        %1184 = vmatpush1.msra.mxu0 %v1126
        %1185 = vmatprep.subr.mxu0 0.0
        %1186 = vmatpush2.msra.mxu0 0.0
        %1187 = vmatprep.subr.mxu0 0.0
        %1188 = vmatpush2.msra.mxu0 0.0
        %1189 = vmatprep.subr.mxu0 0.0
        %1190 = vmatpush2.msra.mxu0 0.0
        %1191 = vmatprep.subr.mxu0 0.0
        %1192 = vmatpush2.msra.mxu0 0.0
        %1193 = vmatprep.subr.mxu0 0.0
        %1194 = vmatpush2.msra.mxu0 0.0
        %1195 = vmatprep.subr.mxu0 0.0
        %1196 = vmatpush2.msra.mxu0 0.0
        %1197 = vmatprep.subr.mxu0 0.0
        %1198 = vmatpush2.msra.mxu0 0.0
        %1199 = vmatprep.subr.mxu0 0.0
        %1200 = vmatpush2.msra.mxu0 0.0
        %1201 = vmatprep.subr.mxu0 0.0
        %1202 = vmatpush2.msra.mxu0 0.0
        %1203 = vmatprep.subr.mxu0 0.0
        %1204 = vmatpush2.msra.mxu0 0.0
        %1205 = vmatprep.subr.mxu0 0.0
        %1206 = vmatpush2.msra.mxu0 0.0
        %1207 = vmatprep.subr.mxu0 0.0
        %1208 = vmatpush2.msra.mxu0 0.0
        %1209 = vmatprep.subr.mxu0 0.0
        %1210 = vmatpush2.msra.mxu0 0.0
        %1211 = vmatprep.subr.mxu0 0.0
        %1212 = vmatpush2.msra.mxu0 0.0
        %1213 = vmatprep.subr.mxu0 0.0
        %1214 = vmatpush2.msra.mxu0 0.0
        %1215 = vmatprep.subr.mxu0 0.0
        %1216 = vmatpush2.msra.mxu0 0.0
        %1217 = vmatprep.mubr.f32.mxu0 0.0
        %1218 = vmatmul.mubr.f32.gmra.mxu0 %v1130
        %v1219 = vpop.f32.mrf.mxu0
        %v1220 = vadd.f32 0.0, %v1219
        %v1221 = vpop.f32.mrf.mxu0
        %1222 = vmatprep.mubr.f32.mxu0 0.0
        %1223 = vmatmul.mubr.f32.gmra.mxu0 %v1133
        %v1224 = vpop.f32.mrf.mxu0
        %v1225 = vadd.f32 0.0, %v1224
        %v1226 = vpop.f32.mrf.mxu0
        %1227 = vmatprep.mubr.f32.mxu0 0.0
        %1228 = vmatmul.mubr.f32.gmra.mxu0 %v1136
        %v1229 = vpop.f32.mrf.mxu0
        %v1230 = vadd.f32 0.0, %v1229
        %v1231 = vpop.f32.mrf.mxu0
        %1232 = vmatprep.mubr.f32.mxu0 0.0
        %1233 = vmatmul.mubr.f32.gmra.mxu0 %v1139
        %v1234 = vpop.f32.mrf.mxu0
        %v1235 = vadd.f32 0.0, %v1234
        %v1236 = vpop.f32.mrf.mxu0
        %1237 = vmatprep.mubr.f32.mxu0 0.0
        %1238 = vmatmul.mubr.f32.gmra.mxu0 %v1142
        %v1239 = vpop.f32.mrf.mxu0
        %v1240 = vadd.f32 0.0, %v1239
        %v1241 = vpop.f32.mrf.mxu0
        %1242 = vmatprep.mubr.f32.mxu0 0.0
        %1243 = vmatmul.mubr.f32.gmra.mxu0 %v1145
        %v1244 = vpop.f32.mrf.mxu0
        %v1245 = vadd.f32 0.0, %v1244
        %v1246 = vpop.f32.mrf.mxu0
        %1247 = vmatprep.mubr.f32.mxu0 0.0
        %1248 = vmatmul.mubr.f32.gmra.mxu0 %v1148
        %v1249 = vpop.f32.mrf.mxu0
        %v1250 = vadd.f32 0.0, %v1249
        %v1251 = vpop.f32.mrf.mxu0
        %1252 = vmatprep.mubr.f32.mxu0 0.0
        %1253 = vmatmul.mubr.f32.gmra.mxu0 %v1151
        %v1254 = vpop.f32.mrf.mxu0
        %v1255 = vadd.f32 0.0, %v1254
        %v1256 = vpop.f32.mrf.mxu0
        %1257 = vdwg.mxu0
        %v1258 = vld [vmem:[%s13] sm:$0x1]
        %v1260 = vlaneseq
        %v1261 = vshrl.u32 %v1260, 7
        %v1262 = vsub.s32 0, %v1261
        %v1263 = vrot.slane %v1258, %v1262
        %v1265 = vmul.f32 %v1220, %v1263
        %v1266 = vmul.f32 %v1225, %v1263
        %v1267 = vmul.f32 %v1230, %v1263
        %v1268 = vmul.f32 %v1235, %v1263
        %v1269 = vmul.f32 %v1240, %v1263
        %v1270 = vmul.f32 %v1245, %v1263
        %v1271 = vmul.f32 %v1250, %v1263
        %v1272 = vmul.f32 %v1255, %v1263
        %v1273 = vld [vmem:[%s15] sm:$0x1]
        %v1275 = vlaneseq
        %v1276 = vshrl.u32 %v1275, 7
        %v1277 = vsub.s32 0, %v1276
        %v1278 = vrot.slane %v1273, %v1277
        %v1280 = vadd.f32 %v1265, %v1278
        %v1281 = vadd.f32 %v1266, %v1278
        %v1282 = vadd.f32 %v1267, %v1278
        %v1283 = vadd.f32 %v1268, %v1278
        %v1284 = vadd.f32 %v1269, %v1278
        %v1285 = vadd.f32 %v1270, %v1278
        %v1286 = vadd.f32 %v1271, %v1278
        %v1287 = vadd.f32 %v1272, %v1278
        %v1288 = vmax.f32 %v1280, 0.0
        %v1289 = vmax.f32 %v1281, 0.0
        %v1290 = vmax.f32 %v1282, 0.0
        %v1291 = vmax.f32 %v1283, 0.0
        %v1292 = vmax.f32 %v1284, 0.0
        %v1293 = vmax.f32 %v1285, 0.0
        %v1294 = vmax.f32 %v1286, 0.0
        %v1295 = vmax.f32 %v1287, 0.0
        %v1296 = vld [vmem:[%s17] sm:$0xff]
        %v1297 = vld [vmem:[%s17 + $0x8] sm:$0xff]
        %v1298 = vld [vmem:[%s17 + $0x10] sm:$0xff]
        %v1299 = vld [vmem:[%s17 + $0x18] sm:$0xff]
        %v1300 = vld [vmem:[%s17 + $0x20] sm:$0xff]
        %v1301 = vld [vmem:[%s17 + $0x28] sm:$0xff]
        %v1302 = vld [vmem:[%s17 + $0x30] sm:$0xff]
        %v1303 = vld [vmem:[%s17 + $0x38] sm:$0xff]
        %vm1304 = vcmask 261120
        %v1306 = vsel %vm1304, %v1288, 0
        %v1309 = vsel %vm1304, %v1289, 0
        %v1312 = vsel %vm1304, %v1290, 0
        %v1315 = vsel %vm1304, %v1291, 0
        %v1318 = vsel %vm1304, %v1292, 0
        %v1321 = vsel %vm1304, %v1293, 0
        %v1324 = vsel %vm1304, %v1294, 0
        %v1327 = vsel %vm1304, %v1295, 0
        %1329 = vmatprep.subr.mxu0 0.0
        %1330 = vmatpush1.msra.mxu0 0.0
        %1331 = vmatprep.subr.mxu0 0.0
        %1332 = vmatpush1.msra.mxu0 0.0
        %1333 = vmatprep.subr.mxu0 0.0
        %1334 = vmatpush1.msra.mxu0 0.0
        %1335 = vmatprep.subr.mxu0 0.0
        %1336 = vmatpush1.msra.mxu0 0.0
        %1337 = vmatprep.subr.mxu0 0.0
        %1338 = vmatpush1.msra.mxu0 0.0
        %1339 = vmatprep.subr.mxu0 0.0
        %1340 = vmatpush1.msra.mxu0 0.0
        %1341 = vmatprep.subr.mxu0 0.0
        %1342 = vmatpush1.msra.mxu0 0.0
        %1343 = vmatprep.subr.mxu0 0.0
        %1344 = vmatpush1.msra.mxu0 0.0
        %1345 = vmatprep.subr.mxu0 0.0
        %1346 = vmatpush1.msra.mxu0 0.0
        %1347 = vmatprep.subr.mxu0 0.0
        %1348 = vmatpush1.msra.mxu0 0.0
        %1349 = vmatprep.subr.mxu0 0.0
        %1350 = vmatpush1.msra.mxu0 0.0
        %1351 = vmatprep.subr.mxu0 0.0
        %1352 = vmatpush1.msra.mxu0 0.0
        %1353 = vmatprep.subr.mxu0 %v1303
        %1354 = vmatpush1.msra.mxu0 %v1302
        %1355 = vmatprep.subr.mxu0 %v1301
        %1356 = vmatpush1.msra.mxu0 %v1300
        %1357 = vmatprep.subr.mxu0 %v1299
        %1358 = vmatpush1.msra.mxu0 %v1298
        %1359 = vmatprep.subr.mxu0 %v1297
        %1360 = vmatpush1.msra.mxu0 %v1296
        %1361 = vmatprep.subr.mxu0 0.0
        %1362 = vmatpush2.msra.mxu0 0.0
        %1363 = vmatprep.subr.mxu0 0.0
        %1364 = vmatpush2.msra.mxu0 0.0
        %1365 = vmatprep.subr.mxu0 0.0
        %1366 = vmatpush2.msra.mxu0 0.0
        %1367 = vmatprep.subr.mxu0 0.0
        %1368 = vmatpush2.msra.mxu0 0.0
        %1369 = vmatprep.subr.mxu0 0.0
        %1370 = vmatpush2.msra.mxu0 0.0
        %1371 = vmatprep.subr.mxu0 0.0
        %1372 = vmatpush2.msra.mxu0 0.0
        %1373 = vmatprep.subr.mxu0 0.0
        %1374 = vmatpush2.msra.mxu0 0.0
        %1375 = vmatprep.subr.mxu0 0.0
        %1376 = vmatpush2.msra.mxu0 0.0
        %1377 = vmatprep.subr.mxu0 0.0
        %1378 = vmatpush2.msra.mxu0 0.0
        %1379 = vmatprep.subr.mxu0 0.0
        %1380 = vmatpush2.msra.mxu0 0.0
        %1381 = vmatprep.subr.mxu0 0.0
        %1382 = vmatpush2.msra.mxu0 0.0
        %1383 = vmatprep.subr.mxu0 0.0
        %1384 = vmatpush2.msra.mxu0 0.0
        %1385 = vmatprep.subr.mxu0 0.0
        %1386 = vmatpush2.msra.mxu0 0.0
        %1387 = vmatprep.subr.mxu0 0.0
        %1388 = vmatpush2.msra.mxu0 0.0
        %1389 = vmatprep.subr.mxu0 0.0
        %1390 = vmatpush2.msra.mxu0 0.0
        %1391 = vmatprep.subr.mxu0 0.0
        %1392 = vmatpush2.msra.mxu0 0.0
        %1393 = vmatprep.mubr.f32.mxu0 0.0
        %1394 = vmatmul.mubr.f32.gmra.mxu0 %v1306
        %v1395 = vpop.f32.mrf.mxu0
        %v1396 = vadd.f32 0.0, %v1395
        %v1397 = vpop.f32.mrf.mxu0
        %v1398 = vadd.f32 0.0, %v1397
        %1399 = vmatprep.mubr.f32.mxu0 0.0
        %1400 = vmatmul.mubr.f32.gmra.mxu0 %v1309
        %v1401 = vpop.f32.mrf.mxu0
        %v1402 = vadd.f32 0.0, %v1401
        %v1403 = vpop.f32.mrf.mxu0
        %v1404 = vadd.f32 0.0, %v1403
        %1405 = vmatprep.mubr.f32.mxu0 0.0
        %1406 = vmatmul.mubr.f32.gmra.mxu0 %v1312
        %v1407 = vpop.f32.mrf.mxu0
        %v1408 = vadd.f32 0.0, %v1407
        %v1409 = vpop.f32.mrf.mxu0
        %v1410 = vadd.f32 0.0, %v1409
        %1411 = vmatprep.mubr.f32.mxu0 0.0
        %1412 = vmatmul.mubr.f32.gmra.mxu0 %v1315
        %v1413 = vpop.f32.mrf.mxu0
        %v1414 = vadd.f32 0.0, %v1413
        %v1415 = vpop.f32.mrf.mxu0
        %v1416 = vadd.f32 0.0, %v1415
        %1417 = vmatprep.mubr.f32.mxu0 0.0
        %1418 = vmatmul.mubr.f32.gmra.mxu0 %v1318
        %v1419 = vpop.f32.mrf.mxu0
        %v1420 = vadd.f32 0.0, %v1419
        %v1421 = vpop.f32.mrf.mxu0
        %v1422 = vadd.f32 0.0, %v1421
        %1423 = vmatprep.mubr.f32.mxu0 0.0
        %1424 = vmatmul.mubr.f32.gmra.mxu0 %v1321
        %v1425 = vpop.f32.mrf.mxu0
        %v1426 = vadd.f32 0.0, %v1425
        %v1427 = vpop.f32.mrf.mxu0
        %v1428 = vadd.f32 0.0, %v1427
        %1429 = vmatprep.mubr.f32.mxu0 0.0
        %1430 = vmatmul.mubr.f32.gmra.mxu0 %v1324
        %v1431 = vpop.f32.mrf.mxu0
        %v1432 = vadd.f32 0.0, %v1431
        %v1433 = vpop.f32.mrf.mxu0
        %v1434 = vadd.f32 0.0, %v1433
        %1435 = vmatprep.mubr.f32.mxu0 0.0
        %1436 = vmatmul.mubr.f32.gmra.mxu0 %v1327
        %v1437 = vpop.f32.mrf.mxu0
        %v1438 = vadd.f32 0.0, %v1437
        %v1439 = vpop.f32.mrf.mxu0
        %v1440 = vadd.f32 0.0, %v1439
        %1441 = vdwg.mxu0
        %v1442 = vld [vmem:[%s19] sm:$0x3]
        %v1444 = vlaneseq
        %v1445 = vshrl.u32 %v1444, 7
        %v1446 = vsub.s32 0, %v1445
        %v1447 = vrot.slane %v1442, %v1446
        %v1448 = vlaneseq
        %v1449 = vshrl.u32 %v1448, 7
        %v1450 = vsub.s32 1, %v1449
        %v1451 = vrot.slane %v1442, %v1450
        %v1454 = vmul.f32 %v1396, %v1447
        %v1455 = vmul.f32 %v1398, %v1451
        %v1456 = vmul.f32 %v1402, %v1447
        %v1457 = vmul.f32 %v1404, %v1451
        %v1458 = vmul.f32 %v1408, %v1447
        %v1459 = vmul.f32 %v1410, %v1451
        %v1460 = vmul.f32 %v1414, %v1447
        %v1461 = vmul.f32 %v1416, %v1451
        %v1462 = vmul.f32 %v1420, %v1447
        %v1463 = vmul.f32 %v1422, %v1451
        %v1464 = vmul.f32 %v1426, %v1447
        %v1465 = vmul.f32 %v1428, %v1451
        %v1466 = vmul.f32 %v1432, %v1447
        %v1467 = vmul.f32 %v1434, %v1451
        %v1468 = vmul.f32 %v1438, %v1447
        %v1469 = vmul.f32 %v1440, %v1451
        %v1470 = vld [vmem:[%s21] sm:$0x3]
        %v1472 = vlaneseq
        %v1473 = vshrl.u32 %v1472, 7
        %v1474 = vsub.s32 0, %v1473
        %v1475 = vrot.slane %v1470, %v1474
        %v1476 = vlaneseq
        %v1477 = vshrl.u32 %v1476, 7
        %v1478 = vsub.s32 1, %v1477
        %v1479 = vrot.slane %v1470, %v1478
        %v1482 = vadd.f32 %v1454, %v1475
        %v1483 = vadd.f32 %v1455, %v1479
        %v1484 = vadd.f32 %v1456, %v1475
        %v1485 = vadd.f32 %v1457, %v1479
        %v1486 = vadd.f32 %v1458, %v1475
        %v1487 = vadd.f32 %v1459, %v1479
        %v1488 = vadd.f32 %v1460, %v1475
        %v1489 = vadd.f32 %v1461, %v1479
        %v1490 = vadd.f32 %v1462, %v1475
        %v1491 = vadd.f32 %v1463, %v1479
        %v1492 = vadd.f32 %v1464, %v1475
        %v1493 = vadd.f32 %v1465, %v1479
        %v1494 = vadd.f32 %v1466, %v1475
        %v1495 = vadd.f32 %v1467, %v1479
        %v1496 = vadd.f32 %v1468, %v1475
        %v1497 = vadd.f32 %v1469, %v1479
        %v1498 = vld [vmem:[%s23] sm:$0x3]
        %vm1499 = vcmp.gt.f32.partialorder %v1498, 0.0
        %v1500 = vmax.f32 %v1482, 0.0
        %v1501 = vmax.f32 %v1483, 0.0
        %v1502 = vmax.f32 %v1484, 0.0
        %v1503 = vmax.f32 %v1485, 0.0
        %v1504 = vmax.f32 %v1486, 0.0
        %v1505 = vmax.f32 %v1487, 0.0
        %v1506 = vmax.f32 %v1488, 0.0
        %v1507 = vmax.f32 %v1489, 0.0
        %v1508 = vmax.f32 %v1490, 0.0
        %v1509 = vmax.f32 %v1491, 0.0
        %v1510 = vmax.f32 %v1492, 0.0
        %v1511 = vmax.f32 %v1493, 0.0
        %v1512 = vmax.f32 %v1494, 0.0
        %v1513 = vmax.f32 %v1495, 0.0
        %v1514 = vmax.f32 %v1496, 0.0
        %v1515 = vmax.f32 %v1497, 0.0
        %v1516 = vsel %vm1499, 1, 0
        %v1517 = vlaneseq
        %v1518 = vshrl.u32 %v1517, 7
        %v1519 = vsub.s32 0, %v1518
        %v1520 = vrot.slane %v1516, %v1519
        %v1521 = vlaneseq
        %v1522 = vshrl.u32 %v1521, 7
        %v1523 = vsub.s32 1, %v1522
        %v1524 = vrot.slane %v1516, %v1523
        %vm1525 = vcmp.eq.s32.totalorder %v1520, 1
        %vm1526 = vcmp.eq.s32.totalorder %v1524, 1
        %v1527 = vsel %vm1525, %v1500, %v1482
        %v1528 = vsel %vm1526, %v1501, %v1483
        %v1529 = vsel %vm1525, %v1502, %v1484
        %v1530 = vsel %vm1526, %v1503, %v1485
        %v1531 = vsel %vm1525, %v1504, %v1486
        %v1532 = vsel %vm1526, %v1505, %v1487
        %v1533 = vsel %vm1525, %v1506, %v1488
        %v1534 = vsel %vm1526, %v1507, %v1489
        %v1535 = vsel %vm1525, %v1508, %v1490
        %v1536 = vsel %vm1526, %v1509, %v1491
        %v1537 = vsel %vm1525, %v1510, %v1492
        %v1538 = vsel %vm1526, %v1511, %v1493
        %v1539 = vsel %vm1525, %v1512, %v1494
        %v1540 = vsel %vm1526, %v1513, %v1495
        %v1541 = vsel %vm1525, %v1514, %v1496
        %v1542 = vsel %vm1526, %v1515, %v1497
        %v1543 = vld [vmem:[%s25] sm:$0xff]
        %v1544 = vld [vmem:[%s25 + $0x8] sm:$0xff]
        %v1545 = vld [vmem:[%s25 + $0x10] sm:$0xff]
        %v1546 = vld [vmem:[%s25 + $0x18] sm:$0xff]
        %v1547 = vld [vmem:[%s25 + $0x20] sm:$0xff]
        %v1548 = vld [vmem:[%s25 + $0x28] sm:$0xff]
        %v1549 = vld [vmem:[%s25 + $0x30] sm:$0xff]
        %v1550 = vld [vmem:[%s25 + $0x38] sm:$0xff]
        %v1551 = vld [vmem:[%s25 + $0x40] sm:$0xff]
        %v1552 = vld [vmem:[%s25 + $0x48] sm:$0xff]
        %v1553 = vld [vmem:[%s25 + $0x50] sm:$0xff]
        %v1554 = vld [vmem:[%s25 + $0x58] sm:$0xff]
        %v1555 = vld [vmem:[%s25 + $0x60] sm:$0xff]
        %v1556 = vld [vmem:[%s25 + $0x68] sm:$0xff]
        %v1557 = vld [vmem:[%s25 + $0x70] sm:$0xff]
        %v1558 = vld [vmem:[%s25 + $0x78] sm:$0xff]
        %v1559 = vld [vmem:[%s25 + $0x80] sm:$0xff]
        %v1560 = vld [vmem:[%s25 + $0x88] sm:$0xff]
        %v1561 = vld [vmem:[%s25 + $0x90] sm:$0xff]
        %v1562 = vld [vmem:[%s25 + $0x98] sm:$0xff]
        %v1563 = vld [vmem:[%s25 + $0xa0] sm:$0xff]
        %v1564 = vld [vmem:[%s25 + $0xa8] sm:$0xff]
        %v1565 = vld [vmem:[%s25 + $0xb0] sm:$0xff]
        %v1566 = vld [vmem:[%s25 + $0xb8] sm:$0xff]
        %v1567 = vld [vmem:[%s25 + $0xc0] sm:$0xff]
        %v1568 = vld [vmem:[%s25 + $0xc8] sm:$0xff]
        %v1569 = vld [vmem:[%s25 + $0xd0] sm:$0xff]
        %v1570 = vld [vmem:[%s25 + $0xd8] sm:$0xff]
        %v1571 = vld [vmem:[%s25 + $0xe0] sm:$0xff]
        %v1572 = vld [vmem:[%s25 + $0xe8] sm:$0xff]
        %v1573 = vld [vmem:[%s25 + $0xf0] sm:$0xff]
        %v1574 = vld [vmem:[%s25 + $0xf8] sm:$0xff]
        %v1575 = vld [vmem:[%s25 + $0x100] sm:$0xff]
        %v1576 = vld [vmem:[%s25 + $0x108] sm:$0xff]
        %v1577 = vld [vmem:[%s25 + $0x110] sm:$0xff]
        %v1578 = vld [vmem:[%s25 + $0x118] sm:$0xff]
        %v1579 = vld [vmem:[%s25 + $0x120] sm:$0xff]
        %v1580 = vld [vmem:[%s25 + $0x128] sm:$0xff]
        %v1581 = vld [vmem:[%s25 + $0x130] sm:$0xff]
        %v1582 = vld [vmem:[%s25 + $0x138] sm:$0xff]
        %v1584 = vsel %vm1304, %v1528, 0
        %v1587 = vsel %vm1304, %v1530, 0
        %v1590 = vsel %vm1304, %v1532, 0
        %v1593 = vsel %vm1304, %v1534, 0
        %v1596 = vsel %vm1304, %v1536, 0
        %v1599 = vsel %vm1304, %v1538, 0
        %v1602 = vsel %vm1304, %v1540, 0
        %v1605 = vsel %vm1304, %v1542, 0
        %1607 = vmatprep.subr.mxu0 %v1574
        %1608 = vmatpush1.msra.mxu0 %v1573
        %1609 = vmatprep.subr.mxu0 %v1572
        %1610 = vmatpush1.msra.mxu0 %v1571
        %1611 = vmatprep.subr.mxu0 %v1570
        %1612 = vmatpush1.msra.mxu0 %v1569
        %1613 = vmatprep.subr.mxu0 %v1568
        %1614 = vmatpush1.msra.mxu0 %v1567
        %1615 = vmatprep.subr.mxu0 %v1566
        %1616 = vmatpush1.msra.mxu0 %v1565
        %1617 = vmatprep.subr.mxu0 %v1564
        %1618 = vmatpush1.msra.mxu0 %v1563
        %1619 = vmatprep.subr.mxu0 %v1562
        %1620 = vmatpush1.msra.mxu0 %v1561
        %1621 = vmatprep.subr.mxu0 %v1560
        %1622 = vmatpush1.msra.mxu0 %v1559
        %1623 = vmatprep.subr.mxu0 %v1558
        %1624 = vmatpush1.msra.mxu0 %v1557
        %1625 = vmatprep.subr.mxu0 %v1556
        %1626 = vmatpush1.msra.mxu0 %v1555
        %1627 = vmatprep.subr.mxu0 %v1554
        %1628 = vmatpush1.msra.mxu0 %v1553
        %1629 = vmatprep.subr.mxu0 %v1552
        %1630 = vmatpush1.msra.mxu0 %v1551
        %1631 = vmatprep.subr.mxu0 %v1550
        %1632 = vmatpush1.msra.mxu0 %v1549
        %1633 = vmatprep.subr.mxu0 %v1548
        %1634 = vmatpush1.msra.mxu0 %v1547
        %1635 = vmatprep.subr.mxu0 %v1546
        %1636 = vmatpush1.msra.mxu0 %v1545
        %1637 = vmatprep.subr.mxu0 %v1544
        %1638 = vmatpush1.msra.mxu0 %v1543
        %1639 = vmatprep.subr.mxu0 0.0
        %1640 = vmatpush2.msra.mxu0 0.0
        %1641 = vmatprep.subr.mxu0 0.0
        %1642 = vmatpush2.msra.mxu0 0.0
        %1643 = vmatprep.subr.mxu0 0.0
        %1644 = vmatpush2.msra.mxu0 0.0
        %1645 = vmatprep.subr.mxu0 0.0
        %1646 = vmatpush2.msra.mxu0 0.0
        %1647 = vmatprep.subr.mxu0 0.0
        %1648 = vmatpush2.msra.mxu0 0.0
        %1649 = vmatprep.subr.mxu0 0.0
        %1650 = vmatpush2.msra.mxu0 0.0
        %1651 = vmatprep.subr.mxu0 0.0
        %1652 = vmatpush2.msra.mxu0 0.0
        %1653 = vmatprep.subr.mxu0 0.0
        %1654 = vmatpush2.msra.mxu0 0.0
        %1655 = vmatprep.subr.mxu0 0.0
        %1656 = vmatpush2.msra.mxu0 0.0
        %1657 = vmatprep.subr.mxu0 0.0
        %1658 = vmatpush2.msra.mxu0 0.0
        %1659 = vmatprep.subr.mxu0 0.0
        %1660 = vmatpush2.msra.mxu0 0.0
        %1661 = vmatprep.subr.mxu0 0.0
        %1662 = vmatpush2.msra.mxu0 0.0
        %1663 = vmatprep.subr.mxu0 %v1582
        %1664 = vmatpush2.msra.mxu0 %v1581
        %1665 = vmatprep.subr.mxu0 %v1580
        %1666 = vmatpush2.msra.mxu0 %v1579
        %1667 = vmatprep.subr.mxu0 %v1578
        %1668 = vmatpush2.msra.mxu0 %v1577
        %1669 = vmatprep.subr.mxu0 %v1576
        %1670 = vmatpush2.msra.mxu0 %v1575
        %1671 = vmatprep.mubr.f32.mxu0 %v1584
        %1672 = vmatmul.mubr.f32.gmra.mxu0 %v1527
        %v1673 = vpop.f32.mrf.mxu0
        %v1674 = vadd.f32 0.0, %v1673
        %v1675 = vpop.f32.mrf.mxu0
        %v1676 = vadd.f32 0.0, %v1675
        %1677 = vmatprep.mubr.f32.mxu0 %v1587
        %1678 = vmatmul.mubr.f32.gmra.mxu0 %v1529
        %v1679 = vpop.f32.mrf.mxu0
        %v1680 = vadd.f32 0.0, %v1679
        %v1681 = vpop.f32.mrf.mxu0
        %v1682 = vadd.f32 0.0, %v1681
        %1683 = vmatprep.mubr.f32.mxu0 %v1590
        %1684 = vmatmul.mubr.f32.gmra.mxu0 %v1531
        %v1685 = vpop.f32.mrf.mxu0
        %v1686 = vadd.f32 0.0, %v1685
        %v1687 = vpop.f32.mrf.mxu0
        %v1688 = vadd.f32 0.0, %v1687
        %1689 = vmatprep.mubr.f32.mxu0 %v1593
        %1690 = vmatmul.mubr.f32.gmra.mxu0 %v1533
        %v1691 = vpop.f32.mrf.mxu0
        %v1692 = vadd.f32 0.0, %v1691
        %v1693 = vpop.f32.mrf.mxu0
        %v1694 = vadd.f32 0.0, %v1693
        %1695 = vmatprep.mubr.f32.mxu0 %v1596
        %1696 = vmatmul.mubr.f32.gmra.mxu0 %v1535
        %v1697 = vpop.f32.mrf.mxu0
        %v1698 = vadd.f32 0.0, %v1697
        %v1699 = vpop.f32.mrf.mxu0
        %v1700 = vadd.f32 0.0, %v1699
        %1701 = vmatprep.mubr.f32.mxu0 %v1599
        %1702 = vmatmul.mubr.f32.gmra.mxu0 %v1537
        %v1703 = vpop.f32.mrf.mxu0
        %v1704 = vadd.f32 0.0, %v1703
        %v1705 = vpop.f32.mrf.mxu0
        %v1706 = vadd.f32 0.0, %v1705
        %1707 = vmatprep.mubr.f32.mxu0 %v1602
        %1708 = vmatmul.mubr.f32.gmra.mxu0 %v1539
        %v1709 = vpop.f32.mrf.mxu0
        %v1710 = vadd.f32 0.0, %v1709
        %v1711 = vpop.f32.mrf.mxu0
        %v1712 = vadd.f32 0.0, %v1711
        %1713 = vmatprep.mubr.f32.mxu0 %v1605
        %1714 = vmatmul.mubr.f32.gmra.mxu0 %v1541
        %v1715 = vpop.f32.mrf.mxu0
        %v1716 = vadd.f32 0.0, %v1715
        %v1717 = vpop.f32.mrf.mxu0
        %v1718 = vadd.f32 0.0, %v1717
        %1719 = vdwg.mxu0
        %v1720 = vld [vmem:[%s27] sm:$0x3]
        %v1722 = vlaneseq
        %v1723 = vshrl.u32 %v1722, 7
        %v1724 = vsub.s32 0, %v1723
        %v1725 = vrot.slane %v1720, %v1724
        %v1726 = vlaneseq
        %v1727 = vshrl.u32 %v1726, 7
        %v1728 = vsub.s32 1, %v1727
        %v1729 = vrot.slane %v1720, %v1728
        %v1732 = vmul.f32 %v1674, %v1725
        %v1733 = vmul.f32 %v1676, %v1729
        %v1734 = vmul.f32 %v1680, %v1725
        %v1735 = vmul.f32 %v1682, %v1729
        %v1736 = vmul.f32 %v1686, %v1725
        %v1737 = vmul.f32 %v1688, %v1729
        %v1738 = vmul.f32 %v1692, %v1725
        %v1739 = vmul.f32 %v1694, %v1729
        %v1740 = vmul.f32 %v1698, %v1725
        %v1741 = vmul.f32 %v1700, %v1729
        %v1742 = vmul.f32 %v1704, %v1725
        %v1743 = vmul.f32 %v1706, %v1729
        %v1744 = vmul.f32 %v1710, %v1725
        %v1745 = vmul.f32 %v1712, %v1729
        %v1746 = vmul.f32 %v1716, %v1725
        %v1747 = vmul.f32 %v1718, %v1729
        %v1748 = vld [vmem:[%s29] sm:$0x3]
        %v1750 = vlaneseq
        %v1751 = vshrl.u32 %v1750, 7
        %v1752 = vsub.s32 0, %v1751
        %v1753 = vrot.slane %v1748, %v1752
        %v1754 = vlaneseq
        %v1755 = vshrl.u32 %v1754, 7
        %v1756 = vsub.s32 1, %v1755
        %v1757 = vrot.slane %v1748, %v1756
        %v1760 = vadd.f32 %v1732, %v1753
        %v1761 = vadd.f32 %v1733, %v1757
        %v1762 = vadd.f32 %v1734, %v1753
        %v1763 = vadd.f32 %v1735, %v1757
        %v1764 = vadd.f32 %v1736, %v1753
        %v1765 = vadd.f32 %v1737, %v1757
        %v1766 = vadd.f32 %v1738, %v1753
        %v1767 = vadd.f32 %v1739, %v1757
        %v1768 = vadd.f32 %v1740, %v1753
        %v1769 = vadd.f32 %v1741, %v1757
        %v1770 = vadd.f32 %v1742, %v1753
        %v1771 = vadd.f32 %v1743, %v1757
        %v1772 = vadd.f32 %v1744, %v1753
        %v1773 = vadd.f32 %v1745, %v1757
        %v1774 = vadd.f32 %v1746, %v1753
        %v1775 = vadd.f32 %v1747, %v1757
        %v1776 = vld [vmem:[%s31] sm:$0x3]
        %vm1777 = vcmp.gt.f32.partialorder %v1776, 0.0
        %v1778 = vmax.f32 %v1760, 0.0
        %v1779 = vmax.f32 %v1761, 0.0
        %v1780 = vmax.f32 %v1762, 0.0
        %v1781 = vmax.f32 %v1763, 0.0
        %v1782 = vmax.f32 %v1764, 0.0
        %v1783 = vmax.f32 %v1765, 0.0
        %v1784 = vmax.f32 %v1766, 0.0
        %v1785 = vmax.f32 %v1767, 0.0
        %v1786 = vmax.f32 %v1768, 0.0
        %v1787 = vmax.f32 %v1769, 0.0
        %v1788 = vmax.f32 %v1770, 0.0
        %v1789 = vmax.f32 %v1771, 0.0
        %v1790 = vmax.f32 %v1772, 0.0
        %v1791 = vmax.f32 %v1773, 0.0
        %v1792 = vmax.f32 %v1774, 0.0
        %v1793 = vmax.f32 %v1775, 0.0
        %v1794 = vsel %vm1777, 1, 0
        %v1795 = vlaneseq
        %v1796 = vshrl.u32 %v1795, 7
        %v1797 = vsub.s32 0, %v1796
        %v1798 = vrot.slane %v1794, %v1797
        %v1799 = vlaneseq
        %v1800 = vshrl.u32 %v1799, 7
        %v1801 = vsub.s32 1, %v1800
        %v1802 = vrot.slane %v1794, %v1801
        %vm1803 = vcmp.eq.s32.totalorder %v1798, 1
        %vm1804 = vcmp.eq.s32.totalorder %v1802, 1
        %v1805 = vsel %vm1803, %v1778, %v1760
        %v1806 = vsel %vm1804, %v1779, %v1761
        %v1807 = vsel %vm1803, %v1780, %v1762
        %v1808 = vsel %vm1804, %v1781, %v1763
        %v1809 = vsel %vm1803, %v1782, %v1764
        %v1810 = vsel %vm1804, %v1783, %v1765
        %v1811 = vsel %vm1803, %v1784, %v1766
        %v1812 = vsel %vm1804, %v1785, %v1767
        %v1813 = vsel %vm1803, %v1786, %v1768
        %v1814 = vsel %vm1804, %v1787, %v1769
        %v1815 = vsel %vm1803, %v1788, %v1770
        %v1816 = vsel %vm1804, %v1789, %v1771
        %v1817 = vsel %vm1803, %v1790, %v1772
        %v1818 = vsel %vm1804, %v1791, %v1773
        %v1819 = vsel %vm1803, %v1792, %v1774
        %v1820 = vsel %vm1804, %v1793, %v1775
        %vm1821 = vcmask 7168
        %v1822 = vsel %vm1821, %v937, 0.0
        %v1823 = vsel %vm1821, %v938, 0.0
        %v1824 = vadd.f32 %v1822, %v1823
        %v1825 = vsel %vm1821, %v939, 0.0
        %v1826 = vadd.f32 %v1824, %v1825
        %v1827 = vsel %vm1821, %v940, 0.0
        %v1828 = vadd.f32 %v1826, %v1827
        %v1829 = vsel %vm1821, %v941, 0.0
        %v1830 = vadd.f32 %v1828, %v1829
        %v1831 = vsel %vm1821, %v942, 0.0
        %v1832 = vadd.f32 %v1830, %v1831
        %v1833 = vsel %vm1821, %v943, 0.0
        %v1834 = vadd.f32 %v1832, %v1833
        %v1835 = vsel %vm1821, %v944, 0.0
        %v1836 = vadd.f32 %v1834, %v1835
        %1837 = vadd.xlane.f32.xlu0 %v1836
        %v1838 = vpop.xlane.xlu0 %1837
        %v1839 = vrot.slane %v1838, 4
        %v1840 = vadd.f32 %v1838, %v1839
        %v1841 = vrot.slane %v1840, 2
        %v1842 = vadd.f32 %v1840, %v1841
        %v1843 = vrot.slane %v1842, 1
        %v1844 = vadd.f32 %v1842, %v1843
        %s1845 = vtos %v1844
        %s1846 = smax.f32 %s1845, 1.0
        %v1847 = vlaneseq
        %v1848 = vand.u32 %v1847, 127
        %v1849 = vld [vmem:[%s33] sm:$0xff]
        %v1850 = vld [vmem:[%s33 + $0x8] sm:$0xff]
        %v1851 = vld [vmem:[%s33 + $0x10] sm:$0xff]
        %v1852 = vld [vmem:[%s33 + $0x18] sm:$0xff]
        %v1853 = vld [vmem:[%s33 + $0x20] sm:$0xff]
        %v1854 = vld [vmem:[%s33 + $0x28] sm:$0xff]
        %v1855 = vld [vmem:[%s33 + $0x30] sm:$0xff]
        %v1856 = vld [vmem:[%s33 + $0x38] sm:$0xff]
        %v1857 = vld [vmem:[%s33 + $0x40] sm:$0xff]
        %v1858 = vld [vmem:[%s33 + $0x48] sm:$0xff]
        %v1859 = vld [vmem:[%s33 + $0x50] sm:$0xff]
        %v1860 = vld [vmem:[%s33 + $0x58] sm:$0xff]
        %v1861 = vld [vmem:[%s33 + $0x60] sm:$0xff]
        %v1862 = vld [vmem:[%s33 + $0x68] sm:$0xff]
        %v1863 = vld [vmem:[%s33 + $0x70] sm:$0xff]
        %v1864 = vld [vmem:[%s33 + $0x78] sm:$0xff]
        %v1865 = vld [vmem:[%s33 + $0x80] sm:$0xff]
        %v1866 = vld [vmem:[%s33 + $0x88] sm:$0xff]
        %v1867 = vld [vmem:[%s33 + $0x90] sm:$0xff]
        %v1868 = vld [vmem:[%s33 + $0x98] sm:$0xff]
        %v1870 = vsel %vm1304, %v1806, 0
        %v1873 = vsel %vm1304, %v1808, 0
        %v1876 = vsel %vm1304, %v1810, 0
        %v1879 = vsel %vm1304, %v1812, 0
        %v1882 = vsel %vm1304, %v1814, 0
        %v1885 = vsel %vm1304, %v1816, 0
        %v1888 = vsel %vm1304, %v1818, 0
        %v1891 = vsel %vm1304, %v1820, 0
        %1893 = vmatprep.subr.mxu0 0.0
        %1894 = vmatpush1.msra.mxu0 %v1864
        %1895 = vmatprep.subr.mxu0 0.0
        %1896 = vmatpush1.msra.mxu0 %v1863
        %1897 = vmatprep.subr.mxu0 0.0
        %1898 = vmatpush1.msra.mxu0 %v1862
        %1899 = vmatprep.subr.mxu0 0.0
        %1900 = vmatpush1.msra.mxu0 %v1861
        %1901 = vmatprep.subr.mxu0 0.0
        %1902 = vmatpush1.msra.mxu0 %v1860
        %1903 = vmatprep.subr.mxu0 0.0
        %1904 = vmatpush1.msra.mxu0 %v1859
        %1905 = vmatprep.subr.mxu0 0.0
        %1906 = vmatpush1.msra.mxu0 %v1858
        %1907 = vmatprep.subr.mxu0 0.0
        %1908 = vmatpush1.msra.mxu0 %v1857
        %1909 = vmatprep.subr.mxu0 0.0
        %1910 = vmatpush1.msra.mxu0 %v1856
        %1911 = vmatprep.subr.mxu0 0.0
        %1912 = vmatpush1.msra.mxu0 %v1855
        %1913 = vmatprep.subr.mxu0 0.0
        %1914 = vmatpush1.msra.mxu0 %v1854
        %1915 = vmatprep.subr.mxu0 0.0
        %1916 = vmatpush1.msra.mxu0 %v1853
        %1917 = vmatprep.subr.mxu0 0.0
        %1918 = vmatpush1.msra.mxu0 %v1852
        %1919 = vmatprep.subr.mxu0 0.0
        %1920 = vmatpush1.msra.mxu0 %v1851
        %1921 = vmatprep.subr.mxu0 0.0
        %1922 = vmatpush1.msra.mxu0 %v1850
        %1923 = vmatprep.subr.mxu0 0.0
        %1924 = vmatpush1.msra.mxu0 %v1849
        %1925 = vmatprep.subr.mxu0 0.0
        %1926 = vmatpush2.msra.mxu0 0.0
        %1927 = vmatprep.subr.mxu0 0.0
        %1928 = vmatpush2.msra.mxu0 0.0
        %1929 = vmatprep.subr.mxu0 0.0
        %1930 = vmatpush2.msra.mxu0 0.0
        %1931 = vmatprep.subr.mxu0 0.0
        %1932 = vmatpush2.msra.mxu0 0.0
        %1933 = vmatprep.subr.mxu0 0.0
        %1934 = vmatpush2.msra.mxu0 0.0
        %1935 = vmatprep.subr.mxu0 0.0
        %1936 = vmatpush2.msra.mxu0 0.0
        %1937 = vmatprep.subr.mxu0 0.0
        %1938 = vmatpush2.msra.mxu0 0.0
        %1939 = vmatprep.subr.mxu0 0.0
        %1940 = vmatpush2.msra.mxu0 0.0
        %1941 = vmatprep.subr.mxu0 0.0
        %1942 = vmatpush2.msra.mxu0 0.0
        %1943 = vmatprep.subr.mxu0 0.0
        %1944 = vmatpush2.msra.mxu0 0.0
        %1945 = vmatprep.subr.mxu0 0.0
        %1946 = vmatpush2.msra.mxu0 0.0
        %1947 = vmatprep.subr.mxu0 0.0
        %1948 = vmatpush2.msra.mxu0 0.0
        %1949 = vmatprep.subr.mxu0 0.0
        %1950 = vmatpush2.msra.mxu0 %v1868
        %1951 = vmatprep.subr.mxu0 0.0
        %1952 = vmatpush2.msra.mxu0 %v1867
        %1953 = vmatprep.subr.mxu0 0.0
        %1954 = vmatpush2.msra.mxu0 %v1866
        %1955 = vmatprep.subr.mxu0 0.0
        %1956 = vmatpush2.msra.mxu0 %v1865
        %1957 = vmatprep.mubr.f32.mxu0 %v1870
        %1958 = vmatmul.mubr.f32.gmra.mxu0 %v1805
        %v1959 = vpop.f32.mrf.mxu0
        %v1960 = vadd.f32 0.0, %v1959
        %v1961 = vpop.f32.mrf.mxu0
        %1962 = vmatprep.mubr.f32.mxu0 %v1873
        %1963 = vmatmul.mubr.f32.gmra.mxu0 %v1807
        %v1964 = vpop.f32.mrf.mxu0
        %v1965 = vadd.f32 0.0, %v1964
        %v1966 = vpop.f32.mrf.mxu0
        %1967 = vmatprep.mubr.f32.mxu0 %v1876
        %1968 = vmatmul.mubr.f32.gmra.mxu0 %v1809
        %v1969 = vpop.f32.mrf.mxu0
        %v1970 = vadd.f32 0.0, %v1969
        %v1971 = vpop.f32.mrf.mxu0
        %1972 = vmatprep.mubr.f32.mxu0 %v1879
        %1973 = vmatmul.mubr.f32.gmra.mxu0 %v1811
        %v1974 = vpop.f32.mrf.mxu0
        %v1975 = vadd.f32 0.0, %v1974
        %v1976 = vpop.f32.mrf.mxu0
        %1977 = vmatprep.mubr.f32.mxu0 %v1882
        %1978 = vmatmul.mubr.f32.gmra.mxu0 %v1813
        %v1979 = vpop.f32.mrf.mxu0
        %v1980 = vadd.f32 0.0, %v1979
        %v1981 = vpop.f32.mrf.mxu0
        %1982 = vmatprep.mubr.f32.mxu0 %v1885
        %1983 = vmatmul.mubr.f32.gmra.mxu0 %v1815
        %v1984 = vpop.f32.mrf.mxu0
        %v1985 = vadd.f32 0.0, %v1984
        %v1986 = vpop.f32.mrf.mxu0
        %1987 = vmatprep.mubr.f32.mxu0 %v1888
        %1988 = vmatmul.mubr.f32.gmra.mxu0 %v1817
        %v1989 = vpop.f32.mrf.mxu0
        %v1990 = vadd.f32 0.0, %v1989
        %v1991 = vpop.f32.mrf.mxu0
        %1992 = vmatprep.mubr.f32.mxu0 %v1891
        %1993 = vmatmul.mubr.f32.gmra.mxu0 %v1819
        %v1994 = vpop.f32.mrf.mxu0
        %v1995 = vadd.f32 0.0, %v1994
        %v1996 = vpop.f32.mrf.mxu0
        %1997 = vdwg.mxu0
        %v1998 = vld [vmem:[%s35] sm:$0x1]
        %v2000 = vlaneseq
        %v2001 = vshrl.u32 %v2000, 7
        %v2002 = vsub.s32 0, %v2001
        %v2003 = vrot.slane %v1998, %v2002
        %v2005 = vmul.f32 %v1960, %v2003
        %v2006 = vmul.f32 %v1965, %v2003
        %v2007 = vmul.f32 %v1970, %v2003
        %v2008 = vmul.f32 %v1975, %v2003
        %v2009 = vmul.f32 %v1980, %v2003
        %v2010 = vmul.f32 %v1985, %v2003
        %v2011 = vmul.f32 %v1990, %v2003
        %v2012 = vmul.f32 %v1995, %v2003
        %v2013 = vld [vmem:[%s37] sm:$0x1]
        %v2015 = vlaneseq
        %v2016 = vshrl.u32 %v2015, 7
        %v2017 = vsub.s32 0, %v2016
        %v2018 = vrot.slane %v2013, %v2017
        %v2020 = vadd.f32 %v2005, %v2018
        %v2021 = vadd.f32 %v2006, %v2018
        %v2022 = vadd.f32 %v2007, %v2018
        %v2023 = vadd.f32 %v2008, %v2018
        %v2024 = vadd.f32 %v2009, %v2018
        %v2025 = vadd.f32 %v2010, %v2018
        %v2026 = vadd.f32 %v2011, %v2018
        %v2027 = vadd.f32 %v2012, %v2018
        %2029 = vset.pattern.permute.xlu0 0
        %2030 = vperm.xlu0 %2029, %v937
        %v2031 = vpop.permute.xlu0 %2030
        %2034 = vset.pattern.permute.xlu0 0
        %2035 = vperm.xlu0 %2034, %v938
        %v2036 = vpop.permute.xlu0 %2035
        %2039 = vset.pattern.permute.xlu0 0
        %2040 = vperm.xlu0 %2039, %v939
        %v2041 = vpop.permute.xlu0 %2040
        %2044 = vset.pattern.permute.xlu0 0
        %2045 = vperm.xlu0 %2044, %v940
        %v2046 = vpop.permute.xlu0 %2045
        %2049 = vset.pattern.permute.xlu0 0
        %2050 = vperm.xlu0 %2049, %v941
        %v2051 = vpop.permute.xlu0 %2050
        %2054 = vset.pattern.permute.xlu0 0
        %2055 = vperm.xlu0 %2054, %v942
        %v2056 = vpop.permute.xlu0 %2055
        %2059 = vset.pattern.permute.xlu0 0
        %2060 = vperm.xlu0 %2059, %v943
        %v2061 = vpop.permute.xlu0 %2060
        %2064 = vset.pattern.permute.xlu0 0
        %2065 = vperm.xlu0 %2064, %v944
        %v2066 = vpop.permute.xlu0 %2065
        %v2068 = vmul.f32 %v2020, %v2031
        %v2069 = vmul.f32 %v2021, %v2036
        %v2070 = vmul.f32 %v2022, %v2041
        %v2071 = vmul.f32 %v2023, %v2046
        %v2072 = vmul.f32 %v2024, %v2051
        %v2073 = vmul.f32 %v2025, %v2056
        %v2074 = vmul.f32 %v2026, %v2061
        %v2075 = vmul.f32 %v2027, %v2066
        %v2076 = vsel %vm1304, %v2068, 0.0
        %v2077 = vsel %vm1304, %v2069, 0.0
        %v2078 = vadd.f32 %v2076, %v2077
        %v2079 = vsel %vm1304, %v2070, 0.0
        %v2080 = vadd.f32 %v2078, %v2079
        %v2081 = vsel %vm1304, %v2071, 0.0
        %v2082 = vadd.f32 %v2080, %v2081
        %v2083 = vsel %vm1304, %v2072, 0.0
        %v2084 = vadd.f32 %v2082, %v2083
        %v2085 = vsel %vm1304, %v2073, 0.0
        %v2086 = vadd.f32 %v2084, %v2085
        %v2087 = vsel %vm1304, %v2074, 0.0
        %v2088 = vadd.f32 %v2086, %v2087
        %v2089 = vsel %vm1304, %v2075, 0.0
        %v2090 = vadd.f32 %v2088, %v2089
        %v2091 = vrot.slane %v2090, 4
        %v2092 = vadd.f32 %v2090, %v2091
        %v2093 = vrot.slane %v2092, 2
        %v2094 = vadd.f32 %v2092, %v2093
        %v2095 = vrot.slane %v2094, 1
        %v2096 = vadd.f32 %v2094, %v2095
        %v2097 = vstv %s1846
        %v2098 = vrcp.pop %v2097
        %v2099 = vmul.f32 %v2096, %v2098
        %vm2100 = vcmask 1047808
        %2101 = vrot.lane.b32.xlu0 %v2099, 32
        %v2102 = vpop.permute.xlu0 %2101
        %v2103 = vsel %vm2100, %v2102, %v2099
        %2104 = vrot.lane.b32.xlu0 %v2103, 32
        %v2105 = vpop.permute.xlu0 %2104
        %v2106 = vsel %vm2100, %v2105, %v2099
        %v2107 = vadd.s32 %v1848, 4294967295
        %vm2108 = vcmp.ge.s32.totalorder %v2107, 0
        %vm2109 = vcmp.lt.s32.totalorder %v2107, 32
        %vm2110 = vmand %vm2108, %vm2109
        %s2111 = sld [smem:[#allocation2]]
        %2113 = vrot.lane.b32.xlu0 %v2106, 97
        %v2114 = vpop.permute.xlu0 %2113
        %v2116 = vsel %vm2110, %v2114, 0.0
        %v2117 = vstv %s2111
        %v2118 = vmul.f32 %v2117, %v2116
        %v2119 = vadd.f32 %v2118, 0.0
        %vm2120 = vcmp.ge.s32.totalorder %v1848, 0
        %vm2121 = vcmp.lt.s32.totalorder %v1848, 32
        %vm2122 = vmand %vm2120, %vm2121
        %s2123 = sld [smem:[#allocation2 + $0x1]]
        %v2124 = vsel %vm2122, %v2099, 0.0
        %v2125 = vstv %s2123
        %v2126 = vmul.f32 %v2125, %v2124
        %v2127 = vadd.f32 %v2119, %v2126
        %v2128 = vadd.s32 %v1848, 1
        %vm2129 = vcmp.ge.s32.totalorder %v2128, 0
        %vm2130 = vcmp.lt.s32.totalorder %v2128, 32
        %vm2131 = vmand %vm2129, %vm2130
        %s2132 = sld [smem:[#allocation2 + $0x2]]
        %2133 = vrot.lane.b32.xlu0 %v2106, 127
        %v2134 = vpop.permute.xlu0 %2133
        %v2136 = vsel %vm2131, %v2134, 0.0
        %v2137 = vstv %s2132
        %v2138 = vmul.f32 %v2137, %v2136
        %v2139 = vadd.f32 %v2127, %v2138
        %v2140 = vxor.u32 %v2139, 2147483648
        %v2141 = vmul.f32 %v2140, 1.442695
        %v2142 = vpow.pop %v2141
        %v2143 = vadd.f32 %v2142, 1.0
        %v2144 = vrcp.pop %v2143
        %v2145 = vmul.f32 1.0, %v2144
        %v2146 = vlaneseq
        %v2147 = vshrl.u32 %v2146, 7
        %v2148 = vsub.s32 0, %v2147
        %v2149 = vrot.slane %v2145, %v2148
        %v2150 = vmul.f32 %v2020, %v2149
        %v2151 = vmul.f32 %v2021, %v2149
        %v2152 = vmul.f32 %v2022, %v2149
        %v2153 = vmul.f32 %v2023, %v2149
        %v2154 = vmul.f32 %v2024, %v2149
        %v2155 = vmul.f32 %v2025, %v2149
        %v2156 = vmul.f32 %v2026, %v2149
        %v2157 = vmul.f32 %v2027, %v2149
        %v2158 = vld [vmem:[%s41] sm:$0xff]
        %v2159 = vld [vmem:[%s41 + $0x8] sm:$0xff]
        %v2160 = vld [vmem:[%s41 + $0x10] sm:$0xff]
        %v2161 = vld [vmem:[%s41 + $0x18] sm:$0xff]
        %v2163 = vsel %vm1304, %v2150, 0
        %v2166 = vsel %vm1304, %v2151, 0
        %v2169 = vsel %vm1304, %v2152, 0
        %v2172 = vsel %vm1304, %v2153, 0
        %v2175 = vsel %vm1304, %v2154, 0
        %v2178 = vsel %vm1304, %v2155, 0
        %v2181 = vsel %vm1304, %v2156, 0
        %v2184 = vsel %vm1304, %v2157, 0
        %2186 = vmatprep.subr.mxu0 0.0
        %2187 = vmatpush1.msra.mxu0 0.0
        %2188 = vmatprep.subr.mxu0 0.0
        %2189 = vmatpush1.msra.mxu0 0.0
        %2190 = vmatprep.subr.mxu0 0.0
        %2191 = vmatpush1.msra.mxu0 0.0
        %2192 = vmatprep.subr.mxu0 0.0
        %2193 = vmatpush1.msra.mxu0 0.0
        %2194 = vmatprep.subr.mxu0 0.0
        %2195 = vmatpush1.msra.mxu0 0.0
        %2196 = vmatprep.subr.mxu0 0.0
        %2197 = vmatpush1.msra.mxu0 0.0
        %2198 = vmatprep.subr.mxu0 0.0
        %2199 = vmatpush1.msra.mxu0 0.0
        %2200 = vmatprep.subr.mxu0 0.0
        %2201 = vmatpush1.msra.mxu0 0.0
        %2202 = vmatprep.subr.mxu0 0.0
        %2203 = vmatpush1.msra.mxu0 0.0
        %2204 = vmatprep.subr.mxu0 0.0
        %2205 = vmatpush1.msra.mxu0 0.0
        %2206 = vmatprep.subr.mxu0 0.0
        %2207 = vmatpush1.msra.mxu0 0.0
        %2208 = vmatprep.subr.mxu0 0.0
        %2209 = vmatpush1.msra.mxu0 0.0
        %2210 = vmatprep.subr.mxu0 0.0
        %2211 = vmatpush1.msra.mxu0 %v2161
        %2212 = vmatprep.subr.mxu0 0.0
        %2213 = vmatpush1.msra.mxu0 %v2160
        %2214 = vmatprep.subr.mxu0 0.0
        %2215 = vmatpush1.msra.mxu0 %v2159
        %2216 = vmatprep.subr.mxu0 0.0
        %2217 = vmatpush1.msra.mxu0 %v2158
        %2218 = vmatprep.subr.mxu0 0.0
        %2219 = vmatpush2.msra.mxu0 0.0
        %2220 = vmatprep.subr.mxu0 0.0
        %2221 = vmatpush2.msra.mxu0 0.0
        %2222 = vmatprep.subr.mxu0 0.0
        %2223 = vmatpush2.msra.mxu0 0.0
        %2224 = vmatprep.subr.mxu0 0.0
        %2225 = vmatpush2.msra.mxu0 0.0
        %2226 = vmatprep.subr.mxu0 0.0
        %2227 = vmatpush2.msra.mxu0 0.0
        %2228 = vmatprep.subr.mxu0 0.0
        %2229 = vmatpush2.msra.mxu0 0.0
        %2230 = vmatprep.subr.mxu0 0.0
        %2231 = vmatpush2.msra.mxu0 0.0
        %2232 = vmatprep.subr.mxu0 0.0
        %2233 = vmatpush2.msra.mxu0 0.0
        %2234 = vmatprep.subr.mxu0 0.0
        %2235 = vmatpush2.msra.mxu0 0.0
        %2236 = vmatprep.subr.mxu0 0.0
        %2237 = vmatpush2.msra.mxu0 0.0
        %2238 = vmatprep.subr.mxu0 0.0
        %2239 = vmatpush2.msra.mxu0 0.0
        %2240 = vmatprep.subr.mxu0 0.0
        %2241 = vmatpush2.msra.mxu0 0.0
        %2242 = vmatprep.subr.mxu0 0.0
        %2243 = vmatpush2.msra.mxu0 0.0
        %2244 = vmatprep.subr.mxu0 0.0
        %2245 = vmatpush2.msra.mxu0 0.0
        %2246 = vmatprep.subr.mxu0 0.0
        %2247 = vmatpush2.msra.mxu0 0.0
        %2248 = vmatprep.subr.mxu0 0.0
        %2249 = vmatpush2.msra.mxu0 0.0
        %2250 = vmatprep.mubr.f32.mxu0 0.0
        %2251 = vmatmul.mubr.f32.gmra.mxu0 %v2163
        %v2252 = vpop.f32.mrf.mxu0
        %v2253 = vadd.f32 0.0, %v2252
        %v2254 = vpop.f32.mrf.mxu0
        %2255 = vmatprep.mubr.f32.mxu0 0.0
        %2256 = vmatmul.mubr.f32.gmra.mxu0 %v2166
        %v2257 = vpop.f32.mrf.mxu0
        %v2258 = vadd.f32 0.0, %v2257
        %v2259 = vpop.f32.mrf.mxu0
        %2260 = vmatprep.mubr.f32.mxu0 0.0
        %2261 = vmatmul.mubr.f32.gmra.mxu0 %v2169
        %v2262 = vpop.f32.mrf.mxu0
        %v2263 = vadd.f32 0.0, %v2262
        %v2264 = vpop.f32.mrf.mxu0
        %2265 = vmatprep.mubr.f32.mxu0 0.0
        %2266 = vmatmul.mubr.f32.gmra.mxu0 %v2172
        %v2267 = vpop.f32.mrf.mxu0
        %v2268 = vadd.f32 0.0, %v2267
        %v2269 = vpop.f32.mrf.mxu0
        %2270 = vmatprep.mubr.f32.mxu0 0.0
        %2271 = vmatmul.mubr.f32.gmra.mxu0 %v2175
        %v2272 = vpop.f32.mrf.mxu0
        %v2273 = vadd.f32 0.0, %v2272
        %v2274 = vpop.f32.mrf.mxu0
        %2275 = vmatprep.mubr.f32.mxu0 0.0
        %2276 = vmatmul.mubr.f32.gmra.mxu0 %v2178
        %v2277 = vpop.f32.mrf.mxu0
        %v2278 = vadd.f32 0.0, %v2277
        %v2279 = vpop.f32.mrf.mxu0
        %2280 = vmatprep.mubr.f32.mxu0 0.0
        %2281 = vmatmul.mubr.f32.gmra.mxu0 %v2181
        %v2282 = vpop.f32.mrf.mxu0
        %v2283 = vadd.f32 0.0, %v2282
        %v2284 = vpop.f32.mrf.mxu0
        %2285 = vmatprep.mubr.f32.mxu0 0.0
        %2286 = vmatmul.mubr.f32.gmra.mxu0 %v2184
        %v2287 = vpop.f32.mrf.mxu0
        %v2288 = vadd.f32 0.0, %v2287
        %v2289 = vpop.f32.mrf.mxu0
        %2290 = vdwg.mxu0
        %v2291 = vld [vmem:[%s43] sm:$0x1]
        %v2293 = vlaneseq
        %v2294 = vshrl.u32 %v2293, 7
        %v2295 = vsub.s32 0, %v2294
        %v2296 = vrot.slane %v2291, %v2295
        %v2298 = vmul.f32 %v2253, %v2296
        %v2299 = vmul.f32 %v2258, %v2296
        %v2300 = vmul.f32 %v2263, %v2296
        %v2301 = vmul.f32 %v2268, %v2296
        %v2302 = vmul.f32 %v2273, %v2296
        %v2303 = vmul.f32 %v2278, %v2296
        %v2304 = vmul.f32 %v2283, %v2296
        %v2305 = vmul.f32 %v2288, %v2296
        %v2306 = vld [vmem:[%s45] sm:$0x1]
        %v2308 = vlaneseq
        %v2309 = vshrl.u32 %v2308, 7
        %v2310 = vsub.s32 0, %v2309
        %v2311 = vrot.slane %v2306, %v2310
        %v2313 = vadd.f32 %v2298, %v2311
        %v2314 = vadd.f32 %v2299, %v2311
        %v2315 = vadd.f32 %v2300, %v2311
        %v2316 = vadd.f32 %v2301, %v2311
        %v2317 = vadd.f32 %v2302, %v2311
        %v2318 = vadd.f32 %v2303, %v2311
        %v2319 = vadd.f32 %v2304, %v2311
        %v2320 = vadd.f32 %v2305, %v2311
        %v2321 = vmax.f32 %v2313, 0.0
        %v2322 = vmax.f32 %v2314, 0.0
        %v2323 = vmax.f32 %v2315, 0.0
        %v2324 = vmax.f32 %v2316, 0.0
        %v2325 = vmax.f32 %v2317, 0.0
        %v2326 = vmax.f32 %v2318, 0.0
        %v2327 = vmax.f32 %v2319, 0.0
        %v2328 = vmax.f32 %v2320, 0.0
        %v2329 = vld [vmem:[%s47] sm:$0xff]
        %v2330 = vld [vmem:[%s47 + $0x8] sm:$0xff]
        %v2331 = vld [vmem:[%s47 + $0x10] sm:$0xff]
        %v2332 = vld [vmem:[%s47 + $0x18] sm:$0xff]
        %v2334 = vsel %vm1304, %v2321, 0
        %v2337 = vsel %vm1304, %v2322, 0
        %v2340 = vsel %vm1304, %v2323, 0
        %v2343 = vsel %vm1304, %v2324, 0
        %v2346 = vsel %vm1304, %v2325, 0
        %v2349 = vsel %vm1304, %v2326, 0
        %v2352 = vsel %vm1304, %v2327, 0
        %v2355 = vsel %vm1304, %v2328, 0
        %2357 = vmatprep.subr.mxu0 0.0
        %2358 = vmatpush1.msra.mxu0 0.0
        %2359 = vmatprep.subr.mxu0 0.0
        %2360 = vmatpush1.msra.mxu0 0.0
        %2361 = vmatprep.subr.mxu0 0.0
        %2362 = vmatpush1.msra.mxu0 0.0
        %2363 = vmatprep.subr.mxu0 0.0
        %2364 = vmatpush1.msra.mxu0 0.0
        %2365 = vmatprep.subr.mxu0 0.0
        %2366 = vmatpush1.msra.mxu0 0.0
        %2367 = vmatprep.subr.mxu0 0.0
        %2368 = vmatpush1.msra.mxu0 0.0
        %2369 = vmatprep.subr.mxu0 0.0
        %2370 = vmatpush1.msra.mxu0 0.0
        %2371 = vmatprep.subr.mxu0 0.0
        %2372 = vmatpush1.msra.mxu0 0.0
        %2373 = vmatprep.subr.mxu0 0.0
        %2374 = vmatpush1.msra.mxu0 0.0
        %2375 = vmatprep.subr.mxu0 0.0
        %2376 = vmatpush1.msra.mxu0 0.0
        %2377 = vmatprep.subr.mxu0 0.0
        %2378 = vmatpush1.msra.mxu0 0.0
        %2379 = vmatprep.subr.mxu0 0.0
        %2380 = vmatpush1.msra.mxu0 0.0
        %2381 = vmatprep.subr.mxu0 0.0
        %2382 = vmatpush1.msra.mxu0 %v2332
        %2383 = vmatprep.subr.mxu0 0.0
        %2384 = vmatpush1.msra.mxu0 %v2331
        %2385 = vmatprep.subr.mxu0 0.0
        %2386 = vmatpush1.msra.mxu0 %v2330
        %2387 = vmatprep.subr.mxu0 0.0
        %2388 = vmatpush1.msra.mxu0 %v2329
        %2389 = vmatprep.subr.mxu0 0.0
        %2390 = vmatpush2.msra.mxu0 0.0
        %2391 = vmatprep.subr.mxu0 0.0
        %2392 = vmatpush2.msra.mxu0 0.0
        %2393 = vmatprep.subr.mxu0 0.0
        %2394 = vmatpush2.msra.mxu0 0.0
        %2395 = vmatprep.subr.mxu0 0.0
        %2396 = vmatpush2.msra.mxu0 0.0
        %2397 = vmatprep.subr.mxu0 0.0
        %2398 = vmatpush2.msra.mxu0 0.0
        %2399 = vmatprep.subr.mxu0 0.0
        %2400 = vmatpush2.msra.mxu0 0.0
        %2401 = vmatprep.subr.mxu0 0.0
        %2402 = vmatpush2.msra.mxu0 0.0
        %2403 = vmatprep.subr.mxu0 0.0
        %2404 = vmatpush2.msra.mxu0 0.0
        %2405 = vmatprep.subr.mxu0 0.0
        %2406 = vmatpush2.msra.mxu0 0.0
        %2407 = vmatprep.subr.mxu0 0.0
        %2408 = vmatpush2.msra.mxu0 0.0
        %2409 = vmatprep.subr.mxu0 0.0
        %2410 = vmatpush2.msra.mxu0 0.0
        %2411 = vmatprep.subr.mxu0 0.0
        %2412 = vmatpush2.msra.mxu0 0.0
        %2413 = vmatprep.subr.mxu0 0.0
        %2414 = vmatpush2.msra.mxu0 0.0
        %2415 = vmatprep.subr.mxu0 0.0
        %2416 = vmatpush2.msra.mxu0 0.0
        %2417 = vmatprep.subr.mxu0 0.0
        %2418 = vmatpush2.msra.mxu0 0.0
        %2419 = vmatprep.subr.mxu0 0.0
        %2420 = vmatpush2.msra.mxu0 0.0
        %2421 = vmatprep.mubr.f32.mxu0 0.0
        %2422 = vmatmul.mubr.f32.gmra.mxu0 %v2334
        %v2423 = vpop.f32.mrf.mxu0
        %v2424 = vadd.f32 0.0, %v2423
        %v2425 = vpop.f32.mrf.mxu0
        %2426 = vmatprep.mubr.f32.mxu0 0.0
        %2427 = vmatmul.mubr.f32.gmra.mxu0 %v2337
        %v2428 = vpop.f32.mrf.mxu0
        %v2429 = vadd.f32 0.0, %v2428
        %v2430 = vpop.f32.mrf.mxu0
        %2431 = vmatprep.mubr.f32.mxu0 0.0
        %2432 = vmatmul.mubr.f32.gmra.mxu0 %v2340
        %v2433 = vpop.f32.mrf.mxu0
        %v2434 = vadd.f32 0.0, %v2433
        %v2435 = vpop.f32.mrf.mxu0
        %2436 = vmatprep.mubr.f32.mxu0 0.0
        %2437 = vmatmul.mubr.f32.gmra.mxu0 %v2343
        %v2438 = vpop.f32.mrf.mxu0
        %v2439 = vadd.f32 0.0, %v2438
        %v2440 = vpop.f32.mrf.mxu0
        %2441 = vmatprep.mubr.f32.mxu0 0.0
        %2442 = vmatmul.mubr.f32.gmra.mxu0 %v2346
        %v2443 = vpop.f32.mrf.mxu0
        %v2444 = vadd.f32 0.0, %v2443
        %v2445 = vpop.f32.mrf.mxu0
        %2446 = vmatprep.mubr.f32.mxu0 0.0
        %2447 = vmatmul.mubr.f32.gmra.mxu0 %v2349
        %v2448 = vpop.f32.mrf.mxu0
        %v2449 = vadd.f32 0.0, %v2448
        %v2450 = vpop.f32.mrf.mxu0
        %2451 = vmatprep.mubr.f32.mxu0 0.0
        %2452 = vmatmul.mubr.f32.gmra.mxu0 %v2352
        %v2453 = vpop.f32.mrf.mxu0
        %v2454 = vadd.f32 0.0, %v2453
        %v2455 = vpop.f32.mrf.mxu0
        %2456 = vmatprep.mubr.f32.mxu0 0.0
        %2457 = vmatmul.mubr.f32.gmra.mxu0 %v2355
        %v2458 = vpop.f32.mrf.mxu0
        %v2459 = vadd.f32 0.0, %v2458
        %v2460 = vpop.f32.mrf.mxu0
        %2461 = vdwg.mxu0
        %v2462 = vld [vmem:[%s49] sm:$0x1]
        %v2464 = vlaneseq
        %v2465 = vshrl.u32 %v2464, 7
        %v2466 = vsub.s32 0, %v2465
        %v2467 = vrot.slane %v2462, %v2466
        %v2469 = vmul.f32 %v2424, %v2467
        %v2470 = vmul.f32 %v2429, %v2467
        %v2471 = vmul.f32 %v2434, %v2467
        %v2472 = vmul.f32 %v2439, %v2467
        %v2473 = vmul.f32 %v2444, %v2467
        %v2474 = vmul.f32 %v2449, %v2467
        %v2475 = vmul.f32 %v2454, %v2467
        %v2476 = vmul.f32 %v2459, %v2467
        %v2477 = vld [vmem:[%s51] sm:$0x1]
        %v2479 = vlaneseq
        %v2480 = vshrl.u32 %v2479, 7
        %v2481 = vsub.s32 0, %v2480
        %v2482 = vrot.slane %v2477, %v2481
        %v2484 = vadd.f32 %v2469, %v2482
        %v2485 = vadd.f32 %v2470, %v2482
        %v2486 = vadd.f32 %v2471, %v2482
        %v2487 = vadd.f32 %v2472, %v2482
        %v2488 = vadd.f32 %v2473, %v2482
        %v2489 = vadd.f32 %v2474, %v2482
        %v2490 = vadd.f32 %v2475, %v2482
        %v2491 = vadd.f32 %v2476, %v2482
        %s2492 = scalar_lea.vmem %s33, 160
        %v2493 = vld [vmem:[%s2492] sm:$0xff]
        %v2494 = vld [vmem:[%s2492 + $0x8] sm:$0xff]
        %v2495 = vld [vmem:[%s2492 + $0x10] sm:$0xff]
        %v2496 = vld [vmem:[%s2492 + $0x18] sm:$0xff]
        %v2497 = vld [vmem:[%s2492 + $0x20] sm:$0xff]
        %v2498 = vld [vmem:[%s2492 + $0x28] sm:$0xff]
        %v2499 = vld [vmem:[%s2492 + $0x30] sm:$0xff]
        %v2500 = vld [vmem:[%s2492 + $0x38] sm:$0xff]
        %v2501 = vld [vmem:[%s2492 + $0x40] sm:$0xff]
        %v2502 = vld [vmem:[%s2492 + $0x48] sm:$0xff]
        %v2503 = vld [vmem:[%s2492 + $0x50] sm:$0xff]
        %v2504 = vld [vmem:[%s2492 + $0x58] sm:$0xff]
        %v2505 = vld [vmem:[%s2492 + $0x60] sm:$0xff]
        %v2506 = vld [vmem:[%s2492 + $0x68] sm:$0xff]
        %v2507 = vld [vmem:[%s2492 + $0x70] sm:$0xff]
        %v2508 = vld [vmem:[%s2492 + $0x78] sm:$0xff]
        %v2509 = vld [vmem:[%s2492 + $0x80] sm:$0xff]
        %v2510 = vld [vmem:[%s2492 + $0x88] sm:$0xff]
        %v2511 = vld [vmem:[%s2492 + $0x90] sm:$0xff]
        %v2512 = vld [vmem:[%s2492 + $0x98] sm:$0xff]
        %2513 = vmatprep.subr.mxu0 0.0
        %2514 = vmatpush1.msra.mxu0 %v2508
        %2515 = vmatprep.subr.mxu0 0.0
        %2516 = vmatpush1.msra.mxu0 %v2507
        %2517 = vmatprep.subr.mxu0 0.0
        %2518 = vmatpush1.msra.mxu0 %v2506
        %2519 = vmatprep.subr.mxu0 0.0
        %2520 = vmatpush1.msra.mxu0 %v2505
        %2521 = vmatprep.subr.mxu0 0.0
        %2522 = vmatpush1.msra.mxu0 %v2504
        %2523 = vmatprep.subr.mxu0 0.0
        %2524 = vmatpush1.msra.mxu0 %v2503
        %2525 = vmatprep.subr.mxu0 0.0
        %2526 = vmatpush1.msra.mxu0 %v2502
        %2527 = vmatprep.subr.mxu0 0.0
        %2528 = vmatpush1.msra.mxu0 %v2501
        %2529 = vmatprep.subr.mxu0 0.0
        %2530 = vmatpush1.msra.mxu0 %v2500
        %2531 = vmatprep.subr.mxu0 0.0
        %2532 = vmatpush1.msra.mxu0 %v2499
        %2533 = vmatprep.subr.mxu0 0.0
        %2534 = vmatpush1.msra.mxu0 %v2498
        %2535 = vmatprep.subr.mxu0 0.0
        %2536 = vmatpush1.msra.mxu0 %v2497
        %2537 = vmatprep.subr.mxu0 0.0
        %2538 = vmatpush1.msra.mxu0 %v2496
        %2539 = vmatprep.subr.mxu0 0.0
        %2540 = vmatpush1.msra.mxu0 %v2495
        %2541 = vmatprep.subr.mxu0 0.0
        %2542 = vmatpush1.msra.mxu0 %v2494
        %2543 = vmatprep.subr.mxu0 0.0
        %2544 = vmatpush1.msra.mxu0 %v2493
        %2545 = vmatprep.subr.mxu0 0.0
        %2546 = vmatpush2.msra.mxu0 0.0
        %2547 = vmatprep.subr.mxu0 0.0
        %2548 = vmatpush2.msra.mxu0 0.0
        %2549 = vmatprep.subr.mxu0 0.0
        %2550 = vmatpush2.msra.mxu0 0.0
        %2551 = vmatprep.subr.mxu0 0.0
        %2552 = vmatpush2.msra.mxu0 0.0
        %2553 = vmatprep.subr.mxu0 0.0
        %2554 = vmatpush2.msra.mxu0 0.0
        %2555 = vmatprep.subr.mxu0 0.0
        %2556 = vmatpush2.msra.mxu0 0.0
        %2557 = vmatprep.subr.mxu0 0.0
        %2558 = vmatpush2.msra.mxu0 0.0
        %2559 = vmatprep.subr.mxu0 0.0
        %2560 = vmatpush2.msra.mxu0 0.0
        %2561 = vmatprep.subr.mxu0 0.0
        %2562 = vmatpush2.msra.mxu0 0.0
        %2563 = vmatprep.subr.mxu0 0.0
        %2564 = vmatpush2.msra.mxu0 0.0
        %2565 = vmatprep.subr.mxu0 0.0
        %2566 = vmatpush2.msra.mxu0 0.0
        %2567 = vmatprep.subr.mxu0 0.0
        %2568 = vmatpush2.msra.mxu0 0.0
        %2569 = vmatprep.subr.mxu0 0.0
        %2570 = vmatpush2.msra.mxu0 %v2512
        %2571 = vmatprep.subr.mxu0 0.0
        %2572 = vmatpush2.msra.mxu0 %v2511
        %2573 = vmatprep.subr.mxu0 0.0
        %2574 = vmatpush2.msra.mxu0 %v2510
        %2575 = vmatprep.subr.mxu0 0.0
        %2576 = vmatpush2.msra.mxu0 %v2509
        %2577 = vmatprep.mubr.f32.mxu0 %v1870
        %2578 = vmatmul.mubr.f32.gmra.mxu0 %v1805
        %v2579 = vpop.f32.mrf.mxu0
        %v2580 = vadd.f32 0.0, %v2579
        %v2581 = vpop.f32.mrf.mxu0
        %2582 = vmatprep.mubr.f32.mxu0 %v1873
        %2583 = vmatmul.mubr.f32.gmra.mxu0 %v1807
        %v2584 = vpop.f32.mrf.mxu0
        %v2585 = vadd.f32 0.0, %v2584
        %v2586 = vpop.f32.mrf.mxu0
        %2587 = vmatprep.mubr.f32.mxu0 %v1876
        %2588 = vmatmul.mubr.f32.gmra.mxu0 %v1809
        %v2589 = vpop.f32.mrf.mxu0
        %v2590 = vadd.f32 0.0, %v2589
        %v2591 = vpop.f32.mrf.mxu0
        %2592 = vmatprep.mubr.f32.mxu0 %v1879
        %2593 = vmatmul.mubr.f32.gmra.mxu0 %v1811
        %v2594 = vpop.f32.mrf.mxu0
        %v2595 = vadd.f32 0.0, %v2594
        %v2596 = vpop.f32.mrf.mxu0
        %2597 = vmatprep.mubr.f32.mxu0 %v1882
        %2598 = vmatmul.mubr.f32.gmra.mxu0 %v1813
        %v2599 = vpop.f32.mrf.mxu0
        %v2600 = vadd.f32 0.0, %v2599
        %v2601 = vpop.f32.mrf.mxu0
        %2602 = vmatprep.mubr.f32.mxu0 %v1885
        %2603 = vmatmul.mubr.f32.gmra.mxu0 %v1815
        %v2604 = vpop.f32.mrf.mxu0
        %v2605 = vadd.f32 0.0, %v2604
        %v2606 = vpop.f32.mrf.mxu0
        %2607 = vmatprep.mubr.f32.mxu0 %v1888
        %2608 = vmatmul.mubr.f32.gmra.mxu0 %v1817
        %v2609 = vpop.f32.mrf.mxu0
        %v2610 = vadd.f32 0.0, %v2609
        %v2611 = vpop.f32.mrf.mxu0
        %2612 = vmatprep.mubr.f32.mxu0 %v1891
        %2613 = vmatmul.mubr.f32.gmra.mxu0 %v1819
        %v2614 = vpop.f32.mrf.mxu0
        %v2615 = vadd.f32 0.0, %v2614
        %v2616 = vpop.f32.mrf.mxu0
        %2617 = vdwg.mxu0
        %s2618 = scalar_lea.vmem %s35, 1
        %v2619 = vld [vmem:[%s2618] sm:$0x1]
        %v2621 = vlaneseq
        %v2622 = vshrl.u32 %v2621, 7
        %v2623 = vsub.s32 0, %v2622
        %v2624 = vrot.slane %v2619, %v2623
        %v2626 = vmul.f32 %v2580, %v2624
        %v2627 = vmul.f32 %v2585, %v2624
        %v2628 = vmul.f32 %v2590, %v2624
        %v2629 = vmul.f32 %v2595, %v2624
        %v2630 = vmul.f32 %v2600, %v2624
        %v2631 = vmul.f32 %v2605, %v2624
        %v2632 = vmul.f32 %v2610, %v2624
        %v2633 = vmul.f32 %v2615, %v2624
        %s2634 = scalar_lea.vmem %s37, 1
        %v2635 = vld [vmem:[%s2634] sm:$0x1]
        %v2637 = vlaneseq
        %v2638 = vshrl.u32 %v2637, 7
        %v2639 = vsub.s32 0, %v2638
        %v2640 = vrot.slane %v2635, %v2639
        %v2642 = vadd.f32 %v2626, %v2640
        %v2643 = vadd.f32 %v2627, %v2640
        %v2644 = vadd.f32 %v2628, %v2640
        %v2645 = vadd.f32 %v2629, %v2640
        %v2646 = vadd.f32 %v2630, %v2640
        %v2647 = vadd.f32 %v2631, %v2640
        %v2648 = vadd.f32 %v2632, %v2640
        %v2649 = vadd.f32 %v2633, %v2640
        %v2650 = vmul.f32 %v2642, %v2031
        %v2651 = vmul.f32 %v2643, %v2036
        %v2652 = vmul.f32 %v2644, %v2041
        %v2653 = vmul.f32 %v2645, %v2046
        %v2654 = vmul.f32 %v2646, %v2051
        %v2655 = vmul.f32 %v2647, %v2056
        %v2656 = vmul.f32 %v2648, %v2061
        %v2657 = vmul.f32 %v2649, %v2066
        %v2658 = vsel %vm1304, %v2650, 0.0
        %v2659 = vsel %vm1304, %v2651, 0.0
        %v2660 = vadd.f32 %v2658, %v2659
        %v2661 = vsel %vm1304, %v2652, 0.0
        %v2662 = vadd.f32 %v2660, %v2661
        %v2663 = vsel %vm1304, %v2653, 0.0
        %v2664 = vadd.f32 %v2662, %v2663
        %v2665 = vsel %vm1304, %v2654, 0.0
        %v2666 = vadd.f32 %v2664, %v2665
        %v2667 = vsel %vm1304, %v2655, 0.0
        %v2668 = vadd.f32 %v2666, %v2667
        %v2669 = vsel %vm1304, %v2656, 0.0
        %v2670 = vadd.f32 %v2668, %v2669
        %v2671 = vsel %vm1304, %v2657, 0.0
        %v2672 = vadd.f32 %v2670, %v2671
        %v2673 = vrot.slane %v2672, 4
        %v2674 = vadd.f32 %v2672, %v2673
        %v2675 = vrot.slane %v2674, 2
        %v2676 = vadd.f32 %v2674, %v2675
        %v2677 = vrot.slane %v2676, 1
        %v2678 = vadd.f32 %v2676, %v2677
        %v2679 = vmul.f32 %v2678, %v2098
        %2680 = vrot.lane.b32.xlu0 %v2679, 32
        %v2681 = vpop.permute.xlu0 %2680
        %v2682 = vsel %vm2100, %v2681, %v2679
        %2683 = vrot.lane.b32.xlu0 %v2682, 32
        %v2684 = vpop.permute.xlu0 %2683
        %v2685 = vsel %vm2100, %v2684, %v2679
        %s2686 = sld [smem:[#allocation2 + $0x80]]
        %2688 = vrot.lane.b32.xlu0 %v2685, 97
        %v2689 = vpop.permute.xlu0 %2688
        %v2691 = vsel %vm2110, %v2689, 0.0
        %v2692 = vstv %s2686
        %v2693 = vmul.f32 %v2692, %v2691
        %v2694 = vadd.f32 %v2693, 0.0
        %s2695 = sld [smem:[#allocation2 + $0x81]]
        %v2696 = vsel %vm2122, %v2679, 0.0
        %v2697 = vstv %s2695
        %v2698 = vmul.f32 %v2697, %v2696
        %v2699 = vadd.f32 %v2694, %v2698
        %s2700 = sld [smem:[#allocation2 + $0x82]]
        %2701 = vrot.lane.b32.xlu0 %v2685, 127
        %v2702 = vpop.permute.xlu0 %2701
        %v2704 = vsel %vm2131, %v2702, 0.0
        %v2705 = vstv %s2700
        %v2706 = vmul.f32 %v2705, %v2704
        %v2707 = vadd.f32 %v2699, %v2706
        %v2708 = vxor.u32 %v2707, 2147483648
        %v2709 = vmul.f32 %v2708, 1.442695
        %v2710 = vpow.pop %v2709
        %v2711 = vadd.f32 %v2710, 1.0
        %v2712 = vrcp.pop %v2711
        %v2713 = vmul.f32 1.0, %v2712
        %v2714 = vlaneseq
        %v2715 = vshrl.u32 %v2714, 7
        %v2716 = vsub.s32 0, %v2715
        %v2717 = vrot.slane %v2713, %v2716
        %v2718 = vmul.f32 %v2642, %v2717
        %v2719 = vmul.f32 %v2643, %v2717
        %v2720 = vmul.f32 %v2644, %v2717
        %v2721 = vmul.f32 %v2645, %v2717
        %v2722 = vmul.f32 %v2646, %v2717
        %v2723 = vmul.f32 %v2647, %v2717
        %v2724 = vmul.f32 %v2648, %v2717
        %v2725 = vmul.f32 %v2649, %v2717
        %s2726 = scalar_lea.vmem %s41, 32
        %v2727 = vld [vmem:[%s2726] sm:$0xff]
        %v2728 = vld [vmem:[%s2726 + $0x8] sm:$0xff]
        %v2729 = vld [vmem:[%s2726 + $0x10] sm:$0xff]
        %v2730 = vld [vmem:[%s2726 + $0x18] sm:$0xff]
        %v2732 = vsel %vm1304, %v2718, 0
        %v2735 = vsel %vm1304, %v2719, 0
        %v2738 = vsel %vm1304, %v2720, 0
        %v2741 = vsel %vm1304, %v2721, 0
        %v2744 = vsel %vm1304, %v2722, 0
        %v2747 = vsel %vm1304, %v2723, 0
        %v2750 = vsel %vm1304, %v2724, 0
        %v2753 = vsel %vm1304, %v2725, 0
        %2755 = vmatprep.subr.mxu0 0.0
        %2756 = vmatpush1.msra.mxu0 0.0
        %2757 = vmatprep.subr.mxu0 0.0
        %2758 = vmatpush1.msra.mxu0 0.0
        %2759 = vmatprep.subr.mxu0 0.0
        %2760 = vmatpush1.msra.mxu0 0.0
        %2761 = vmatprep.subr.mxu0 0.0
        %2762 = vmatpush1.msra.mxu0 0.0
        %2763 = vmatprep.subr.mxu0 0.0
        %2764 = vmatpush1.msra.mxu0 0.0
        %2765 = vmatprep.subr.mxu0 0.0
        %2766 = vmatpush1.msra.mxu0 0.0
        %2767 = vmatprep.subr.mxu0 0.0
        %2768 = vmatpush1.msra.mxu0 0.0
        %2769 = vmatprep.subr.mxu0 0.0
        %2770 = vmatpush1.msra.mxu0 0.0
        %2771 = vmatprep.subr.mxu0 0.0
        %2772 = vmatpush1.msra.mxu0 0.0
        %2773 = vmatprep.subr.mxu0 0.0
        %2774 = vmatpush1.msra.mxu0 0.0
        %2775 = vmatprep.subr.mxu0 0.0
        %2776 = vmatpush1.msra.mxu0 0.0
        %2777 = vmatprep.subr.mxu0 0.0
        %2778 = vmatpush1.msra.mxu0 0.0
        %2779 = vmatprep.subr.mxu0 0.0
        %2780 = vmatpush1.msra.mxu0 %v2730
        %2781 = vmatprep.subr.mxu0 0.0
        %2782 = vmatpush1.msra.mxu0 %v2729
        %2783 = vmatprep.subr.mxu0 0.0
        %2784 = vmatpush1.msra.mxu0 %v2728
        %2785 = vmatprep.subr.mxu0 0.0
        %2786 = vmatpush1.msra.mxu0 %v2727
        %2787 = vmatprep.subr.mxu0 0.0
        %2788 = vmatpush2.msra.mxu0 0.0
        %2789 = vmatprep.subr.mxu0 0.0
        %2790 = vmatpush2.msra.mxu0 0.0
        %2791 = vmatprep.subr.mxu0 0.0
        %2792 = vmatpush2.msra.mxu0 0.0
        %2793 = vmatprep.subr.mxu0 0.0
        %2794 = vmatpush2.msra.mxu0 0.0
        %2795 = vmatprep.subr.mxu0 0.0
        %2796 = vmatpush2.msra.mxu0 0.0
        %2797 = vmatprep.subr.mxu0 0.0
        %2798 = vmatpush2.msra.mxu0 0.0
        %2799 = vmatprep.subr.mxu0 0.0
        %2800 = vmatpush2.msra.mxu0 0.0
        %2801 = vmatprep.subr.mxu0 0.0
        %2802 = vmatpush2.msra.mxu0 0.0
        %2803 = vmatprep.subr.mxu0 0.0
        %2804 = vmatpush2.msra.mxu0 0.0
        %2805 = vmatprep.subr.mxu0 0.0
        %2806 = vmatpush2.msra.mxu0 0.0
        %2807 = vmatprep.subr.mxu0 0.0
        %2808 = vmatpush2.msra.mxu0 0.0
        %2809 = vmatprep.subr.mxu0 0.0
        %2810 = vmatpush2.msra.mxu0 0.0
        %2811 = vmatprep.subr.mxu0 0.0
        %2812 = vmatpush2.msra.mxu0 0.0
        %2813 = vmatprep.subr.mxu0 0.0
        %2814 = vmatpush2.msra.mxu0 0.0
        %2815 = vmatprep.subr.mxu0 0.0
        %2816 = vmatpush2.msra.mxu0 0.0
        %2817 = vmatprep.subr.mxu0 0.0
        %2818 = vmatpush2.msra.mxu0 0.0
        %2819 = vmatprep.mubr.f32.mxu0 0.0
        %2820 = vmatmul.mubr.f32.gmra.mxu0 %v2732
        %v2821 = vpop.f32.mrf.mxu0
        %v2822 = vadd.f32 0.0, %v2821
        %v2823 = vpop.f32.mrf.mxu0
        %2824 = vmatprep.mubr.f32.mxu0 0.0
        %2825 = vmatmul.mubr.f32.gmra.mxu0 %v2735
        %v2826 = vpop.f32.mrf.mxu0
        %v2827 = vadd.f32 0.0, %v2826
        %v2828 = vpop.f32.mrf.mxu0
        %2829 = vmatprep.mubr.f32.mxu0 0.0
        %2830 = vmatmul.mubr.f32.gmra.mxu0 %v2738
        %v2831 = vpop.f32.mrf.mxu0
        %v2832 = vadd.f32 0.0, %v2831
        %v2833 = vpop.f32.mrf.mxu0
        %2834 = vmatprep.mubr.f32.mxu0 0.0
        %2835 = vmatmul.mubr.f32.gmra.mxu0 %v2741
        %v2836 = vpop.f32.mrf.mxu0
        %v2837 = vadd.f32 0.0, %v2836
        %v2838 = vpop.f32.mrf.mxu0
        %2839 = vmatprep.mubr.f32.mxu0 0.0
        %2840 = vmatmul.mubr.f32.gmra.mxu0 %v2744
        %v2841 = vpop.f32.mrf.mxu0
        %v2842 = vadd.f32 0.0, %v2841
        %v2843 = vpop.f32.mrf.mxu0
        %2844 = vmatprep.mubr.f32.mxu0 0.0
        %2845 = vmatmul.mubr.f32.gmra.mxu0 %v2747
        %v2846 = vpop.f32.mrf.mxu0
        %v2847 = vadd.f32 0.0, %v2846
        %v2848 = vpop.f32.mrf.mxu0
        %2849 = vmatprep.mubr.f32.mxu0 0.0
        %2850 = vmatmul.mubr.f32.gmra.mxu0 %v2750
        %v2851 = vpop.f32.mrf.mxu0
        %v2852 = vadd.f32 0.0, %v2851
        %v2853 = vpop.f32.mrf.mxu0
        %2854 = vmatprep.mubr.f32.mxu0 0.0
        %2855 = vmatmul.mubr.f32.gmra.mxu0 %v2753
        %v2856 = vpop.f32.mrf.mxu0
        %v2857 = vadd.f32 0.0, %v2856
        %v2858 = vpop.f32.mrf.mxu0
        %2859 = vdwg.mxu0
        %s2860 = scalar_lea.vmem %s43, 1
        %v2861 = vld [vmem:[%s2860] sm:$0x1]
        %v2863 = vlaneseq
        %v2864 = vshrl.u32 %v2863, 7
        %v2865 = vsub.s32 0, %v2864
        %v2866 = vrot.slane %v2861, %v2865
        %v2868 = vmul.f32 %v2822, %v2866
        %v2869 = vmul.f32 %v2827, %v2866
        %v2870 = vmul.f32 %v2832, %v2866
        %v2871 = vmul.f32 %v2837, %v2866
        %v2872 = vmul.f32 %v2842, %v2866
        %v2873 = vmul.f32 %v2847, %v2866
        %v2874 = vmul.f32 %v2852, %v2866
        %v2875 = vmul.f32 %v2857, %v2866
        %s2876 = scalar_lea.vmem %s45, 1
        %v2877 = vld [vmem:[%s2876] sm:$0x1]
        %v2879 = vlaneseq
        %v2880 = vshrl.u32 %v2879, 7
        %v2881 = vsub.s32 0, %v2880
        %v2882 = vrot.slane %v2877, %v2881
        %v2884 = vadd.f32 %v2868, %v2882
        %v2885 = vadd.f32 %v2869, %v2882
        %v2886 = vadd.f32 %v2870, %v2882
        %v2887 = vadd.f32 %v2871, %v2882
        %v2888 = vadd.f32 %v2872, %v2882
        %v2889 = vadd.f32 %v2873, %v2882
        %v2890 = vadd.f32 %v2874, %v2882
        %v2891 = vadd.f32 %v2875, %v2882
        %v2892 = vmax.f32 %v2884, 0.0
        %v2893 = vmax.f32 %v2885, 0.0
        %v2894 = vmax.f32 %v2886, 0.0
        %v2895 = vmax.f32 %v2887, 0.0
        %v2896 = vmax.f32 %v2888, 0.0
        %v2897 = vmax.f32 %v2889, 0.0
        %v2898 = vmax.f32 %v2890, 0.0
        %v2899 = vmax.f32 %v2891, 0.0
        %s2900 = scalar_lea.vmem %s47, 32
        %v2901 = vld [vmem:[%s2900] sm:$0xff]
        %v2902 = vld [vmem:[%s2900 + $0x8] sm:$0xff]
        %v2903 = vld [vmem:[%s2900 + $0x10] sm:$0xff]
        %v2904 = vld [vmem:[%s2900 + $0x18] sm:$0xff]
        %v2906 = vsel %vm1304, %v2892, 0
        %v2909 = vsel %vm1304, %v2893, 0
        %v2912 = vsel %vm1304, %v2894, 0
        %v2915 = vsel %vm1304, %v2895, 0
        %v2918 = vsel %vm1304, %v2896, 0
        %v2921 = vsel %vm1304, %v2897, 0
        %v2924 = vsel %vm1304, %v2898, 0
        %v2927 = vsel %vm1304, %v2899, 0
        %2929 = vmatprep.subr.mxu0 0.0
        %2930 = vmatpush1.msra.mxu0 0.0
        %2931 = vmatprep.subr.mxu0 0.0
        %2932 = vmatpush1.msra.mxu0 0.0
        %2933 = vmatprep.subr.mxu0 0.0
        %2934 = vmatpush1.msra.mxu0 0.0
        %2935 = vmatprep.subr.mxu0 0.0
        %2936 = vmatpush1.msra.mxu0 0.0
        %2937 = vmatprep.subr.mxu0 0.0
        %2938 = vmatpush1.msra.mxu0 0.0
        %2939 = vmatprep.subr.mxu0 0.0
        %2940 = vmatpush1.msra.mxu0 0.0
        %2941 = vmatprep.subr.mxu0 0.0
        %2942 = vmatpush1.msra.mxu0 0.0
        %2943 = vmatprep.subr.mxu0 0.0
        %2944 = vmatpush1.msra.mxu0 0.0
        %2945 = vmatprep.subr.mxu0 0.0
        %2946 = vmatpush1.msra.mxu0 0.0
        %2947 = vmatprep.subr.mxu0 0.0
        %2948 = vmatpush1.msra.mxu0 0.0
        %2949 = vmatprep.subr.mxu0 0.0
        %2950 = vmatpush1.msra.mxu0 0.0
        %2951 = vmatprep.subr.mxu0 0.0
        %2952 = vmatpush1.msra.mxu0 0.0
        %2953 = vmatprep.subr.mxu0 0.0
        %2954 = vmatpush1.msra.mxu0 %v2904
        %2955 = vmatprep.subr.mxu0 0.0
        %2956 = vmatpush1.msra.mxu0 %v2903
        %2957 = vmatprep.subr.mxu0 0.0
        %2958 = vmatpush1.msra.mxu0 %v2902
        %2959 = vmatprep.subr.mxu0 0.0
        %2960 = vmatpush1.msra.mxu0 %v2901
        %2961 = vmatprep.subr.mxu0 0.0
        %2962 = vmatpush2.msra.mxu0 0.0
        %2963 = vmatprep.subr.mxu0 0.0
        %2964 = vmatpush2.msra.mxu0 0.0
        %2965 = vmatprep.subr.mxu0 0.0
        %2966 = vmatpush2.msra.mxu0 0.0
        %2967 = vmatprep.subr.mxu0 0.0
        %2968 = vmatpush2.msra.mxu0 0.0
        %2969 = vmatprep.subr.mxu0 0.0
        %2970 = vmatpush2.msra.mxu0 0.0
        %2971 = vmatprep.subr.mxu0 0.0
        %2972 = vmatpush2.msra.mxu0 0.0
        %2973 = vmatprep.subr.mxu0 0.0
        %2974 = vmatpush2.msra.mxu0 0.0
        %2975 = vmatprep.subr.mxu0 0.0
        %2976 = vmatpush2.msra.mxu0 0.0
        %2977 = vmatprep.subr.mxu0 0.0
        %2978 = vmatpush2.msra.mxu0 0.0
        %2979 = vmatprep.subr.mxu0 0.0
        %2980 = vmatpush2.msra.mxu0 0.0
        %2981 = vmatprep.subr.mxu0 0.0
        %2982 = vmatpush2.msra.mxu0 0.0
        %2983 = vmatprep.subr.mxu0 0.0
        %2984 = vmatpush2.msra.mxu0 0.0
        %2985 = vmatprep.subr.mxu0 0.0
        %2986 = vmatpush2.msra.mxu0 0.0
        %2987 = vmatprep.subr.mxu0 0.0
        %2988 = vmatpush2.msra.mxu0 0.0
        %2989 = vmatprep.subr.mxu0 0.0
        %2990 = vmatpush2.msra.mxu0 0.0
        %2991 = vmatprep.subr.mxu0 0.0
        %2992 = vmatpush2.msra.mxu0 0.0
        %2993 = vmatprep.mubr.f32.mxu0 0.0
        %2994 = vmatmul.mubr.f32.gmra.mxu0 %v2906
        %v2995 = vpop.f32.mrf.mxu0
        %v2996 = vadd.f32 0.0, %v2995
        %v2997 = vpop.f32.mrf.mxu0
        %2998 = vmatprep.mubr.f32.mxu0 0.0
        %2999 = vmatmul.mubr.f32.gmra.mxu0 %v2909
        %v3000 = vpop.f32.mrf.mxu0
        %v3001 = vadd.f32 0.0, %v3000
        %v3002 = vpop.f32.mrf.mxu0
        %3003 = vmatprep.mubr.f32.mxu0 0.0
        %3004 = vmatmul.mubr.f32.gmra.mxu0 %v2912
        %v3005 = vpop.f32.mrf.mxu0
        %v3006 = vadd.f32 0.0, %v3005
        %v3007 = vpop.f32.mrf.mxu0
        %3008 = vmatprep.mubr.f32.mxu0 0.0
        %3009 = vmatmul.mubr.f32.gmra.mxu0 %v2915
        %v3010 = vpop.f32.mrf.mxu0
        %v3011 = vadd.f32 0.0, %v3010
        %v3012 = vpop.f32.mrf.mxu0
        %3013 = vmatprep.mubr.f32.mxu0 0.0
        %3014 = vmatmul.mubr.f32.gmra.mxu0 %v2918
        %v3015 = vpop.f32.mrf.mxu0
        %v3016 = vadd.f32 0.0, %v3015
        %v3017 = vpop.f32.mrf.mxu0
        %3018 = vmatprep.mubr.f32.mxu0 0.0
        %3019 = vmatmul.mubr.f32.gmra.mxu0 %v2921
        %v3020 = vpop.f32.mrf.mxu0
        %v3021 = vadd.f32 0.0, %v3020
        %v3022 = vpop.f32.mrf.mxu0
        %3023 = vmatprep.mubr.f32.mxu0 0.0
        %3024 = vmatmul.mubr.f32.gmra.mxu0 %v2924
        %v3025 = vpop.f32.mrf.mxu0
        %v3026 = vadd.f32 0.0, %v3025
        %v3027 = vpop.f32.mrf.mxu0
        %3028 = vmatprep.mubr.f32.mxu0 0.0
        %3029 = vmatmul.mubr.f32.gmra.mxu0 %v2927
        %v3030 = vpop.f32.mrf.mxu0
        %v3031 = vadd.f32 0.0, %v3030
        %v3032 = vpop.f32.mrf.mxu0
        %3033 = vdwg.mxu0
        %s3034 = scalar_lea.vmem %s49, 1
        %v3035 = vld [vmem:[%s3034] sm:$0x1]
        %v3037 = vlaneseq
        %v3038 = vshrl.u32 %v3037, 7
        %v3039 = vsub.s32 0, %v3038
        %v3040 = vrot.slane %v3035, %v3039
        %v3042 = vmul.f32 %v2996, %v3040
        %v3043 = vmul.f32 %v3001, %v3040
        %v3044 = vmul.f32 %v3006, %v3040
        %v3045 = vmul.f32 %v3011, %v3040
        %v3046 = vmul.f32 %v3016, %v3040
        %v3047 = vmul.f32 %v3021, %v3040
        %v3048 = vmul.f32 %v3026, %v3040
        %v3049 = vmul.f32 %v3031, %v3040
        %s3050 = scalar_lea.vmem %s51, 1
        %v3051 = vld [vmem:[%s3050] sm:$0x1]
        %v3053 = vlaneseq
        %v3054 = vshrl.u32 %v3053, 7
        %v3055 = vsub.s32 0, %v3054
        %v3056 = vrot.slane %v3051, %v3055
        %v3058 = vadd.f32 %v3042, %v3056
        %v3059 = vadd.f32 %v3043, %v3056
        %v3060 = vadd.f32 %v3044, %v3056
        %v3061 = vadd.f32 %v3045, %v3056
        %v3062 = vadd.f32 %v3046, %v3056
        %v3063 = vadd.f32 %v3047, %v3056
        %v3064 = vadd.f32 %v3048, %v3056
        %v3065 = vadd.f32 %v3049, %v3056
        %s3066 = scalar_lea.vmem %s33, 320
        %v3067 = vld [vmem:[%s3066] sm:$0xff]
        %v3068 = vld [vmem:[%s3066 + $0x8] sm:$0xff]
        %v3069 = vld [vmem:[%s3066 + $0x10] sm:$0xff]
        %v3070 = vld [vmem:[%s3066 + $0x18] sm:$0xff]
        %v3071 = vld [vmem:[%s3066 + $0x20] sm:$0xff]
        %v3072 = vld [vmem:[%s3066 + $0x28] sm:$0xff]
        %v3073 = vld [vmem:[%s3066 + $0x30] sm:$0xff]
        %v3074 = vld [vmem:[%s3066 + $0x38] sm:$0xff]
        %v3075 = vld [vmem:[%s3066 + $0x40] sm:$0xff]
        %v3076 = vld [vmem:[%s3066 + $0x48] sm:$0xff]
        %v3077 = vld [vmem:[%s3066 + $0x50] sm:$0xff]
        %v3078 = vld [vmem:[%s3066 + $0x58] sm:$0xff]
        %v3079 = vld [vmem:[%s3066 + $0x60] sm:$0xff]
        %v3080 = vld [vmem:[%s3066 + $0x68] sm:$0xff]
        %v3081 = vld [vmem:[%s3066 + $0x70] sm:$0xff]
        %v3082 = vld [vmem:[%s3066 + $0x78] sm:$0xff]
        %v3083 = vld [vmem:[%s3066 + $0x80] sm:$0xff]
        %v3084 = vld [vmem:[%s3066 + $0x88] sm:$0xff]
        %v3085 = vld [vmem:[%s3066 + $0x90] sm:$0xff]
        %v3086 = vld [vmem:[%s3066 + $0x98] sm:$0xff]
        %3087 = vmatprep.subr.mxu0 0.0
        %3088 = vmatpush1.msra.mxu0 %v3082
        %3089 = vmatprep.subr.mxu0 0.0
        %3090 = vmatpush1.msra.mxu0 %v3081
        %3091 = vmatprep.subr.mxu0 0.0
        %3092 = vmatpush1.msra.mxu0 %v3080
        %3093 = vmatprep.subr.mxu0 0.0
        %3094 = vmatpush1.msra.mxu0 %v3079
        %3095 = vmatprep.subr.mxu0 0.0
        %3096 = vmatpush1.msra.mxu0 %v3078
        %3097 = vmatprep.subr.mxu0 0.0
        %3098 = vmatpush1.msra.mxu0 %v3077
        %3099 = vmatprep.subr.mxu0 0.0
        %3100 = vmatpush1.msra.mxu0 %v3076
        %3101 = vmatprep.subr.mxu0 0.0
        %3102 = vmatpush1.msra.mxu0 %v3075
        %3103 = vmatprep.subr.mxu0 0.0
        %3104 = vmatpush1.msra.mxu0 %v3074
        %3105 = vmatprep.subr.mxu0 0.0
        %3106 = vmatpush1.msra.mxu0 %v3073
        %3107 = vmatprep.subr.mxu0 0.0
        %3108 = vmatpush1.msra.mxu0 %v3072
        %3109 = vmatprep.subr.mxu0 0.0
        %3110 = vmatpush1.msra.mxu0 %v3071
        %3111 = vmatprep.subr.mxu0 0.0
        %3112 = vmatpush1.msra.mxu0 %v3070
        %3113 = vmatprep.subr.mxu0 0.0
        %3114 = vmatpush1.msra.mxu0 %v3069
        %3115 = vmatprep.subr.mxu0 0.0
        %3116 = vmatpush1.msra.mxu0 %v3068
        %3117 = vmatprep.subr.mxu0 0.0
        %3118 = vmatpush1.msra.mxu0 %v3067
        %3119 = vmatprep.subr.mxu0 0.0
        %3120 = vmatpush2.msra.mxu0 0.0
        %3121 = vmatprep.subr.mxu0 0.0
        %3122 = vmatpush2.msra.mxu0 0.0
        %3123 = vmatprep.subr.mxu0 0.0
        %3124 = vmatpush2.msra.mxu0 0.0
        %3125 = vmatprep.subr.mxu0 0.0
        %3126 = vmatpush2.msra.mxu0 0.0
        %3127 = vmatprep.subr.mxu0 0.0
        %3128 = vmatpush2.msra.mxu0 0.0
        %3129 = vmatprep.subr.mxu0 0.0
        %3130 = vmatpush2.msra.mxu0 0.0
        %3131 = vmatprep.subr.mxu0 0.0
        %3132 = vmatpush2.msra.mxu0 0.0
        %3133 = vmatprep.subr.mxu0 0.0
        %3134 = vmatpush2.msra.mxu0 0.0
        %3135 = vmatprep.subr.mxu0 0.0
        %3136 = vmatpush2.msra.mxu0 0.0
        %3137 = vmatprep.subr.mxu0 0.0
        %3138 = vmatpush2.msra.mxu0 0.0
        %3139 = vmatprep.subr.mxu0 0.0
        %3140 = vmatpush2.msra.mxu0 0.0
        %3141 = vmatprep.subr.mxu0 0.0
        %3142 = vmatpush2.msra.mxu0 0.0
        %3143 = vmatprep.subr.mxu0 0.0
        %3144 = vmatpush2.msra.mxu0 %v3086
        %3145 = vmatprep.subr.mxu0 0.0
        %3146 = vmatpush2.msra.mxu0 %v3085
        %3147 = vmatprep.subr.mxu0 0.0
        %3148 = vmatpush2.msra.mxu0 %v3084
        %3149 = vmatprep.subr.mxu0 0.0
        %3150 = vmatpush2.msra.mxu0 %v3083
        %3151 = vmatprep.mubr.f32.mxu0 %v1870
        %3152 = vmatmul.mubr.f32.gmra.mxu0 %v1805
        %v3153 = vpop.f32.mrf.mxu0
        %v3154 = vadd.f32 0.0, %v3153
        %v3155 = vpop.f32.mrf.mxu0
        %3156 = vmatprep.mubr.f32.mxu0 %v1873
        %3157 = vmatmul.mubr.f32.gmra.mxu0 %v1807
        %v3158 = vpop.f32.mrf.mxu0
        %v3159 = vadd.f32 0.0, %v3158
        %v3160 = vpop.f32.mrf.mxu0
        %3161 = vmatprep.mubr.f32.mxu0 %v1876
        %3162 = vmatmul.mubr.f32.gmra.mxu0 %v1809
        %v3163 = vpop.f32.mrf.mxu0
        %v3164 = vadd.f32 0.0, %v3163
        %v3165 = vpop.f32.mrf.mxu0
        %3166 = vmatprep.mubr.f32.mxu0 %v1879
        %3167 = vmatmul.mubr.f32.gmra.mxu0 %v1811
        %v3168 = vpop.f32.mrf.mxu0
        %v3169 = vadd.f32 0.0, %v3168
        %v3170 = vpop.f32.mrf.mxu0
        %3171 = vmatprep.mubr.f32.mxu0 %v1882
        %3172 = vmatmul.mubr.f32.gmra.mxu0 %v1813
        %v3173 = vpop.f32.mrf.mxu0
        %v3174 = vadd.f32 0.0, %v3173
        %v3175 = vpop.f32.mrf.mxu0
        %3176 = vmatprep.mubr.f32.mxu0 %v1885
        %3177 = vmatmul.mubr.f32.gmra.mxu0 %v1815
        %v3178 = vpop.f32.mrf.mxu0
        %v3179 = vadd.f32 0.0, %v3178
        %v3180 = vpop.f32.mrf.mxu0
        %3181 = vmatprep.mubr.f32.mxu0 %v1888
        %3182 = vmatmul.mubr.f32.gmra.mxu0 %v1817
        %v3183 = vpop.f32.mrf.mxu0
        %v3184 = vadd.f32 0.0, %v3183
        %v3185 = vpop.f32.mrf.mxu0
        %3186 = vmatprep.mubr.f32.mxu0 %v1891
        %3187 = vmatmul.mubr.f32.gmra.mxu0 %v1819
        %v3188 = vpop.f32.mrf.mxu0
        %v3189 = vadd.f32 0.0, %v3188
        %v3190 = vpop.f32.mrf.mxu0
        %3191 = vdwg.mxu0
        %s3192 = scalar_lea.vmem %s35, 2
        %v3193 = vld [vmem:[%s3192] sm:$0x1]
        %v3195 = vlaneseq
        %v3196 = vshrl.u32 %v3195, 7
        %v3197 = vsub.s32 0, %v3196
        %v3198 = vrot.slane %v3193, %v3197
        %v3200 = vmul.f32 %v3154, %v3198
        %v3201 = vmul.f32 %v3159, %v3198
        %v3202 = vmul.f32 %v3164, %v3198
        %v3203 = vmul.f32 %v3169, %v3198
        %v3204 = vmul.f32 %v3174, %v3198
        %v3205 = vmul.f32 %v3179, %v3198
        %v3206 = vmul.f32 %v3184, %v3198
        %v3207 = vmul.f32 %v3189, %v3198
        %s3208 = scalar_lea.vmem %s37, 2
        %v3209 = vld [vmem:[%s3208] sm:$0x1]
        %v3211 = vlaneseq
        %v3212 = vshrl.u32 %v3211, 7
        %v3213 = vsub.s32 0, %v3212
        %v3214 = vrot.slane %v3209, %v3213
        %v3216 = vadd.f32 %v3200, %v3214
        %v3217 = vadd.f32 %v3201, %v3214
        %v3218 = vadd.f32 %v3202, %v3214
        %v3219 = vadd.f32 %v3203, %v3214
        %v3220 = vadd.f32 %v3204, %v3214
        %v3221 = vadd.f32 %v3205, %v3214
        %v3222 = vadd.f32 %v3206, %v3214
        %v3223 = vadd.f32 %v3207, %v3214
        %v3224 = vmul.f32 %v3216, %v2031
        %v3225 = vmul.f32 %v3217, %v2036
        %v3226 = vmul.f32 %v3218, %v2041
        %v3227 = vmul.f32 %v3219, %v2046
        %v3228 = vmul.f32 %v3220, %v2051
        %v3229 = vmul.f32 %v3221, %v2056
        %v3230 = vmul.f32 %v3222, %v2061
        %v3231 = vmul.f32 %v3223, %v2066
        %v3232 = vsel %vm1304, %v3224, 0.0
        %v3233 = vsel %vm1304, %v3225, 0.0
        %v3234 = vadd.f32 %v3232, %v3233
        %v3235 = vsel %vm1304, %v3226, 0.0
        %v3236 = vadd.f32 %v3234, %v3235
        %v3237 = vsel %vm1304, %v3227, 0.0
        %v3238 = vadd.f32 %v3236, %v3237
        %v3239 = vsel %vm1304, %v3228, 0.0
        %v3240 = vadd.f32 %v3238, %v3239
        %v3241 = vsel %vm1304, %v3229, 0.0
        %v3242 = vadd.f32 %v3240, %v3241
        %v3243 = vsel %vm1304, %v3230, 0.0
        %v3244 = vadd.f32 %v3242, %v3243
        %v3245 = vsel %vm1304, %v3231, 0.0
        %v3246 = vadd.f32 %v3244, %v3245
        %v3247 = vrot.slane %v3246, 4
        %v3248 = vadd.f32 %v3246, %v3247
        %v3249 = vrot.slane %v3248, 2
        %v3250 = vadd.f32 %v3248, %v3249
        %v3251 = vrot.slane %v3250, 1
        %v3252 = vadd.f32 %v3250, %v3251
        %v3253 = vmul.f32 %v3252, %v2098
        %3254 = vrot.lane.b32.xlu0 %v3253, 32
        %v3255 = vpop.permute.xlu0 %3254
        %v3256 = vsel %vm2100, %v3255, %v3253
        %3257 = vrot.lane.b32.xlu0 %v3256, 32
        %v3258 = vpop.permute.xlu0 %3257
        %v3259 = vsel %vm2100, %v3258, %v3253
        %s3260 = sld [smem:[#allocation2 + $0x100]]
        %3262 = vrot.lane.b32.xlu0 %v3259, 97
        %v3263 = vpop.permute.xlu0 %3262
        %v3265 = vsel %vm2110, %v3263, 0.0
        %v3266 = vstv %s3260
        %v3267 = vmul.f32 %v3266, %v3265
        %v3268 = vadd.f32 %v3267, 0.0
        %s3269 = sld [smem:[#allocation2 + $0x101]]
        %v3270 = vsel %vm2122, %v3253, 0.0
        %v3271 = vstv %s3269
        %v3272 = vmul.f32 %v3271, %v3270
        %v3273 = vadd.f32 %v3268, %v3272
        %s3274 = sld [smem:[#allocation2 + $0x102]]
        %3275 = vrot.lane.b32.xlu0 %v3259, 127
        %v3276 = vpop.permute.xlu0 %3275
        %v3278 = vsel %vm2131, %v3276, 0.0
        %v3279 = vstv %s3274
        %v3280 = vmul.f32 %v3279, %v3278
        %v3281 = vadd.f32 %v3273, %v3280
        %v3282 = vxor.u32 %v3281, 2147483648
        %v3283 = vmul.f32 %v3282, 1.442695
        %v3284 = vpow.pop %v3283
        %v3285 = vadd.f32 %v3284, 1.0
        %v3286 = vrcp.pop %v3285
        %v3287 = vmul.f32 1.0, %v3286
        %v3288 = vlaneseq
        %v3289 = vshrl.u32 %v3288, 7
        %v3290 = vsub.s32 0, %v3289
        %v3291 = vrot.slane %v3287, %v3290
        %v3292 = vmul.f32 %v3216, %v3291
        %v3293 = vmul.f32 %v3217, %v3291
        %v3294 = vmul.f32 %v3218, %v3291
        %v3295 = vmul.f32 %v3219, %v3291
        %v3296 = vmul.f32 %v3220, %v3291
        %v3297 = vmul.f32 %v3221, %v3291
        %v3298 = vmul.f32 %v3222, %v3291
        %v3299 = vmul.f32 %v3223, %v3291
        %s3300 = scalar_lea.vmem %s41, 64
        %v3301 = vld [vmem:[%s3300] sm:$0xff]
        %v3302 = vld [vmem:[%s3300 + $0x8] sm:$0xff]
        %v3303 = vld [vmem:[%s3300 + $0x10] sm:$0xff]
        %v3304 = vld [vmem:[%s3300 + $0x18] sm:$0xff]
        %v3306 = vsel %vm1304, %v3292, 0
        %v3309 = vsel %vm1304, %v3293, 0
        %v3312 = vsel %vm1304, %v3294, 0
        %v3315 = vsel %vm1304, %v3295, 0
        %v3318 = vsel %vm1304, %v3296, 0
        %v3321 = vsel %vm1304, %v3297, 0
        %v3324 = vsel %vm1304, %v3298, 0
        %v3327 = vsel %vm1304, %v3299, 0
        %3329 = vmatprep.subr.mxu0 0.0
        %3330 = vmatpush1.msra.mxu0 0.0
        %3331 = vmatprep.subr.mxu0 0.0
        %3332 = vmatpush1.msra.mxu0 0.0
        %3333 = vmatprep.subr.mxu0 0.0
        %3334 = vmatpush1.msra.mxu0 0.0
        %3335 = vmatprep.subr.mxu0 0.0
        %3336 = vmatpush1.msra.mxu0 0.0
        %3337 = vmatprep.subr.mxu0 0.0
        %3338 = vmatpush1.msra.mxu0 0.0
        %3339 = vmatprep.subr.mxu0 0.0
        %3340 = vmatpush1.msra.mxu0 0.0
        %3341 = vmatprep.subr.mxu0 0.0
        %3342 = vmatpush1.msra.mxu0 0.0
        %3343 = vmatprep.subr.mxu0 0.0
        %3344 = vmatpush1.msra.mxu0 0.0
        %3345 = vmatprep.subr.mxu0 0.0
        %3346 = vmatpush1.msra.mxu0 0.0
        %3347 = vmatprep.subr.mxu0 0.0
        %3348 = vmatpush1.msra.mxu0 0.0
        %3349 = vmatprep.subr.mxu0 0.0
        %3350 = vmatpush1.msra.mxu0 0.0
        %3351 = vmatprep.subr.mxu0 0.0
        %3352 = vmatpush1.msra.mxu0 0.0
        %3353 = vmatprep.subr.mxu0 0.0
        %3354 = vmatpush1.msra.mxu0 %v3304
        %3355 = vmatprep.subr.mxu0 0.0
        %3356 = vmatpush1.msra.mxu0 %v3303
        %3357 = vmatprep.subr.mxu0 0.0
        %3358 = vmatpush1.msra.mxu0 %v3302
        %3359 = vmatprep.subr.mxu0 0.0
        %3360 = vmatpush1.msra.mxu0 %v3301
        %3361 = vmatprep.subr.mxu0 0.0
        %3362 = vmatpush2.msra.mxu0 0.0
        %3363 = vmatprep.subr.mxu0 0.0
        %3364 = vmatpush2.msra.mxu0 0.0
        %3365 = vmatprep.subr.mxu0 0.0
        %3366 = vmatpush2.msra.mxu0 0.0
        %3367 = vmatprep.subr.mxu0 0.0
        %3368 = vmatpush2.msra.mxu0 0.0
        %3369 = vmatprep.subr.mxu0 0.0
        %3370 = vmatpush2.msra.mxu0 0.0
        %3371 = vmatprep.subr.mxu0 0.0
        %3372 = vmatpush2.msra.mxu0 0.0
        %3373 = vmatprep.subr.mxu0 0.0
        %3374 = vmatpush2.msra.mxu0 0.0
        %3375 = vmatprep.subr.mxu0 0.0
        %3376 = vmatpush2.msra.mxu0 0.0
        %3377 = vmatprep.subr.mxu0 0.0
        %3378 = vmatpush2.msra.mxu0 0.0
        %3379 = vmatprep.subr.mxu0 0.0
        %3380 = vmatpush2.msra.mxu0 0.0
        %3381 = vmatprep.subr.mxu0 0.0
        %3382 = vmatpush2.msra.mxu0 0.0
        %3383 = vmatprep.subr.mxu0 0.0
        %3384 = vmatpush2.msra.mxu0 0.0
        %3385 = vmatprep.subr.mxu0 0.0
        %3386 = vmatpush2.msra.mxu0 0.0
        %3387 = vmatprep.subr.mxu0 0.0
        %3388 = vmatpush2.msra.mxu0 0.0
        %3389 = vmatprep.subr.mxu0 0.0
        %3390 = vmatpush2.msra.mxu0 0.0
        %3391 = vmatprep.subr.mxu0 0.0
        %3392 = vmatpush2.msra.mxu0 0.0
        %3393 = vmatprep.mubr.f32.mxu0 0.0
        %3394 = vmatmul.mubr.f32.gmra.mxu0 %v3306
        %v3395 = vpop.f32.mrf.mxu0
        %v3396 = vadd.f32 0.0, %v3395
        %v3397 = vpop.f32.mrf.mxu0
        %3398 = vmatprep.mubr.f32.mxu0 0.0
        %3399 = vmatmul.mubr.f32.gmra.mxu0 %v3309
        %v3400 = vpop.f32.mrf.mxu0
        %v3401 = vadd.f32 0.0, %v3400
        %v3402 = vpop.f32.mrf.mxu0
        %3403 = vmatprep.mubr.f32.mxu0 0.0
        %3404 = vmatmul.mubr.f32.gmra.mxu0 %v3312
        %v3405 = vpop.f32.mrf.mxu0
        %v3406 = vadd.f32 0.0, %v3405
        %v3407 = vpop.f32.mrf.mxu0
        %3408 = vmatprep.mubr.f32.mxu0 0.0
        %3409 = vmatmul.mubr.f32.gmra.mxu0 %v3315
        %v3410 = vpop.f32.mrf.mxu0
        %v3411 = vadd.f32 0.0, %v3410
        %v3412 = vpop.f32.mrf.mxu0
        %3413 = vmatprep.mubr.f32.mxu0 0.0
        %3414 = vmatmul.mubr.f32.gmra.mxu0 %v3318
        %v3415 = vpop.f32.mrf.mxu0
        %v3416 = vadd.f32 0.0, %v3415
        %v3417 = vpop.f32.mrf.mxu0
        %3418 = vmatprep.mubr.f32.mxu0 0.0
        %3419 = vmatmul.mubr.f32.gmra.mxu0 %v3321
        %v3420 = vpop.f32.mrf.mxu0
        %v3421 = vadd.f32 0.0, %v3420
        %v3422 = vpop.f32.mrf.mxu0
        %3423 = vmatprep.mubr.f32.mxu0 0.0
        %3424 = vmatmul.mubr.f32.gmra.mxu0 %v3324
        %v3425 = vpop.f32.mrf.mxu0
        %v3426 = vadd.f32 0.0, %v3425
        %v3427 = vpop.f32.mrf.mxu0
        %3428 = vmatprep.mubr.f32.mxu0 0.0
        %3429 = vmatmul.mubr.f32.gmra.mxu0 %v3327
        %v3430 = vpop.f32.mrf.mxu0
        %v3431 = vadd.f32 0.0, %v3430
        %v3432 = vpop.f32.mrf.mxu0
        %3433 = vdwg.mxu0
        %s3434 = scalar_lea.vmem %s43, 2
        %v3435 = vld [vmem:[%s3434] sm:$0x1]
        %v3437 = vlaneseq
        %v3438 = vshrl.u32 %v3437, 7
        %v3439 = vsub.s32 0, %v3438
        %v3440 = vrot.slane %v3435, %v3439
        %v3442 = vmul.f32 %v3396, %v3440
        %v3443 = vmul.f32 %v3401, %v3440
        %v3444 = vmul.f32 %v3406, %v3440
        %v3445 = vmul.f32 %v3411, %v3440
        %v3446 = vmul.f32 %v3416, %v3440
        %v3447 = vmul.f32 %v3421, %v3440
        %v3448 = vmul.f32 %v3426, %v3440
        %v3449 = vmul.f32 %v3431, %v3440
        %s3450 = scalar_lea.vmem %s45, 2
        %v3451 = vld [vmem:[%s3450] sm:$0x1]
        %v3453 = vlaneseq
        %v3454 = vshrl.u32 %v3453, 7
        %v3455 = vsub.s32 0, %v3454
        %v3456 = vrot.slane %v3451, %v3455
        %v3458 = vadd.f32 %v3442, %v3456
        %v3459 = vadd.f32 %v3443, %v3456
        %v3460 = vadd.f32 %v3444, %v3456
        %v3461 = vadd.f32 %v3445, %v3456
        %v3462 = vadd.f32 %v3446, %v3456
        %v3463 = vadd.f32 %v3447, %v3456
        %v3464 = vadd.f32 %v3448, %v3456
        %v3465 = vadd.f32 %v3449, %v3456
        %v3466 = vmax.f32 %v3458, 0.0
        %v3467 = vmax.f32 %v3459, 0.0
        %v3468 = vmax.f32 %v3460, 0.0
        %v3469 = vmax.f32 %v3461, 0.0
        %v3470 = vmax.f32 %v3462, 0.0
        %v3471 = vmax.f32 %v3463, 0.0
        %v3472 = vmax.f32 %v3464, 0.0
        %v3473 = vmax.f32 %v3465, 0.0
        %s3474 = scalar_lea.vmem %s47, 64
        %v3475 = vld [vmem:[%s3474] sm:$0xff]
        %v3476 = vld [vmem:[%s3474 + $0x8] sm:$0xff]
        %v3477 = vld [vmem:[%s3474 + $0x10] sm:$0xff]
        %v3478 = vld [vmem:[%s3474 + $0x18] sm:$0xff]
        %v3480 = vsel %vm1304, %v3466, 0
        %v3483 = vsel %vm1304, %v3467, 0
        %v3486 = vsel %vm1304, %v3468, 0
        %v3489 = vsel %vm1304, %v3469, 0
        %v3492 = vsel %vm1304, %v3470, 0
        %v3495 = vsel %vm1304, %v3471, 0
        %v3498 = vsel %vm1304, %v3472, 0
        %v3501 = vsel %vm1304, %v3473, 0
        %3503 = vmatprep.subr.mxu0 0.0
        %3504 = vmatpush1.msra.mxu0 0.0
        %3505 = vmatprep.subr.mxu0 0.0
        %3506 = vmatpush1.msra.mxu0 0.0
        %3507 = vmatprep.subr.mxu0 0.0
        %3508 = vmatpush1.msra.mxu0 0.0
        %3509 = vmatprep.subr.mxu0 0.0
        %3510 = vmatpush1.msra.mxu0 0.0
        %3511 = vmatprep.subr.mxu0 0.0
        %3512 = vmatpush1.msra.mxu0 0.0
        %3513 = vmatprep.subr.mxu0 0.0
        %3514 = vmatpush1.msra.mxu0 0.0
        %3515 = vmatprep.subr.mxu0 0.0
        %3516 = vmatpush1.msra.mxu0 0.0
        %3517 = vmatprep.subr.mxu0 0.0
        %3518 = vmatpush1.msra.mxu0 0.0
        %3519 = vmatprep.subr.mxu0 0.0
        %3520 = vmatpush1.msra.mxu0 0.0
        %3521 = vmatprep.subr.mxu0 0.0
        %3522 = vmatpush1.msra.mxu0 0.0
        %3523 = vmatprep.subr.mxu0 0.0
        %3524 = vmatpush1.msra.mxu0 0.0
        %3525 = vmatprep.subr.mxu0 0.0
        %3526 = vmatpush1.msra.mxu0 0.0
        %3527 = vmatprep.subr.mxu0 0.0
        %3528 = vmatpush1.msra.mxu0 %v3478
        %3529 = vmatprep.subr.mxu0 0.0
        %3530 = vmatpush1.msra.mxu0 %v3477
        %3531 = vmatprep.subr.mxu0 0.0
        %3532 = vmatpush1.msra.mxu0 %v3476
        %3533 = vmatprep.subr.mxu0 0.0
        %3534 = vmatpush1.msra.mxu0 %v3475
        %3535 = vmatprep.subr.mxu0 0.0
        %3536 = vmatpush2.msra.mxu0 0.0
        %3537 = vmatprep.subr.mxu0 0.0
        %3538 = vmatpush2.msra.mxu0 0.0
        %3539 = vmatprep.subr.mxu0 0.0
        %3540 = vmatpush2.msra.mxu0 0.0
        %3541 = vmatprep.subr.mxu0 0.0
        %3542 = vmatpush2.msra.mxu0 0.0
        %3543 = vmatprep.subr.mxu0 0.0
        %3544 = vmatpush2.msra.mxu0 0.0
        %3545 = vmatprep.subr.mxu0 0.0
        %3546 = vmatpush2.msra.mxu0 0.0
        %3547 = vmatprep.subr.mxu0 0.0
        %3548 = vmatpush2.msra.mxu0 0.0
        %3549 = vmatprep.subr.mxu0 0.0
        %3550 = vmatpush2.msra.mxu0 0.0
        %3551 = vmatprep.subr.mxu0 0.0
        %3552 = vmatpush2.msra.mxu0 0.0
        %3553 = vmatprep.subr.mxu0 0.0
        %3554 = vmatpush2.msra.mxu0 0.0
        %3555 = vmatprep.subr.mxu0 0.0
        %3556 = vmatpush2.msra.mxu0 0.0
        %3557 = vmatprep.subr.mxu0 0.0
        %3558 = vmatpush2.msra.mxu0 0.0
        %3559 = vmatprep.subr.mxu0 0.0
        %3560 = vmatpush2.msra.mxu0 0.0
        %3561 = vmatprep.subr.mxu0 0.0
        %3562 = vmatpush2.msra.mxu0 0.0
        %3563 = vmatprep.subr.mxu0 0.0
        %3564 = vmatpush2.msra.mxu0 0.0
        %3565 = vmatprep.subr.mxu0 0.0
        %3566 = vmatpush2.msra.mxu0 0.0
        %3567 = vmatprep.mubr.f32.mxu0 0.0
        %3568 = vmatmul.mubr.f32.gmra.mxu0 %v3480
        %v3569 = vpop.f32.mrf.mxu0
        %v3570 = vadd.f32 0.0, %v3569
        %v3571 = vpop.f32.mrf.mxu0
        %3572 = vmatprep.mubr.f32.mxu0 0.0
        %3573 = vmatmul.mubr.f32.gmra.mxu0 %v3483
        %v3574 = vpop.f32.mrf.mxu0
        %v3575 = vadd.f32 0.0, %v3574
        %v3576 = vpop.f32.mrf.mxu0
        %3577 = vmatprep.mubr.f32.mxu0 0.0
        %3578 = vmatmul.mubr.f32.gmra.mxu0 %v3486
        %v3579 = vpop.f32.mrf.mxu0
        %v3580 = vadd.f32 0.0, %v3579
        %v3581 = vpop.f32.mrf.mxu0
        %3582 = vmatprep.mubr.f32.mxu0 0.0
        %3583 = vmatmul.mubr.f32.gmra.mxu0 %v3489
        %v3584 = vpop.f32.mrf.mxu0
        %v3585 = vadd.f32 0.0, %v3584
        %v3586 = vpop.f32.mrf.mxu0
        %3587 = vmatprep.mubr.f32.mxu0 0.0
        %3588 = vmatmul.mubr.f32.gmra.mxu0 %v3492
        %v3589 = vpop.f32.mrf.mxu0
        %v3590 = vadd.f32 0.0, %v3589
        %v3591 = vpop.f32.mrf.mxu0
        %3592 = vmatprep.mubr.f32.mxu0 0.0
        %3593 = vmatmul.mubr.f32.gmra.mxu0 %v3495
        %v3594 = vpop.f32.mrf.mxu0
        %v3595 = vadd.f32 0.0, %v3594
        %v3596 = vpop.f32.mrf.mxu0
        %3597 = vmatprep.mubr.f32.mxu0 0.0
        %3598 = vmatmul.mubr.f32.gmra.mxu0 %v3498
        %v3599 = vpop.f32.mrf.mxu0
        %v3600 = vadd.f32 0.0, %v3599
        %v3601 = vpop.f32.mrf.mxu0
        %3602 = vmatprep.mubr.f32.mxu0 0.0
        %3603 = vmatmul.mubr.f32.gmra.mxu0 %v3501
        %v3604 = vpop.f32.mrf.mxu0
        %v3605 = vadd.f32 0.0, %v3604
        %v3606 = vpop.f32.mrf.mxu0
        %3607 = vdwg.mxu0
        %s3608 = scalar_lea.vmem %s49, 2
        %v3609 = vld [vmem:[%s3608] sm:$0x1]
        %v3611 = vlaneseq
        %v3612 = vshrl.u32 %v3611, 7
        %v3613 = vsub.s32 0, %v3612
        %v3614 = vrot.slane %v3609, %v3613
        %v3616 = vmul.f32 %v3570, %v3614
        %v3617 = vmul.f32 %v3575, %v3614
        %v3618 = vmul.f32 %v3580, %v3614
        %v3619 = vmul.f32 %v3585, %v3614
        %v3620 = vmul.f32 %v3590, %v3614
        %v3621 = vmul.f32 %v3595, %v3614
        %v3622 = vmul.f32 %v3600, %v3614
        %v3623 = vmul.f32 %v3605, %v3614
        %s3624 = scalar_lea.vmem %s51, 2
        %v3625 = vld [vmem:[%s3624] sm:$0x1]
        %v3627 = vlaneseq
        %v3628 = vshrl.u32 %v3627, 7
        %v3629 = vsub.s32 0, %v3628
        %v3630 = vrot.slane %v3625, %v3629
        %v3632 = vadd.f32 %v3616, %v3630
        %v3633 = vadd.f32 %v3617, %v3630
        %v3634 = vadd.f32 %v3618, %v3630
        %v3635 = vadd.f32 %v3619, %v3630
        %v3636 = vadd.f32 %v3620, %v3630
        %v3637 = vadd.f32 %v3621, %v3630
        %v3638 = vadd.f32 %v3622, %v3630
        %v3639 = vadd.f32 %v3623, %v3630
        %s3640 = scalar_lea.vmem %s33, 480
        %v3641 = vld [vmem:[%s3640] sm:$0xff]
        %v3642 = vld [vmem:[%s3640 + $0x8] sm:$0xff]
        %v3643 = vld [vmem:[%s3640 + $0x10] sm:$0xff]
        %v3644 = vld [vmem:[%s3640 + $0x18] sm:$0xff]
        %v3645 = vld [vmem:[%s3640 + $0x20] sm:$0xff]
        %v3646 = vld [vmem:[%s3640 + $0x28] sm:$0xff]
        %v3647 = vld [vmem:[%s3640 + $0x30] sm:$0xff]
        %v3648 = vld [vmem:[%s3640 + $0x38] sm:$0xff]
        %v3649 = vld [vmem:[%s3640 + $0x40] sm:$0xff]
        %v3650 = vld [vmem:[%s3640 + $0x48] sm:$0xff]
        %v3651 = vld [vmem:[%s3640 + $0x50] sm:$0xff]
        %v3652 = vld [vmem:[%s3640 + $0x58] sm:$0xff]
        %v3653 = vld [vmem:[%s3640 + $0x60] sm:$0xff]
        %v3654 = vld [vmem:[%s3640 + $0x68] sm:$0xff]
        %v3655 = vld [vmem:[%s3640 + $0x70] sm:$0xff]
        %v3656 = vld [vmem:[%s3640 + $0x78] sm:$0xff]
        %v3657 = vld [vmem:[%s3640 + $0x80] sm:$0xff]
        %v3658 = vld [vmem:[%s3640 + $0x88] sm:$0xff]
        %v3659 = vld [vmem:[%s3640 + $0x90] sm:$0xff]
        %v3660 = vld [vmem:[%s3640 + $0x98] sm:$0xff]
        %3661 = vmatprep.subr.mxu0 0.0
        %3662 = vmatpush1.msra.mxu0 %v3656
        %3663 = vmatprep.subr.mxu0 0.0
        %3664 = vmatpush1.msra.mxu0 %v3655
        %3665 = vmatprep.subr.mxu0 0.0
        %3666 = vmatpush1.msra.mxu0 %v3654
        %3667 = vmatprep.subr.mxu0 0.0
        %3668 = vmatpush1.msra.mxu0 %v3653
        %3669 = vmatprep.subr.mxu0 0.0
        %3670 = vmatpush1.msra.mxu0 %v3652
        %3671 = vmatprep.subr.mxu0 0.0
        %3672 = vmatpush1.msra.mxu0 %v3651
        %3673 = vmatprep.subr.mxu0 0.0
        %3674 = vmatpush1.msra.mxu0 %v3650
        %3675 = vmatprep.subr.mxu0 0.0
        %3676 = vmatpush1.msra.mxu0 %v3649
        %3677 = vmatprep.subr.mxu0 0.0
        %3678 = vmatpush1.msra.mxu0 %v3648
        %3679 = vmatprep.subr.mxu0 0.0
        %3680 = vmatpush1.msra.mxu0 %v3647
        %3681 = vmatprep.subr.mxu0 0.0
        %3682 = vmatpush1.msra.mxu0 %v3646
        %3683 = vmatprep.subr.mxu0 0.0
        %3684 = vmatpush1.msra.mxu0 %v3645
        %3685 = vmatprep.subr.mxu0 0.0
        %3686 = vmatpush1.msra.mxu0 %v3644
        %3687 = vmatprep.subr.mxu0 0.0
        %3688 = vmatpush1.msra.mxu0 %v3643
        %3689 = vmatprep.subr.mxu0 0.0
        %3690 = vmatpush1.msra.mxu0 %v3642
        %3691 = vmatprep.subr.mxu0 0.0
        %3692 = vmatpush1.msra.mxu0 %v3641
        %3693 = vmatprep.subr.mxu0 0.0
        %3694 = vmatpush2.msra.mxu0 0.0
        %3695 = vmatprep.subr.mxu0 0.0
        %3696 = vmatpush2.msra.mxu0 0.0
        %3697 = vmatprep.subr.mxu0 0.0
        %3698 = vmatpush2.msra.mxu0 0.0
        %3699 = vmatprep.subr.mxu0 0.0
        %3700 = vmatpush2.msra.mxu0 0.0
        %3701 = vmatprep.subr.mxu0 0.0
        %3702 = vmatpush2.msra.mxu0 0.0
        %3703 = vmatprep.subr.mxu0 0.0
        %3704 = vmatpush2.msra.mxu0 0.0
        %3705 = vmatprep.subr.mxu0 0.0
        %3706 = vmatpush2.msra.mxu0 0.0
        %3707 = vmatprep.subr.mxu0 0.0
        %3708 = vmatpush2.msra.mxu0 0.0
        %3709 = vmatprep.subr.mxu0 0.0
        %3710 = vmatpush2.msra.mxu0 0.0
        %3711 = vmatprep.subr.mxu0 0.0
        %3712 = vmatpush2.msra.mxu0 0.0
        %3713 = vmatprep.subr.mxu0 0.0
        %3714 = vmatpush2.msra.mxu0 0.0
        %3715 = vmatprep.subr.mxu0 0.0
        %3716 = vmatpush2.msra.mxu0 0.0
        %3717 = vmatprep.subr.mxu0 0.0
        %3718 = vmatpush2.msra.mxu0 %v3660
        %3719 = vmatprep.subr.mxu0 0.0
        %3720 = vmatpush2.msra.mxu0 %v3659
        %3721 = vmatprep.subr.mxu0 0.0
        %3722 = vmatpush2.msra.mxu0 %v3658
        %3723 = vmatprep.subr.mxu0 0.0
        %3724 = vmatpush2.msra.mxu0 %v3657
        %3725 = vmatprep.mubr.f32.mxu0 %v1870
        %3726 = vmatmul.mubr.f32.gmra.mxu0 %v1805
        %v3727 = vpop.f32.mrf.mxu0
        %v3728 = vadd.f32 0.0, %v3727
        %v3729 = vpop.f32.mrf.mxu0
        %3730 = vmatprep.mubr.f32.mxu0 %v1873
        %3731 = vmatmul.mubr.f32.gmra.mxu0 %v1807
        %v3732 = vpop.f32.mrf.mxu0
        %v3733 = vadd.f32 0.0, %v3732
        %v3734 = vpop.f32.mrf.mxu0
        %3735 = vmatprep.mubr.f32.mxu0 %v1876
        %3736 = vmatmul.mubr.f32.gmra.mxu0 %v1809
        %v3737 = vpop.f32.mrf.mxu0
        %v3738 = vadd.f32 0.0, %v3737
        %v3739 = vpop.f32.mrf.mxu0
        %3740 = vmatprep.mubr.f32.mxu0 %v1879
        %3741 = vmatmul.mubr.f32.gmra.mxu0 %v1811
        %v3742 = vpop.f32.mrf.mxu0
        %v3743 = vadd.f32 0.0, %v3742
        %v3744 = vpop.f32.mrf.mxu0
        %3745 = vmatprep.mubr.f32.mxu0 %v1882
        %3746 = vmatmul.mubr.f32.gmra.mxu0 %v1813
        %v3747 = vpop.f32.mrf.mxu0
        %v3748 = vadd.f32 0.0, %v3747
        %v3749 = vpop.f32.mrf.mxu0
        %3750 = vmatprep.mubr.f32.mxu0 %v1885
        %3751 = vmatmul.mubr.f32.gmra.mxu0 %v1815
        %v3752 = vpop.f32.mrf.mxu0
        %v3753 = vadd.f32 0.0, %v3752
        %v3754 = vpop.f32.mrf.mxu0
        %3755 = vmatprep.mubr.f32.mxu0 %v1888
        %3756 = vmatmul.mubr.f32.gmra.mxu0 %v1817
        %v3757 = vpop.f32.mrf.mxu0
        %v3758 = vadd.f32 0.0, %v3757
        %v3759 = vpop.f32.mrf.mxu0
        %3760 = vmatprep.mubr.f32.mxu0 %v1891
        %3761 = vmatmul.mubr.f32.gmra.mxu0 %v1819
        %v3762 = vpop.f32.mrf.mxu0
        %v3763 = vadd.f32 0.0, %v3762
        %v3764 = vpop.f32.mrf.mxu0
        %3765 = vdwg.mxu0
        %s3766 = scalar_lea.vmem %s35, 3
        %v3767 = vld [vmem:[%s3766] sm:$0x1]
        %v3769 = vlaneseq
        %v3770 = vshrl.u32 %v3769, 7
        %v3771 = vsub.s32 0, %v3770
        %v3772 = vrot.slane %v3767, %v3771
        %v3774 = vmul.f32 %v3728, %v3772
        %v3775 = vmul.f32 %v3733, %v3772
        %v3776 = vmul.f32 %v3738, %v3772
        %v3777 = vmul.f32 %v3743, %v3772
        %v3778 = vmul.f32 %v3748, %v3772
        %v3779 = vmul.f32 %v3753, %v3772
        %v3780 = vmul.f32 %v3758, %v3772
        %v3781 = vmul.f32 %v3763, %v3772
        %s3782 = scalar_lea.vmem %s37, 3
        %v3783 = vld [vmem:[%s3782] sm:$0x1]
        %v3785 = vlaneseq
        %v3786 = vshrl.u32 %v3785, 7
        %v3787 = vsub.s32 0, %v3786
        %v3788 = vrot.slane %v3783, %v3787
        %v3790 = vadd.f32 %v3774, %v3788
        %v3791 = vadd.f32 %v3775, %v3788
        %v3792 = vadd.f32 %v3776, %v3788
        %v3793 = vadd.f32 %v3777, %v3788
        %v3794 = vadd.f32 %v3778, %v3788
        %v3795 = vadd.f32 %v3779, %v3788
        %v3796 = vadd.f32 %v3780, %v3788
        %v3797 = vadd.f32 %v3781, %v3788
        %v3798 = vmul.f32 %v3790, %v2031
        %v3799 = vmul.f32 %v3791, %v2036
        %v3800 = vmul.f32 %v3792, %v2041
        %v3801 = vmul.f32 %v3793, %v2046
        %v3802 = vmul.f32 %v3794, %v2051
        %v3803 = vmul.f32 %v3795, %v2056
        %v3804 = vmul.f32 %v3796, %v2061
        %v3805 = vmul.f32 %v3797, %v2066
        %v3806 = vsel %vm1304, %v3798, 0.0
        %v3807 = vsel %vm1304, %v3799, 0.0
        %v3808 = vadd.f32 %v3806, %v3807
        %v3809 = vsel %vm1304, %v3800, 0.0
        %v3810 = vadd.f32 %v3808, %v3809
        %v3811 = vsel %vm1304, %v3801, 0.0
        %v3812 = vadd.f32 %v3810, %v3811
        %v3813 = vsel %vm1304, %v3802, 0.0
        %v3814 = vadd.f32 %v3812, %v3813
        %v3815 = vsel %vm1304, %v3803, 0.0
        %v3816 = vadd.f32 %v3814, %v3815
        %v3817 = vsel %vm1304, %v3804, 0.0
        %v3818 = vadd.f32 %v3816, %v3817
        %v3819 = vsel %vm1304, %v3805, 0.0
        %v3820 = vadd.f32 %v3818, %v3819
        %v3821 = vrot.slane %v3820, 4
        %v3822 = vadd.f32 %v3820, %v3821
        %v3823 = vrot.slane %v3822, 2
        %v3824 = vadd.f32 %v3822, %v3823
        %v3825 = vrot.slane %v3824, 1
        %v3826 = vadd.f32 %v3824, %v3825
        %v3827 = vmul.f32 %v3826, %v2098
        %3828 = vrot.lane.b32.xlu0 %v3827, 32
        %v3829 = vpop.permute.xlu0 %3828
        %v3830 = vsel %vm2100, %v3829, %v3827
        %3831 = vrot.lane.b32.xlu0 %v3830, 32
        %v3832 = vpop.permute.xlu0 %3831
        %v3833 = vsel %vm2100, %v3832, %v3827
        %s3834 = sld [smem:[#allocation2 + $0x180]]
        %3836 = vrot.lane.b32.xlu0 %v3833, 97
        %v3837 = vpop.permute.xlu0 %3836
        %v3839 = vsel %vm2110, %v3837, 0.0
        %v3840 = vstv %s3834
        %v3841 = vmul.f32 %v3840, %v3839
        %v3842 = vadd.f32 %v3841, 0.0
        %s3843 = sld [smem:[#allocation2 + $0x181]]
        %v3844 = vsel %vm2122, %v3827, 0.0
        %v3845 = vstv %s3843
        %v3846 = vmul.f32 %v3845, %v3844
        %v3847 = vadd.f32 %v3842, %v3846
        %s3848 = sld [smem:[#allocation2 + $0x182]]
        %3849 = vrot.lane.b32.xlu0 %v3833, 127
        %v3850 = vpop.permute.xlu0 %3849
        %v3852 = vsel %vm2131, %v3850, 0.0
        %v3853 = vstv %s3848
        %v3854 = vmul.f32 %v3853, %v3852
        %v3855 = vadd.f32 %v3847, %v3854
        %v3856 = vxor.u32 %v3855, 2147483648
        %v3857 = vmul.f32 %v3856, 1.442695
        %v3858 = vpow.pop %v3857
        %v3859 = vadd.f32 %v3858, 1.0
        %v3860 = vrcp.pop %v3859
        %v3861 = vmul.f32 1.0, %v3860
        %v3862 = vlaneseq
        %v3863 = vshrl.u32 %v3862, 7
        %v3864 = vsub.s32 0, %v3863
        %v3865 = vrot.slane %v3861, %v3864
        %v3866 = vmul.f32 %v3790, %v3865
        %v3867 = vmul.f32 %v3791, %v3865
        %v3868 = vmul.f32 %v3792, %v3865
        %v3869 = vmul.f32 %v3793, %v3865
        %v3870 = vmul.f32 %v3794, %v3865
        %v3871 = vmul.f32 %v3795, %v3865
        %v3872 = vmul.f32 %v3796, %v3865
        %v3873 = vmul.f32 %v3797, %v3865
        %s3874 = scalar_lea.vmem %s41, 96
        %v3875 = vld [vmem:[%s3874] sm:$0xff]
        %v3876 = vld [vmem:[%s3874 + $0x8] sm:$0xff]
        %v3877 = vld [vmem:[%s3874 + $0x10] sm:$0xff]
        %v3878 = vld [vmem:[%s3874 + $0x18] sm:$0xff]
        %v3880 = vsel %vm1304, %v3866, 0
        %v3883 = vsel %vm1304, %v3867, 0
        %v3886 = vsel %vm1304, %v3868, 0
        %v3889 = vsel %vm1304, %v3869, 0
        %v3892 = vsel %vm1304, %v3870, 0
        %v3895 = vsel %vm1304, %v3871, 0
        %v3898 = vsel %vm1304, %v3872, 0
        %v3901 = vsel %vm1304, %v3873, 0
        %3903 = vmatprep.subr.mxu0 0.0
        %3904 = vmatpush1.msra.mxu0 0.0
        %3905 = vmatprep.subr.mxu0 0.0
        %3906 = vmatpush1.msra.mxu0 0.0
        %3907 = vmatprep.subr.mxu0 0.0
        %3908 = vmatpush1.msra.mxu0 0.0
        %3909 = vmatprep.subr.mxu0 0.0
        %3910 = vmatpush1.msra.mxu0 0.0
        %3911 = vmatprep.subr.mxu0 0.0
        %3912 = vmatpush1.msra.mxu0 0.0
        %3913 = vmatprep.subr.mxu0 0.0
        %3914 = vmatpush1.msra.mxu0 0.0
        %3915 = vmatprep.subr.mxu0 0.0
        %3916 = vmatpush1.msra.mxu0 0.0
        %3917 = vmatprep.subr.mxu0 0.0
        %3918 = vmatpush1.msra.mxu0 0.0
        %3919 = vmatprep.subr.mxu0 0.0
        %3920 = vmatpush1.msra.mxu0 0.0
        %3921 = vmatprep.subr.mxu0 0.0
        %3922 = vmatpush1.msra.mxu0 0.0
        %3923 = vmatprep.subr.mxu0 0.0
        %3924 = vmatpush1.msra.mxu0 0.0
        %3925 = vmatprep.subr.mxu0 0.0
        %3926 = vmatpush1.msra.mxu0 0.0
        %3927 = vmatprep.subr.mxu0 0.0
        %3928 = vmatpush1.msra.mxu0 %v3878
        %3929 = vmatprep.subr.mxu0 0.0
        %3930 = vmatpush1.msra.mxu0 %v3877
        %3931 = vmatprep.subr.mxu0 0.0
        %3932 = vmatpush1.msra.mxu0 %v3876
        %3933 = vmatprep.subr.mxu0 0.0
        %3934 = vmatpush1.msra.mxu0 %v3875
        %3935 = vmatprep.subr.mxu0 0.0
        %3936 = vmatpush2.msra.mxu0 0.0
        %3937 = vmatprep.subr.mxu0 0.0
        %3938 = vmatpush2.msra.mxu0 0.0
        %3939 = vmatprep.subr.mxu0 0.0
        %3940 = vmatpush2.msra.mxu0 0.0
        %3941 = vmatprep.subr.mxu0 0.0
        %3942 = vmatpush2.msra.mxu0 0.0
        %3943 = vmatprep.subr.mxu0 0.0
        %3944 = vmatpush2.msra.mxu0 0.0
        %3945 = vmatprep.subr.mxu0 0.0
        %3946 = vmatpush2.msra.mxu0 0.0
        %3947 = vmatprep.subr.mxu0 0.0
        %3948 = vmatpush2.msra.mxu0 0.0
        %3949 = vmatprep.subr.mxu0 0.0
        %3950 = vmatpush2.msra.mxu0 0.0
        %3951 = vmatprep.subr.mxu0 0.0
        %3952 = vmatpush2.msra.mxu0 0.0
        %3953 = vmatprep.subr.mxu0 0.0
        %3954 = vmatpush2.msra.mxu0 0.0
        %3955 = vmatprep.subr.mxu0 0.0
        %3956 = vmatpush2.msra.mxu0 0.0
        %3957 = vmatprep.subr.mxu0 0.0
        %3958 = vmatpush2.msra.mxu0 0.0
        %3959 = vmatprep.subr.mxu0 0.0
        %3960 = vmatpush2.msra.mxu0 0.0
        %3961 = vmatprep.subr.mxu0 0.0
        %3962 = vmatpush2.msra.mxu0 0.0
        %3963 = vmatprep.subr.mxu0 0.0
        %3964 = vmatpush2.msra.mxu0 0.0
        %3965 = vmatprep.subr.mxu0 0.0
        %3966 = vmatpush2.msra.mxu0 0.0
        %3967 = vmatprep.mubr.f32.mxu0 0.0
        %3968 = vmatmul.mubr.f32.gmra.mxu0 %v3880
        %v3969 = vpop.f32.mrf.mxu0
        %v3970 = vadd.f32 0.0, %v3969
        %v3971 = vpop.f32.mrf.mxu0
        %3972 = vmatprep.mubr.f32.mxu0 0.0
        %3973 = vmatmul.mubr.f32.gmra.mxu0 %v3883
        %v3974 = vpop.f32.mrf.mxu0
        %v3975 = vadd.f32 0.0, %v3974
        %v3976 = vpop.f32.mrf.mxu0
        %3977 = vmatprep.mubr.f32.mxu0 0.0
        %3978 = vmatmul.mubr.f32.gmra.mxu0 %v3886
        %v3979 = vpop.f32.mrf.mxu0
        %v3980 = vadd.f32 0.0, %v3979
        %v3981 = vpop.f32.mrf.mxu0
        %3982 = vmatprep.mubr.f32.mxu0 0.0
        %3983 = vmatmul.mubr.f32.gmra.mxu0 %v3889
        %v3984 = vpop.f32.mrf.mxu0
        %v3985 = vadd.f32 0.0, %v3984
        %v3986 = vpop.f32.mrf.mxu0
        %3987 = vmatprep.mubr.f32.mxu0 0.0
        %3988 = vmatmul.mubr.f32.gmra.mxu0 %v3892
        %v3989 = vpop.f32.mrf.mxu0
        %v3990 = vadd.f32 0.0, %v3989
        %v3991 = vpop.f32.mrf.mxu0
        %3992 = vmatprep.mubr.f32.mxu0 0.0
        %3993 = vmatmul.mubr.f32.gmra.mxu0 %v3895
        %v3994 = vpop.f32.mrf.mxu0
        %v3995 = vadd.f32 0.0, %v3994
        %v3996 = vpop.f32.mrf.mxu0
        %3997 = vmatprep.mubr.f32.mxu0 0.0
        %3998 = vmatmul.mubr.f32.gmra.mxu0 %v3898
        %v3999 = vpop.f32.mrf.mxu0
        %v4000 = vadd.f32 0.0, %v3999
        %v4001 = vpop.f32.mrf.mxu0
        %4002 = vmatprep.mubr.f32.mxu0 0.0
        %4003 = vmatmul.mubr.f32.gmra.mxu0 %v3901
        %v4004 = vpop.f32.mrf.mxu0
        %v4005 = vadd.f32 0.0, %v4004
        %v4006 = vpop.f32.mrf.mxu0
        %4007 = vdwg.mxu0
        %s4008 = scalar_lea.vmem %s43, 3
        %v4009 = vld [vmem:[%s4008] sm:$0x1]
        %v4011 = vlaneseq
        %v4012 = vshrl.u32 %v4011, 7
        %v4013 = vsub.s32 0, %v4012
        %v4014 = vrot.slane %v4009, %v4013
        %v4016 = vmul.f32 %v3970, %v4014
        %v4017 = vmul.f32 %v3975, %v4014
        %v4018 = vmul.f32 %v3980, %v4014
        %v4019 = vmul.f32 %v3985, %v4014
        %v4020 = vmul.f32 %v3990, %v4014
        %v4021 = vmul.f32 %v3995, %v4014
        %v4022 = vmul.f32 %v4000, %v4014
        %v4023 = vmul.f32 %v4005, %v4014
        %s4024 = scalar_lea.vmem %s45, 3
        %v4025 = vld [vmem:[%s4024] sm:$0x1]
        %v4027 = vlaneseq
        %v4028 = vshrl.u32 %v4027, 7
        %v4029 = vsub.s32 0, %v4028
        %v4030 = vrot.slane %v4025, %v4029
        %v4032 = vadd.f32 %v4016, %v4030
        %v4033 = vadd.f32 %v4017, %v4030
        %v4034 = vadd.f32 %v4018, %v4030
        %v4035 = vadd.f32 %v4019, %v4030
        %v4036 = vadd.f32 %v4020, %v4030
        %v4037 = vadd.f32 %v4021, %v4030
        %v4038 = vadd.f32 %v4022, %v4030
        %v4039 = vadd.f32 %v4023, %v4030
        %v4040 = vmax.f32 %v4032, 0.0
        %v4041 = vmax.f32 %v4033, 0.0
        %v4042 = vmax.f32 %v4034, 0.0
        %v4043 = vmax.f32 %v4035, 0.0
        %v4044 = vmax.f32 %v4036, 0.0
        %v4045 = vmax.f32 %v4037, 0.0
        %v4046 = vmax.f32 %v4038, 0.0
        %v4047 = vmax.f32 %v4039, 0.0
        %s4048 = scalar_lea.vmem %s47, 96
        %v4049 = vld [vmem:[%s4048] sm:$0xff]
        %v4050 = vld [vmem:[%s4048 + $0x8] sm:$0xff]
        %v4051 = vld [vmem:[%s4048 + $0x10] sm:$0xff]
        %v4052 = vld [vmem:[%s4048 + $0x18] sm:$0xff]
        %v4054 = vsel %vm1304, %v4040, 0
        %v4057 = vsel %vm1304, %v4041, 0
        %v4060 = vsel %vm1304, %v4042, 0
        %v4063 = vsel %vm1304, %v4043, 0
        %v4066 = vsel %vm1304, %v4044, 0
        %v4069 = vsel %vm1304, %v4045, 0
        %v4072 = vsel %vm1304, %v4046, 0
        %v4075 = vsel %vm1304, %v4047, 0
        %4077 = vmatprep.subr.mxu0 0.0
        %4078 = vmatpush1.msra.mxu0 0.0
        %4079 = vmatprep.subr.mxu0 0.0
        %4080 = vmatpush1.msra.mxu0 0.0
        %4081 = vmatprep.subr.mxu0 0.0
        %4082 = vmatpush1.msra.mxu0 0.0
        %4083 = vmatprep.subr.mxu0 0.0
        %4084 = vmatpush1.msra.mxu0 0.0
        %4085 = vmatprep.subr.mxu0 0.0
        %4086 = vmatpush1.msra.mxu0 0.0
        %4087 = vmatprep.subr.mxu0 0.0
        %4088 = vmatpush1.msra.mxu0 0.0
        %4089 = vmatprep.subr.mxu0 0.0
        %4090 = vmatpush1.msra.mxu0 0.0
        %4091 = vmatprep.subr.mxu0 0.0
        %4092 = vmatpush1.msra.mxu0 0.0
        %4093 = vmatprep.subr.mxu0 0.0
        %4094 = vmatpush1.msra.mxu0 0.0
        %4095 = vmatprep.subr.mxu0 0.0
        %4096 = vmatpush1.msra.mxu0 0.0
        %4097 = vmatprep.subr.mxu0 0.0
        %4098 = vmatpush1.msra.mxu0 0.0
        %4099 = vmatprep.subr.mxu0 0.0
        %4100 = vmatpush1.msra.mxu0 0.0
        %4101 = vmatprep.subr.mxu0 0.0
        %4102 = vmatpush1.msra.mxu0 %v4052
        %4103 = vmatprep.subr.mxu0 0.0
        %4104 = vmatpush1.msra.mxu0 %v4051
        %4105 = vmatprep.subr.mxu0 0.0
        %4106 = vmatpush1.msra.mxu0 %v4050
        %4107 = vmatprep.subr.mxu0 0.0
        %4108 = vmatpush1.msra.mxu0 %v4049
        %4109 = vmatprep.subr.mxu0 0.0
        %4110 = vmatpush2.msra.mxu0 0.0
        %4111 = vmatprep.subr.mxu0 0.0
        %4112 = vmatpush2.msra.mxu0 0.0
        %4113 = vmatprep.subr.mxu0 0.0
        %4114 = vmatpush2.msra.mxu0 0.0
        %4115 = vmatprep.subr.mxu0 0.0
        %4116 = vmatpush2.msra.mxu0 0.0
        %4117 = vmatprep.subr.mxu0 0.0
        %4118 = vmatpush2.msra.mxu0 0.0
        %4119 = vmatprep.subr.mxu0 0.0
        %4120 = vmatpush2.msra.mxu0 0.0
        %4121 = vmatprep.subr.mxu0 0.0
        %4122 = vmatpush2.msra.mxu0 0.0
        %4123 = vmatprep.subr.mxu0 0.0
        %4124 = vmatpush2.msra.mxu0 0.0
        %4125 = vmatprep.subr.mxu0 0.0
        %4126 = vmatpush2.msra.mxu0 0.0
        %4127 = vmatprep.subr.mxu0 0.0
        %4128 = vmatpush2.msra.mxu0 0.0
        %4129 = vmatprep.subr.mxu0 0.0
        %4130 = vmatpush2.msra.mxu0 0.0
        %4131 = vmatprep.subr.mxu0 0.0
        %4132 = vmatpush2.msra.mxu0 0.0
        %4133 = vmatprep.subr.mxu0 0.0
        %4134 = vmatpush2.msra.mxu0 0.0
        %4135 = vmatprep.subr.mxu0 0.0
        %4136 = vmatpush2.msra.mxu0 0.0
        %4137 = vmatprep.subr.mxu0 0.0
        %4138 = vmatpush2.msra.mxu0 0.0
        %4139 = vmatprep.subr.mxu0 0.0
        %4140 = vmatpush2.msra.mxu0 0.0
        %4141 = vmatprep.mubr.f32.mxu0 0.0
        %4142 = vmatmul.mubr.f32.gmra.mxu0 %v4054
        %v4143 = vpop.f32.mrf.mxu0
        %v4144 = vadd.f32 0.0, %v4143
        %v4145 = vpop.f32.mrf.mxu0
        %4146 = vmatprep.mubr.f32.mxu0 0.0
        %4147 = vmatmul.mubr.f32.gmra.mxu0 %v4057
        %v4148 = vpop.f32.mrf.mxu0
        %v4149 = vadd.f32 0.0, %v4148
        %v4150 = vpop.f32.mrf.mxu0
        %4151 = vmatprep.mubr.f32.mxu0 0.0
        %4152 = vmatmul.mubr.f32.gmra.mxu0 %v4060
        %v4153 = vpop.f32.mrf.mxu0
        %v4154 = vadd.f32 0.0, %v4153
        %v4155 = vpop.f32.mrf.mxu0
        %4156 = vmatprep.mubr.f32.mxu0 0.0
        %4157 = vmatmul.mubr.f32.gmra.mxu0 %v4063
        %v4158 = vpop.f32.mrf.mxu0
        %v4159 = vadd.f32 0.0, %v4158
        %v4160 = vpop.f32.mrf.mxu0
        %4161 = vmatprep.mubr.f32.mxu0 0.0
        %4162 = vmatmul.mubr.f32.gmra.mxu0 %v4066
        %v4163 = vpop.f32.mrf.mxu0
        %v4164 = vadd.f32 0.0, %v4163
        %v4165 = vpop.f32.mrf.mxu0
        %4166 = vmatprep.mubr.f32.mxu0 0.0
        %4167 = vmatmul.mubr.f32.gmra.mxu0 %v4069
        %v4168 = vpop.f32.mrf.mxu0
        %v4169 = vadd.f32 0.0, %v4168
        %v4170 = vpop.f32.mrf.mxu0
        %4171 = vmatprep.mubr.f32.mxu0 0.0
        %4172 = vmatmul.mubr.f32.gmra.mxu0 %v4072
        %v4173 = vpop.f32.mrf.mxu0
        %v4174 = vadd.f32 0.0, %v4173
        %v4175 = vpop.f32.mrf.mxu0
        %4176 = vmatprep.mubr.f32.mxu0 0.0
        %4177 = vmatmul.mubr.f32.gmra.mxu0 %v4075
        %v4178 = vpop.f32.mrf.mxu0
        %v4179 = vadd.f32 0.0, %v4178
        %v4180 = vpop.f32.mrf.mxu0
        %4181 = vdwg.mxu0
        %s4182 = scalar_lea.vmem %s49, 3
        %v4183 = vld [vmem:[%s4182] sm:$0x1]
        %v4185 = vlaneseq
        %v4186 = vshrl.u32 %v4185, 7
        %v4187 = vsub.s32 0, %v4186
        %v4188 = vrot.slane %v4183, %v4187
        %v4190 = vmul.f32 %v4144, %v4188
        %v4191 = vmul.f32 %v4149, %v4188
        %v4192 = vmul.f32 %v4154, %v4188
        %v4193 = vmul.f32 %v4159, %v4188
        %v4194 = vmul.f32 %v4164, %v4188
        %v4195 = vmul.f32 %v4169, %v4188
        %v4196 = vmul.f32 %v4174, %v4188
        %v4197 = vmul.f32 %v4179, %v4188
        %s4198 = scalar_lea.vmem %s51, 3
        %v4199 = vld [vmem:[%s4198] sm:$0x1]
        %v4201 = vlaneseq
        %v4202 = vshrl.u32 %v4201, 7
        %v4203 = vsub.s32 0, %v4202
        %v4204 = vrot.slane %v4199, %v4203
        %v4206 = vadd.f32 %v4190, %v4204
        %v4207 = vadd.f32 %v4191, %v4204
        %v4208 = vadd.f32 %v4192, %v4204
        %v4209 = vadd.f32 %v4193, %v4204
        %v4210 = vadd.f32 %v4194, %v4204
        %v4211 = vadd.f32 %v4195, %v4204
        %v4212 = vadd.f32 %v4196, %v4204
        %v4213 = vadd.f32 %v4197, %v4204
        %s4214 = scalar_lea.vmem %s33, 640
        %v4215 = vld [vmem:[%s4214] sm:$0xff]
        %v4216 = vld [vmem:[%s4214 + $0x8] sm:$0xff]
        %v4217 = vld [vmem:[%s4214 + $0x10] sm:$0xff]
        %v4218 = vld [vmem:[%s4214 + $0x18] sm:$0xff]
        %v4219 = vld [vmem:[%s4214 + $0x20] sm:$0xff]
        %v4220 = vld [vmem:[%s4214 + $0x28] sm:$0xff]
        %v4221 = vld [vmem:[%s4214 + $0x30] sm:$0xff]
        %v4222 = vld [vmem:[%s4214 + $0x38] sm:$0xff]
        %v4223 = vld [vmem:[%s4214 + $0x40] sm:$0xff]
        %v4224 = vld [vmem:[%s4214 + $0x48] sm:$0xff]
        %v4225 = vld [vmem:[%s4214 + $0x50] sm:$0xff]
        %v4226 = vld [vmem:[%s4214 + $0x58] sm:$0xff]
        %v4227 = vld [vmem:[%s4214 + $0x60] sm:$0xff]
        %v4228 = vld [vmem:[%s4214 + $0x68] sm:$0xff]
        %v4229 = vld [vmem:[%s4214 + $0x70] sm:$0xff]
        %v4230 = vld [vmem:[%s4214 + $0x78] sm:$0xff]
        %v4231 = vld [vmem:[%s4214 + $0x80] sm:$0xff]
        %v4232 = vld [vmem:[%s4214 + $0x88] sm:$0xff]
        %v4233 = vld [vmem:[%s4214 + $0x90] sm:$0xff]
        %v4234 = vld [vmem:[%s4214 + $0x98] sm:$0xff]
        %4235 = vmatprep.subr.mxu0 0.0
        %4236 = vmatpush1.msra.mxu0 %v4230
        %4237 = vmatprep.subr.mxu0 0.0
        %4238 = vmatpush1.msra.mxu0 %v4229
        %4239 = vmatprep.subr.mxu0 0.0
        %4240 = vmatpush1.msra.mxu0 %v4228
        %4241 = vmatprep.subr.mxu0 0.0
        %4242 = vmatpush1.msra.mxu0 %v4227
        %4243 = vmatprep.subr.mxu0 0.0
        %4244 = vmatpush1.msra.mxu0 %v4226
        %4245 = vmatprep.subr.mxu0 0.0
        %4246 = vmatpush1.msra.mxu0 %v4225
        %4247 = vmatprep.subr.mxu0 0.0
        %4248 = vmatpush1.msra.mxu0 %v4224
        %4249 = vmatprep.subr.mxu0 0.0
        %4250 = vmatpush1.msra.mxu0 %v4223
        %4251 = vmatprep.subr.mxu0 0.0
        %4252 = vmatpush1.msra.mxu0 %v4222
        %4253 = vmatprep.subr.mxu0 0.0
        %4254 = vmatpush1.msra.mxu0 %v4221
        %4255 = vmatprep.subr.mxu0 0.0
        %4256 = vmatpush1.msra.mxu0 %v4220
        %4257 = vmatprep.subr.mxu0 0.0
        %4258 = vmatpush1.msra.mxu0 %v4219
        %4259 = vmatprep.subr.mxu0 0.0
        %4260 = vmatpush1.msra.mxu0 %v4218
        %4261 = vmatprep.subr.mxu0 0.0
        %4262 = vmatpush1.msra.mxu0 %v4217
        %4263 = vmatprep.subr.mxu0 0.0
        %4264 = vmatpush1.msra.mxu0 %v4216
        %4265 = vmatprep.subr.mxu0 0.0
        %4266 = vmatpush1.msra.mxu0 %v4215
        %4267 = vmatprep.subr.mxu0 0.0
        %4268 = vmatpush2.msra.mxu0 0.0
        %4269 = vmatprep.subr.mxu0 0.0
        %4270 = vmatpush2.msra.mxu0 0.0
        %4271 = vmatprep.subr.mxu0 0.0
        %4272 = vmatpush2.msra.mxu0 0.0
        %4273 = vmatprep.subr.mxu0 0.0
        %4274 = vmatpush2.msra.mxu0 0.0
        %4275 = vmatprep.subr.mxu0 0.0
        %4276 = vmatpush2.msra.mxu0 0.0
        %4277 = vmatprep.subr.mxu0 0.0
        %4278 = vmatpush2.msra.mxu0 0.0
        %4279 = vmatprep.subr.mxu0 0.0
        %4280 = vmatpush2.msra.mxu0 0.0
        %4281 = vmatprep.subr.mxu0 0.0
        %4282 = vmatpush2.msra.mxu0 0.0
        %4283 = vmatprep.subr.mxu0 0.0
        %4284 = vmatpush2.msra.mxu0 0.0
        %4285 = vmatprep.subr.mxu0 0.0
        %4286 = vmatpush2.msra.mxu0 0.0
        %4287 = vmatprep.subr.mxu0 0.0
        %4288 = vmatpush2.msra.mxu0 0.0
        %4289 = vmatprep.subr.mxu0 0.0
        %4290 = vmatpush2.msra.mxu0 0.0
        %4291 = vmatprep.subr.mxu0 0.0
        %4292 = vmatpush2.msra.mxu0 %v4234
        %4293 = vmatprep.subr.mxu0 0.0
        %4294 = vmatpush2.msra.mxu0 %v4233
        %4295 = vmatprep.subr.mxu0 0.0
        %4296 = vmatpush2.msra.mxu0 %v4232
        %4297 = vmatprep.subr.mxu0 0.0
        %4298 = vmatpush2.msra.mxu0 %v4231
        %4299 = vmatprep.mubr.f32.mxu0 %v1870
        %4300 = vmatmul.mubr.f32.gmra.mxu0 %v1805
        %v4301 = vpop.f32.mrf.mxu0
        %v4302 = vadd.f32 0.0, %v4301
        %v4303 = vpop.f32.mrf.mxu0
        %4304 = vmatprep.mubr.f32.mxu0 %v1873
        %4305 = vmatmul.mubr.f32.gmra.mxu0 %v1807
        %v4306 = vpop.f32.mrf.mxu0
        %v4307 = vadd.f32 0.0, %v4306
        %v4308 = vpop.f32.mrf.mxu0
        %4309 = vmatprep.mubr.f32.mxu0 %v1876
        %4310 = vmatmul.mubr.f32.gmra.mxu0 %v1809
        %v4311 = vpop.f32.mrf.mxu0
        %v4312 = vadd.f32 0.0, %v4311
        %v4313 = vpop.f32.mrf.mxu0
        %4314 = vmatprep.mubr.f32.mxu0 %v1879
        %4315 = vmatmul.mubr.f32.gmra.mxu0 %v1811
        %v4316 = vpop.f32.mrf.mxu0
        %v4317 = vadd.f32 0.0, %v4316
        %v4318 = vpop.f32.mrf.mxu0
        %4319 = vmatprep.mubr.f32.mxu0 %v1882
        %4320 = vmatmul.mubr.f32.gmra.mxu0 %v1813
        %v4321 = vpop.f32.mrf.mxu0
        %v4322 = vadd.f32 0.0, %v4321
        %v4323 = vpop.f32.mrf.mxu0
        %4324 = vmatprep.mubr.f32.mxu0 %v1885
        %4325 = vmatmul.mubr.f32.gmra.mxu0 %v1815
        %v4326 = vpop.f32.mrf.mxu0
        %v4327 = vadd.f32 0.0, %v4326
        %v4328 = vpop.f32.mrf.mxu0
        %4329 = vmatprep.mubr.f32.mxu0 %v1888
        %4330 = vmatmul.mubr.f32.gmra.mxu0 %v1817
        %v4331 = vpop.f32.mrf.mxu0
        %v4332 = vadd.f32 0.0, %v4331
        %v4333 = vpop.f32.mrf.mxu0
        %4334 = vmatprep.mubr.f32.mxu0 %v1891
        %4335 = vmatmul.mubr.f32.gmra.mxu0 %v1819
        %v4336 = vpop.f32.mrf.mxu0
        %v4337 = vadd.f32 0.0, %v4336
        %v4338 = vpop.f32.mrf.mxu0
        %4339 = vdwg.mxu0
        %s4340 = scalar_lea.vmem %s35, 4
        %v4341 = vld [vmem:[%s4340] sm:$0x1]
        %v4343 = vlaneseq
        %v4344 = vshrl.u32 %v4343, 7
        %v4345 = vsub.s32 0, %v4344
        %v4346 = vrot.slane %v4341, %v4345
        %v4348 = vmul.f32 %v4302, %v4346
        %v4349 = vmul.f32 %v4307, %v4346
        %v4350 = vmul.f32 %v4312, %v4346
        %v4351 = vmul.f32 %v4317, %v4346
        %v4352 = vmul.f32 %v4322, %v4346
        %v4353 = vmul.f32 %v4327, %v4346
        %v4354 = vmul.f32 %v4332, %v4346
        %v4355 = vmul.f32 %v4337, %v4346
        %s4356 = scalar_lea.vmem %s37, 4
        %v4357 = vld [vmem:[%s4356] sm:$0x1]
        %v4359 = vlaneseq
        %v4360 = vshrl.u32 %v4359, 7
        %v4361 = vsub.s32 0, %v4360
        %v4362 = vrot.slane %v4357, %v4361
        %v4364 = vadd.f32 %v4348, %v4362
        %v4365 = vadd.f32 %v4349, %v4362
        %v4366 = vadd.f32 %v4350, %v4362
        %v4367 = vadd.f32 %v4351, %v4362
        %v4368 = vadd.f32 %v4352, %v4362
        %v4369 = vadd.f32 %v4353, %v4362
        %v4370 = vadd.f32 %v4354, %v4362
        %v4371 = vadd.f32 %v4355, %v4362
        %v4372 = vmul.f32 %v4364, %v2031
        %v4373 = vmul.f32 %v4365, %v2036
        %v4374 = vmul.f32 %v4366, %v2041
        %v4375 = vmul.f32 %v4367, %v2046
        %v4376 = vmul.f32 %v4368, %v2051
        %v4377 = vmul.f32 %v4369, %v2056
        %v4378 = vmul.f32 %v4370, %v2061
        %v4379 = vmul.f32 %v4371, %v2066
        %v4380 = vsel %vm1304, %v4372, 0.0
        %v4381 = vsel %vm1304, %v4373, 0.0
        %v4382 = vadd.f32 %v4380, %v4381
        %v4383 = vsel %vm1304, %v4374, 0.0
        %v4384 = vadd.f32 %v4382, %v4383
        %v4385 = vsel %vm1304, %v4375, 0.0
        %v4386 = vadd.f32 %v4384, %v4385
        %v4387 = vsel %vm1304, %v4376, 0.0
        %v4388 = vadd.f32 %v4386, %v4387
        %v4389 = vsel %vm1304, %v4377, 0.0
        %v4390 = vadd.f32 %v4388, %v4389
        %v4391 = vsel %vm1304, %v4378, 0.0
        %v4392 = vadd.f32 %v4390, %v4391
        %v4393 = vsel %vm1304, %v4379, 0.0
        %v4394 = vadd.f32 %v4392, %v4393
        %v4395 = vrot.slane %v4394, 4
        %v4396 = vadd.f32 %v4394, %v4395
        %v4397 = vrot.slane %v4396, 2
        %v4398 = vadd.f32 %v4396, %v4397
        %v4399 = vrot.slane %v4398, 1
        %v4400 = vadd.f32 %v4398, %v4399
        %v4401 = vmul.f32 %v4400, %v2098
        %4402 = vrot.lane.b32.xlu0 %v4401, 32
        %v4403 = vpop.permute.xlu0 %4402
        %v4404 = vsel %vm2100, %v4403, %v4401
        %4405 = vrot.lane.b32.xlu0 %v4404, 32
        %v4406 = vpop.permute.xlu0 %4405
        %v4407 = vsel %vm2100, %v4406, %v4401
        %s4408 = sld [smem:[#allocation2 + $0x200]]
        %4410 = vrot.lane.b32.xlu0 %v4407, 97
        %v4411 = vpop.permute.xlu0 %4410
        %v4413 = vsel %vm2110, %v4411, 0.0
        %v4414 = vstv %s4408
        %v4415 = vmul.f32 %v4414, %v4413
        %v4416 = vadd.f32 %v4415, 0.0
        %s4417 = sld [smem:[#allocation2 + $0x201]]
        %v4418 = vsel %vm2122, %v4401, 0.0
        %v4419 = vstv %s4417
        %v4420 = vmul.f32 %v4419, %v4418
        %v4421 = vadd.f32 %v4416, %v4420
        %s4422 = sld [smem:[#allocation2 + $0x202]]
        %4423 = vrot.lane.b32.xlu0 %v4407, 127
        %v4424 = vpop.permute.xlu0 %4423
        %v4426 = vsel %vm2131, %v4424, 0.0
        %v4427 = vstv %s4422
        %v4428 = vmul.f32 %v4427, %v4426
        %v4429 = vadd.f32 %v4421, %v4428
        %v4430 = vxor.u32 %v4429, 2147483648
        %v4431 = vmul.f32 %v4430, 1.442695
        %v4432 = vpow.pop %v4431
        %v4433 = vadd.f32 %v4432, 1.0
        %v4434 = vrcp.pop %v4433
        %v4435 = vmul.f32 1.0, %v4434
        %v4436 = vlaneseq
        %v4437 = vshrl.u32 %v4436, 7
        %v4438 = vsub.s32 0, %v4437
        %v4439 = vrot.slane %v4435, %v4438
        %v4440 = vmul.f32 %v4364, %v4439
        %v4441 = vmul.f32 %v4365, %v4439
        %v4442 = vmul.f32 %v4366, %v4439
        %v4443 = vmul.f32 %v4367, %v4439
        %v4444 = vmul.f32 %v4368, %v4439
        %v4445 = vmul.f32 %v4369, %v4439
        %v4446 = vmul.f32 %v4370, %v4439
        %v4447 = vmul.f32 %v4371, %v4439
        %s4448 = scalar_lea.vmem %s41, 128
        %v4449 = vld [vmem:[%s4448] sm:$0xff]
        %v4450 = vld [vmem:[%s4448 + $0x8] sm:$0xff]
        %v4451 = vld [vmem:[%s4448 + $0x10] sm:$0xff]
        %v4452 = vld [vmem:[%s4448 + $0x18] sm:$0xff]
        %v4454 = vsel %vm1304, %v4440, 0
        %v4457 = vsel %vm1304, %v4441, 0
        %v4460 = vsel %vm1304, %v4442, 0
        %v4463 = vsel %vm1304, %v4443, 0
        %v4466 = vsel %vm1304, %v4444, 0
        %v4469 = vsel %vm1304, %v4445, 0
        %v4472 = vsel %vm1304, %v4446, 0
        %v4475 = vsel %vm1304, %v4447, 0
        %4477 = vmatprep.subr.mxu0 0.0
        %4478 = vmatpush1.msra.mxu0 0.0
        %4479 = vmatprep.subr.mxu0 0.0
        %4480 = vmatpush1.msra.mxu0 0.0
        %4481 = vmatprep.subr.mxu0 0.0
        %4482 = vmatpush1.msra.mxu0 0.0
        %4483 = vmatprep.subr.mxu0 0.0
        %4484 = vmatpush1.msra.mxu0 0.0
        %4485 = vmatprep.subr.mxu0 0.0
        %4486 = vmatpush1.msra.mxu0 0.0
        %4487 = vmatprep.subr.mxu0 0.0
        %4488 = vmatpush1.msra.mxu0 0.0
        %4489 = vmatprep.subr.mxu0 0.0
        %4490 = vmatpush1.msra.mxu0 0.0
        %4491 = vmatprep.subr.mxu0 0.0
        %4492 = vmatpush1.msra.mxu0 0.0
        %4493 = vmatprep.subr.mxu0 0.0
        %4494 = vmatpush1.msra.mxu0 0.0
        %4495 = vmatprep.subr.mxu0 0.0
        %4496 = vmatpush1.msra.mxu0 0.0
        %4497 = vmatprep.subr.mxu0 0.0
        %4498 = vmatpush1.msra.mxu0 0.0
        %4499 = vmatprep.subr.mxu0 0.0
        %4500 = vmatpush1.msra.mxu0 0.0
        %4501 = vmatprep.subr.mxu0 0.0
        %4502 = vmatpush1.msra.mxu0 %v4452
        %4503 = vmatprep.subr.mxu0 0.0
        %4504 = vmatpush1.msra.mxu0 %v4451
        %4505 = vmatprep.subr.mxu0 0.0
        %4506 = vmatpush1.msra.mxu0 %v4450
        %4507 = vmatprep.subr.mxu0 0.0
        %4508 = vmatpush1.msra.mxu0 %v4449
        %4509 = vmatprep.subr.mxu0 0.0
        %4510 = vmatpush2.msra.mxu0 0.0
        %4511 = vmatprep.subr.mxu0 0.0
        %4512 = vmatpush2.msra.mxu0 0.0
        %4513 = vmatprep.subr.mxu0 0.0
        %4514 = vmatpush2.msra.mxu0 0.0
        %4515 = vmatprep.subr.mxu0 0.0
        %4516 = vmatpush2.msra.mxu0 0.0
        %4517 = vmatprep.subr.mxu0 0.0
        %4518 = vmatpush2.msra.mxu0 0.0
        %4519 = vmatprep.subr.mxu0 0.0
        %4520 = vmatpush2.msra.mxu0 0.0
        %4521 = vmatprep.subr.mxu0 0.0
        %4522 = vmatpush2.msra.mxu0 0.0
        %4523 = vmatprep.subr.mxu0 0.0
        %4524 = vmatpush2.msra.mxu0 0.0
        %4525 = vmatprep.subr.mxu0 0.0
        %4526 = vmatpush2.msra.mxu0 0.0
        %4527 = vmatprep.subr.mxu0 0.0
        %4528 = vmatpush2.msra.mxu0 0.0
        %4529 = vmatprep.subr.mxu0 0.0
        %4530 = vmatpush2.msra.mxu0 0.0
        %4531 = vmatprep.subr.mxu0 0.0
        %4532 = vmatpush2.msra.mxu0 0.0
        %4533 = vmatprep.subr.mxu0 0.0
        %4534 = vmatpush2.msra.mxu0 0.0
        %4535 = vmatprep.subr.mxu0 0.0
        %4536 = vmatpush2.msra.mxu0 0.0
        %4537 = vmatprep.subr.mxu0 0.0
        %4538 = vmatpush2.msra.mxu0 0.0
        %4539 = vmatprep.subr.mxu0 0.0
        %4540 = vmatpush2.msra.mxu0 0.0
        %4541 = vmatprep.mubr.f32.mxu0 0.0
        %4542 = vmatmul.mubr.f32.gmra.mxu0 %v4454
        %v4543 = vpop.f32.mrf.mxu0
        %v4544 = vadd.f32 0.0, %v4543
        %v4545 = vpop.f32.mrf.mxu0
        %4546 = vmatprep.mubr.f32.mxu0 0.0
        %4547 = vmatmul.mubr.f32.gmra.mxu0 %v4457
        %v4548 = vpop.f32.mrf.mxu0
        %v4549 = vadd.f32 0.0, %v4548
        %v4550 = vpop.f32.mrf.mxu0
        %4551 = vmatprep.mubr.f32.mxu0 0.0
        %4552 = vmatmul.mubr.f32.gmra.mxu0 %v4460
        %v4553 = vpop.f32.mrf.mxu0
        %v4554 = vadd.f32 0.0, %v4553
        %v4555 = vpop.f32.mrf.mxu0
        %4556 = vmatprep.mubr.f32.mxu0 0.0
        %4557 = vmatmul.mubr.f32.gmra.mxu0 %v4463
        %v4558 = vpop.f32.mrf.mxu0
        %v4559 = vadd.f32 0.0, %v4558
        %v4560 = vpop.f32.mrf.mxu0
        %4561 = vmatprep.mubr.f32.mxu0 0.0
        %4562 = vmatmul.mubr.f32.gmra.mxu0 %v4466
        %v4563 = vpop.f32.mrf.mxu0
        %v4564 = vadd.f32 0.0, %v4563
        %v4565 = vpop.f32.mrf.mxu0
        %4566 = vmatprep.mubr.f32.mxu0 0.0
        %4567 = vmatmul.mubr.f32.gmra.mxu0 %v4469
        %v4568 = vpop.f32.mrf.mxu0
        %v4569 = vadd.f32 0.0, %v4568
        %v4570 = vpop.f32.mrf.mxu0
        %4571 = vmatprep.mubr.f32.mxu0 0.0
        %4572 = vmatmul.mubr.f32.gmra.mxu0 %v4472
        %v4573 = vpop.f32.mrf.mxu0
        %v4574 = vadd.f32 0.0, %v4573
        %v4575 = vpop.f32.mrf.mxu0
        %4576 = vmatprep.mubr.f32.mxu0 0.0
        %4577 = vmatmul.mubr.f32.gmra.mxu0 %v4475
        %v4578 = vpop.f32.mrf.mxu0
        %v4579 = vadd.f32 0.0, %v4578
        %v4580 = vpop.f32.mrf.mxu0
        %4581 = vdwg.mxu0
        %s4582 = scalar_lea.vmem %s43, 4
        %v4583 = vld [vmem:[%s4582] sm:$0x1]
        %v4585 = vlaneseq
        %v4586 = vshrl.u32 %v4585, 7
        %v4587 = vsub.s32 0, %v4586
        %v4588 = vrot.slane %v4583, %v4587
        %v4590 = vmul.f32 %v4544, %v4588
        %v4591 = vmul.f32 %v4549, %v4588
        %v4592 = vmul.f32 %v4554, %v4588
        %v4593 = vmul.f32 %v4559, %v4588
        %v4594 = vmul.f32 %v4564, %v4588
        %v4595 = vmul.f32 %v4569, %v4588
        %v4596 = vmul.f32 %v4574, %v4588
        %v4597 = vmul.f32 %v4579, %v4588
        %s4598 = scalar_lea.vmem %s45, 4
        %v4599 = vld [vmem:[%s4598] sm:$0x1]
        %v4601 = vlaneseq
        %v4602 = vshrl.u32 %v4601, 7
        %v4603 = vsub.s32 0, %v4602
        %v4604 = vrot.slane %v4599, %v4603
        %v4606 = vadd.f32 %v4590, %v4604
        %v4607 = vadd.f32 %v4591, %v4604
        %v4608 = vadd.f32 %v4592, %v4604
        %v4609 = vadd.f32 %v4593, %v4604
        %v4610 = vadd.f32 %v4594, %v4604
        %v4611 = vadd.f32 %v4595, %v4604
        %v4612 = vadd.f32 %v4596, %v4604
        %v4613 = vadd.f32 %v4597, %v4604
        %v4614 = vmax.f32 %v4606, 0.0
        %v4615 = vmax.f32 %v4607, 0.0
        %v4616 = vmax.f32 %v4608, 0.0
        %v4617 = vmax.f32 %v4609, 0.0
        %v4618 = vmax.f32 %v4610, 0.0
        %v4619 = vmax.f32 %v4611, 0.0
        %v4620 = vmax.f32 %v4612, 0.0
        %v4621 = vmax.f32 %v4613, 0.0
        %s4622 = scalar_lea.vmem %s47, 128
        %v4623 = vld [vmem:[%s4622] sm:$0xff]
        %v4624 = vld [vmem:[%s4622 + $0x8] sm:$0xff]
        %v4625 = vld [vmem:[%s4622 + $0x10] sm:$0xff]
        %v4626 = vld [vmem:[%s4622 + $0x18] sm:$0xff]
        %v4628 = vsel %vm1304, %v4614, 0
        %v4631 = vsel %vm1304, %v4615, 0
        %v4634 = vsel %vm1304, %v4616, 0
        %v4637 = vsel %vm1304, %v4617, 0
        %v4640 = vsel %vm1304, %v4618, 0
        %v4643 = vsel %vm1304, %v4619, 0
        %v4646 = vsel %vm1304, %v4620, 0
        %v4649 = vsel %vm1304, %v4621, 0
        %4651 = vmatprep.subr.mxu0 0.0
        %4652 = vmatpush1.msra.mxu0 0.0
        %4653 = vmatprep.subr.mxu0 0.0
        %4654 = vmatpush1.msra.mxu0 0.0
        %4655 = vmatprep.subr.mxu0 0.0
        %4656 = vmatpush1.msra.mxu0 0.0
        %4657 = vmatprep.subr.mxu0 0.0
        %4658 = vmatpush1.msra.mxu0 0.0
        %4659 = vmatprep.subr.mxu0 0.0
        %4660 = vmatpush1.msra.mxu0 0.0
        %4661 = vmatprep.subr.mxu0 0.0
        %4662 = vmatpush1.msra.mxu0 0.0
        %4663 = vmatprep.subr.mxu0 0.0
        %4664 = vmatpush1.msra.mxu0 0.0
        %4665 = vmatprep.subr.mxu0 0.0
        %4666 = vmatpush1.msra.mxu0 0.0
        %4667 = vmatprep.subr.mxu0 0.0
        %4668 = vmatpush1.msra.mxu0 0.0
        %4669 = vmatprep.subr.mxu0 0.0
        %4670 = vmatpush1.msra.mxu0 0.0
        %4671 = vmatprep.subr.mxu0 0.0
        %4672 = vmatpush1.msra.mxu0 0.0
        %4673 = vmatprep.subr.mxu0 0.0
        %4674 = vmatpush1.msra.mxu0 0.0
        %4675 = vmatprep.subr.mxu0 0.0
        %4676 = vmatpush1.msra.mxu0 %v4626
        %4677 = vmatprep.subr.mxu0 0.0
        %4678 = vmatpush1.msra.mxu0 %v4625
        %4679 = vmatprep.subr.mxu0 0.0
        %4680 = vmatpush1.msra.mxu0 %v4624
        %4681 = vmatprep.subr.mxu0 0.0
        %4682 = vmatpush1.msra.mxu0 %v4623
        %4683 = vmatprep.subr.mxu0 0.0
        %4684 = vmatpush2.msra.mxu0 0.0
        %4685 = vmatprep.subr.mxu0 0.0
        %4686 = vmatpush2.msra.mxu0 0.0
        %4687 = vmatprep.subr.mxu0 0.0
        %4688 = vmatpush2.msra.mxu0 0.0
        %4689 = vmatprep.subr.mxu0 0.0
        %4690 = vmatpush2.msra.mxu0 0.0
        %4691 = vmatprep.subr.mxu0 0.0
        %4692 = vmatpush2.msra.mxu0 0.0
        %4693 = vmatprep.subr.mxu0 0.0
        %4694 = vmatpush2.msra.mxu0 0.0
        %4695 = vmatprep.subr.mxu0 0.0
        %4696 = vmatpush2.msra.mxu0 0.0
        %4697 = vmatprep.subr.mxu0 0.0
        %4698 = vmatpush2.msra.mxu0 0.0
        %4699 = vmatprep.subr.mxu0 0.0
        %4700 = vmatpush2.msra.mxu0 0.0
        %4701 = vmatprep.subr.mxu0 0.0
        %4702 = vmatpush2.msra.mxu0 0.0
        %4703 = vmatprep.subr.mxu0 0.0
        %4704 = vmatpush2.msra.mxu0 0.0
        %4705 = vmatprep.subr.mxu0 0.0
        %4706 = vmatpush2.msra.mxu0 0.0
        %4707 = vmatprep.subr.mxu0 0.0
        %4708 = vmatpush2.msra.mxu0 0.0
        %4709 = vmatprep.subr.mxu0 0.0
        %4710 = vmatpush2.msra.mxu0 0.0
        %4711 = vmatprep.subr.mxu0 0.0
        %4712 = vmatpush2.msra.mxu0 0.0
        %4713 = vmatprep.subr.mxu0 0.0
        %4714 = vmatpush2.msra.mxu0 0.0
        %4715 = vmatprep.mubr.f32.mxu0 0.0
        %4716 = vmatmul.mubr.f32.gmra.mxu0 %v4628
        %v4717 = vpop.f32.mrf.mxu0
        %v4718 = vadd.f32 0.0, %v4717
        %v4719 = vpop.f32.mrf.mxu0
        %4720 = vmatprep.mubr.f32.mxu0 0.0
        %4721 = vmatmul.mubr.f32.gmra.mxu0 %v4631
        %v4722 = vpop.f32.mrf.mxu0
        %v4723 = vadd.f32 0.0, %v4722
        %v4724 = vpop.f32.mrf.mxu0
        %4725 = vmatprep.mubr.f32.mxu0 0.0
        %4726 = vmatmul.mubr.f32.gmra.mxu0 %v4634
        %v4727 = vpop.f32.mrf.mxu0
        %v4728 = vadd.f32 0.0, %v4727
        %v4729 = vpop.f32.mrf.mxu0
        %4730 = vmatprep.mubr.f32.mxu0 0.0
        %4731 = vmatmul.mubr.f32.gmra.mxu0 %v4637
        %v4732 = vpop.f32.mrf.mxu0
        %v4733 = vadd.f32 0.0, %v4732
        %v4734 = vpop.f32.mrf.mxu0
        %4735 = vmatprep.mubr.f32.mxu0 0.0
        %4736 = vmatmul.mubr.f32.gmra.mxu0 %v4640
        %v4737 = vpop.f32.mrf.mxu0
        %v4738 = vadd.f32 0.0, %v4737
        %v4739 = vpop.f32.mrf.mxu0
        %4740 = vmatprep.mubr.f32.mxu0 0.0
        %4741 = vmatmul.mubr.f32.gmra.mxu0 %v4643
        %v4742 = vpop.f32.mrf.mxu0
        %v4743 = vadd.f32 0.0, %v4742
        %v4744 = vpop.f32.mrf.mxu0
        %4745 = vmatprep.mubr.f32.mxu0 0.0
        %4746 = vmatmul.mubr.f32.gmra.mxu0 %v4646
        %v4747 = vpop.f32.mrf.mxu0
        %v4748 = vadd.f32 0.0, %v4747
        %v4749 = vpop.f32.mrf.mxu0
        %4750 = vmatprep.mubr.f32.mxu0 0.0
        %4751 = vmatmul.mubr.f32.gmra.mxu0 %v4649
        %v4752 = vpop.f32.mrf.mxu0
        %v4753 = vadd.f32 0.0, %v4752
        %v4754 = vpop.f32.mrf.mxu0
        %4755 = vdwg.mxu0
        %s4756 = scalar_lea.vmem %s49, 4
        %v4757 = vld [vmem:[%s4756] sm:$0x1]
        %v4759 = vlaneseq
        %v4760 = vshrl.u32 %v4759, 7
        %v4761 = vsub.s32 0, %v4760
        %v4762 = vrot.slane %v4757, %v4761
        %v4764 = vmul.f32 %v4718, %v4762
        %v4765 = vmul.f32 %v4723, %v4762
        %v4766 = vmul.f32 %v4728, %v4762
        %v4767 = vmul.f32 %v4733, %v4762
        %v4768 = vmul.f32 %v4738, %v4762
        %v4769 = vmul.f32 %v4743, %v4762
        %v4770 = vmul.f32 %v4748, %v4762
        %v4771 = vmul.f32 %v4753, %v4762
        %s4772 = scalar_lea.vmem %s51, 4
        %v4773 = vld [vmem:[%s4772] sm:$0x1]
        %v4775 = vlaneseq
        %v4776 = vshrl.u32 %v4775, 7
        %v4777 = vsub.s32 0, %v4776
        %v4778 = vrot.slane %v4773, %v4777
        %v4780 = vadd.f32 %v4764, %v4778
        %v4781 = vadd.f32 %v4765, %v4778
        %v4782 = vadd.f32 %v4766, %v4778
        %v4783 = vadd.f32 %v4767, %v4778
        %v4784 = vadd.f32 %v4768, %v4778
        %v4785 = vadd.f32 %v4769, %v4778
        %v4786 = vadd.f32 %v4770, %v4778
        %v4787 = vadd.f32 %v4771, %v4778
        %v4788 = vadd.f32 %v2484, %v3058
        %v4789 = vadd.f32 %v2485, %v3059
        %v4790 = vadd.f32 %v2486, %v3060
        %v4791 = vadd.f32 %v2487, %v3061
        %v4792 = vadd.f32 %v2488, %v3062
        %v4793 = vadd.f32 %v2489, %v3063
        %v4794 = vadd.f32 %v2490, %v3064
        %v4795 = vadd.f32 %v2491, %v3065
        %v4796 = vadd.f32 %v4788, %v3632
        %v4797 = vadd.f32 %v4789, %v3633
        %v4798 = vadd.f32 %v4790, %v3634
        %v4799 = vadd.f32 %v4791, %v3635
        %v4800 = vadd.f32 %v4792, %v3636
        %v4801 = vadd.f32 %v4793, %v3637
        %v4802 = vadd.f32 %v4794, %v3638
        %v4803 = vadd.f32 %v4795, %v3639
        %v4804 = vadd.f32 %v4796, %v4206
        %v4805 = vadd.f32 %v4797, %v4207
        %v4806 = vadd.f32 %v4798, %v4208
        %v4807 = vadd.f32 %v4799, %v4209
        %v4808 = vadd.f32 %v4800, %v4210
        %v4809 = vadd.f32 %v4801, %v4211
        %v4810 = vadd.f32 %v4802, %v4212
        %v4811 = vadd.f32 %v4803, %v4213
        %v4812 = vadd.f32 %v4804, %v4780
        %v4813 = vadd.f32 %v4805, %v4781
        %v4814 = vadd.f32 %v4806, %v4782
        %v4815 = vadd.f32 %v4807, %v4783
        %v4816 = vadd.f32 %v4808, %v4784
        %v4817 = vadd.f32 %v4809, %v4785
        %v4818 = vadd.f32 %v4810, %v4786
        %v4819 = vadd.f32 %v4811, %v4787
        %v4820 = vld [vmem:[%s53] sm:$0xff]
        %v4821 = vld [vmem:[%s53 + $0x8] sm:$0xff]
        %v4822 = vld [vmem:[%s53 + $0x10] sm:$0xff]
        %v4823 = vld [vmem:[%s53 + $0x18] sm:$0xff]
        %v4825 = vsel %vm1304, %v4812, 0
        %v4828 = vsel %vm1304, %v4813, 0
        %v4831 = vsel %vm1304, %v4814, 0
        %v4834 = vsel %vm1304, %v4815, 0
        %v4837 = vsel %vm1304, %v4816, 0
        %v4840 = vsel %vm1304, %v4817, 0
        %v4843 = vsel %vm1304, %v4818, 0
        %v4846 = vsel %vm1304, %v4819, 0
        %4848 = vmatprep.subr.mxu0 0.0
        %4849 = vmatpush1.msra.mxu0 0.0
        %4850 = vmatprep.subr.mxu0 0.0
        %4851 = vmatpush1.msra.mxu0 0.0
        %4852 = vmatprep.subr.mxu0 0.0
        %4853 = vmatpush1.msra.mxu0 0.0
        %4854 = vmatprep.subr.mxu0 0.0
        %4855 = vmatpush1.msra.mxu0 0.0
        %4856 = vmatprep.subr.mxu0 0.0
        %4857 = vmatpush1.msra.mxu0 0.0
        %4858 = vmatprep.subr.mxu0 0.0
        %4859 = vmatpush1.msra.mxu0 0.0
        %4860 = vmatprep.subr.mxu0 0.0
        %4861 = vmatpush1.msra.mxu0 0.0
        %4862 = vmatprep.subr.mxu0 0.0
        %4863 = vmatpush1.msra.mxu0 0.0
        %4864 = vmatprep.subr.mxu0 0.0
        %4865 = vmatpush1.msra.mxu0 0.0
        %4866 = vmatprep.subr.mxu0 0.0
        %4867 = vmatpush1.msra.mxu0 0.0
        %4868 = vmatprep.subr.mxu0 0.0
        %4869 = vmatpush1.msra.mxu0 0.0
        %4870 = vmatprep.subr.mxu0 0.0
        %4871 = vmatpush1.msra.mxu0 0.0
        %4872 = vmatprep.subr.mxu0 0.0
        %4873 = vmatpush1.msra.mxu0 %v4823
        %4874 = vmatprep.subr.mxu0 0.0
        %4875 = vmatpush1.msra.mxu0 %v4822
        %4876 = vmatprep.subr.mxu0 0.0
        %4877 = vmatpush1.msra.mxu0 %v4821
        %4878 = vmatprep.subr.mxu0 0.0
        %4879 = vmatpush1.msra.mxu0 %v4820
        %4880 = vmatprep.subr.mxu0 0.0
        %4881 = vmatpush2.msra.mxu0 0.0
        %4882 = vmatprep.subr.mxu0 0.0
        %4883 = vmatpush2.msra.mxu0 0.0
        %4884 = vmatprep.subr.mxu0 0.0
        %4885 = vmatpush2.msra.mxu0 0.0
        %4886 = vmatprep.subr.mxu0 0.0
        %4887 = vmatpush2.msra.mxu0 0.0
        %4888 = vmatprep.subr.mxu0 0.0
        %4889 = vmatpush2.msra.mxu0 0.0
        %4890 = vmatprep.subr.mxu0 0.0
        %4891 = vmatpush2.msra.mxu0 0.0
        %4892 = vmatprep.subr.mxu0 0.0
        %4893 = vmatpush2.msra.mxu0 0.0
        %4894 = vmatprep.subr.mxu0 0.0
        %4895 = vmatpush2.msra.mxu0 0.0
        %4896 = vmatprep.subr.mxu0 0.0
        %4897 = vmatpush2.msra.mxu0 0.0
        %4898 = vmatprep.subr.mxu0 0.0
        %4899 = vmatpush2.msra.mxu0 0.0
        %4900 = vmatprep.subr.mxu0 0.0
        %4901 = vmatpush2.msra.mxu0 0.0
        %4902 = vmatprep.subr.mxu0 0.0
        %4903 = vmatpush2.msra.mxu0 0.0
        %4904 = vmatprep.subr.mxu0 0.0
        %4905 = vmatpush2.msra.mxu0 0.0
        %4906 = vmatprep.subr.mxu0 0.0
        %4907 = vmatpush2.msra.mxu0 0.0
        %4908 = vmatprep.subr.mxu0 0.0
        %4909 = vmatpush2.msra.mxu0 0.0
        %4910 = vmatprep.subr.mxu0 0.0
        %4911 = vmatpush2.msra.mxu0 0.0
        %4912 = vmatprep.mubr.f32.mxu0 0.0
        %4913 = vmatmul.mubr.f32.gmra.mxu0 %v4825
        %v4914 = vpop.f32.mrf.mxu0
        %v4915 = vadd.f32 0.0, %v4914
        %v4916 = vpop.f32.mrf.mxu0
        %4917 = vmatprep.mubr.f32.mxu0 0.0
        %4918 = vmatmul.mubr.f32.gmra.mxu0 %v4828
        %v4919 = vpop.f32.mrf.mxu0
        %v4920 = vadd.f32 0.0, %v4919
        %v4921 = vpop.f32.mrf.mxu0
        %4922 = vmatprep.mubr.f32.mxu0 0.0
        %4923 = vmatmul.mubr.f32.gmra.mxu0 %v4831
        %v4924 = vpop.f32.mrf.mxu0
        %v4925 = vadd.f32 0.0, %v4924
        %v4926 = vpop.f32.mrf.mxu0
        %4927 = vmatprep.mubr.f32.mxu0 0.0
        %4928 = vmatmul.mubr.f32.gmra.mxu0 %v4834
        %v4929 = vpop.f32.mrf.mxu0
        %v4930 = vadd.f32 0.0, %v4929
        %v4931 = vpop.f32.mrf.mxu0
        %4932 = vmatprep.mubr.f32.mxu0 0.0
        %4933 = vmatmul.mubr.f32.gmra.mxu0 %v4837
        %v4934 = vpop.f32.mrf.mxu0
        %v4935 = vadd.f32 0.0, %v4934
        %v4936 = vpop.f32.mrf.mxu0
        %4937 = vmatprep.mubr.f32.mxu0 0.0
        %4938 = vmatmul.mubr.f32.gmra.mxu0 %v4840
        %v4939 = vpop.f32.mrf.mxu0
        %v4940 = vadd.f32 0.0, %v4939
        %v4941 = vpop.f32.mrf.mxu0
        %4942 = vmatprep.mubr.f32.mxu0 0.0
        %4943 = vmatmul.mubr.f32.gmra.mxu0 %v4843
        %v4944 = vpop.f32.mrf.mxu0
        %v4945 = vadd.f32 0.0, %v4944
        %v4946 = vpop.f32.mrf.mxu0
        %4947 = vmatprep.mubr.f32.mxu0 0.0
        %4948 = vmatmul.mubr.f32.gmra.mxu0 %v4846
        %v4949 = vpop.f32.mrf.mxu0
        %v4950 = vadd.f32 0.0, %v4949
        %v4951 = vpop.f32.mrf.mxu0
        %4952 = vdwg.mxu0
        %v4953 = vld [vmem:[%s55] sm:$0x1]
        %v4955 = vlaneseq
        %v4956 = vshrl.u32 %v4955, 7
        %v4957 = vsub.s32 0, %v4956
        %v4958 = vrot.slane %v4953, %v4957
        %v4960 = vmul.f32 %v4915, %v4958
        %v4961 = vmul.f32 %v4920, %v4958
        %v4962 = vmul.f32 %v4925, %v4958
        %v4963 = vmul.f32 %v4930, %v4958
        %v4964 = vmul.f32 %v4935, %v4958
        %v4965 = vmul.f32 %v4940, %v4958
        %v4966 = vmul.f32 %v4945, %v4958
        %v4967 = vmul.f32 %v4950, %v4958
        %v4968 = vld [vmem:[%s57] sm:$0x1]
        %v4970 = vlaneseq
        %v4971 = vshrl.u32 %v4970, 7
        %v4972 = vsub.s32 0, %v4971
        %v4973 = vrot.slane %v4968, %v4972
        %v4975 = vadd.f32 %v4960, %v4973
        %v4976 = vadd.f32 %v4961, %v4973
        %v4977 = vadd.f32 %v4962, %v4973
        %v4978 = vadd.f32 %v4963, %v4973
        %v4979 = vadd.f32 %v4964, %v4973
        %v4980 = vadd.f32 %v4965, %v4973
        %v4981 = vadd.f32 %v4966, %v4973
        %v4982 = vadd.f32 %v4967, %v4973
        %s4983 = scalar_lea.vmem %s53, 32
        %v4984 = vld [vmem:[%s4983] sm:$0xff]
        %v4985 = vld [vmem:[%s4983 + $0x8] sm:$0xff]
        %v4986 = vld [vmem:[%s4983 + $0x10] sm:$0xff]
        %v4987 = vld [vmem:[%s4983 + $0x18] sm:$0xff]
        %4988 = vmatprep.subr.mxu0 0.0
        %4989 = vmatpush1.msra.mxu0 0.0
        %4990 = vmatprep.subr.mxu0 0.0
        %4991 = vmatpush1.msra.mxu0 0.0
        %4992 = vmatprep.subr.mxu0 0.0
        %4993 = vmatpush1.msra.mxu0 0.0
        %4994 = vmatprep.subr.mxu0 0.0
        %4995 = vmatpush1.msra.mxu0 0.0
        %4996 = vmatprep.subr.mxu0 0.0
        %4997 = vmatpush1.msra.mxu0 0.0
        %4998 = vmatprep.subr.mxu0 0.0
        %4999 = vmatpush1.msra.mxu0 0.0
        %5000 = vmatprep.subr.mxu0 0.0
        %5001 = vmatpush1.msra.mxu0 0.0
        %5002 = vmatprep.subr.mxu0 0.0
        %5003 = vmatpush1.msra.mxu0 0.0
        %5004 = vmatprep.subr.mxu0 0.0
        %5005 = vmatpush1.msra.mxu0 0.0
        %5006 = vmatprep.subr.mxu0 0.0
        %5007 = vmatpush1.msra.mxu0 0.0
        %5008 = vmatprep.subr.mxu0 0.0
        %5009 = vmatpush1.msra.mxu0 0.0
        %5010 = vmatprep.subr.mxu0 0.0
        %5011 = vmatpush1.msra.mxu0 0.0
        %5012 = vmatprep.subr.mxu0 0.0
        %5013 = vmatpush1.msra.mxu0 %v4987
        %5014 = vmatprep.subr.mxu0 0.0
        %5015 = vmatpush1.msra.mxu0 %v4986
        %5016 = vmatprep.subr.mxu0 0.0
        %5017 = vmatpush1.msra.mxu0 %v4985
        %5018 = vmatprep.subr.mxu0 0.0
        %5019 = vmatpush1.msra.mxu0 %v4984
        %5020 = vmatprep.subr.mxu0 0.0
        %5021 = vmatpush2.msra.mxu0 0.0
        %5022 = vmatprep.subr.mxu0 0.0
        %5023 = vmatpush2.msra.mxu0 0.0
        %5024 = vmatprep.subr.mxu0 0.0
        %5025 = vmatpush2.msra.mxu0 0.0
        %5026 = vmatprep.subr.mxu0 0.0
        %5027 = vmatpush2.msra.mxu0 0.0
        %5028 = vmatprep.subr.mxu0 0.0
        %5029 = vmatpush2.msra.mxu0 0.0
        %5030 = vmatprep.subr.mxu0 0.0
        %5031 = vmatpush2.msra.mxu0 0.0
        %5032 = vmatprep.subr.mxu0 0.0
        %5033 = vmatpush2.msra.mxu0 0.0
        %5034 = vmatprep.subr.mxu0 0.0
        %5035 = vmatpush2.msra.mxu0 0.0
        %5036 = vmatprep.subr.mxu0 0.0
        %5037 = vmatpush2.msra.mxu0 0.0
        %5038 = vmatprep.subr.mxu0 0.0
        %5039 = vmatpush2.msra.mxu0 0.0
        %5040 = vmatprep.subr.mxu0 0.0
        %5041 = vmatpush2.msra.mxu0 0.0
        %5042 = vmatprep.subr.mxu0 0.0
        %5043 = vmatpush2.msra.mxu0 0.0
        %5044 = vmatprep.subr.mxu0 0.0
        %5045 = vmatpush2.msra.mxu0 0.0
        %5046 = vmatprep.subr.mxu0 0.0
        %5047 = vmatpush2.msra.mxu0 0.0
        %5048 = vmatprep.subr.mxu0 0.0
        %5049 = vmatpush2.msra.mxu0 0.0
        %5050 = vmatprep.subr.mxu0 0.0
        %5051 = vmatpush2.msra.mxu0 0.0
        %5052 = vmatprep.mubr.f32.mxu0 0.0
        %5053 = vmatmul.mubr.f32.gmra.mxu0 %v4825
        %v5054 = vpop.f32.mrf.mxu0
        %v5055 = vadd.f32 0.0, %v5054
        %v5056 = vpop.f32.mrf.mxu0
        %5057 = vmatprep.mubr.f32.mxu0 0.0
        %5058 = vmatmul.mubr.f32.gmra.mxu0 %v4828
        %v5059 = vpop.f32.mrf.mxu0
        %v5060 = vadd.f32 0.0, %v5059
        %v5061 = vpop.f32.mrf.mxu0
        %5062 = vmatprep.mubr.f32.mxu0 0.0
        %5063 = vmatmul.mubr.f32.gmra.mxu0 %v4831
        %v5064 = vpop.f32.mrf.mxu0
        %v5065 = vadd.f32 0.0, %v5064
        %v5066 = vpop.f32.mrf.mxu0
        %5067 = vmatprep.mubr.f32.mxu0 0.0
        %5068 = vmatmul.mubr.f32.gmra.mxu0 %v4834
        %v5069 = vpop.f32.mrf.mxu0
        %v5070 = vadd.f32 0.0, %v5069
        %v5071 = vpop.f32.mrf.mxu0
        %5072 = vmatprep.mubr.f32.mxu0 0.0
        %5073 = vmatmul.mubr.f32.gmra.mxu0 %v4837
        %v5074 = vpop.f32.mrf.mxu0
        %v5075 = vadd.f32 0.0, %v5074
        %v5076 = vpop.f32.mrf.mxu0
        %5077 = vmatprep.mubr.f32.mxu0 0.0
        %5078 = vmatmul.mubr.f32.gmra.mxu0 %v4840
        %v5079 = vpop.f32.mrf.mxu0
        %v5080 = vadd.f32 0.0, %v5079
        %v5081 = vpop.f32.mrf.mxu0
        %5082 = vmatprep.mubr.f32.mxu0 0.0
        %5083 = vmatmul.mubr.f32.gmra.mxu0 %v4843
        %v5084 = vpop.f32.mrf.mxu0
        %v5085 = vadd.f32 0.0, %v5084
        %v5086 = vpop.f32.mrf.mxu0
        %5087 = vmatprep.mubr.f32.mxu0 0.0
        %5088 = vmatmul.mubr.f32.gmra.mxu0 %v4846
        %v5089 = vpop.f32.mrf.mxu0
        %v5090 = vadd.f32 0.0, %v5089
        %v5091 = vpop.f32.mrf.mxu0
        %5092 = vdwg.mxu0
        %s5093 = scalar_lea.vmem %s55, 1
        %v5094 = vld [vmem:[%s5093] sm:$0x1]
        %v5096 = vlaneseq
        %v5097 = vshrl.u32 %v5096, 7
        %v5098 = vsub.s32 0, %v5097
        %v5099 = vrot.slane %v5094, %v5098
        %v5101 = vmul.f32 %v5055, %v5099
        %v5102 = vmul.f32 %v5060, %v5099
        %v5103 = vmul.f32 %v5065, %v5099
        %v5104 = vmul.f32 %v5070, %v5099
        %v5105 = vmul.f32 %v5075, %v5099
        %v5106 = vmul.f32 %v5080, %v5099
        %v5107 = vmul.f32 %v5085, %v5099
        %v5108 = vmul.f32 %v5090, %v5099
        %s5109 = scalar_lea.vmem %s57, 1
        %v5110 = vld [vmem:[%s5109] sm:$0x1]
        %v5112 = vlaneseq
        %v5113 = vshrl.u32 %v5112, 7
        %v5114 = vsub.s32 0, %v5113
        %v5115 = vrot.slane %v5110, %v5114
        %v5117 = vadd.f32 %v5101, %v5115
        %v5118 = vadd.f32 %v5102, %v5115
        %v5119 = vadd.f32 %v5103, %v5115
        %v5120 = vadd.f32 %v5104, %v5115
        %v5121 = vadd.f32 %v5105, %v5115
        %v5122 = vadd.f32 %v5106, %v5115
        %v5123 = vadd.f32 %v5107, %v5115
        %v5124 = vadd.f32 %v5108, %v5115
        %s5125 = scalar_lea.vmem %s53, 64
        %v5126 = vld [vmem:[%s5125] sm:$0xff]
        %v5127 = vld [vmem:[%s5125 + $0x8] sm:$0xff]
        %v5128 = vld [vmem:[%s5125 + $0x10] sm:$0xff]
        %v5129 = vld [vmem:[%s5125 + $0x18] sm:$0xff]
        %5130 = vmatprep.subr.mxu0 0.0
        %5131 = vmatpush1.msra.mxu0 0.0
        %5132 = vmatprep.subr.mxu0 0.0
        %5133 = vmatpush1.msra.mxu0 0.0
        %5134 = vmatprep.subr.mxu0 0.0
        %5135 = vmatpush1.msra.mxu0 0.0
        %5136 = vmatprep.subr.mxu0 0.0
        %5137 = vmatpush1.msra.mxu0 0.0
        %5138 = vmatprep.subr.mxu0 0.0
        %5139 = vmatpush1.msra.mxu0 0.0
        %5140 = vmatprep.subr.mxu0 0.0
        %5141 = vmatpush1.msra.mxu0 0.0
        %5142 = vmatprep.subr.mxu0 0.0
        %5143 = vmatpush1.msra.mxu0 0.0
        %5144 = vmatprep.subr.mxu0 0.0
        %5145 = vmatpush1.msra.mxu0 0.0
        %5146 = vmatprep.subr.mxu0 0.0
        %5147 = vmatpush1.msra.mxu0 0.0
        %5148 = vmatprep.subr.mxu0 0.0
        %5149 = vmatpush1.msra.mxu0 0.0
        %5150 = vmatprep.subr.mxu0 0.0
        %5151 = vmatpush1.msra.mxu0 0.0
        %5152 = vmatprep.subr.mxu0 0.0
        %5153 = vmatpush1.msra.mxu0 0.0
        %5154 = vmatprep.subr.mxu0 0.0
        %5155 = vmatpush1.msra.mxu0 %v5129
        %5156 = vmatprep.subr.mxu0 0.0
        %5157 = vmatpush1.msra.mxu0 %v5128
        %5158 = vmatprep.subr.mxu0 0.0
        %5159 = vmatpush1.msra.mxu0 %v5127
        %5160 = vmatprep.subr.mxu0 0.0
        %5161 = vmatpush1.msra.mxu0 %v5126
        %5162 = vmatprep.subr.mxu0 0.0
        %5163 = vmatpush2.msra.mxu0 0.0
        %5164 = vmatprep.subr.mxu0 0.0
        %5165 = vmatpush2.msra.mxu0 0.0
        %5166 = vmatprep.subr.mxu0 0.0
        %5167 = vmatpush2.msra.mxu0 0.0
        %5168 = vmatprep.subr.mxu0 0.0
        %5169 = vmatpush2.msra.mxu0 0.0
        %5170 = vmatprep.subr.mxu0 0.0
        %5171 = vmatpush2.msra.mxu0 0.0
        %5172 = vmatprep.subr.mxu0 0.0
        %5173 = vmatpush2.msra.mxu0 0.0
        %5174 = vmatprep.subr.mxu0 0.0
        %5175 = vmatpush2.msra.mxu0 0.0
        %5176 = vmatprep.subr.mxu0 0.0
        %5177 = vmatpush2.msra.mxu0 0.0
        %5178 = vmatprep.subr.mxu0 0.0
        %5179 = vmatpush2.msra.mxu0 0.0
        %5180 = vmatprep.subr.mxu0 0.0
        %5181 = vmatpush2.msra.mxu0 0.0
        %5182 = vmatprep.subr.mxu0 0.0
        %5183 = vmatpush2.msra.mxu0 0.0
        %5184 = vmatprep.subr.mxu0 0.0
        %5185 = vmatpush2.msra.mxu0 0.0
        %5186 = vmatprep.subr.mxu0 0.0
        %5187 = vmatpush2.msra.mxu0 0.0
        %5188 = vmatprep.subr.mxu0 0.0
        %5189 = vmatpush2.msra.mxu0 0.0
        %5190 = vmatprep.subr.mxu0 0.0
        %5191 = vmatpush2.msra.mxu0 0.0
        %5192 = vmatprep.subr.mxu0 0.0
        %5193 = vmatpush2.msra.mxu0 0.0
        %5194 = vmatprep.mubr.f32.mxu0 0.0
        %5195 = vmatmul.mubr.f32.gmra.mxu0 %v4825
        %v5196 = vpop.f32.mrf.mxu0
        %v5197 = vadd.f32 0.0, %v5196
        %v5198 = vpop.f32.mrf.mxu0
        %5199 = vmatprep.mubr.f32.mxu0 0.0
        %5200 = vmatmul.mubr.f32.gmra.mxu0 %v4828
        %v5201 = vpop.f32.mrf.mxu0
        %v5202 = vadd.f32 0.0, %v5201
        %v5203 = vpop.f32.mrf.mxu0
        %5204 = vmatprep.mubr.f32.mxu0 0.0
        %5205 = vmatmul.mubr.f32.gmra.mxu0 %v4831
        %v5206 = vpop.f32.mrf.mxu0
        %v5207 = vadd.f32 0.0, %v5206
        %v5208 = vpop.f32.mrf.mxu0
        %5209 = vmatprep.mubr.f32.mxu0 0.0
        %5210 = vmatmul.mubr.f32.gmra.mxu0 %v4834
        %v5211 = vpop.f32.mrf.mxu0
        %v5212 = vadd.f32 0.0, %v5211
        %v5213 = vpop.f32.mrf.mxu0
        %5214 = vmatprep.mubr.f32.mxu0 0.0
        %5215 = vmatmul.mubr.f32.gmra.mxu0 %v4837
        %v5216 = vpop.f32.mrf.mxu0
        %v5217 = vadd.f32 0.0, %v5216
        %v5218 = vpop.f32.mrf.mxu0
        %5219 = vmatprep.mubr.f32.mxu0 0.0
        %5220 = vmatmul.mubr.f32.gmra.mxu0 %v4840
        %v5221 = vpop.f32.mrf.mxu0
        %v5222 = vadd.f32 0.0, %v5221
        %v5223 = vpop.f32.mrf.mxu0
        %5224 = vmatprep.mubr.f32.mxu0 0.0
        %5225 = vmatmul.mubr.f32.gmra.mxu0 %v4843
        %v5226 = vpop.f32.mrf.mxu0
        %v5227 = vadd.f32 0.0, %v5226
        %v5228 = vpop.f32.mrf.mxu0
        %5229 = vmatprep.mubr.f32.mxu0 0.0
        %5230 = vmatmul.mubr.f32.gmra.mxu0 %v4846
        %v5231 = vpop.f32.mrf.mxu0
        %v5232 = vadd.f32 0.0, %v5231
        %v5233 = vpop.f32.mrf.mxu0
        %5234 = vdwg.mxu0
        %s5235 = scalar_lea.vmem %s55, 2
        %v5236 = vld [vmem:[%s5235] sm:$0x1]
        %v5238 = vlaneseq
        %v5239 = vshrl.u32 %v5238, 7
        %v5240 = vsub.s32 0, %v5239
        %v5241 = vrot.slane %v5236, %v5240
        %v5243 = vmul.f32 %v5197, %v5241
        %v5244 = vmul.f32 %v5202, %v5241
        %v5245 = vmul.f32 %v5207, %v5241
        %v5246 = vmul.f32 %v5212, %v5241
        %v5247 = vmul.f32 %v5217, %v5241
        %v5248 = vmul.f32 %v5222, %v5241
        %v5249 = vmul.f32 %v5227, %v5241
        %v5250 = vmul.f32 %v5232, %v5241
        %s5251 = scalar_lea.vmem %s57, 2
        %v5252 = vld [vmem:[%s5251] sm:$0x1]
        %v5254 = vlaneseq
        %v5255 = vshrl.u32 %v5254, 7
        %v5256 = vsub.s32 0, %v5255
        %v5257 = vrot.slane %v5252, %v5256
        %v5259 = vadd.f32 %v5243, %v5257
        %v5260 = vadd.f32 %v5244, %v5257
        %v5261 = vadd.f32 %v5245, %v5257
        %v5262 = vadd.f32 %v5246, %v5257
        %v5263 = vadd.f32 %v5247, %v5257
        %v5264 = vadd.f32 %v5248, %v5257
        %v5265 = vadd.f32 %v5249, %v5257
        %v5266 = vadd.f32 %v5250, %v5257
        %s5267 = scalar_lea.vmem %s53, 96
        %v5268 = vld [vmem:[%s5267] sm:$0xff]
        %v5269 = vld [vmem:[%s5267 + $0x8] sm:$0xff]
        %v5270 = vld [vmem:[%s5267 + $0x10] sm:$0xff]
        %v5271 = vld [vmem:[%s5267 + $0x18] sm:$0xff]
        %5272 = vmatprep.subr.mxu0 0.0
        %5273 = vmatpush1.msra.mxu0 0.0
        %5274 = vmatprep.subr.mxu0 0.0
        %5275 = vmatpush1.msra.mxu0 0.0
        %5276 = vmatprep.subr.mxu0 0.0
        %5277 = vmatpush1.msra.mxu0 0.0
        %5278 = vmatprep.subr.mxu0 0.0
        %5279 = vmatpush1.msra.mxu0 0.0
        %5280 = vmatprep.subr.mxu0 0.0
        %5281 = vmatpush1.msra.mxu0 0.0
        %5282 = vmatprep.subr.mxu0 0.0
        %5283 = vmatpush1.msra.mxu0 0.0
        %5284 = vmatprep.subr.mxu0 0.0
        %5285 = vmatpush1.msra.mxu0 0.0
        %5286 = vmatprep.subr.mxu0 0.0
        %5287 = vmatpush1.msra.mxu0 0.0
        %5288 = vmatprep.subr.mxu0 0.0
        %5289 = vmatpush1.msra.mxu0 0.0
        %5290 = vmatprep.subr.mxu0 0.0
        %5291 = vmatpush1.msra.mxu0 0.0
        %5292 = vmatprep.subr.mxu0 0.0
        %5293 = vmatpush1.msra.mxu0 0.0
        %5294 = vmatprep.subr.mxu0 0.0
        %5295 = vmatpush1.msra.mxu0 0.0
        %5296 = vmatprep.subr.mxu0 0.0
        %5297 = vmatpush1.msra.mxu0 %v5271
        %5298 = vmatprep.subr.mxu0 0.0
        %5299 = vmatpush1.msra.mxu0 %v5270
        %5300 = vmatprep.subr.mxu0 0.0
        %5301 = vmatpush1.msra.mxu0 %v5269
        %5302 = vmatprep.subr.mxu0 0.0
        %5303 = vmatpush1.msra.mxu0 %v5268
        %5304 = vmatprep.subr.mxu0 0.0
        %5305 = vmatpush2.msra.mxu0 0.0
        %5306 = vmatprep.subr.mxu0 0.0
        %5307 = vmatpush2.msra.mxu0 0.0
        %5308 = vmatprep.subr.mxu0 0.0
        %5309 = vmatpush2.msra.mxu0 0.0
        %5310 = vmatprep.subr.mxu0 0.0
        %5311 = vmatpush2.msra.mxu0 0.0
        %5312 = vmatprep.subr.mxu0 0.0
        %5313 = vmatpush2.msra.mxu0 0.0
        %5314 = vmatprep.subr.mxu0 0.0
        %5315 = vmatpush2.msra.mxu0 0.0
        %5316 = vmatprep.subr.mxu0 0.0
        %5317 = vmatpush2.msra.mxu0 0.0
        %5318 = vmatprep.subr.mxu0 0.0
        %5319 = vmatpush2.msra.mxu0 0.0
        %5320 = vmatprep.subr.mxu0 0.0
        %5321 = vmatpush2.msra.mxu0 0.0
        %5322 = vmatprep.subr.mxu0 0.0
        %5323 = vmatpush2.msra.mxu0 0.0
        %5324 = vmatprep.subr.mxu0 0.0
        %5325 = vmatpush2.msra.mxu0 0.0
        %5326 = vmatprep.subr.mxu0 0.0
        %5327 = vmatpush2.msra.mxu0 0.0
        %5328 = vmatprep.subr.mxu0 0.0
        %5329 = vmatpush2.msra.mxu0 0.0
        %5330 = vmatprep.subr.mxu0 0.0
        %5331 = vmatpush2.msra.mxu0 0.0
        %5332 = vmatprep.subr.mxu0 0.0
        %5333 = vmatpush2.msra.mxu0 0.0
        %5334 = vmatprep.subr.mxu0 0.0
        %5335 = vmatpush2.msra.mxu0 0.0
        %5336 = vmatprep.mubr.f32.mxu0 0.0
        %5337 = vmatmul.mubr.f32.gmra.mxu0 %v4825
        %v5338 = vpop.f32.mrf.mxu0
        %v5339 = vadd.f32 0.0, %v5338
        %v5340 = vpop.f32.mrf.mxu0
        %5341 = vmatprep.mubr.f32.mxu0 0.0
        %5342 = vmatmul.mubr.f32.gmra.mxu0 %v4828
        %v5343 = vpop.f32.mrf.mxu0
        %v5344 = vadd.f32 0.0, %v5343
        %v5345 = vpop.f32.mrf.mxu0
        %5346 = vmatprep.mubr.f32.mxu0 0.0
        %5347 = vmatmul.mubr.f32.gmra.mxu0 %v4831
        %v5348 = vpop.f32.mrf.mxu0
        %v5349 = vadd.f32 0.0, %v5348
        %v5350 = vpop.f32.mrf.mxu0
        %5351 = vmatprep.mubr.f32.mxu0 0.0
        %5352 = vmatmul.mubr.f32.gmra.mxu0 %v4834
        %v5353 = vpop.f32.mrf.mxu0
        %v5354 = vadd.f32 0.0, %v5353
        %v5355 = vpop.f32.mrf.mxu0
        %5356 = vmatprep.mubr.f32.mxu0 0.0
        %5357 = vmatmul.mubr.f32.gmra.mxu0 %v4837
        %v5358 = vpop.f32.mrf.mxu0
        %v5359 = vadd.f32 0.0, %v5358
        %v5360 = vpop.f32.mrf.mxu0
        %5361 = vmatprep.mubr.f32.mxu0 0.0
        %5362 = vmatmul.mubr.f32.gmra.mxu0 %v4840
        %v5363 = vpop.f32.mrf.mxu0
        %v5364 = vadd.f32 0.0, %v5363
        %v5365 = vpop.f32.mrf.mxu0
        %5366 = vmatprep.mubr.f32.mxu0 0.0
        %5367 = vmatmul.mubr.f32.gmra.mxu0 %v4843
        %v5368 = vpop.f32.mrf.mxu0
        %v5369 = vadd.f32 0.0, %v5368
        %v5370 = vpop.f32.mrf.mxu0
        %5371 = vmatprep.mubr.f32.mxu0 0.0
        %5372 = vmatmul.mubr.f32.gmra.mxu0 %v4846
        %v5373 = vpop.f32.mrf.mxu0
        %v5374 = vadd.f32 0.0, %v5373
        %v5375 = vpop.f32.mrf.mxu0
        %5376 = vdwg.mxu0
        %s5377 = scalar_lea.vmem %s55, 3
        %v5378 = vld [vmem:[%s5377] sm:$0x1]
        %v5380 = vlaneseq
        %v5381 = vshrl.u32 %v5380, 7
        %v5382 = vsub.s32 0, %v5381
        %v5383 = vrot.slane %v5378, %v5382
        %v5385 = vmul.f32 %v5339, %v5383
        %v5386 = vmul.f32 %v5344, %v5383
        %v5387 = vmul.f32 %v5349, %v5383
        %v5388 = vmul.f32 %v5354, %v5383
        %v5389 = vmul.f32 %v5359, %v5383
        %v5390 = vmul.f32 %v5364, %v5383
        %v5391 = vmul.f32 %v5369, %v5383
        %v5392 = vmul.f32 %v5374, %v5383
        %s5393 = scalar_lea.vmem %s57, 3
        %v5394 = vld [vmem:[%s5393] sm:$0x1]
        %v5396 = vlaneseq
        %v5397 = vshrl.u32 %v5396, 7
        %v5398 = vsub.s32 0, %v5397
        %v5399 = vrot.slane %v5394, %v5398
        %v5401 = vadd.f32 %v5385, %v5399
        %v5402 = vadd.f32 %v5386, %v5399
        %v5403 = vadd.f32 %v5387, %v5399
        %v5404 = vadd.f32 %v5388, %v5399
        %v5405 = vadd.f32 %v5389, %v5399
        %v5406 = vadd.f32 %v5390, %v5399
        %v5407 = vadd.f32 %v5391, %v5399
        %v5408 = vadd.f32 %v5392, %v5399
        %s5409 = scalar_lea.vmem %s53, 128
        %v5410 = vld [vmem:[%s5409] sm:$0xff]
        %v5411 = vld [vmem:[%s5409 + $0x8] sm:$0xff]
        %v5412 = vld [vmem:[%s5409 + $0x10] sm:$0xff]
        %v5413 = vld [vmem:[%s5409 + $0x18] sm:$0xff]
        %5414 = vmatprep.subr.mxu0 0.0
        %5415 = vmatpush1.msra.mxu0 0.0
        %5416 = vmatprep.subr.mxu0 0.0
        %5417 = vmatpush1.msra.mxu0 0.0
        %5418 = vmatprep.subr.mxu0 0.0
        %5419 = vmatpush1.msra.mxu0 0.0
        %5420 = vmatprep.subr.mxu0 0.0
        %5421 = vmatpush1.msra.mxu0 0.0
        %5422 = vmatprep.subr.mxu0 0.0
        %5423 = vmatpush1.msra.mxu0 0.0
        %5424 = vmatprep.subr.mxu0 0.0
        %5425 = vmatpush1.msra.mxu0 0.0
        %5426 = vmatprep.subr.mxu0 0.0
        %5427 = vmatpush1.msra.mxu0 0.0
        %5428 = vmatprep.subr.mxu0 0.0
        %5429 = vmatpush1.msra.mxu0 0.0
        %5430 = vmatprep.subr.mxu0 0.0
        %5431 = vmatpush1.msra.mxu0 0.0
        %5432 = vmatprep.subr.mxu0 0.0
        %5433 = vmatpush1.msra.mxu0 0.0
        %5434 = vmatprep.subr.mxu0 0.0
        %5435 = vmatpush1.msra.mxu0 0.0
        %5436 = vmatprep.subr.mxu0 0.0
        %5437 = vmatpush1.msra.mxu0 0.0
        %5438 = vmatprep.subr.mxu0 0.0
        %5439 = vmatpush1.msra.mxu0 %v5413
        %5440 = vmatprep.subr.mxu0 0.0
        %5441 = vmatpush1.msra.mxu0 %v5412
        %5442 = vmatprep.subr.mxu0 0.0
        %5443 = vmatpush1.msra.mxu0 %v5411
        %5444 = vmatprep.subr.mxu0 0.0
        %5445 = vmatpush1.msra.mxu0 %v5410
        %5446 = vmatprep.subr.mxu0 0.0
        %5447 = vmatpush2.msra.mxu0 0.0
        %5448 = vmatprep.subr.mxu0 0.0
        %5449 = vmatpush2.msra.mxu0 0.0
        %5450 = vmatprep.subr.mxu0 0.0
        %5451 = vmatpush2.msra.mxu0 0.0
        %5452 = vmatprep.subr.mxu0 0.0
        %5453 = vmatpush2.msra.mxu0 0.0
        %5454 = vmatprep.subr.mxu0 0.0
        %5455 = vmatpush2.msra.mxu0 0.0
        %5456 = vmatprep.subr.mxu0 0.0
        %5457 = vmatpush2.msra.mxu0 0.0
        %5458 = vmatprep.subr.mxu0 0.0
        %5459 = vmatpush2.msra.mxu0 0.0
        %5460 = vmatprep.subr.mxu0 0.0
        %5461 = vmatpush2.msra.mxu0 0.0
        %5462 = vmatprep.subr.mxu0 0.0
        %5463 = vmatpush2.msra.mxu0 0.0
        %5464 = vmatprep.subr.mxu0 0.0
        %5465 = vmatpush2.msra.mxu0 0.0
        %5466 = vmatprep.subr.mxu0 0.0
        %5467 = vmatpush2.msra.mxu0 0.0
        %5468 = vmatprep.subr.mxu0 0.0
        %5469 = vmatpush2.msra.mxu0 0.0
        %5470 = vmatprep.subr.mxu0 0.0
        %5471 = vmatpush2.msra.mxu0 0.0
        %5472 = vmatprep.subr.mxu0 0.0
        %5473 = vmatpush2.msra.mxu0 0.0
        %5474 = vmatprep.subr.mxu0 0.0
        %5475 = vmatpush2.msra.mxu0 0.0
        %5476 = vmatprep.subr.mxu0 0.0
        %5477 = vmatpush2.msra.mxu0 0.0
        %5478 = vmatprep.mubr.f32.mxu0 0.0
        %5479 = vmatmul.mubr.f32.gmra.mxu0 %v4825
        %v5480 = vpop.f32.mrf.mxu0
        %v5481 = vadd.f32 0.0, %v5480
        %v5482 = vpop.f32.mrf.mxu0
        %5483 = vmatprep.mubr.f32.mxu0 0.0
        %5484 = vmatmul.mubr.f32.gmra.mxu0 %v4828
        %v5485 = vpop.f32.mrf.mxu0
        %v5486 = vadd.f32 0.0, %v5485
        %v5487 = vpop.f32.mrf.mxu0
        %5488 = vmatprep.mubr.f32.mxu0 0.0
        %5489 = vmatmul.mubr.f32.gmra.mxu0 %v4831
        %v5490 = vpop.f32.mrf.mxu0
        %v5491 = vadd.f32 0.0, %v5490
        %v5492 = vpop.f32.mrf.mxu0
        %5493 = vmatprep.mubr.f32.mxu0 0.0
        %5494 = vmatmul.mubr.f32.gmra.mxu0 %v4834
        %v5495 = vpop.f32.mrf.mxu0
        %v5496 = vadd.f32 0.0, %v5495
        %v5497 = vpop.f32.mrf.mxu0
        %5498 = vmatprep.mubr.f32.mxu0 0.0
        %5499 = vmatmul.mubr.f32.gmra.mxu0 %v4837
        %v5500 = vpop.f32.mrf.mxu0
        %v5501 = vadd.f32 0.0, %v5500
        %v5502 = vpop.f32.mrf.mxu0
        %5503 = vmatprep.mubr.f32.mxu0 0.0
        %5504 = vmatmul.mubr.f32.gmra.mxu0 %v4840
        %v5505 = vpop.f32.mrf.mxu0
        %v5506 = vadd.f32 0.0, %v5505
        %v5507 = vpop.f32.mrf.mxu0
        %5508 = vmatprep.mubr.f32.mxu0 0.0
        %5509 = vmatmul.mubr.f32.gmra.mxu0 %v4843
        %v5510 = vpop.f32.mrf.mxu0
        %v5511 = vadd.f32 0.0, %v5510
        %v5512 = vpop.f32.mrf.mxu0
        %5513 = vmatprep.mubr.f32.mxu0 0.0
        %5514 = vmatmul.mubr.f32.gmra.mxu0 %v4846
        %v5515 = vpop.f32.mrf.mxu0
        %v5516 = vadd.f32 0.0, %v5515
        %v5517 = vpop.f32.mrf.mxu0
        %5518 = vdwg.mxu0
        %s5519 = scalar_lea.vmem %s55, 4
        %v5520 = vld [vmem:[%s5519] sm:$0x1]
        %v5522 = vlaneseq
        %v5523 = vshrl.u32 %v5522, 7
        %v5524 = vsub.s32 0, %v5523
        %v5525 = vrot.slane %v5520, %v5524
        %v5527 = vmul.f32 %v5481, %v5525
        %v5528 = vmul.f32 %v5486, %v5525
        %v5529 = vmul.f32 %v5491, %v5525
        %v5530 = vmul.f32 %v5496, %v5525
        %v5531 = vmul.f32 %v5501, %v5525
        %v5532 = vmul.f32 %v5506, %v5525
        %v5533 = vmul.f32 %v5511, %v5525
        %v5534 = vmul.f32 %v5516, %v5525
        %s5535 = scalar_lea.vmem %s57, 4
        %v5536 = vld [vmem:[%s5535] sm:$0x1]
        %v5538 = vlaneseq
        %v5539 = vshrl.u32 %v5538, 7
        %v5540 = vsub.s32 0, %v5539
        %v5541 = vrot.slane %v5536, %v5540
        %v5543 = vadd.f32 %v5527, %v5541
        %v5544 = vadd.f32 %v5528, %v5541
        %v5545 = vadd.f32 %v5529, %v5541
        %v5546 = vadd.f32 %v5530, %v5541
        %v5547 = vadd.f32 %v5531, %v5541
        %v5548 = vadd.f32 %v5532, %v5541
        %v5549 = vadd.f32 %v5533, %v5541
        %v5550 = vadd.f32 %v5534, %v5541
        %v5551 = vmax.f32 %v4975, %v5117
        %v5552 = vmax.f32 %v4976, %v5118
        %v5553 = vmax.f32 %v4977, %v5119
        %v5554 = vmax.f32 %v4978, %v5120
        %v5555 = vmax.f32 %v4979, %v5121
        %v5556 = vmax.f32 %v4980, %v5122
        %v5557 = vmax.f32 %v4981, %v5123
        %v5558 = vmax.f32 %v4982, %v5124
        %v5559 = vmax.f32 %v5551, %v5259
        %v5560 = vmax.f32 %v5552, %v5260
        %v5561 = vmax.f32 %v5553, %v5261
        %v5562 = vmax.f32 %v5554, %v5262
        %v5563 = vmax.f32 %v5555, %v5263
        %v5564 = vmax.f32 %v5556, %v5264
        %v5565 = vmax.f32 %v5557, %v5265
        %v5566 = vmax.f32 %v5558, %v5266
        %v5567 = vmax.f32 %v5559, %v5401
        %v5568 = vmax.f32 %v5560, %v5402
        %v5569 = vmax.f32 %v5561, %v5403
        %v5570 = vmax.f32 %v5562, %v5404
        %v5571 = vmax.f32 %v5563, %v5405
        %v5572 = vmax.f32 %v5564, %v5406
        %v5573 = vmax.f32 %v5565, %v5407
        %v5574 = vmax.f32 %v5566, %v5408
        %v5575 = vmax.f32 %v5567, %v5543
        %v5576 = vmax.f32 %v5568, %v5544
        %v5577 = vmax.f32 %v5569, %v5545
        %v5578 = vmax.f32 %v5570, %v5546
        %v5579 = vmax.f32 %v5571, %v5547
        %v5580 = vmax.f32 %v5572, %v5548
        %v5581 = vmax.f32 %v5573, %v5549
        %v5582 = vmax.f32 %v5574, %v5550
        %v5583 = vsub.f32 %v4975, %v5575
        %v5584 = vsub.f32 %v4976, %v5576
        %v5585 = vsub.f32 %v4977, %v5577
        %v5586 = vsub.f32 %v4978, %v5578
        %v5587 = vsub.f32 %v4979, %v5579
        %v5588 = vsub.f32 %v4980, %v5580
        %v5589 = vsub.f32 %v4981, %v5581
        %v5590 = vsub.f32 %v4982, %v5582
        %v5591 = vmul.f32 %v5583, 1.442695
        %v5592 = vpow.pop %v5591
        %v5593 = vmul.f32 %v5584, 1.442695
        %v5594 = vpow.pop %v5593
        %v5595 = vmul.f32 %v5585, 1.442695
        %v5596 = vpow.pop %v5595
        %v5597 = vmul.f32 %v5586, 1.442695
        %v5598 = vpow.pop %v5597
        %v5599 = vmul.f32 %v5587, 1.442695
        %v5600 = vpow.pop %v5599
        %v5601 = vmul.f32 %v5588, 1.442695
        %v5602 = vpow.pop %v5601
        %v5603 = vmul.f32 %v5589, 1.442695
        %v5604 = vpow.pop %v5603
        %v5605 = vmul.f32 %v5590, 1.442695
        %v5606 = vpow.pop %v5605
        %v5607 = vsub.f32 %v5117, %v5575
        %v5608 = vsub.f32 %v5118, %v5576
        %v5609 = vsub.f32 %v5119, %v5577
        %v5610 = vsub.f32 %v5120, %v5578
        %v5611 = vsub.f32 %v5121, %v5579
        %v5612 = vsub.f32 %v5122, %v5580
        %v5613 = vsub.f32 %v5123, %v5581
        %v5614 = vsub.f32 %v5124, %v5582
        %v5615 = vmul.f32 %v5607, 1.442695
        %v5616 = vpow.pop %v5615
        %v5617 = vmul.f32 %v5608, 1.442695
        %v5618 = vpow.pop %v5617
        %v5619 = vmul.f32 %v5609, 1.442695
        %v5620 = vpow.pop %v5619
        %v5621 = vmul.f32 %v5610, 1.442695
        %v5622 = vpow.pop %v5621
        %v5623 = vmul.f32 %v5611, 1.442695
        %v5624 = vpow.pop %v5623
        %v5625 = vmul.f32 %v5612, 1.442695
        %v5626 = vpow.pop %v5625
        %v5627 = vmul.f32 %v5613, 1.442695
        %v5628 = vpow.pop %v5627
        %v5629 = vmul.f32 %v5614, 1.442695
        %v5630 = vpow.pop %v5629
        %v5631 = vsub.f32 %v5259, %v5575
        %v5632 = vsub.f32 %v5260, %v5576
        %v5633 = vsub.f32 %v5261, %v5577
        %v5634 = vsub.f32 %v5262, %v5578
        %v5635 = vsub.f32 %v5263, %v5579
        %v5636 = vsub.f32 %v5264, %v5580
        %v5637 = vsub.f32 %v5265, %v5581
        %v5638 = vsub.f32 %v5266, %v5582
        %v5639 = vmul.f32 %v5631, 1.442695
        %v5640 = vpow.pop %v5639
        %v5641 = vmul.f32 %v5632, 1.442695
        %v5642 = vpow.pop %v5641
        %v5643 = vmul.f32 %v5633, 1.442695
        %v5644 = vpow.pop %v5643
        %v5645 = vmul.f32 %v5634, 1.442695
        %v5646 = vpow.pop %v5645
        %v5647 = vmul.f32 %v5635, 1.442695
        %v5648 = vpow.pop %v5647
        %v5649 = vmul.f32 %v5636, 1.442695
        %v5650 = vpow.pop %v5649
        %v5651 = vmul.f32 %v5637, 1.442695
        %v5652 = vpow.pop %v5651
        %v5653 = vmul.f32 %v5638, 1.442695
        %v5654 = vpow.pop %v5653
        %v5655 = vsub.f32 %v5401, %v5575
        %v5656 = vsub.f32 %v5402, %v5576
        %v5657 = vsub.f32 %v5403, %v5577
        %v5658 = vsub.f32 %v5404, %v5578
        %v5659 = vsub.f32 %v5405, %v5579
        %v5660 = vsub.f32 %v5406, %v5580
        %v5661 = vsub.f32 %v5407, %v5581
        %v5662 = vsub.f32 %v5408, %v5582
        %v5663 = vmul.f32 %v5655, 1.442695
        %v5664 = vpow.pop %v5663
        %v5665 = vmul.f32 %v5656, 1.442695
        %v5666 = vpow.pop %v5665
        %v5667 = vmul.f32 %v5657, 1.442695
        %v5668 = vpow.pop %v5667
        %v5669 = vmul.f32 %v5658, 1.442695
        %v5670 = vpow.pop %v5669
        %v5671 = vmul.f32 %v5659, 1.442695
        %v5672 = vpow.pop %v5671
        %v5673 = vmul.f32 %v5660, 1.442695
        %v5674 = vpow.pop %v5673
        %v5675 = vmul.f32 %v5661, 1.442695
        %v5676 = vpow.pop %v5675
        %v5677 = vmul.f32 %v5662, 1.442695
        %v5678 = vpow.pop %v5677
        %v5679 = vsub.f32 %v5543, %v5575
        %v5680 = vsub.f32 %v5544, %v5576
        %v5681 = vsub.f32 %v5545, %v5577
        %v5682 = vsub.f32 %v5546, %v5578
        %v5683 = vsub.f32 %v5547, %v5579
        %v5684 = vsub.f32 %v5548, %v5580
        %v5685 = vsub.f32 %v5549, %v5581
        %v5686 = vsub.f32 %v5550, %v5582
        %v5687 = vmul.f32 %v5679, 1.442695
        %v5688 = vpow.pop %v5687
        %v5689 = vmul.f32 %v5680, 1.442695
        %v5690 = vpow.pop %v5689
        %v5691 = vmul.f32 %v5681, 1.442695
        %v5692 = vpow.pop %v5691
        %v5693 = vmul.f32 %v5682, 1.442695
        %v5694 = vpow.pop %v5693
        %v5695 = vmul.f32 %v5683, 1.442695
        %v5696 = vpow.pop %v5695
        %v5697 = vmul.f32 %v5684, 1.442695
        %v5698 = vpow.pop %v5697
        %v5699 = vmul.f32 %v5685, 1.442695
        %v5700 = vpow.pop %v5699
        %v5701 = vmul.f32 %v5686, 1.442695
        %v5702 = vpow.pop %v5701
        %v5703 = vadd.f32 %v5592, %v5616
        %v5704 = vadd.f32 %v5594, %v5618
        %v5705 = vadd.f32 %v5596, %v5620
        %v5706 = vadd.f32 %v5598, %v5622
        %v5707 = vadd.f32 %v5600, %v5624
        %v5708 = vadd.f32 %v5602, %v5626
        %v5709 = vadd.f32 %v5604, %v5628
        %v5710 = vadd.f32 %v5606, %v5630
        %v5711 = vadd.f32 %v5703, %v5640
        %v5712 = vadd.f32 %v5704, %v5642
        %v5713 = vadd.f32 %v5705, %v5644
        %v5714 = vadd.f32 %v5706, %v5646
        %v5715 = vadd.f32 %v5707, %v5648
        %v5716 = vadd.f32 %v5708, %v5650
        %v5717 = vadd.f32 %v5709, %v5652
        %v5718 = vadd.f32 %v5710, %v5654
        %v5719 = vadd.f32 %v5711, %v5664
        %v5720 = vadd.f32 %v5712, %v5666
        %v5721 = vadd.f32 %v5713, %v5668
        %v5722 = vadd.f32 %v5714, %v5670
        %v5723 = vadd.f32 %v5715, %v5672
        %v5724 = vadd.f32 %v5716, %v5674
        %v5725 = vadd.f32 %v5717, %v5676
        %v5726 = vadd.f32 %v5718, %v5678
        %v5727 = vadd.f32 %v5719, %v5688
        %v5728 = vadd.f32 %v5720, %v5690
        %v5729 = vadd.f32 %v5721, %v5692
        %v5730 = vadd.f32 %v5722, %v5694
        %v5731 = vadd.f32 %v5723, %v5696
        %v5732 = vadd.f32 %v5724, %v5698
        %v5733 = vadd.f32 %v5725, %v5700
        %v5734 = vadd.f32 %v5726, %v5702
        %v5735 = vmul.f32 %v5592, %v2150
        %v5736 = vmul.f32 %v5594, %v2151
        %v5737 = vmul.f32 %v5596, %v2152
        %v5738 = vmul.f32 %v5598, %v2153
        %v5739 = vmul.f32 %v5600, %v2154
        %v5740 = vmul.f32 %v5602, %v2155
        %v5741 = vmul.f32 %v5604, %v2156
        %v5742 = vmul.f32 %v5606, %v2157
        %v5743 = vmul.f32 %v5616, %v2718
        %v5744 = vmul.f32 %v5618, %v2719
        %v5745 = vmul.f32 %v5620, %v2720
        %v5746 = vmul.f32 %v5622, %v2721
        %v5747 = vmul.f32 %v5624, %v2722
        %v5748 = vmul.f32 %v5626, %v2723
        %v5749 = vmul.f32 %v5628, %v2724
        %v5750 = vmul.f32 %v5630, %v2725
        %v5751 = vadd.f32 %v5735, %v5743
        %v5752 = vadd.f32 %v5736, %v5744
        %v5753 = vadd.f32 %v5737, %v5745
        %v5754 = vadd.f32 %v5738, %v5746
        %v5755 = vadd.f32 %v5739, %v5747
        %v5756 = vadd.f32 %v5740, %v5748
        %v5757 = vadd.f32 %v5741, %v5749
        %v5758 = vadd.f32 %v5742, %v5750
        %v5759 = vmul.f32 %v5640, %v3292
        %v5760 = vmul.f32 %v5642, %v3293
        %v5761 = vmul.f32 %v5644, %v3294
        %v5762 = vmul.f32 %v5646, %v3295
        %v5763 = vmul.f32 %v5648, %v3296
        %v5764 = vmul.f32 %v5650, %v3297
        %v5765 = vmul.f32 %v5652, %v3298
        %v5766 = vmul.f32 %v5654, %v3299
        %v5767 = vadd.f32 %v5751, %v5759
        %v5768 = vadd.f32 %v5752, %v5760
        %v5769 = vadd.f32 %v5753, %v5761
        %v5770 = vadd.f32 %v5754, %v5762
        %v5771 = vadd.f32 %v5755, %v5763
        %v5772 = vadd.f32 %v5756, %v5764
        %v5773 = vadd.f32 %v5757, %v5765
        %v5774 = vadd.f32 %v5758, %v5766
        %v5775 = vmul.f32 %v5664, %v3866
        %v5776 = vmul.f32 %v5666, %v3867
        %v5777 = vmul.f32 %v5668, %v3868
        %v5778 = vmul.f32 %v5670, %v3869
        %v5779 = vmul.f32 %v5672, %v3870
        %v5780 = vmul.f32 %v5674, %v3871
        %v5781 = vmul.f32 %v5676, %v3872
        %v5782 = vmul.f32 %v5678, %v3873
        %v5783 = vadd.f32 %v5767, %v5775
        %v5784 = vadd.f32 %v5768, %v5776
        %v5785 = vadd.f32 %v5769, %v5777
        %v5786 = vadd.f32 %v5770, %v5778
        %v5787 = vadd.f32 %v5771, %v5779
        %v5788 = vadd.f32 %v5772, %v5780
        %v5789 = vadd.f32 %v5773, %v5781
        %v5790 = vadd.f32 %v5774, %v5782
        %v5791 = vmul.f32 %v5688, %v4440
        %v5792 = vmul.f32 %v5690, %v4441
        %v5793 = vmul.f32 %v5692, %v4442
        %v5794 = vmul.f32 %v5694, %v4443
        %v5795 = vmul.f32 %v5696, %v4444
        %v5796 = vmul.f32 %v5698, %v4445
        %v5797 = vmul.f32 %v5700, %v4446
        %v5798 = vmul.f32 %v5702, %v4447
        %v5799 = vadd.f32 %v5783, %v5791
        %v5800 = vadd.f32 %v5784, %v5792
        %v5801 = vadd.f32 %v5785, %v5793
        %v5802 = vadd.f32 %v5786, %v5794
        %v5803 = vadd.f32 %v5787, %v5795
        %v5804 = vadd.f32 %v5788, %v5796
        %v5805 = vadd.f32 %v5789, %v5797
        %v5806 = vadd.f32 %v5790, %v5798
        %v5807 = vrcp.pop %v5727
        %v5808 = vmul.f32 %v5799, %v5807
        %v5809 = vrcp.pop %v5728
        %v5810 = vmul.f32 %v5800, %v5809
        %v5811 = vrcp.pop %v5729
        %v5812 = vmul.f32 %v5801, %v5811
        %v5813 = vrcp.pop %v5730
        %v5814 = vmul.f32 %v5802, %v5813
        %v5815 = vrcp.pop %v5731
        %v5816 = vmul.f32 %v5803, %v5815
        %v5817 = vrcp.pop %v5732
        %v5818 = vmul.f32 %v5804, %v5817
        %v5819 = vrcp.pop %v5733
        %v5820 = vmul.f32 %v5805, %v5819
        %v5821 = vrcp.pop %v5734
        %v5822 = vmul.f32 %v5806, %v5821
        %v5823 = vmul.f32 %v5808, %v2031
        %v5824 = vmul.f32 %v5810, %v2036
        %v5825 = vmul.f32 %v5812, %v2041
        %v5826 = vmul.f32 %v5814, %v2046
        %v5827 = vmul.f32 %v5816, %v2051
        %v5828 = vmul.f32 %v5818, %v2056
        %v5829 = vmul.f32 %v5820, %v2061
        %v5830 = vmul.f32 %v5822, %v2066
        %5831 = vst.msk [vmem:[%s936] sm:$0xff] %vm1304, %v5823
        %5832 = vst.msk [vmem:[%s936 + $0x8] sm:$0xff] %vm1304, %v5824
        %5833 = vst.msk [vmem:[%s936 + $0x10] sm:$0xff] %vm1304, %v5825
        %5834 = vst.msk [vmem:[%s936 + $0x18] sm:$0xff] %vm1304, %v5826
        %5835 = vst.msk [vmem:[%s936 + $0x20] sm:$0xff] %vm1304, %v5827
        %5836 = vst.msk [vmem:[%s936 + $0x28] sm:$0xff] %vm1304, %v5828
        %5837 = vst.msk [vmem:[%s936 + $0x30] sm:$0xff] %vm1304, %v5829
        %5838 = vst.msk [vmem:[%s936 + $0x38] sm:$0xff] %vm1304, %v5830
        %p5839 = scmp.lt.s32.totalorder %s71, 1
        %s5840 = scalar_select %p5839, %s71, 1
        %s5841 = smul.addr %s5840, 8
        %s5842 = smul.addr %s5841, 8
        %s5843 = scalar_lea.vmem %s59, %s5842
        // Predicated region
        $region141: #{tpu_custom_call.1} parent=135 // pred_check
          %p5844 = pneg %p708
        $region142: #{tpu_custom_call.1} parent=135 // pred_check_branch
          %5846 = sbr.rel (%p5844) target = $region144
        $region143: #{tpu_custom_call.1} parent=135 // pred_region
          _
        $region144: #{tpu_custom_call.1} parent=135 // pred_fallthru
          _
      $region136: #{tpu_custom_call.1} parent=5 // pred_fallthru
        _
      %p5847 = scmp.le.s32.totalorder 2, %s66
      // Predicated region
      $region145: #{tpu_custom_call.1} parent=5 // pred_check
        %p5848 = pneg %p5847
      $region146: #{tpu_custom_call.1} parent=5 // pred_check_branch
        %5850 = sbr.rel (%p5848) target = $region148
      $region147: #{tpu_custom_call.1} parent=5 // pred_region
        %s5851 = ssub.s32 %s66, 2
        // Predicated region
        $region149: #{tpu_custom_call.1} parent=147 // pred_check
          %p5852 = pneg %p714
        $region150: #{tpu_custom_call.1} parent=147 // pred_check_branch
          %5854 = sbr.rel (%p5852) target = $region152
        $region151: #{tpu_custom_call.1} parent=147 // pred_region
          %p5855 = scmp.lt.s32.totalorder %s72, 1
          %s5856 = scalar_select %p5855, %s72, 1
          %s5857 = smul.addr %s5856, 8
          %s5858 = smul.addr %s5857, 8
          %s5859 = scalar_lea.vmem %s59, %s5858
        $region152: #{tpu_custom_call.1} parent=147 // pred_fallthru
          _
      $region148: #{tpu_custom_call.1} parent=5 // pred_fallthru
        _
    $region6: #{tpu_custom_call.1} parent=1 // loop_footer
      %s70 = sadd.s32 1, %s66
    $region7: #{tpu_custom_call.1} parent=1 // loop_footer_branch
      %65 = sbr.rel target = $region3
    $region8: #{tpu_custom_call.1} parent=1 // loop_exit
      _
    %5860 = vsyncpa [#allocation3], 1
    %s5861 = scalar_lea.sflag [#allocation3], 1
    %5862 = vsyncpa %s5861, 1

</llo_original>
